<compile_context>
chip_gen: v7x
topology: tpu7x:2x2x1
jax: 0.10.0
libtpu: 0.0.40
codegen_flags: <defaults>
</compile_context>

<pallas_src>
import jax
import jax.numpy as jnp
import numpy as np
from jax.experimental import pallas as pl
from jax.experimental.pallas import tpu as pltpu


def _make_kernel(B, S, D, chunk_i, n_chunks, n_slots, norm_fact):
    BS = B * S

    def kernel(img_ref, aud_ref, wimg_ref, bimg_ref, waud_ref, baud_ref,
               w12_ref, b12_ref, w34_ref, b34_ref, wb_hbm, tc_ref, out_ref,
               wb_buf, dma_sem):
        # ---- kick off the bilinear-weight ring buffer immediately ------------
        # Entry fill leaves one slot free; the steady-state prefetch below only
        # ever targets a slot that finished being consumed one full iteration
        # earlier, so a DMA never overlaps a buffer that is still being read.
        n_prefill = min(n_slots - 1, n_chunks)
        for c in range(n_prefill):
            pltpu.make_async_copy(wb_hbm.at[c], wb_buf.at[c], dma_sem.at[c]).start()

        x = img_ref[...].reshape(BS, D)          # fold B into the matmul M dim
        a = aud_ref[...].reshape(BS, D)

        # Fused QK projections: one (BS,D)@(D,2D) matmul per modality.
        y_img = (jnp.dot(x, wimg_ref[...], preferred_element_type=jnp.float32)
                 + bimg_ref[...])
        y_aud = (jnp.dot(a, waud_ref[...], preferred_element_type=jnp.float32)
                 + baud_ref[...])
        w_q_v, w_k_v = y_img[:, :D], y_img[:, D:]
        w_q_a, w_k_a = y_aud[:, :D], y_aud[:, D:]

        def attn_apply(q, k, v):                 # (softmax(q k^T) * nf) @ v
            q3 = q.reshape(B, S, D)
            k3 = k.reshape(B, S, D)
            v3 = v.reshape(B, S, D)
            s = jnp.einsum('bqd,bkd->bqk', q3, k3,
                           preferred_element_type=jnp.float32)    # (B, S, S)
            s = s - jnp.max(s, axis=-1, keepdims=True)
            e = jnp.exp(s)
            # torch scales AFTER the softmax -> fold nf into the denominator.
            p = e * (norm_fact / jnp.sum(e, axis=-1, keepdims=True))
            o = jnp.einsum('bqk,bkd->bqd', p, v3,
                           preferred_element_type=jnp.float32)
            return o.reshape(BS, D)

        alpha_va = attn_apply(w_q_v, w_k_a, a)
        alpha_v  = attn_apply(w_q_v, w_k_v, x)
        alpha_av = attn_apply(w_q_a, w_k_v, x)
        alpha_a  = attn_apply(w_q_a, w_k_a, a)

        # Fused gate projections: w_1(.) + w_2(.) == [ . | . ] @ [[W1],[W2]].
        g_va = (jnp.dot(jnp.concatenate([alpha_va, alpha_v], axis=1), w12_ref[...],
                        preferred_element_type=jnp.float32) + b12_ref[...])
        g_av = (jnp.dot(jnp.concatenate([alpha_av, alpha_a], axis=1), w34_ref[...],
                        preferred_element_type=jnp.float32) + b34_ref[...])
        c_k_va = jax.nn.sigmoid(g_va * alpha_v)          # f32 per-lane scales
        c_k_av = jax.nn.sigmoid(g_av * alpha_a)
        c_av_b = c_k_av.astype(jnp.bfloat16)             # bf16 MXU operand

        # Bilinear: atten_c[s,o] = sum_{i,j} c_k_va[s,i] * Wb[o,i,j] * c_k_av[s,j]
        # Streamed from HBM (bf16) in i-chunks through the ring buffer.  Per
        # chunk: one MXU matmul  u[s, di*D+o] = sum_j c_av[s,j] * Wb[o, i, j]
        # then chunk_i lane-aligned scale-accumulates (chunk stays vreg-sized).
        acc = jnp.zeros((BS, D), jnp.float32)
        for ci in range(n_chunks):
            slot = ci % n_slots
            nxt = ci + n_slots - 1
            if nxt < n_chunks:                   # prefetch into the slot that was
                pltpu.make_async_copy(           # consumed one iteration ago
                    wb_hbm.at[nxt], wb_buf.at[nxt % n_slots],
                    dma_sem.at[nxt % n_slots]).start()
            pltpu.make_async_copy(wb_hbm.at[ci], wb_buf.at[slot],
                                  dma_sem.at[slot]).wait()
            u = jnp.dot(c_av_b, wb_buf[slot],
                        preferred_element_type=jnp.float32)       # (BS, C*D) f32
            for di in range(chunk_i):
                i = ci * chunk_i + di
                acc = acc + c_k_va[:, i:i + 1] * u[:, di * D:(di + 1) * D]

        j_c = jax.nn.sigmoid(acc)
        t_c = tc_ref[0]
        z = t_c * j_c * x + (1.0 - j_c) * a
        out_ref[...] = z.reshape(B, S, D).astype(out_ref.dtype)

    return kernel


def prepare_params(params, chunk_i=16, n_slots=4):
    """One-time parameter prep (hoisted out of the per-call path)."""
    D = params["lin_w"].shape[-1]
    assert D % 128 == 0, "feature dim must be a multiple of 128 (lane tiling)"
    assert D % chunk_i == 0
    n_chunks = D // chunk_i

    lw = jnp.asarray(params["lin_w"], jnp.float32)      # (8, D, D), stored (in, out)
    lb = jnp.asarray(params["lin_b"], jnp.float32)      # (8, D)
    # Index convention: 0=q_v, 1=q_a, 2=k_a, 3=k_v, 4=w_1, 5=w_2, 6=w_3, 7=w_4
    w_img = jnp.concatenate([lw[0], lw[3]], axis=1)     # (D, 2D): [q_v | k_v]
    b_img = jnp.concatenate([lb[0], lb[3]])[None, :]
    w_aud = jnp.concatenate([lw[1], lw[2]], axis=1)     # (D, 2D): [q_a | k_a]
    b_aud = jnp.concatenate([lb[1], lb[2]])[None, :]
    w_12 = jnp.concatenate([lw[4], lw[5]], axis=0)      # (2D, D): stacked K
    b_12 = (lb[4] + lb[5])[None, :]
    w_34 = jnp.concatenate([lw[6], lw[7]], axis=0)      # (2D, D)
    b_34 = (lb[6] + lb[7])[None, :]

    # Wb[o, i, j] -> wb_chunks[ci, j, di*D + o] with i = ci*chunk_i + di (bf16).
    t = jnp.transpose(jnp.asarray(params["wb"], jnp.float32), (2, 1, 0))  # (j,i,o)
    wb_chunks = (t.reshape(D, n_chunks, chunk_i, D)
                  .transpose(1, 0, 2, 3)
                  .reshape(n_chunks, D, chunk_i * D)).astype(jnp.bfloat16)

    return dict(
        w_img=w_img, b_img=b_img, w_aud=w_aud, b_aud=b_aud,
        w_12=w_12, b_12=b_12, w_34=w_34, b_34=b_34,
        wb_chunks=wb_chunks,                              # (n_ch, D, chunk_i*D) bf16
        t_c=jnp.asarray(params["t_c"], jnp.float32).reshape(1),
        n_slots=int(n_slots),
    )


def multi_modal_fusion_attention(img, audio, prepared):
    B, S, D = img.shape
    norm_fact = 1.0 / float(np.sqrt(D))
    wb_chunks = prepared["wb_chunks"]
    n_chunks, _, cxd = wb_chunks.shape
    chunk_i = cxd // D
    n_slots = min(int(prepared["n_slots"]), max(n_chunks, 2))

    kernel = _make_kernel(B, S, D, chunk_i, n_chunks, n_slots, norm_fact)
    vmem = pltpu.MemorySpace.VMEM
    return pl.pallas_call(
        kernel,
        out_shape=jax.ShapeDtypeStruct((B, S, D), jnp.float32),
        in_specs=[
            pl.BlockSpec(memory_space=vmem),                     # img
            pl.BlockSpec(memory_space=vmem),                     # audio
            pl.BlockSpec(memory_space=vmem),                     # W [q_v|k_v]
            pl.BlockSpec(memory_space=vmem),                     # b [q_v|k_v]
            pl.BlockSpec(memory_space=vmem),                     # W [q_a|k_a]
            pl.BlockSpec(memory_space=vmem),                     # b [q_a|k_a]
            pl.BlockSpec(memory_space=vmem),                     # W [w_1;w_2]
            pl.BlockSpec(memory_space=vmem),                     # b w_1+w_2
            pl.BlockSpec(memory_space=vmem),                     # W [w_3;w_4]
            pl.BlockSpec(memory_space=vmem),                     # b w_3+w_4
            pl.BlockSpec(memory_space=pl.ANY),                   # bilinear W (HBM)
            pl.BlockSpec(memory_space=pltpu.MemorySpace.SMEM),   # t_c scalar
        ],
        out_specs=pl.BlockSpec(memory_space=vmem),
        scratch_shapes=[
            pltpu.VMEM((n_slots, D, chunk_i * D), jnp.bfloat16),  # weight ring buf
            pltpu.SemaphoreType.DMA((n_slots,)),
        ],
        compiler_params=pltpu.CompilerParams(
            vmem_limit_bytes=32 * 1024 * 1024,
        ),
    )(img, audio,
      prepared["w_img"], prepared["b_img"], prepared["w_aud"], prepared["b_aud"],
      prepared["w_12"], prepared["b_12"], prepared["w_34"], prepared["b_34"],
      wb_chunks, prepared["t_c"])


def reference(img, audio, params):
    """Pure-JAX mirror of the PyTorch forward for correctness checking."""
    lin_w, lin_b, wb, t_c = (params["lin_w"], params["lin_b"],
                             params["wb"], params["t_c"])
    D = img.shape[-1]
    norm_fact = 1.0 / float(np.sqrt(D))

    def lin(v, i):
        return v @ lin_w[i] + lin_b[i]

    def attn(q, k):
        return jax.nn.softmax(jnp.einsum('bqd,bkd->bqk', q, k), axis=-1) * norm_fact

    w_q_v = lin(img, 0); w_q_a = lin(audio, 1)
    w_k_a = lin(audio, 2); w_k_v = lin(img, 3)
    atten_va = attn(w_q_v, w_k_a); atten_vv = attn(w_q_v, w_k_v)
    atten_av = attn(w_q_a, w_k_v); atten_aa = attn(w_q_a, w_k_a)
    alpha_va = atten_va @ audio; alpha_v = atten_vv @ img
    alpha_av = atten_av @ img;   alpha_a = atten_aa @ audio
    c_k_va = jax.nn.sigmoid((lin(alpha_va, 4) + lin(alpha_v, 5)) * alpha_v)
    c_k_av = jax.nn.sigmoid((lin(alpha_av, 6) + lin(alpha_a, 7)) * alpha_a)
    atten_c = jnp.einsum('bsi,oij,bsj->bso', c_k_va, wb, c_k_av)
    j_c = jax.nn.sigmoid(atten_c)
    return t_c * j_c * img + (1.0 - j_c) * audio


if __name__ == "__main__":
    B, S, D = 2, 8, 128   # batch, sequence, feature (= input_dim = dim_k)
    key = jax.random.PRNGKey(0)
    k_img, k_aud, kw, kb, kwb = jax.random.split(key, 5)

    img = jax.random.normal(k_img, (B, S, D), jnp.float32)
    audio = jax.random.normal(k_aud, (B, S, D), jnp.float32)

    params = dict(
        # 8 Linear layers: [q_v, q_a, k_a, k_v, w_1, w_2, w_3, w_4], stored (in, out)
        lin_w=jax.random.normal(kw, (8, D, D), jnp.float32) * (0.5 / np.sqrt(D)),
        lin_b=jax.random.normal(kb, (8, D), jnp.float32) * 0.01,
        # Bilinear weight Wb[o, i, j] (bias=False in the module)
        wb=jax.random.normal(kwb, (D, D, D), jnp.float32) * (1.0 / D),
        # t_c = nn.Parameter(torch.ones([]))
        t_c=jnp.float32(1.0),
    )

    prepared = prepare_params(params)   # one-time fuse/flatten of the weights

    out = jax.block_until_ready(multi_modal_fusion_attention(img, audio, prepared))
    ref = jax.block_until_ready(reference(img, audio, params))
    np.testing.assert_allclose(np.asarray(out), np.asarray(ref), rtol=2e-2, atol=2e-2)
    print("KERNEL_OK")
</pallas_src>

<mosaic_0001>
module attributes {stable_mosaic.version = 11 : i64} {
  func.func @kernel(%arg0: memref<2x8x128xf32, #tpu.memory_space<vmem>>, %arg1: memref<2x8x128xf32, #tpu.memory_space<vmem>>, %arg2: memref<128x256xf32, #tpu.memory_space<vmem>>, %arg3: memref<1x256xf32, #tpu.memory_space<vmem>>, %arg4: memref<128x256xf32, #tpu.memory_space<vmem>>, %arg5: memref<1x256xf32, #tpu.memory_space<vmem>>, %arg6: memref<256x128xf32, #tpu.memory_space<vmem>>, %arg7: memref<1x128xf32, #tpu.memory_space<vmem>>, %arg8: memref<256x128xf32, #tpu.memory_space<vmem>>, %arg9: memref<1x128xf32, #tpu.memory_space<vmem>>, %arg10: memref<8x128x2048xbf16, #tpu.memory_space<any>>, %arg11: memref<1xf32, #tpu.memory_space<smem>>, %arg12: memref<2x8x128xf32, #tpu.memory_space<vmem>>, %arg13: memref<4x128x2048xbf16, #tpu.memory_space<vmem>>, %arg14: memref<4x!tpu.dma_semaphore, #tpu.memory_space<semaphore_mem>>) attributes {dimension_semantics = [], scalar_prefetch = 0 : i64, scratch_operands = 2 : i64, tpu.core_type = #tpu.core_type<tc>} {
    %c0_i32 = arith.constant 0 : i32
    %c0_i32_0 = arith.constant 0 : i32
    %c0_i32_1 = arith.constant 0 : i32
    %c0_i32_2 = arith.constant 0 : i32
    %c0_i32_3 = arith.constant 0 : i32
    %0 = tpu.memref_slice %arg10[%c0_i32, %c0_i32_2, %c0_i32_3] : memref<8x128x2048xbf16, #tpu.memory_space<any>> -> memref<1x128x2048xbf16, #tpu.memory_space<any>>
    %1 = tpu.memref_squeeze %0 : memref<1x128x2048xbf16, #tpu.memory_space<any>> -> memref<128x2048xbf16, #tpu.memory_space<any>>
    %c0_i32_4 = arith.constant 0 : i32
    %c0_i32_5 = arith.constant 0 : i32
    %2 = tpu.memref_slice %arg13[%c0_i32_0, %c0_i32_4, %c0_i32_5] : memref<4x128x2048xbf16, #tpu.memory_space<vmem>> -> memref<1x128x2048xbf16, #tpu.memory_space<vmem>>
    %3 = tpu.memref_squeeze %2 : memref<1x128x2048xbf16, #tpu.memory_space<vmem>> -> memref<128x2048xbf16, #tpu.memory_space<vmem>>
    %4 = tpu.memref_slice %arg14[%c0_i32_1] : memref<4x!tpu.dma_semaphore, #tpu.memory_space<semaphore_mem>> -> memref<1x!tpu.dma_semaphore, #tpu.memory_space<semaphore_mem>>
    %5 = tpu.memref_squeeze %4 : memref<1x!tpu.dma_semaphore, #tpu.memory_space<semaphore_mem>> -> memref<!tpu.dma_semaphore, #tpu.memory_space<semaphore_mem>>
    tpu.enqueue_dma source(%1 : memref<128x2048xbf16, #tpu.memory_space<any>>) target(%3 : memref<128x2048xbf16, #tpu.memory_space<vmem>>) target_semaphore(%5 : memref<!tpu.dma_semaphore, #tpu.memory_space<semaphore_mem>>)
    %c1_i32 = arith.constant 1 : i32
    %c1_i32_6 = arith.constant 1 : i32
    %c1_i32_7 = arith.constant 1 : i32
    %c0_i32_8 = arith.constant 0 : i32
    %c0_i32_9 = arith.constant 0 : i32
    %6 = tpu.memref_slice %arg10[%c1_i32, %c0_i32_8, %c0_i32_9] : memref<8x128x2048xbf16, #tpu.memory_space<any>> -> memref<1x128x2048xbf16, #tpu.memory_space<any>>
    %7 = tpu.memref_squeeze %6 : memref<1x128x2048xbf16, #tpu.memory_space<any>> -> memref<128x2048xbf16, #tpu.memory_space<any>>
    %c0_i32_10 = arith.constant 0 : i32
    %c0_i32_11 = arith.constant 0 : i32
    %8 = tpu.memref_slice %arg13[%c1_i32_6, %c0_i32_10, %c0_i32_11] : memref<4x128x2048xbf16, #tpu.memory_space<vmem>> -> memref<1x128x2048xbf16, #tpu.memory_space<vmem>>
    %9 = tpu.memref_squeeze %8 : memref<1x128x2048xbf16, #tpu.memory_space<vmem>> -> memref<128x2048xbf16, #tpu.memory_space<vmem>>
    %10 = tpu.memref_slice %arg14[%c1_i32_7] : memref<4x!tpu.dma_semaphore, #tpu.memory_space<semaphore_mem>> -> memref<1x!tpu.dma_semaphore, #tpu.memory_space<semaphore_mem>>
    %11 = tpu.memref_squeeze %10 : memref<1x!tpu.dma_semaphore, #tpu.memory_space<semaphore_mem>> -> memref<!tpu.dma_semaphore, #tpu.memory_space<semaphore_mem>>
    tpu.enqueue_dma source(%7 : memref<128x2048xbf16, #tpu.memory_space<any>>) target(%9 : memref<128x2048xbf16, #tpu.memory_space<vmem>>) target_semaphore(%11 : memref<!tpu.dma_semaphore, #tpu.memory_space<semaphore_mem>>)
    %c2_i32 = arith.constant 2 : i32
    %c2_i32_12 = arith.constant 2 : i32
    %c2_i32_13 = arith.constant 2 : i32
    %c0_i32_14 = arith.constant 0 : i32
    %c0_i32_15 = arith.constant 0 : i32
    %12 = tpu.memref_slice %arg10[%c2_i32, %c0_i32_14, %c0_i32_15] : memref<8x128x2048xbf16, #tpu.memory_space<any>> -> memref<1x128x2048xbf16, #tpu.memory_space<any>>
    %13 = tpu.memref_squeeze %12 : memref<1x128x2048xbf16, #tpu.memory_space<any>> -> memref<128x2048xbf16, #tpu.memory_space<any>>
    %c0_i32_16 = arith.constant 0 : i32
    %c0_i32_17 = arith.constant 0 : i32
    %14 = tpu.memref_slice %arg13[%c2_i32_12, %c0_i32_16, %c0_i32_17] : memref<4x128x2048xbf16, #tpu.memory_space<vmem>> -> memref<1x128x2048xbf16, #tpu.memory_space<vmem>>
    %15 = tpu.memref_squeeze %14 : memref<1x128x2048xbf16, #tpu.memory_space<vmem>> -> memref<128x2048xbf16, #tpu.memory_space<vmem>>
    %16 = tpu.memref_slice %arg14[%c2_i32_13] : memref<4x!tpu.dma_semaphore, #tpu.memory_space<semaphore_mem>> -> memref<1x!tpu.dma_semaphore, #tpu.memory_space<semaphore_mem>>
    %17 = tpu.memref_squeeze %16 : memref<1x!tpu.dma_semaphore, #tpu.memory_space<semaphore_mem>> -> memref<!tpu.dma_semaphore, #tpu.memory_space<semaphore_mem>>
    tpu.enqueue_dma source(%13 : memref<128x2048xbf16, #tpu.memory_space<any>>) target(%15 : memref<128x2048xbf16, #tpu.memory_space<vmem>>) target_semaphore(%17 : memref<!tpu.dma_semaphore, #tpu.memory_space<semaphore_mem>>)
    %c0 = arith.constant 0 : index
    %c0_18 = arith.constant 0 : index
    %c0_19 = arith.constant 0 : index
    %18 = vector.load %arg0[%c0, %c0_18, %c0_19] : memref<2x8x128xf32, #tpu.memory_space<vmem>>, vector<2x8x128xf32>
    %19 = vector.shape_cast %18 : vector<2x8x128xf32> to vector<16x128xf32>
    %c0_20 = arith.constant 0 : index
    %c0_21 = arith.constant 0 : index
    %c0_22 = arith.constant 0 : index
    %20 = vector.load %arg1[%c0_20, %c0_21, %c0_22] : memref<2x8x128xf32, #tpu.memory_space<vmem>>, vector<2x8x128xf32>
    %21 = vector.shape_cast %20 : vector<2x8x128xf32> to vector<16x128xf32>
    %c0_23 = arith.constant 0 : index
    %c0_24 = arith.constant 0 : index
    %22 = vector.load %arg2[%c0_23, %c0_24] : memref<128x256xf32, #tpu.memory_space<vmem>>, vector<128x256xf32>
    %cst = arith.constant dense<0.000000e+00> : vector<16x256xf32>
    %23 = tpu.matmul %19, %22, %cst {dimension_numbers = #tpu.dot_dimension_numbers<[1], [0], [0], [1], [0, 0, 1, 1], [], []>} : vector<16x128xf32>, vector<128x256xf32>, vector<16x256xf32> -> vector<16x256xf32>
    %c0_25 = arith.constant 0 : index
    %c0_26 = arith.constant 0 : index
    %24 = vector.load %arg3[%c0_25, %c0_26] : memref<1x256xf32, #tpu.memory_space<vmem>>, vector<1x256xf32>
    %25 = vector.broadcast %24 : vector<1x256xf32> to vector<16x256xf32>
    %26 = arith.addf %23, %25 : vector<16x256xf32>
    %c0_27 = arith.constant 0 : index
    %c0_28 = arith.constant 0 : index
    %27 = vector.load %arg4[%c0_27, %c0_28] : memref<128x256xf32, #tpu.memory_space<vmem>>, vector<128x256xf32>
    %cst_29 = arith.constant dense<0.000000e+00> : vector<16x256xf32>
    %28 = tpu.matmul %21, %27, %cst_29 {dimension_numbers = #tpu.dot_dimension_numbers<[1], [0], [0], [1], [0, 0, 1, 1], [], []>} : vector<16x128xf32>, vector<128x256xf32>, vector<16x256xf32> -> vector<16x256xf32>
    %c0_30 = arith.constant 0 : index
    %c0_31 = arith.constant 0 : index
    %29 = vector.load %arg5[%c0_30, %c0_31] : memref<1x256xf32, #tpu.memory_space<vmem>>, vector<1x256xf32>
    %30 = vector.broadcast %29 : vector<1x256xf32> to vector<16x256xf32>
    %31 = arith.addf %28, %30 : vector<16x256xf32>
    %32 = vector.extract_strided_slice %26 {offsets = [0, 0], sizes = [16, 128], strides = [1, 1]} : vector<16x256xf32> to vector<16x128xf32>
    %33 = vector.extract_strided_slice %26 {offsets = [0, 128], sizes = [16, 128], strides = [1, 1]} : vector<16x256xf32> to vector<16x128xf32>
    %34 = vector.extract_strided_slice %31 {offsets = [0, 0], sizes = [16, 128], strides = [1, 1]} : vector<16x256xf32> to vector<16x128xf32>
    %35 = vector.extract_strided_slice %31 {offsets = [0, 128], sizes = [16, 128], strides = [1, 1]} : vector<16x256xf32> to vector<16x128xf32>
    %36 = vector.shape_cast %32 : vector<16x128xf32> to vector<2x8x128xf32>
    %37 = vector.shape_cast %35 : vector<16x128xf32> to vector<2x8x128xf32>
    %38 = vector.shape_cast %21 : vector<16x128xf32> to vector<2x8x128xf32>
    "tpu.trace_start"() <{level = 10 : i32, message = "bqd,bkd->bqk"}> : () -> ()
    %cst_32 = arith.constant dense<0.000000e+00> : vector<2x8x8xf32>
    %39 = tpu.matmul %36, %37, %cst_32 {dimension_numbers = #tpu.dot_dimension_numbers<[2], [2], [1], [1], [0, 0, 0, 1, 1, 1], [0], [0]>} : vector<2x8x128xf32>, vector<2x8x128xf32>, vector<2x8x8xf32> -> vector<2x8x8xf32>
    "tpu.trace_stop"() : () -> ()
    %cst_33 = arith.constant dense<0xFF800000> : vector<2x8xf32>
    %40 = vector.multi_reduction <maximumf>, %39, %cst_33 [2] : vector<2x8x8xf32> to vector<2x8xf32>
    %41 = vector.shape_cast %40 : vector<2x8xf32> to vector<2x8x1xf32>
    %42 = vector.broadcast %41 : vector<2x8x1xf32> to vector<2x8x8xf32>
    %43 = arith.subf %39, %42 : vector<2x8x8xf32>
    %44 = math.exp %43 : vector<2x8x8xf32>
    %cst_34 = arith.constant dense<0.000000e+00> : vector<2x8xf32>
    %45 = vector.multi_reduction <add>, %44, %cst_34 [2] : vector<2x8x8xf32> to vector<2x8xf32>
    %46 = vector.shape_cast %45 : vector<2x8xf32> to vector<2x8x1xf32>
    %cst_35 = arith.constant 0.0883883461 : f32
    %47 = vector.broadcast %cst_35 : f32 to vector<2x8x1xf32>
    %48 = arith.divf %47, %46 : vector<2x8x1xf32>
    %49 = vector.broadcast %48 : vector<2x8x1xf32> to vector<2x8x8xf32>
    %50 = arith.mulf %44, %49 : vector<2x8x8xf32>
    "tpu.trace_start"() <{level = 10 : i32, message = "bqk,bkd->bqd"}> : () -> ()
    %cst_36 = arith.constant dense<0.000000e+00> : vector<2x8x128xf32>
    %51 = tpu.matmul %50, %38, %cst_36 {dimension_numbers = #tpu.dot_dimension_numbers<[2], [1], [1], [2], [0, 0, 0, 1, 1, 2], [0], [0]>} : vector<2x8x8xf32>, vector<2x8x128xf32>, vector<2x8x128xf32> -> vector<2x8x128xf32>
    "tpu.trace_stop"() : () -> ()
    %52 = vector.shape_cast %51 : vector<2x8x128xf32> to vector<16x128xf32>
    %53 = vector.shape_cast %32 : vector<16x128xf32> to vector<2x8x128xf32>
    %54 = vector.shape_cast %33 : vector<16x128xf32> to vector<2x8x128xf32>
    %55 = vector.shape_cast %19 : vector<16x128xf32> to vector<2x8x128xf32>
    "tpu.trace_start"() <{level = 10 : i32, message = "bqd,bkd->bqk"}> : () -> ()
    %cst_37 = arith.constant dense<0.000000e+00> : vector<2x8x8xf32>
    %56 = tpu.matmul %53, %54, %cst_37 {dimension_numbers = #tpu.dot_dimension_numbers<[2], [2], [1], [1], [0, 0, 0, 1, 1, 1], [0], [0]>} : vector<2x8x128xf32>, vector<2x8x128xf32>, vector<2x8x8xf32> -> vector<2x8x8xf32>
    "tpu.trace_stop"() : () -> ()
    %cst_38 = arith.constant dense<0xFF800000> : vector<2x8xf32>
    %57 = vector.multi_reduction <maximumf>, %56, %cst_38 [2] : vector<2x8x8xf32> to vector<2x8xf32>
    %58 = vector.shape_cast %57 : vector<2x8xf32> to vector<2x8x1xf32>
    %59 = vector.broadcast %58 : vector<2x8x1xf32> to vector<2x8x8xf32>
    %60 = arith.subf %56, %59 : vector<2x8x8xf32>
    %61 = math.exp %60 : vector<2x8x8xf32>
    %cst_39 = arith.constant dense<0.000000e+00> : vector<2x8xf32>
    %62 = vector.multi_reduction <add>, %61, %cst_39 [2] : vector<2x8x8xf32> to vector<2x8xf32>
    %63 = vector.shape_cast %62 : vector<2x8xf32> to vector<2x8x1xf32>
    %cst_40 = arith.constant 0.0883883461 : f32
    %64 = vector.broadcast %cst_40 : f32 to vector<2x8x1xf32>
    %65 = arith.divf %64, %63 : vector<2x8x1xf32>
    %66 = vector.broadcast %65 : vector<2x8x1xf32> to vector<2x8x8xf32>
    %67 = arith.mulf %61, %66 : vector<2x8x8xf32>
    "tpu.trace_start"() <{level = 10 : i32, message = "bqk,bkd->bqd"}> : () -> ()
    %cst_41 = arith.constant dense<0.000000e+00> : vector<2x8x128xf32>
    %68 = tpu.matmul %67, %55, %cst_41 {dimension_numbers = #tpu.dot_dimension_numbers<[2], [1], [1], [2], [0, 0, 0, 1, 1, 2], [0], [0]>} : vector<2x8x8xf32>, vector<2x8x128xf32>, vector<2x8x128xf32> -> vector<2x8x128xf32>
    "tpu.trace_stop"() : () -> ()
    %69 = vector.shape_cast %68 : vector<2x8x128xf32> to vector<16x128xf32>
    %70 = vector.shape_cast %34 : vector<16x128xf32> to vector<2x8x128xf32>
    %71 = vector.shape_cast %33 : vector<16x128xf32> to vector<2x8x128xf32>
    %72 = vector.shape_cast %19 : vector<16x128xf32> to vector<2x8x128xf32>
    "tpu.trace_start"() <{level = 10 : i32, message = "bqd,bkd->bqk"}> : () -> ()
    %cst_42 = arith.constant dense<0.000000e+00> : vector<2x8x8xf32>
    %73 = tpu.matmul %70, %71, %cst_42 {dimension_numbers = #tpu.dot_dimension_numbers<[2], [2], [1], [1], [0, 0, 0, 1, 1, 1], [0], [0]>} : vector<2x8x128xf32>, vector<2x8x128xf32>, vector<2x8x8xf32> -> vector<2x8x8xf32>
    "tpu.trace_stop"() : () -> ()
    %cst_43 = arith.constant dense<0xFF800000> : vector<2x8xf32>
    %74 = vector.multi_reduction <maximumf>, %73, %cst_43 [2] : vector<2x8x8xf32> to vector<2x8xf32>
    %75 = vector.shape_cast %74 : vector<2x8xf32> to vector<2x8x1xf32>
    %76 = vector.broadcast %75 : vector<2x8x1xf32> to vector<2x8x8xf32>
    %77 = arith.subf %73, %76 : vector<2x8x8xf32>
    %78 = math.exp %77 : vector<2x8x8xf32>
    %cst_44 = arith.constant dense<0.000000e+00> : vector<2x8xf32>
    %79 = vector.multi_reduction <add>, %78, %cst_44 [2] : vector<2x8x8xf32> to vector<2x8xf32>
    %80 = vector.shape_cast %79 : vector<2x8xf32> to vector<2x8x1xf32>
    %cst_45 = arith.constant 0.0883883461 : f32
    %81 = vector.broadcast %cst_45 : f32 to vector<2x8x1xf32>
    %82 = arith.divf %81, %80 : vector<2x8x1xf32>
    %83 = vector.broadcast %82 : vector<2x8x1xf32> to vector<2x8x8xf32>
    %84 = arith.mulf %78, %83 : vector<2x8x8xf32>
    "tpu.trace_start"() <{level = 10 : i32, message = "bqk,bkd->bqd"}> : () -> ()
    %cst_46 = arith.constant dense<0.000000e+00> : vector<2x8x128xf32>
    %85 = tpu.matmul %84, %72, %cst_46 {dimension_numbers = #tpu.dot_dimension_numbers<[2], [1], [1], [2], [0, 0, 0, 1, 1, 2], [0], [0]>} : vector<2x8x8xf32>, vector<2x8x128xf32>, vector<2x8x128xf32> -> vector<2x8x128xf32>
    "tpu.trace_stop"() : () -> ()
    %86 = vector.shape_cast %85 : vector<2x8x128xf32> to vector<16x128xf32>
    %87 = vector.shape_cast %34 : vector<16x128xf32> to vector<2x8x128xf32>
    %88 = vector.shape_cast %35 : vector<16x128xf32> to vector<2x8x128xf32>
    %89 = vector.shape_cast %21 : vector<16x128xf32> to vector<2x8x128xf32>
    "tpu.trace_start"() <{level = 10 : i32, message = "bqd,bkd->bqk"}> : () -> ()
    %cst_47 = arith.constant dense<0.000000e+00> : vector<2x8x8xf32>
    %90 = tpu.matmul %87, %88, %cst_47 {dimension_numbers = #tpu.dot_dimension_numbers<[2], [2], [1], [1], [0, 0, 0, 1, 1, 1], [0], [0]>} : vector<2x8x128xf32>, vector<2x8x128xf32>, vector<2x8x8xf32> -> vector<2x8x8xf32>
    "tpu.trace_stop"() : () -> ()
    %cst_48 = arith.constant dense<0xFF800000> : vector<2x8xf32>
    %91 = vector.multi_reduction <maximumf>, %90, %cst_48 [2] : vector<2x8x8xf32> to vector<2x8xf32>
    %92 = vector.shape_cast %91 : vector<2x8xf32> to vector<2x8x1xf32>
    %93 = vector.broadcast %92 : vector<2x8x1xf32> to vector<2x8x8xf32>
    %94 = arith.subf %90, %93 : vector<2x8x8xf32>
    %95 = math.exp %94 : vector<2x8x8xf32>
    %cst_49 = arith.constant dense<0.000000e+00> : vector<2x8xf32>
    %96 = vector.multi_reduction <add>, %95, %cst_49 [2] : vector<2x8x8xf32> to vector<2x8xf32>
    %97 = vector.shape_cast %96 : vector<2x8xf32> to vector<2x8x1xf32>
    %cst_50 = arith.constant 0.0883883461 : f32
    %98 = vector.broadcast %cst_50 : f32 to vector<2x8x1xf32>
    %99 = arith.divf %98, %97 : vector<2x8x1xf32>
    %100 = vector.broadcast %99 : vector<2x8x1xf32> to vector<2x8x8xf32>
    %101 = arith.mulf %95, %100 : vector<2x8x8xf32>
    "tpu.trace_start"() <{level = 10 : i32, message = "bqk,bkd->bqd"}> : () -> ()
    %cst_51 = arith.constant dense<0.000000e+00> : vector<2x8x128xf32>
    %102 = tpu.matmul %101, %89, %cst_51 {dimension_numbers = #tpu.dot_dimension_numbers<[2], [1], [1], [2], [0, 0, 0, 1, 1, 2], [0], [0]>} : vector<2x8x8xf32>, vector<2x8x128xf32>, vector<2x8x128xf32> -> vector<2x8x128xf32>
    "tpu.trace_stop"() : () -> ()
    %103 = vector.shape_cast %102 : vector<2x8x128xf32> to vector<16x128xf32>
    %104 = tpu.concatenate %52, %69 in 1 : vector<16x128xf32>, vector<16x128xf32> -> vector<16x256xf32>
    %c0_52 = arith.constant 0 : index
    %c0_53 = arith.constant 0 : index
    %105 = vector.load %arg6[%c0_52, %c0_53] : memref<256x128xf32, #tpu.memory_space<vmem>>, vector<256x128xf32>
    %cst_54 = arith.constant dense<0.000000e+00> : vector<16x128xf32>
    %106 = tpu.matmul %104, %105, %cst_54 {dimension_numbers = #tpu.dot_dimension_numbers<[1], [0], [0], [1], [0, 0, 1, 1], [], []>} : vector<16x256xf32>, vector<256x128xf32>, vector<16x128xf32> -> vector<16x128xf32>
    %c0_55 = arith.constant 0 : index
    %c0_56 = arith.constant 0 : index
    %107 = vector.load %arg7[%c0_55, %c0_56] : memref<1x128xf32, #tpu.memory_space<vmem>>, vector<1x128xf32>
    %108 = vector.broadcast %107 : vector<1x128xf32> to vector<16x128xf32>
    %109 = arith.addf %106, %108 : vector<16x128xf32>
    %110 = tpu.concatenate %86, %103 in 1 : vector<16x128xf32>, vector<16x128xf32> -> vector<16x256xf32>
    %c0_57 = arith.constant 0 : index
    %c0_58 = arith.constant 0 : index
    %111 = vector.load %arg8[%c0_57, %c0_58] : memref<256x128xf32, #tpu.memory_space<vmem>>, vector<256x128xf32>
    %cst_59 = arith.constant dense<0.000000e+00> : vector<16x128xf32>
    %112 = tpu.matmul %110, %111, %cst_59 {dimension_numbers = #tpu.dot_dimension_numbers<[1], [0], [0], [1], [0, 0, 1, 1], [], []>} : vector<16x256xf32>, vector<256x128xf32>, vector<16x128xf32> -> vector<16x128xf32>
    %c0_60 = arith.constant 0 : index
    %c0_61 = arith.constant 0 : index
    %113 = vector.load %arg9[%c0_60, %c0_61] : memref<1x128xf32, #tpu.memory_space<vmem>>, vector<1x128xf32>
    %114 = vector.broadcast %113 : vector<1x128xf32> to vector<16x128xf32>
    %115 = arith.addf %112, %114 : vector<16x128xf32>
    %116 = arith.mulf %109, %69 : vector<16x128xf32>
    %117 = arith.negf %116 : vector<16x128xf32>
    %118 = math.exp %117 : vector<16x128xf32>
    %cst_62 = arith.constant 1.000000e+00 : f32
    %119 = vector.broadcast %cst_62 : f32 to vector<16x128xf32>
    %120 = arith.addf %119, %118 : vector<16x128xf32>
    %121 = arith.divf %119, %120 : vector<16x128xf32>
    %122 = arith.mulf %115, %103 : vector<16x128xf32>
    %123 = arith.negf %122 : vector<16x128xf32>
    %124 = math.exp %123 : vector<16x128xf32>
    %cst_63 = arith.constant 1.000000e+00 : f32
    %125 = vector.broadcast %cst_63 : f32 to vector<16x128xf32>
    %126 = arith.addf %125, %124 : vector<16x128xf32>
    %127 = arith.divf %125, %126 : vector<16x128xf32>
    %128 = arith.truncf %127 : vector<16x128xf32> to vector<16x128xbf16>
    %cst_64 = arith.constant 0.000000e+00 : f32
    %129 = vector.broadcast %cst_64 : f32 to vector<16x128xf32>
    %c3_i32 = arith.constant 3 : i32
    %c3_i32_65 = arith.constant 3 : i32
    %c3_i32_66 = arith.constant 3 : i32
    %c0_i32_67 = arith.constant 0 : i32
    %c0_i32_68 = arith.constant 0 : i32
    %130 = tpu.memref_slice %arg10[%c3_i32, %c0_i32_67, %c0_i32_68] : memref<8x128x2048xbf16, #tpu.memory_space<any>> -> memref<1x128x2048xbf16, #tpu.memory_space<any>>
    %131 = tpu.memref_squeeze %130 : memref<1x128x2048xbf16, #tpu.memory_space<any>> -> memref<128x2048xbf16, #tpu.memory_space<any>>
    %c0_i32_69 = arith.constant 0 : i32
    %c0_i32_70 = arith.constant 0 : i32
    %132 = tpu.memref_slice %arg13[%c3_i32_65, %c0_i32_69, %c0_i32_70] : memref<4x128x2048xbf16, #tpu.memory_space<vmem>> -> memref<1x128x2048xbf16, #tpu.memory_space<vmem>>
    %133 = tpu.memref_squeeze %132 : memref<1x128x2048xbf16, #tpu.memory_space<vmem>> -> memref<128x2048xbf16, #tpu.memory_space<vmem>>
    %134 = tpu.memref_slice %arg14[%c3_i32_66] : memref<4x!tpu.dma_semaphore, #tpu.memory_space<semaphore_mem>> -> memref<1x!tpu.dma_semaphore, #tpu.memory_space<semaphore_mem>>
    %135 = tpu.memref_squeeze %134 : memref<1x!tpu.dma_semaphore, #tpu.memory_space<semaphore_mem>> -> memref<!tpu.dma_semaphore, #tpu.memory_space<semaphore_mem>>
    tpu.enqueue_dma source(%131 : memref<128x2048xbf16, #tpu.memory_space<any>>) target(%133 : memref<128x2048xbf16, #tpu.memory_space<vmem>>) target_semaphore(%135 : memref<!tpu.dma_semaphore, #tpu.memory_space<semaphore_mem>>)
    %c0_i32_71 = arith.constant 0 : i32
    %c0_i32_72 = arith.constant 0 : i32
    %c0_i32_73 = arith.constant 0 : i32
    %c0_i32_74 = arith.constant 0 : i32
    %c0_i32_75 = arith.constant 0 : i32
    %136 = tpu.memref_slice %arg10[%c0_i32_71, %c0_i32_74, %c0_i32_75] : memref<8x128x2048xbf16, #tpu.memory_space<any>> -> memref<1x128x2048xbf16, #tpu.memory_space<any>>
    %137 = tpu.memref_squeeze %136 : memref<1x128x2048xbf16, #tpu.memory_space<any>> -> memref<128x2048xbf16, #tpu.memory_space<any>>
    %c0_i32_76 = arith.constant 0 : i32
    %c0_i32_77 = arith.constant 0 : i32
    %138 = tpu.memref_slice %arg13[%c0_i32_72, %c0_i32_76, %c0_i32_77] : memref<4x128x2048xbf16, #tpu.memory_space<vmem>> -> memref<1x128x2048xbf16, #tpu.memory_space<vmem>>
    %139 = tpu.memref_squeeze %138 : memref<1x128x2048xbf16, #tpu.memory_space<vmem>> -> memref<128x2048xbf16, #tpu.memory_space<vmem>>
    %140 = tpu.memref_slice %arg14[%c0_i32_73] : memref<4x!tpu.dma_semaphore, #tpu.memory_space<semaphore_mem>> -> memref<1x!tpu.dma_semaphore, #tpu.memory_space<semaphore_mem>>
    %141 = tpu.memref_squeeze %140 : memref<1x!tpu.dma_semaphore, #tpu.memory_space<semaphore_mem>> -> memref<!tpu.dma_semaphore, #tpu.memory_space<semaphore_mem>>
    tpu.wait_dma2 semaphore(%141 : memref<!tpu.dma_semaphore, #tpu.memory_space<semaphore_mem>>) src(%137 : memref<128x2048xbf16, #tpu.memory_space<any>>) dst(%139 : memref<128x2048xbf16, #tpu.memory_space<vmem>>)
    %c0_78 = arith.constant 0 : index
    %c0_79 = arith.constant 0 : index
    %c0_80 = arith.constant 0 : index
    %142 = vector.load %arg13[%c0_78, %c0_79, %c0_80] : memref<4x128x2048xbf16, #tpu.memory_space<vmem>>, vector<1x128x2048xbf16>
    %143 = vector.shape_cast %142 : vector<1x128x2048xbf16> to vector<128x2048xbf16>
    %cst_81 = arith.constant dense<0.000000e+00> : vector<16x2048xf32>
    %144 = tpu.matmul %128, %143, %cst_81 {dimension_numbers = #tpu.dot_dimension_numbers<[1], [0], [0], [1], [0, 0, 1, 1], [], []>} : vector<16x128xbf16>, vector<128x2048xbf16>, vector<16x2048xf32> -> vector<16x2048xf32>
    %145 = vector.extract_strided_slice %121 {offsets = [0, 0], sizes = [16, 1], strides = [1, 1]} : vector<16x128xf32> to vector<16x1xf32>
    %146 = vector.extract_strided_slice %144 {offsets = [0, 0], sizes = [16, 128], strides = [1, 1]} : vector<16x2048xf32> to vector<16x128xf32>
    %147 = vector.broadcast %145 : vector<16x1xf32> to vector<16x128xf32>
    %148 = arith.mulf %147, %146 : vector<16x128xf32>
    %149 = arith.addf %129, %148 : vector<16x128xf32>
    %150 = vector.extract_strided_slice %121 {offsets = [0, 1], sizes = [16, 1], strides = [1, 1]} : vector<16x128xf32> to vector<16x1xf32>
    %151 = vector.extract_strided_slice %144 {offsets = [0, 128], sizes = [16, 128], strides = [1, 1]} : vector<16x2048xf32> to vector<16x128xf32>
    %152 = vector.broadcast %150 : vector<16x1xf32> to vector<16x128xf32>
    %153 = arith.mulf %152, %151 : vector<16x128xf32>
    %154 = arith.addf %149, %153 : vector<16x128xf32>
    %155 = vector.extract_strided_slice %121 {offsets = [0, 2], sizes = [16, 1], strides = [1, 1]} : vector<16x128xf32> to vector<16x1xf32>
    %156 = vector.extract_strided_slice %144 {offsets = [0, 256], sizes = [16, 128], strides = [1, 1]} : vector<16x2048xf32> to vector<16x128xf32>
    %157 = vector.broadcast %155 : vector<16x1xf32> to vector<16x128xf32>
    %158 = arith.mulf %157, %156 : vector<16x128xf32>
    %159 = arith.addf %154, %158 : vector<16x128xf32>
    %160 = vector.extract_strided_slice %121 {offsets = [0, 3], sizes = [16, 1], strides = [1, 1]} : vector<16x128xf32> to vector<16x1xf32>
    %161 = vector.extract_strided_slice %144 {offsets = [0, 384], sizes = [16, 128], strides = [1, 1]} : vector<16x2048xf32> to vector<16x128xf32>
    %162 = vector.broadcast %160 : vector<16x1xf32> to vector<16x128xf32>
    %163 = arith.mulf %162, %161 : vector<16x128xf32>
    %164 = arith.addf %159, %163 : vector<16x128xf32>
    %165 = vector.extract_strided_slice %121 {offsets = [0, 4], sizes = [16, 1], strides = [1, 1]} : vector<16x128xf32> to vector<16x1xf32>
    %166 = vector.extract_strided_slice %144 {offsets = [0, 512], sizes = [16, 128], strides = [1, 1]} : vector<16x2048xf32> to vector<16x128xf32>
    %167 = vector.broadcast %165 : vector<16x1xf32> to vector<16x128xf32>
    %168 = arith.mulf %167, %166 : vector<16x128xf32>
    %169 = arith.addf %164, %168 : vector<16x128xf32>
    %170 = vector.extract_strided_slice %121 {offsets = [0, 5], sizes = [16, 1], strides = [1, 1]} : vector<16x128xf32> to vector<16x1xf32>
    %171 = vector.extract_strided_slice %144 {offsets = [0, 640], sizes = [16, 128], strides = [1, 1]} : vector<16x2048xf32> to vector<16x128xf32>
    %172 = vector.broadcast %170 : vector<16x1xf32> to vector<16x128xf32>
    %173 = arith.mulf %172, %171 : vector<16x128xf32>
    %174 = arith.addf %169, %173 : vector<16x128xf32>
    %175 = vector.extract_strided_slice %121 {offsets = [0, 6], sizes = [16, 1], strides = [1, 1]} : vector<16x128xf32> to vector<16x1xf32>
    %176 = vector.extract_strided_slice %144 {offsets = [0, 768], sizes = [16, 128], strides = [1, 1]} : vector<16x2048xf32> to vector<16x128xf32>
    %177 = vector.broadcast %175 : vector<16x1xf32> to vector<16x128xf32>
    %178 = arith.mulf %177, %176 : vector<16x128xf32>
    %179 = arith.addf %174, %178 : vector<16x128xf32>
    %180 = vector.extract_strided_slice %121 {offsets = [0, 7], sizes = [16, 1], strides = [1, 1]} : vector<16x128xf32> to vector<16x1xf32>
    %181 = vector.extract_strided_slice %144 {offsets = [0, 896], sizes = [16, 128], strides = [1, 1]} : vector<16x2048xf32> to vector<16x128xf32>
    %182 = vector.broadcast %180 : vector<16x1xf32> to vector<16x128xf32>
    %183 = arith.mulf %182, %181 : vector<16x128xf32>
    %184 = arith.addf %179, %183 : vector<16x128xf32>
    %185 = vector.extract_strided_slice %121 {offsets = [0, 8], sizes = [16, 1], strides = [1, 1]} : vector<16x128xf32> to vector<16x1xf32>
    %186 = vector.extract_strided_slice %144 {offsets = [0, 1024], sizes = [16, 128], strides = [1, 1]} : vector<16x2048xf32> to vector<16x128xf32>
    %187 = vector.broadcast %185 : vector<16x1xf32> to vector<16x128xf32>
    %188 = arith.mulf %187, %186 : vector<16x128xf32>
    %189 = arith.addf %184, %188 : vector<16x128xf32>
    %190 = vector.extract_strided_slice %121 {offsets = [0, 9], sizes = [16, 1], strides = [1, 1]} : vector<16x128xf32> to vector<16x1xf32>
    %191 = vector.extract_strided_slice %144 {offsets = [0, 1152], sizes = [16, 128], strides = [1, 1]} : vector<16x2048xf32> to vector<16x128xf32>
    %192 = vector.broadcast %190 : vector<16x1xf32> to vector<16x128xf32>
    %193 = arith.mulf %192, %191 : vector<16x128xf32>
    %194 = arith.addf %189, %193 : vector<16x128xf32>
    %195 = vector.extract_strided_slice %121 {offsets = [0, 10], sizes = [16, 1], strides = [1, 1]} : vector<16x128xf32> to vector<16x1xf32>
    %196 = vector.extract_strided_slice %144 {offsets = [0, 1280], sizes = [16, 128], strides = [1, 1]} : vector<16x2048xf32> to vector<16x128xf32>
    %197 = vector.broadcast %195 : vector<16x1xf32> to vector<16x128xf32>
    %198 = arith.mulf %197, %196 : vector<16x128xf32>
    %199 = arith.addf %194, %198 : vector<16x128xf32>
    %200 = vector.extract_strided_slice %121 {offsets = [0, 11], sizes = [16, 1], strides = [1, 1]} : vector<16x128xf32> to vector<16x1xf32>
    %201 = vector.extract_strided_slice %144 {offsets = [0, 1408], sizes = [16, 128], strides = [1, 1]} : vector<16x2048xf32> to vector<16x128xf32>
    %202 = vector.broadcast %200 : vector<16x1xf32> to vector<16x128xf32>
    %203 = arith.mulf %202, %201 : vector<16x128xf32>
    %204 = arith.addf %199, %203 : vector<16x128xf32>
    %205 = vector.extract_strided_slice %121 {offsets = [0, 12], sizes = [16, 1], strides = [1, 1]} : vector<16x128xf32> to vector<16x1xf32>
    %206 = vector.extract_strided_slice %144 {offsets = [0, 1536], sizes = [16, 128], strides = [1, 1]} : vector<16x2048xf32> to vector<16x128xf32>
    %207 = vector.broadcast %205 : vector<16x1xf32> to vector<16x128xf32>
    %208 = arith.mulf %207, %206 : vector<16x128xf32>
    %209 = arith.addf %204, %208 : vector<16x128xf32>
    %210 = vector.extract_strided_slice %121 {offsets = [0, 13], sizes = [16, 1], strides = [1, 1]} : vector<16x128xf32> to vector<16x1xf32>
    %211 = vector.extract_strided_slice %144 {offsets = [0, 1664], sizes = [16, 128], strides = [1, 1]} : vector<16x2048xf32> to vector<16x128xf32>
    %212 = vector.broadcast %210 : vector<16x1xf32> to vector<16x128xf32>
    %213 = arith.mulf %212, %211 : vector<16x128xf32>
    %214 = arith.addf %209, %213 : vector<16x128xf32>
    %215 = vector.extract_strided_slice %121 {offsets = [0, 14], sizes = [16, 1], strides = [1, 1]} : vector<16x128xf32> to vector<16x1xf32>
    %216 = vector.extract_strided_slice %144 {offsets = [0, 1792], sizes = [16, 128], strides = [1, 1]} : vector<16x2048xf32> to vector<16x128xf32>
    %217 = vector.broadcast %215 : vector<16x1xf32> to vector<16x128xf32>
    %218 = arith.mulf %217, %216 : vector<16x128xf32>
    %219 = arith.addf %214, %218 : vector<16x128xf32>
    %220 = vector.extract_strided_slice %121 {offsets = [0, 15], sizes = [16, 1], strides = [1, 1]} : vector<16x128xf32> to vector<16x1xf32>
    %221 = vector.extract_strided_slice %144 {offsets = [0, 1920], sizes = [16, 128], strides = [1, 1]} : vector<16x2048xf32> to vector<16x128xf32>
    %222 = vector.broadcast %220 : vector<16x1xf32> to vector<16x128xf32>
    %223 = arith.mulf %222, %221 : vector<16x128xf32>
    %224 = arith.addf %219, %223 : vector<16x128xf32>
    %c4_i32 = arith.constant 4 : i32
    %c0_i32_82 = arith.constant 0 : i32
    %c0_i32_83 = arith.constant 0 : i32
    %c0_i32_84 = arith.constant 0 : i32
    %c0_i32_85 = arith.constant 0 : i32
    %225 = tpu.memref_slice %arg10[%c4_i32, %c0_i32_84, %c0_i32_85] : memref<8x128x2048xbf16, #tpu.memory_space<any>> -> memref<1x128x2048xbf16, #tpu.memory_space<any>>
    %226 = tpu.memref_squeeze %225 : memref<1x128x2048xbf16, #tpu.memory_space<any>> -> memref<128x2048xbf16, #tpu.memory_space<any>>
    %c0_i32_86 = arith.constant 0 : i32
    %c0_i32_87 = arith.constant 0 : i32
    %227 = tpu.memref_slice %arg13[%c0_i32_82, %c0_i32_86, %c0_i32_87] : memref<4x128x2048xbf16, #tpu.memory_space<vmem>> -> memref<1x128x2048xbf16, #tpu.memory_space<vmem>>
    %228 = tpu.memref_squeeze %227 : memref<1x128x2048xbf16, #tpu.memory_space<vmem>> -> memref<128x2048xbf16, #tpu.memory_space<vmem>>
    %229 = tpu.memref_slice %arg14[%c0_i32_83] : memref<4x!tpu.dma_semaphore, #tpu.memory_space<semaphore_mem>> -> memref<1x!tpu.dma_semaphore, #tpu.memory_space<semaphore_mem>>
    %230 = tpu.memref_squeeze %229 : memref<1x!tpu.dma_semaphore, #tpu.memory_space<semaphore_mem>> -> memref<!tpu.dma_semaphore, #tpu.memory_space<semaphore_mem>>
    tpu.enqueue_dma source(%226 : memref<128x2048xbf16, #tpu.memory_space<any>>) target(%228 : memref<128x2048xbf16, #tpu.memory_space<vmem>>) target_semaphore(%230 : memref<!tpu.dma_semaphore, #tpu.memory_space<semaphore_mem>>)
    %c1_i32_88 = arith.constant 1 : i32
    %c1_i32_89 = arith.constant 1 : i32
    %c1_i32_90 = arith.constant 1 : i32
    %c0_i32_91 = arith.constant 0 : i32
    %c0_i32_92 = arith.constant 0 : i32
    %231 = tpu.memref_slice %arg10[%c1_i32_88, %c0_i32_91, %c0_i32_92] : memref<8x128x2048xbf16, #tpu.memory_space<any>> -> memref<1x128x2048xbf16, #tpu.memory_space<any>>
    %232 = tpu.memref_squeeze %231 : memref<1x128x2048xbf16, #tpu.memory_space<any>> -> memref<128x2048xbf16, #tpu.memory_space<any>>
    %c0_i32_93 = arith.constant 0 : i32
    %c0_i32_94 = arith.constant 0 : i32
    %233 = tpu.memref_slice %arg13[%c1_i32_89, %c0_i32_93, %c0_i32_94] : memref<4x128x2048xbf16, #tpu.memory_space<vmem>> -> memref<1x128x2048xbf16, #tpu.memory_space<vmem>>
    %234 = tpu.memref_squeeze %233 : memref<1x128x2048xbf16, #tpu.memory_space<vmem>> -> memref<128x2048xbf16, #tpu.memory_space<vmem>>
    %235 = tpu.memref_slice %arg14[%c1_i32_90] : memref<4x!tpu.dma_semaphore, #tpu.memory_space<semaphore_mem>> -> memref<1x!tpu.dma_semaphore, #tpu.memory_space<semaphore_mem>>
    %236 = tpu.memref_squeeze %235 : memref<1x!tpu.dma_semaphore, #tpu.memory_space<semaphore_mem>> -> memref<!tpu.dma_semaphore, #tpu.memory_space<semaphore_mem>>
    tpu.wait_dma2 semaphore(%236 : memref<!tpu.dma_semaphore, #tpu.memory_space<semaphore_mem>>) src(%232 : memref<128x2048xbf16, #tpu.memory_space<any>>) dst(%234 : memref<128x2048xbf16, #tpu.memory_space<vmem>>)
    %c1 = arith.constant 1 : index
    %c0_95 = arith.constant 0 : index
    %c0_96 = arith.constant 0 : index
    %237 = vector.load %arg13[%c1, %c0_95, %c0_96] : memref<4x128x2048xbf16, #tpu.memory_space<vmem>>, vector<1x128x2048xbf16>
    %238 = vector.shape_cast %237 : vector<1x128x2048xbf16> to vector<128x2048xbf16>
    %cst_97 = arith.constant dense<0.000000e+00> : vector<16x2048xf32>
    %239 = tpu.matmul %128, %238, %cst_97 {dimension_numbers = #tpu.dot_dimension_numbers<[1], [0], [0], [1], [0, 0, 1, 1], [], []>} : vector<16x128xbf16>, vector<128x2048xbf16>, vector<16x2048xf32> -> vector<16x2048xf32>
    %240 = vector.extract_strided_slice %121 {offsets = [0, 16], sizes = [16, 1], strides = [1, 1]} : vector<16x128xf32> to vector<16x1xf32>
    %241 = vector.extract_strided_slice %239 {offsets = [0, 0], sizes = [16, 128], strides = [1, 1]} : vector<16x2048xf32> to vector<16x128xf32>
    %242 = vector.broadcast %240 : vector<16x1xf32> to vector<16x128xf32>
    %243 = arith.mulf %242, %241 : vector<16x128xf32>
    %244 = arith.addf %224, %243 : vector<16x128xf32>
    %245 = vector.extract_strided_slice %121 {offsets = [0, 17], sizes = [16, 1], strides = [1, 1]} : vector<16x128xf32> to vector<16x1xf32>
    %246 = vector.extract_strided_slice %239 {offsets = [0, 128], sizes = [16, 128], strides = [1, 1]} : vector<16x2048xf32> to vector<16x128xf32>
    %247 = vector.broadcast %245 : vector<16x1xf32> to vector<16x128xf32>
    %248 = arith.mulf %247, %246 : vector<16x128xf32>
    %249 = arith.addf %244, %248 : vector<16x128xf32>
    %250 = vector.extract_strided_slice %121 {offsets = [0, 18], sizes = [16, 1], strides = [1, 1]} : vector<16x128xf32> to vector<16x1xf32>
    %251 = vector.extract_strided_slice %239 {offsets = [0, 256], sizes = [16, 128], strides = [1, 1]} : vector<16x2048xf32> to vector<16x128xf32>
    %252 = vector.broadcast %250 : vector<16x1xf32> to vector<16x128xf32>
    %253 = arith.mulf %252, %251 : vector<16x128xf32>
    %254 = arith.addf %249, %253 : vector<16x128xf32>
    %255 = vector.extract_strided_slice %121 {offsets = [0, 19], sizes = [16, 1], strides = [1, 1]} : vector<16x128xf32> to vector<16x1xf32>
    %256 = vector.extract_strided_slice %239 {offsets = [0, 384], sizes = [16, 128], strides = [1, 1]} : vector<16x2048xf32> to vector<16x128xf32>
    %257 = vector.broadcast %255 : vector<16x1xf32> to vector<16x128xf32>
    %258 = arith.mulf %257, %256 : vector<16x128xf32>
    %259 = arith.addf %254, %258 : vector<16x128xf32>
    %260 = vector.extract_strided_slice %121 {offsets = [0, 20], sizes = [16, 1], strides = [1, 1]} : vector<16x128xf32> to vector<16x1xf32>
    %261 = vector.extract_strided_slice %239 {offsets = [0, 512], sizes = [16, 128], strides = [1, 1]} : vector<16x2048xf32> to vector<16x128xf32>
    %262 = vector.broadcast %260 : vector<16x1xf32> to vector<16x128xf32>
    %263 = arith.mulf %262, %261 : vector<16x128xf32>
    %264 = arith.addf %259, %263 : vector<16x128xf32>
    %265 = vector.extract_strided_slice %121 {offsets = [0, 21], sizes = [16, 1], strides = [1, 1]} : vector<16x128xf32> to vector<16x1xf32>
    %266 = vector.extract_strided_slice %239 {offsets = [0, 640], sizes = [16, 128], strides = [1, 1]} : vector<16x2048xf32> to vector<16x128xf32>
    %267 = vector.broadcast %265 : vector<16x1xf32> to vector<16x128xf32>
    %268 = arith.mulf %267, %266 : vector<16x128xf32>
    %269 = arith.addf %264, %268 : vector<16x128xf32>
    %270 = vector.extract_strided_slice %121 {offsets = [0, 22], sizes = [16, 1], strides = [1, 1]} : vector<16x128xf32> to vector<16x1xf32>
    %271 = vector.extract_strided_slice %239 {offsets = [0, 768], sizes = [16, 128], strides = [1, 1]} : vector<16x2048xf32> to vector<16x128xf32>
    %272 = vector.broadcast %270 : vector<16x1xf32> to vector<16x128xf32>
    %273 = arith.mulf %272, %271 : vector<16x128xf32>
    %274 = arith.addf %269, %273 : vector<16x128xf32>
    %275 = vector.extract_strided_slice %121 {offsets = [0, 23], sizes = [16, 1], strides = [1, 1]} : vector<16x128xf32> to vector<16x1xf32>
    %276 = vector.extract_strided_slice %239 {offsets = [0, 896], sizes = [16, 128], strides = [1, 1]} : vector<16x2048xf32> to vector<16x128xf32>
    %277 = vector.broadcast %275 : vector<16x1xf32> to vector<16x128xf32>
    %278 = arith.mulf %277, %276 : vector<16x128xf32>
    %279 = arith.addf %274, %278 : vector<16x128xf32>
    %280 = vector.extract_strided_slice %121 {offsets = [0, 24], sizes = [16, 1], strides = [1, 1]} : vector<16x128xf32> to vector<16x1xf32>
    %281 = vector.extract_strided_slice %239 {offsets = [0, 1024], sizes = [16, 128], strides = [1, 1]} : vector<16x2048xf32> to vector<16x128xf32>
    %282 = vector.broadcast %280 : vector<16x1xf32> to vector<16x128xf32>
    %283 = arith.mulf %282, %281 : vector<16x128xf32>
    %284 = arith.addf %279, %283 : vector<16x128xf32>
    %285 = vector.extract_strided_slice %121 {offsets = [0, 25], sizes = [16, 1], strides = [1, 1]} : vector<16x128xf32> to vector<16x1xf32>
    %286 = vector.extract_strided_slice %239 {offsets = [0, 1152], sizes = [16, 128], strides = [1, 1]} : vector<16x2048xf32> to vector<16x128xf32>
    %287 = vector.broadcast %285 : vector<16x1xf32> to vector<16x128xf32>
    %288 = arith.mulf %287, %286 : vector<16x128xf32>
    %289 = arith.addf %284, %288 : vector<16x128xf32>
    %290 = vector.extract_strided_slice %121 {offsets = [0, 26], sizes = [16, 1], strides = [1, 1]} : vector<16x128xf32> to vector<16x1xf32>
    %291 = vector.extract_strided_slice %239 {offsets = [0, 1280], sizes = [16, 128], strides = [1, 1]} : vector<16x2048xf32> to vector<16x128xf32>
    %292 = vector.broadcast %290 : vector<16x1xf32> to vector<16x128xf32>
    %293 = arith.mulf %292, %291 : vector<16x128xf32>
    %294 = arith.addf %289, %293 : vector<16x128xf32>
    %295 = vector.extract_strided_slice %121 {offsets = [0, 27], sizes = [16, 1], strides = [1, 1]} : vector<16x128xf32> to vector<16x1xf32>
    %296 = vector.extract_strided_slice %239 {offsets = [0, 1408], sizes = [16, 128], strides = [1, 1]} : vector<16x2048xf32> to vector<16x128xf32>
    %297 = vector.broadcast %295 : vector<16x1xf32> to vector<16x128xf32>
    %298 = arith.mulf %297, %296 : vector<16x128xf32>
    %299 = arith.addf %294, %298 : vector<16x128xf32>
    %300 = vector.extract_strided_slice %121 {offsets = [0, 28], sizes = [16, 1], strides = [1, 1]} : vector<16x128xf32> to vector<16x1xf32>
    %301 = vector.extract_strided_slice %239 {offsets = [0, 1536], sizes = [16, 128], strides = [1, 1]} : vector<16x2048xf32> to vector<16x128xf32>
    %302 = vector.broadcast %300 : vector<16x1xf32> to vector<16x128xf32>
    %303 = arith.mulf %302, %301 : vector<16x128xf32>
    %304 = arith.addf %299, %303 : vector<16x128xf32>
    %305 = vector.extract_strided_slice %121 {offsets = [0, 29], sizes = [16, 1], strides = [1, 1]} : vector<16x128xf32> to vector<16x1xf32>
    %306 = vector.extract_strided_slice %239 {offsets = [0, 1664], sizes = [16, 128], strides = [1, 1]} : vector<16x2048xf32> to vector<16x128xf32>
    %307 = vector.broadcast %305 : vector<16x1xf32> to vector<16x128xf32>
    %308 = arith.mulf %307, %306 : vector<16x128xf32>
    %309 = arith.addf %304, %308 : vector<16x128xf32>
    %310 = vector.extract_strided_slice %121 {offsets = [0, 30], sizes = [16, 1], strides = [1, 1]} : vector<16x128xf32> to vector<16x1xf32>
    %311 = vector.extract_strided_slice %239 {offsets = [0, 1792], sizes = [16, 128], strides = [1, 1]} : vector<16x2048xf32> to vector<16x128xf32>
    %312 = vector.broadcast %310 : vector<16x1xf32> to vector<16x128xf32>
    %313 = arith.mulf %312, %311 : vector<16x128xf32>
    %314 = arith.addf %309, %313 : vector<16x128xf32>
    %315 = vector.extract_strided_slice %121 {offsets = [0, 31], sizes = [16, 1], strides = [1, 1]} : vector<16x128xf32> to vector<16x1xf32>
    %316 = vector.extract_strided_slice %239 {offsets = [0, 1920], sizes = [16, 128], strides = [1, 1]} : vector<16x2048xf32> to vector<16x128xf32>
    %317 = vector.broadcast %315 : vector<16x1xf32> to vector<16x128xf32>
    %318 = arith.mulf %317, %316 : vector<16x128xf32>
    %319 = arith.addf %314, %318 : vector<16x128xf32>
    %c5_i32 = arith.constant 5 : i32
    %c1_i32_98 = arith.constant 1 : i32
    %c1_i32_99 = arith.constant 1 : i32
    %c0_i32_100 = arith.constant 0 : i32
    %c0_i32_101 = arith.constant 0 : i32
    %320 = tpu.memref_slice %arg10[%c5_i32, %c0_i32_100, %c0_i32_101] : memref<8x128x2048xbf16, #tpu.memory_space<any>> -> memref<1x128x2048xbf16, #tpu.memory_space<any>>
    %321 = tpu.memref_squeeze %320 : memref<1x128x2048xbf16, #tpu.memory_space<any>> -> memref<128x2048xbf16, #tpu.memory_space<any>>
    %c0_i32_102 = arith.constant 0 : i32
    %c0_i32_103 = arith.constant 0 : i32
    %322 = tpu.memref_slice %arg13[%c1_i32_98, %c0_i32_102, %c0_i32_103] : memref<4x128x2048xbf16, #tpu.memory_space<vmem>> -> memref<1x128x2048xbf16, #tpu.memory_space<vmem>>
    %323 = tpu.memref_squeeze %322 : memref<1x128x2048xbf16, #tpu.memory_space<vmem>> -> memref<128x2048xbf16, #tpu.memory_space<vmem>>
    %324 = tpu.memref_slice %arg14[%c1_i32_99] : memref<4x!tpu.dma_semaphore, #tpu.memory_space<semaphore_mem>> -> memref<1x!tpu.dma_semaphore, #tpu.memory_space<semaphore_mem>>
    %325 = tpu.memref_squeeze %324 : memref<1x!tpu.dma_semaphore, #tpu.memory_space<semaphore_mem>> -> memref<!tpu.dma_semaphore, #tpu.memory_space<semaphore_mem>>
    tpu.enqueue_dma source(%321 : memref<128x2048xbf16, #tpu.memory_space<any>>) target(%323 : memref<128x2048xbf16, #tpu.memory_space<vmem>>) target_semaphore(%325 : memref<!tpu.dma_semaphore, #tpu.memory_space<semaphore_mem>>)
    %c2_i32_104 = arith.constant 2 : i32
    %c2_i32_105 = arith.constant 2 : i32
    %c2_i32_106 = arith.constant 2 : i32
    %c0_i32_107 = arith.constant 0 : i32
    %c0_i32_108 = arith.constant 0 : i32
    %326 = tpu.memref_slice %arg10[%c2_i32_104, %c0_i32_107, %c0_i32_108] : memref<8x128x2048xbf16, #tpu.memory_space<any>> -> memref<1x128x2048xbf16, #tpu.memory_space<any>>
    %327 = tpu.memref_squeeze %326 : memref<1x128x2048xbf16, #tpu.memory_space<any>> -> memref<128x2048xbf16, #tpu.memory_space<any>>
    %c0_i32_109 = arith.constant 0 : i32
    %c0_i32_110 = arith.constant 0 : i32
    %328 = tpu.memref_slice %arg13[%c2_i32_105, %c0_i32_109, %c0_i32_110] : memref<4x128x2048xbf16, #tpu.memory_space<vmem>> -> memref<1x128x2048xbf16, #tpu.memory_space<vmem>>
    %329 = tpu.memref_squeeze %328 : memref<1x128x2048xbf16, #tpu.memory_space<vmem>> -> memref<128x2048xbf16, #tpu.memory_space<vmem>>
    %330 = tpu.memref_slice %arg14[%c2_i32_106] : memref<4x!tpu.dma_semaphore, #tpu.memory_space<semaphore_mem>> -> memref<1x!tpu.dma_semaphore, #tpu.memory_space<semaphore_mem>>
    %331 = tpu.memref_squeeze %330 : memref<1x!tpu.dma_semaphore, #tpu.memory_space<semaphore_mem>> -> memref<!tpu.dma_semaphore, #tpu.memory_space<semaphore_mem>>
    tpu.wait_dma2 semaphore(%331 : memref<!tpu.dma_semaphore, #tpu.memory_space<semaphore_mem>>) src(%327 : memref<128x2048xbf16, #tpu.memory_space<any>>) dst(%329 : memref<128x2048xbf16, #tpu.memory_space<vmem>>)
    %c2 = arith.constant 2 : index
    %c0_111 = arith.constant 0 : index
    %c0_112 = arith.constant 0 : index
    %332 = vector.load %arg13[%c2, %c0_111, %c0_112] : memref<4x128x2048xbf16, #tpu.memory_space<vmem>>, vector<1x128x2048xbf16>
    %333 = vector.shape_cast %332 : vector<1x128x2048xbf16> to vector<128x2048xbf16>
    %cst_113 = arith.constant dense<0.000000e+00> : vector<16x2048xf32>
    %334 = tpu.matmul %128, %333, %cst_113 {dimension_numbers = #tpu.dot_dimension_numbers<[1], [0], [0], [1], [0, 0, 1, 1], [], []>} : vector<16x128xbf16>, vector<128x2048xbf16>, vector<16x2048xf32> -> vector<16x2048xf32>
    %335 = vector.extract_strided_slice %121 {offsets = [0, 32], sizes = [16, 1], strides = [1, 1]} : vector<16x128xf32> to vector<16x1xf32>
    %336 = vector.extract_strided_slice %334 {offsets = [0, 0], sizes = [16, 128], strides = [1, 1]} : vector<16x2048xf32> to vector<16x128xf32>
    %337 = vector.broadcast %335 : vector<16x1xf32> to vector<16x128xf32>
    %338 = arith.mulf %337, %336 : vector<16x128xf32>
    %339 = arith.addf %319, %338 : vector<16x128xf32>
    %340 = vector.extract_strided_slice %121 {offsets = [0, 33], sizes = [16, 1], strides = [1, 1]} : vector<16x128xf32> to vector<16x1xf32>
    %341 = vector.extract_strided_slice %334 {offsets = [0, 128], sizes = [16, 128], strides = [1, 1]} : vector<16x2048xf32> to vector<16x128xf32>
    %342 = vector.broadcast %340 : vector<16x1xf32> to vector<16x128xf32>
    %343 = arith.mulf %342, %341 : vector<16x128xf32>
    %344 = arith.addf %339, %343 : vector<16x128xf32>
    %345 = vector.extract_strided_slice %121 {offsets = [0, 34], sizes = [16, 1], strides = [1, 1]} : vector<16x128xf32> to vector<16x1xf32>
    %346 = vector.extract_strided_slice %334 {offsets = [0, 256], sizes = [16, 128], strides = [1, 1]} : vector<16x2048xf32> to vector<16x128xf32>
    %347 = vector.broadcast %345 : vector<16x1xf32> to vector<16x128xf32>
    %348 = arith.mulf %347, %346 : vector<16x128xf32>
    %349 = arith.addf %344, %348 : vector<16x128xf32>
    %350 = vector.extract_strided_slice %121 {offsets = [0, 35], sizes = [16, 1], strides = [1, 1]} : vector<16x128xf32> to vector<16x1xf32>
    %351 = vector.extract_strided_slice %334 {offsets = [0, 384], sizes = [16, 128], strides = [1, 1]} : vector<16x2048xf32> to vector<16x128xf32>
    %352 = vector.broadcast %350 : vector<16x1xf32> to vector<16x128xf32>
    %353 = arith.mulf %352, %351 : vector<16x128xf32>
    %354 = arith.addf %349, %353 : vector<16x128xf32>
    %355 = vector.extract_strided_slice %121 {offsets = [0, 36], sizes = [16, 1], strides = [1, 1]} : vector<16x128xf32> to vector<16x1xf32>
    %356 = vector.extract_strided_slice %334 {offsets = [0, 512], sizes = [16, 128], strides = [1, 1]} : vector<16x2048xf32> to vector<16x128xf32>
    %357 = vector.broadcast %355 : vector<16x1xf32> to vector<16x128xf32>
    %358 = arith.mulf %357, %356 : vector<16x128xf32>
    %359 = arith.addf %354, %358 : vector<16x128xf32>
    %360 = vector.extract_strided_slice %121 {offsets = [0, 37], sizes = [16, 1], strides = [1, 1]} : vector<16x128xf32> to vector<16x1xf32>
    %361 = vector.extract_strided_slice %334 {offsets = [0, 640], sizes = [16, 128], strides = [1, 1]} : vector<16x2048xf32> to vector<16x128xf32>
    %362 = vector.broadcast %360 : vector<16x1xf32> to vector<16x128xf32>
    %363 = arith.mulf %362, %361 : vector<16x128xf32>
    %364 = arith.addf %359, %363 : vector<16x128xf32>
    %365 = vector.extract_strided_slice %121 {offsets = [0, 38], sizes = [16, 1], strides = [1, 1]} : vector<16x128xf32> to vector<16x1xf32>
    %366 = vector.extract_strided_slice %334 {offsets = [0, 768], sizes = [16, 128], strides = [1, 1]} : vector<16x2048xf32> to vector<16x128xf32>
    %367 = vector.broadcast %365 : vector<16x1xf32> to vector<16x128xf32>
    %368 = arith.mulf %367, %366 : vector<16x128xf32>
    %369 = arith.addf %364, %368 : vector<16x128xf32>
    %370 = vector.extract_strided_slice %121 {offsets = [0, 39], sizes = [16, 1], strides = [1, 1]} : vector<16x128xf32> to vector<16x1xf32>
    %371 = vector.extract_strided_slice %334 {offsets = [0, 896], sizes = [16, 128], strides = [1, 1]} : vector<16x2048xf32> to vector<16x128xf32>
    %372 = vector.broadcast %370 : vector<16x1xf32> to vector<16x128xf32>
    %373 = arith.mulf %372, %371 : vector<16x128xf32>
    %374 = arith.addf %369, %373 : vector<16x128xf32>
    %375 = vector.extract_strided_slice %121 {offsets = [0, 40], sizes = [16, 1], strides = [1, 1]} : vector<16x128xf32> to vector<16x1xf32>
    %376 = vector.extract_strided_slice %334 {offsets = [0, 1024], sizes = [16, 128], strides = [1, 1]} : vector<16x2048xf32> to vector<16x128xf32>
    %377 = vector.broadcast %375 : vector<16x1xf32> to vector<16x128xf32>
    %378 = arith.mulf %377, %376 : vector<16x128xf32>
    %379 = arith.addf %374, %378 : vector<16x128xf32>
    %380 = vector.extract_strided_slice %121 {offsets = [0, 41], sizes = [16, 1], strides = [1, 1]} : vector<16x128xf32> to vector<16x1xf32>
    %381 = vector.extract_strided_slice %334 {offsets = [0, 1152], sizes = [16, 128], strides = [1, 1]} : vector<16x2048xf32> to vector<16x128xf32>
    %382 = vector.broadcast %380 : vector<16x1xf32> to vector<16x128xf32>
    %383 = arith.mulf %382, %381 : vector<16x128xf32>
    %384 = arith.addf %379, %383 : vector<16x128xf32>
    %385 = vector.extract_strided_slice %121 {offsets = [0, 42], sizes = [16, 1], strides = [1, 1]} : vector<16x128xf32> to vector<16x1xf32>
    %386 = vector.extract_strided_slice %334 {offsets = [0, 1280], sizes = [16, 128], strides = [1, 1]} : vector<16x2048xf32> to vector<16x128xf32>
    %387 = vector.broadcast %385 : vector<16x1xf32> to vector<16x128xf32>
    %388 = arith.mulf %387, %386 : vector<16x128xf32>
    %389 = arith.addf %384, %388 : vector<16x128xf32>
    %390 = vector.extract_strided_slice %121 {offsets = [0, 43], sizes = [16, 1], strides = [1, 1]} : vector<16x128xf32> to vector<16x1xf32>
    %391 = vector.extract_strided_slice %334 {offsets = [0, 1408], sizes = [16, 128], strides = [1, 1]} : vector<16x2048xf32> to vector<16x128xf32>
    %392 = vector.broadcast %390 : vector<16x1xf32> to vector<16x128xf32>
    %393 = arith.mulf %392, %391 : vector<16x128xf32>
    %394 = arith.addf %389, %393 : vector<16x128xf32>
    %395 = vector.extract_strided_slice %121 {offsets = [0, 44], sizes = [16, 1], strides = [1, 1]} : vector<16x128xf32> to vector<16x1xf32>
    %396 = vector.extract_strided_slice %334 {offsets = [0, 1536], sizes = [16, 128], strides = [1, 1]} : vector<16x2048xf32> to vector<16x128xf32>
    %397 = vector.broadcast %395 : vector<16x1xf32> to vector<16x128xf32>
    %398 = arith.mulf %397, %396 : vector<16x128xf32>
    %399 = arith.addf %394, %398 : vector<16x128xf32>
    %400 = vector.extract_strided_slice %121 {offsets = [0, 45], sizes = [16, 1], strides = [1, 1]} : vector<16x128xf32> to vector<16x1xf32>
    %401 = vector.extract_strided_slice %334 {offsets = [0, 1664], sizes = [16, 128], strides = [1, 1]} : vector<16x2048xf32> to vector<16x128xf32>
    %402 = vector.broadcast %400 : vector<16x1xf32> to vector<16x128xf32>
    %403 = arith.mulf %402, %401 : vector<16x128xf32>
    %404 = arith.addf %399, %403 : vector<16x128xf32>
    %405 = vector.extract_strided_slice %121 {offsets = [0, 46], sizes = [16, 1], strides = [1, 1]} : vector<16x128xf32> to vector<16x1xf32>
    %406 = vector.extract_strided_slice %334 {offsets = [0, 1792], sizes = [16, 128], strides = [1, 1]} : vector<16x2048xf32> to vector<16x128xf32>
    %407 = vector.broadcast %405 : vector<16x1xf32> to vector<16x128xf32>
    %408 = arith.mulf %407, %406 : vector<16x128xf32>
    %409 = arith.addf %404, %408 : vector<16x128xf32>
    %410 = vector.extract_strided_slice %121 {offsets = [0, 47], sizes = [16, 1], strides = [1, 1]} : vector<16x128xf32> to vector<16x1xf32>
    %411 = vector.extract_strided_slice %334 {offsets = [0, 1920], sizes = [16, 128], strides = [1, 1]} : vector<16x2048xf32> to vector<16x128xf32>
    %412 = vector.broadcast %410 : vector<16x1xf32> to vector<16x128xf32>
    %413 = arith.mulf %412, %411 : vector<16x128xf32>
    %414 = arith.addf %409, %413 : vector<16x128xf32>
    %c6_i32 = arith.constant 6 : i32
    %c2_i32_114 = arith.constant 2 : i32
    %c2_i32_115 = arith.constant 2 : i32
    %c0_i32_116 = arith.constant 0 : i32
    %c0_i32_117 = arith.constant 0 : i32
    %415 = tpu.memref_slice %arg10[%c6_i32, %c0_i32_116, %c0_i32_117] : memref<8x128x2048xbf16, #tpu.memory_space<any>> -> memref<1x128x2048xbf16, #tpu.memory_space<any>>
    %416 = tpu.memref_squeeze %415 : memref<1x128x2048xbf16, #tpu.memory_space<any>> -> memref<128x2048xbf16, #tpu.memory_space<any>>
    %c0_i32_118 = arith.constant 0 : i32
    %c0_i32_119 = arith.constant 0 : i32
    %417 = tpu.memref_slice %arg13[%c2_i32_114, %c0_i32_118, %c0_i32_119] : memref<4x128x2048xbf16, #tpu.memory_space<vmem>> -> memref<1x128x2048xbf16, #tpu.memory_space<vmem>>
    %418 = tpu.memref_squeeze %417 : memref<1x128x2048xbf16, #tpu.memory_space<vmem>> -> memref<128x2048xbf16, #tpu.memory_space<vmem>>
    %419 = tpu.memref_slice %arg14[%c2_i32_115] : memref<4x!tpu.dma_semaphore, #tpu.memory_space<semaphore_mem>> -> memref<1x!tpu.dma_semaphore, #tpu.memory_space<semaphore_mem>>
    %420 = tpu.memref_squeeze %419 : memref<1x!tpu.dma_semaphore, #tpu.memory_space<semaphore_mem>> -> memref<!tpu.dma_semaphore, #tpu.memory_space<semaphore_mem>>
    tpu.enqueue_dma source(%416 : memref<128x2048xbf16, #tpu.memory_space<any>>) target(%418 : memref<128x2048xbf16, #tpu.memory_space<vmem>>) target_semaphore(%420 : memref<!tpu.dma_semaphore, #tpu.memory_space<semaphore_mem>>)
    %c3_i32_120 = arith.constant 3 : i32
    %c3_i32_121 = arith.constant 3 : i32
    %c3_i32_122 = arith.constant 3 : i32
    %c0_i32_123 = arith.constant 0 : i32
    %c0_i32_124 = arith.constant 0 : i32
    %421 = tpu.memref_slice %arg10[%c3_i32_120, %c0_i32_123, %c0_i32_124] : memref<8x128x2048xbf16, #tpu.memory_space<any>> -> memref<1x128x2048xbf16, #tpu.memory_space<any>>
    %422 = tpu.memref_squeeze %421 : memref<1x128x2048xbf16, #tpu.memory_space<any>> -> memref<128x2048xbf16, #tpu.memory_space<any>>
    %c0_i32_125 = arith.constant 0 : i32
    %c0_i32_126 = arith.constant 0 : i32
    %423 = tpu.memref_slice %arg13[%c3_i32_121, %c0_i32_125, %c0_i32_126] : memref<4x128x2048xbf16, #tpu.memory_space<vmem>> -> memref<1x128x2048xbf16, #tpu.memory_space<vmem>>
    %424 = tpu.memref_squeeze %423 : memref<1x128x2048xbf16, #tpu.memory_space<vmem>> -> memref<128x2048xbf16, #tpu.memory_space<vmem>>
    %425 = tpu.memref_slice %arg14[%c3_i32_122] : memref<4x!tpu.dma_semaphore, #tpu.memory_space<semaphore_mem>> -> memref<1x!tpu.dma_semaphore, #tpu.memory_space<semaphore_mem>>
    %426 = tpu.memref_squeeze %425 : memref<1x!tpu.dma_semaphore, #tpu.memory_space<semaphore_mem>> -> memref<!tpu.dma_semaphore, #tpu.memory_space<semaphore_mem>>
    tpu.wait_dma2 semaphore(%426 : memref<!tpu.dma_semaphore, #tpu.memory_space<semaphore_mem>>) src(%422 : memref<128x2048xbf16, #tpu.memory_space<any>>) dst(%424 : memref<128x2048xbf16, #tpu.memory_space<vmem>>)
    %c3 = arith.constant 3 : index
    %c0_127 = arith.constant 0 : index
    %c0_128 = arith.constant 0 : index
    %427 = vector.load %arg13[%c3, %c0_127, %c0_128] : memref<4x128x2048xbf16, #tpu.memory_space<vmem>>, vector<1x128x2048xbf16>
    %428 = vector.shape_cast %427 : vector<1x128x2048xbf16> to vector<128x2048xbf16>
    %cst_129 = arith.constant dense<0.000000e+00> : vector<16x2048xf32>
    %429 = tpu.matmul %128, %428, %cst_129 {dimension_numbers = #tpu.dot_dimension_numbers<[1], [0], [0], [1], [0, 0, 1, 1], [], []>} : vector<16x128xbf16>, vector<128x2048xbf16>, vector<16x2048xf32> -> vector<16x2048xf32>
    %430 = vector.extract_strided_slice %121 {offsets = [0, 48], sizes = [16, 1], strides = [1, 1]} : vector<16x128xf32> to vector<16x1xf32>
    %431 = vector.extract_strided_slice %429 {offsets = [0, 0], sizes = [16, 128], strides = [1, 1]} : vector<16x2048xf32> to vector<16x128xf32>
    %432 = vector.broadcast %430 : vector<16x1xf32> to vector<16x128xf32>
    %433 = arith.mulf %432, %431 : vector<16x128xf32>
    %434 = arith.addf %414, %433 : vector<16x128xf32>
    %435 = vector.extract_strided_slice %121 {offsets = [0, 49], sizes = [16, 1], strides = [1, 1]} : vector<16x128xf32> to vector<16x1xf32>
    %436 = vector.extract_strided_slice %429 {offsets = [0, 128], sizes = [16, 128], strides = [1, 1]} : vector<16x2048xf32> to vector<16x128xf32>
    %437 = vector.broadcast %435 : vector<16x1xf32> to vector<16x128xf32>
    %438 = arith.mulf %437, %436 : vector<16x128xf32>
    %439 = arith.addf %434, %438 : vector<16x128xf32>
    %440 = vector.extract_strided_slice %121 {offsets = [0, 50], sizes = [16, 1], strides = [1, 1]} : vector<16x128xf32> to vector<16x1xf32>
    %441 = vector.extract_strided_slice %429 {offsets = [0, 256], sizes = [16, 128], strides = [1, 1]} : vector<16x2048xf32> to vector<16x128xf32>
    %442 = vector.broadcast %440 : vector<16x1xf32> to vector<16x128xf32>
    %443 = arith.mulf %442, %441 : vector<16x128xf32>
    %444 = arith.addf %439, %443 : vector<16x128xf32>
    %445 = vector.extract_strided_slice %121 {offsets = [0, 51], sizes = [16, 1], strides = [1, 1]} : vector<16x128xf32> to vector<16x1xf32>
    %446 = vector.extract_strided_slice %429 {offsets = [0, 384], sizes = [16, 128], strides = [1, 1]} : vector<16x2048xf32> to vector<16x128xf32>
    %447 = vector.broadcast %445 : vector<16x1xf32> to vector<16x128xf32>
    %448 = arith.mulf %447, %446 : vector<16x128xf32>
    %449 = arith.addf %444, %448 : vector<16x128xf32>
    %450 = vector.extract_strided_slice %121 {offsets = [0, 52], sizes = [16, 1], strides = [1, 1]} : vector<16x128xf32> to vector<16x1xf32>
    %451 = vector.extract_strided_slice %429 {offsets = [0, 512], sizes = [16, 128], strides = [1, 1]} : vector<16x2048xf32> to vector<16x128xf32>
    %452 = vector.broadcast %450 : vector<16x1xf32> to vector<16x128xf32>
    %453 = arith.mulf %452, %451 : vector<16x128xf32>
    %454 = arith.addf %449, %453 : vector<16x128xf32>
    %455 = vector.extract_strided_slice %121 {offsets = [0, 53], sizes = [16, 1], strides = [1, 1]} : vector<16x128xf32> to vector<16x1xf32>
    %456 = vector.extract_strided_slice %429 {offsets = [0, 640], sizes = [16, 128], strides = [1, 1]} : vector<16x2048xf32> to vector<16x128xf32>
    %457 = vector.broadcast %455 : vector<16x1xf32> to vector<16x128xf32>
    %458 = arith.mulf %457, %456 : vector<16x128xf32>
    %459 = arith.addf %454, %458 : vector<16x128xf32>
    %460 = vector.extract_strided_slice %121 {offsets = [0, 54], sizes = [16, 1], strides = [1, 1]} : vector<16x128xf32> to vector<16x1xf32>
    %461 = vector.extract_strided_slice %429 {offsets = [0, 768], sizes = [16, 128], strides = [1, 1]} : vector<16x2048xf32> to vector<16x128xf32>
    %462 = vector.broadcast %460 : vector<16x1xf32> to vector<16x128xf32>
    %463 = arith.mulf %462, %461 : vector<16x128xf32>
    %464 = arith.addf %459, %463 : vector<16x128xf32>
    %465 = vector.extract_strided_slice %121 {offsets = [0, 55], sizes = [16, 1], strides = [1, 1]} : vector<16x128xf32> to vector<16x1xf32>
    %466 = vector.extract_strided_slice %429 {offsets = [0, 896], sizes = [16, 128], strides = [1, 1]} : vector<16x2048xf32> to vector<16x128xf32>
    %467 = vector.broadcast %465 : vector<16x1xf32> to vector<16x128xf32>
    %468 = arith.mulf %467, %466 : vector<16x128xf32>
    %469 = arith.addf %464, %468 : vector<16x128xf32>
    %470 = vector.extract_strided_slice %121 {offsets = [0, 56], sizes = [16, 1], strides = [1, 1]} : vector<16x128xf32> to vector<16x1xf32>
    %471 = vector.extract_strided_slice %429 {offsets = [0, 1024], sizes = [16, 128], strides = [1, 1]} : vector<16x2048xf32> to vector<16x128xf32>
    %472 = vector.broadcast %470 : vector<16x1xf32> to vector<16x128xf32>
    %473 = arith.mulf %472, %471 : vector<16x128xf32>
    %474 = arith.addf %469, %473 : vector<16x128xf32>
    %475 = vector.extract_strided_slice %121 {offsets = [0, 57], sizes = [16, 1], strides = [1, 1]} : vector<16x128xf32> to vector<16x1xf32>
    %476 = vector.extract_strided_slice %429 {offsets = [0, 1152], sizes = [16, 128], strides = [1, 1]} : vector<16x2048xf32> to vector<16x128xf32>
    %477 = vector.broadcast %475 : vector<16x1xf32> to vector<16x128xf32>
    %478 = arith.mulf %477, %476 : vector<16x128xf32>
    %479 = arith.addf %474, %478 : vector<16x128xf32>
    %480 = vector.extract_strided_slice %121 {offsets = [0, 58], sizes = [16, 1], strides = [1, 1]} : vector<16x128xf32> to vector<16x1xf32>
    %481 = vector.extract_strided_slice %429 {offsets = [0, 1280], sizes = [16, 128], strides = [1, 1]} : vector<16x2048xf32> to vector<16x128xf32>
    %482 = vector.broadcast %480 : vector<16x1xf32> to vector<16x128xf32>
    %483 = arith.mulf %482, %481 : vector<16x128xf32>
    %484 = arith.addf %479, %483 : vector<16x128xf32>
    %485 = vector.extract_strided_slice %121 {offsets = [0, 59], sizes = [16, 1], strides = [1, 1]} : vector<16x128xf32> to vector<16x1xf32>
    %486 = vector.extract_strided_slice %429 {offsets = [0, 1408], sizes = [16, 128], strides = [1, 1]} : vector<16x2048xf32> to vector<16x128xf32>
    %487 = vector.broadcast %485 : vector<16x1xf32> to vector<16x128xf32>
    %488 = arith.mulf %487, %486 : vector<16x128xf32>
    %489 = arith.addf %484, %488 : vector<16x128xf32>
    %490 = vector.extract_strided_slice %121 {offsets = [0, 60], sizes = [16, 1], strides = [1, 1]} : vector<16x128xf32> to vector<16x1xf32>
    %491 = vector.extract_strided_slice %429 {offsets = [0, 1536], sizes = [16, 128], strides = [1, 1]} : vector<16x2048xf32> to vector<16x128xf32>
    %492 = vector.broadcast %490 : vector<16x1xf32> to vector<16x128xf32>
    %493 = arith.mulf %492, %491 : vector<16x128xf32>
    %494 = arith.addf %489, %493 : vector<16x128xf32>
    %495 = vector.extract_strided_slice %121 {offsets = [0, 61], sizes = [16, 1], strides = [1, 1]} : vector<16x128xf32> to vector<16x1xf32>
    %496 = vector.extract_strided_slice %429 {offsets = [0, 1664], sizes = [16, 128], strides = [1, 1]} : vector<16x2048xf32> to vector<16x128xf32>
    %497 = vector.broadcast %495 : vector<16x1xf32> to vector<16x128xf32>
    %498 = arith.mulf %497, %496 : vector<16x128xf32>
    %499 = arith.addf %494, %498 : vector<16x128xf32>
    %500 = vector.extract_strided_slice %121 {offsets = [0, 62], sizes = [16, 1], strides = [1, 1]} : vector<16x128xf32> to vector<16x1xf32>
    %501 = vector.extract_strided_slice %429 {offsets = [0, 1792], sizes = [16, 128], strides = [1, 1]} : vector<16x2048xf32> to vector<16x128xf32>
    %502 = vector.broadcast %500 : vector<16x1xf32> to vector<16x128xf32>
    %503 = arith.mulf %502, %501 : vector<16x128xf32>
    %504 = arith.addf %499, %503 : vector<16x128xf32>
    %505 = vector.extract_strided_slice %121 {offsets = [0, 63], sizes = [16, 1], strides = [1, 1]} : vector<16x128xf32> to vector<16x1xf32>
    %506 = vector.extract_strided_slice %429 {offsets = [0, 1920], sizes = [16, 128], strides = [1, 1]} : vector<16x2048xf32> to vector<16x128xf32>
    %507 = vector.broadcast %505 : vector<16x1xf32> to vector<16x128xf32>
    %508 = arith.mulf %507, %506 : vector<16x128xf32>
    %509 = arith.addf %504, %508 : vector<16x128xf32>
    %c7_i32 = arith.constant 7 : i32
    %c3_i32_130 = arith.constant 3 : i32
    %c3_i32_131 = arith.constant 3 : i32
    %c0_i32_132 = arith.constant 0 : i32
    %c0_i32_133 = arith.constant 0 : i32
    %510 = tpu.memref_slice %arg10[%c7_i32, %c0_i32_132, %c0_i32_133] : memref<8x128x2048xbf16, #tpu.memory_space<any>> -> memref<1x128x2048xbf16, #tpu.memory_space<any>>
    %511 = tpu.memref_squeeze %510 : memref<1x128x2048xbf16, #tpu.memory_space<any>> -> memref<128x2048xbf16, #tpu.memory_space<any>>
    %c0_i32_134 = arith.constant 0 : i32
    %c0_i32_135 = arith.constant 0 : i32
    %512 = tpu.memref_slice %arg13[%c3_i32_130, %c0_i32_134, %c0_i32_135] : memref<4x128x2048xbf16, #tpu.memory_space<vmem>> -> memref<1x128x2048xbf16, #tpu.memory_space<vmem>>
    %513 = tpu.memref_squeeze %512 : memref<1x128x2048xbf16, #tpu.memory_space<vmem>> -> memref<128x2048xbf16, #tpu.memory_space<vmem>>
    %514 = tpu.memref_slice %arg14[%c3_i32_131] : memref<4x!tpu.dma_semaphore, #tpu.memory_space<semaphore_mem>> -> memref<1x!tpu.dma_semaphore, #tpu.memory_space<semaphore_mem>>
    %515 = tpu.memref_squeeze %514 : memref<1x!tpu.dma_semaphore, #tpu.memory_space<semaphore_mem>> -> memref<!tpu.dma_semaphore, #tpu.memory_space<semaphore_mem>>
    tpu.enqueue_dma source(%511 : memref<128x2048xbf16, #tpu.memory_space<any>>) target(%513 : memref<128x2048xbf16, #tpu.memory_space<vmem>>) target_semaphore(%515 : memref<!tpu.dma_semaphore, #tpu.memory_space<semaphore_mem>>)
    %c4_i32_136 = arith.constant 4 : i32
    %c0_i32_137 = arith.constant 0 : i32
    %c0_i32_138 = arith.constant 0 : i32
    %c0_i32_139 = arith.constant 0 : i32
    %c0_i32_140 = arith.constant 0 : i32
    %516 = tpu.memref_slice %arg10[%c4_i32_136, %c0_i32_139, %c0_i32_140] : memref<8x128x2048xbf16, #tpu.memory_space<any>> -> memref<1x128x2048xbf16, #tpu.memory_space<any>>
    %517 = tpu.memref_squeeze %516 : memref<1x128x2048xbf16, #tpu.memory_space<any>> -> memref<128x2048xbf16, #tpu.memory_space<any>>
    %c0_i32_141 = arith.constant 0 : i32
    %c0_i32_142 = arith.constant 0 : i32
    %518 = tpu.memref_slice %arg13[%c0_i32_137, %c0_i32_141, %c0_i32_142] : memref<4x128x2048xbf16, #tpu.memory_space<vmem>> -> memref<1x128x2048xbf16, #tpu.memory_space<vmem>>
    %519 = tpu.memref_squeeze %518 : memref<1x128x2048xbf16, #tpu.memory_space<vmem>> -> memref<128x2048xbf16, #tpu.memory_space<vmem>>
    %520 = tpu.memref_slice %arg14[%c0_i32_138] : memref<4x!tpu.dma_semaphore, #tpu.memory_space<semaphore_mem>> -> memref<1x!tpu.dma_semaphore, #tpu.memory_space<semaphore_mem>>
    %521 = tpu.memref_squeeze %520 : memref<1x!tpu.dma_semaphore, #tpu.memory_space<semaphore_mem>> -> memref<!tpu.dma_semaphore, #tpu.memory_space<semaphore_mem>>
    tpu.wait_dma2 semaphore(%521 : memref<!tpu.dma_semaphore, #tpu.memory_space<semaphore_mem>>) src(%517 : memref<128x2048xbf16, #tpu.memory_space<any>>) dst(%519 : memref<128x2048xbf16, #tpu.memory_space<vmem>>)
    %c0_143 = arith.constant 0 : index
    %c0_144 = arith.constant 0 : index
    %c0_145 = arith.constant 0 : index
    %522 = vector.load %arg13[%c0_143, %c0_144, %c0_145] : memref<4x128x2048xbf16, #tpu.memory_space<vmem>>, vector<1x128x2048xbf16>
    %523 = vector.shape_cast %522 : vector<1x128x2048xbf16> to vector<128x2048xbf16>
    %cst_146 = arith.constant dense<0.000000e+00> : vector<16x2048xf32>
    %524 = tpu.matmul %128, %523, %cst_146 {dimension_numbers = #tpu.dot_dimension_numbers<[1], [0], [0], [1], [0, 0, 1, 1], [], []>} : vector<16x128xbf16>, vector<128x2048xbf16>, vector<16x2048xf32> -> vector<16x2048xf32>
    %525 = vector.extract_strided_slice %121 {offsets = [0, 64], sizes = [16, 1], strides = [1, 1]} : vector<16x128xf32> to vector<16x1xf32>
    %526 = vector.extract_strided_slice %524 {offsets = [0, 0], sizes = [16, 128], strides = [1, 1]} : vector<16x2048xf32> to vector<16x128xf32>
    %527 = vector.broadcast %525 : vector<16x1xf32> to vector<16x128xf32>
    %528 = arith.mulf %527, %526 : vector<16x128xf32>
    %529 = arith.addf %509, %528 : vector<16x128xf32>
    %530 = vector.extract_strided_slice %121 {offsets = [0, 65], sizes = [16, 1], strides = [1, 1]} : vector<16x128xf32> to vector<16x1xf32>
    %531 = vector.extract_strided_slice %524 {offsets = [0, 128], sizes = [16, 128], strides = [1, 1]} : vector<16x2048xf32> to vector<16x128xf32>
    %532 = vector.broadcast %530 : vector<16x1xf32> to vector<16x128xf32>
    %533 = arith.mulf %532, %531 : vector<16x128xf32>
    %534 = arith.addf %529, %533 : vector<16x128xf32>
    %535 = vector.extract_strided_slice %121 {offsets = [0, 66], sizes = [16, 1], strides = [1, 1]} : vector<16x128xf32> to vector<16x1xf32>
    %536 = vector.extract_strided_slice %524 {offsets = [0, 256], sizes = [16, 128], strides = [1, 1]} : vector<16x2048xf32> to vector<16x128xf32>
    %537 = vector.broadcast %535 : vector<16x1xf32> to vector<16x128xf32>
    %538 = arith.mulf %537, %536 : vector<16x128xf32>
    %539 = arith.addf %534, %538 : vector<16x128xf32>
    %540 = vector.extract_strided_slice %121 {offsets = [0, 67], sizes = [16, 1], strides = [1, 1]} : vector<16x128xf32> to vector<16x1xf32>
    %541 = vector.extract_strided_slice %524 {offsets = [0, 384], sizes = [16, 128], strides = [1, 1]} : vector<16x2048xf32> to vector<16x128xf32>
    %542 = vector.broadcast %540 : vector<16x1xf32> to vector<16x128xf32>
    %543 = arith.mulf %542, %541 : vector<16x128xf32>
    %544 = arith.addf %539, %543 : vector<16x128xf32>
    %545 = vector.extract_strided_slice %121 {offsets = [0, 68], sizes = [16, 1], strides = [1, 1]} : vector<16x128xf32> to vector<16x1xf32>
    %546 = vector.extract_strided_slice %524 {offsets = [0, 512], sizes = [16, 128], strides = [1, 1]} : vector<16x2048xf32> to vector<16x128xf32>
    %547 = vector.broadcast %545 : vector<16x1xf32> to vector<16x128xf32>
    %548 = arith.mulf %547, %546 : vector<16x128xf32>
    %549 = arith.addf %544, %548 : vector<16x128xf32>
    %550 = vector.extract_strided_slice %121 {offsets = [0, 69], sizes = [16, 1], strides = [1, 1]} : vector<16x128xf32> to vector<16x1xf32>
    %551 = vector.extract_strided_slice %524 {offsets = [0, 640], sizes = [16, 128], strides = [1, 1]} : vector<16x2048xf32> to vector<16x128xf32>
    %552 = vector.broadcast %550 : vector<16x1xf32> to vector<16x128xf32>
    %553 = arith.mulf %552, %551 : vector<16x128xf32>
    %554 = arith.addf %549, %553 : vector<16x128xf32>
    %555 = vector.extract_strided_slice %121 {offsets = [0, 70], sizes = [16, 1], strides = [1, 1]} : vector<16x128xf32> to vector<16x1xf32>
    %556 = vector.extract_strided_slice %524 {offsets = [0, 768], sizes = [16, 128], strides = [1, 1]} : vector<16x2048xf32> to vector<16x128xf32>
    %557 = vector.broadcast %555 : vector<16x1xf32> to vector<16x128xf32>
    %558 = arith.mulf %557, %556 : vector<16x128xf32>
    %559 = arith.addf %554, %558 : vector<16x128xf32>
    %560 = vector.extract_strided_slice %121 {offsets = [0, 71], sizes = [16, 1], strides = [1, 1]} : vector<16x128xf32> to vector<16x1xf32>
    %561 = vector.extract_strided_slice %524 {offsets = [0, 896], sizes = [16, 128], strides = [1, 1]} : vector<16x2048xf32> to vector<16x128xf32>
    %562 = vector.broadcast %560 : vector<16x1xf32> to vector<16x128xf32>
    %563 = arith.mulf %562, %561 : vector<16x128xf32>
    %564 = arith.addf %559, %563 : vector<16x128xf32>
    %565 = vector.extract_strided_slice %121 {offsets = [0, 72], sizes = [16, 1], strides = [1, 1]} : vector<16x128xf32> to vector<16x1xf32>
    %566 = vector.extract_strided_slice %524 {offsets = [0, 1024], sizes = [16, 128], strides = [1, 1]} : vector<16x2048xf32> to vector<16x128xf32>
    %567 = vector.broadcast %565 : vector<16x1xf32> to vector<16x128xf32>
    %568 = arith.mulf %567, %566 : vector<16x128xf32>
    %569 = arith.addf %564, %568 : vector<16x128xf32>
    %570 = vector.extract_strided_slice %121 {offsets = [0, 73], sizes = [16, 1], strides = [1, 1]} : vector<16x128xf32> to vector<16x1xf32>
    %571 = vector.extract_strided_slice %524 {offsets = [0, 1152], sizes = [16, 128], strides = [1, 1]} : vector<16x2048xf32> to vector<16x128xf32>
    %572 = vector.broadcast %570 : vector<16x1xf32> to vector<16x128xf32>
    %573 = arith.mulf %572, %571 : vector<16x128xf32>
    %574 = arith.addf %569, %573 : vector<16x128xf32>
    %575 = vector.extract_strided_slice %121 {offsets = [0, 74], sizes = [16, 1], strides = [1, 1]} : vector<16x128xf32> to vector<16x1xf32>
    %576 = vector.extract_strided_slice %524 {offsets = [0, 1280], sizes = [16, 128], strides = [1, 1]} : vector<16x2048xf32> to vector<16x128xf32>
    %577 = vector.broadcast %575 : vector<16x1xf32> to vector<16x128xf32>
    %578 = arith.mulf %577, %576 : vector<16x128xf32>
    %579 = arith.addf %574, %578 : vector<16x128xf32>
    %580 = vector.extract_strided_slice %121 {offsets = [0, 75], sizes = [16, 1], strides = [1, 1]} : vector<16x128xf32> to vector<16x1xf32>
    %581 = vector.extract_strided_slice %524 {offsets = [0, 1408], sizes = [16, 128], strides = [1, 1]} : vector<16x2048xf32> to vector<16x128xf32>
    %582 = vector.broadcast %580 : vector<16x1xf32> to vector<16x128xf32>
    %583 = arith.mulf %582, %581 : vector<16x128xf32>
    %584 = arith.addf %579, %583 : vector<16x128xf32>
    %585 = vector.extract_strided_slice %121 {offsets = [0, 76], sizes = [16, 1], strides = [1, 1]} : vector<16x128xf32> to vector<16x1xf32>
    %586 = vector.extract_strided_slice %524 {offsets = [0, 1536], sizes = [16, 128], strides = [1, 1]} : vector<16x2048xf32> to vector<16x128xf32>
    %587 = vector.broadcast %585 : vector<16x1xf32> to vector<16x128xf32>
    %588 = arith.mulf %587, %586 : vector<16x128xf32>
    %589 = arith.addf %584, %588 : vector<16x128xf32>
    %590 = vector.extract_strided_slice %121 {offsets = [0, 77], sizes = [16, 1], strides = [1, 1]} : vector<16x128xf32> to vector<16x1xf32>
    %591 = vector.extract_strided_slice %524 {offsets = [0, 1664], sizes = [16, 128], strides = [1, 1]} : vector<16x2048xf32> to vector<16x128xf32>
    %592 = vector.broadcast %590 : vector<16x1xf32> to vector<16x128xf32>
    %593 = arith.mulf %592, %591 : vector<16x128xf32>
    %594 = arith.addf %589, %593 : vector<16x128xf32>
    %595 = vector.extract_strided_slice %121 {offsets = [0, 78], sizes = [16, 1], strides = [1, 1]} : vector<16x128xf32> to vector<16x1xf32>
    %596 = vector.extract_strided_slice %524 {offsets = [0, 1792], sizes = [16, 128], strides = [1, 1]} : vector<16x2048xf32> to vector<16x128xf32>
    %597 = vector.broadcast %595 : vector<16x1xf32> to vector<16x128xf32>
    %598 = arith.mulf %597, %596 : vector<16x128xf32>
    %599 = arith.addf %594, %598 : vector<16x128xf32>
    %600 = vector.extract_strided_slice %121 {offsets = [0, 79], sizes = [16, 1], strides = [1, 1]} : vector<16x128xf32> to vector<16x1xf32>
    %601 = vector.extract_strided_slice %524 {offsets = [0, 1920], sizes = [16, 128], strides = [1, 1]} : vector<16x2048xf32> to vector<16x128xf32>
    %602 = vector.broadcast %600 : vector<16x1xf32> to vector<16x128xf32>
    %603 = arith.mulf %602, %601 : vector<16x128xf32>
    %604 = arith.addf %599, %603 : vector<16x128xf32>
    %c5_i32_147 = arith.constant 5 : i32
    %c1_i32_148 = arith.constant 1 : i32
    %c1_i32_149 = arith.constant 1 : i32
    %c0_i32_150 = arith.constant 0 : i32
    %c0_i32_151 = arith.constant 0 : i32
    %605 = tpu.memref_slice %arg10[%c5_i32_147, %c0_i32_150, %c0_i32_151] : memref<8x128x2048xbf16, #tpu.memory_space<any>> -> memref<1x128x2048xbf16, #tpu.memory_space<any>>
    %606 = tpu.memref_squeeze %605 : memref<1x128x2048xbf16, #tpu.memory_space<any>> -> memref<128x2048xbf16, #tpu.memory_space<any>>
    %c0_i32_152 = arith.constant 0 : i32
    %c0_i32_153 = arith.constant 0 : i32
    %607 = tpu.memref_slice %arg13[%c1_i32_148, %c0_i32_152, %c0_i32_153] : memref<4x128x2048xbf16, #tpu.memory_space<vmem>> -> memref<1x128x2048xbf16, #tpu.memory_space<vmem>>
    %608 = tpu.memref_squeeze %607 : memref<1x128x2048xbf16, #tpu.memory_space<vmem>> -> memref<128x2048xbf16, #tpu.memory_space<vmem>>
    %609 = tpu.memref_slice %arg14[%c1_i32_149] : memref<4x!tpu.dma_semaphore, #tpu.memory_space<semaphore_mem>> -> memref<1x!tpu.dma_semaphore, #tpu.memory_space<semaphore_mem>>
    %610 = tpu.memref_squeeze %609 : memref<1x!tpu.dma_semaphore, #tpu.memory_space<semaphore_mem>> -> memref<!tpu.dma_semaphore, #tpu.memory_space<semaphore_mem>>
    tpu.wait_dma2 semaphore(%610 : memref<!tpu.dma_semaphore, #tpu.memory_space<semaphore_mem>>) src(%606 : memref<128x2048xbf16, #tpu.memory_space<any>>) dst(%608 : memref<128x2048xbf16, #tpu.memory_space<vmem>>)
    %c1_154 = arith.constant 1 : index
    %c0_155 = arith.constant 0 : index
    %c0_156 = arith.constant 0 : index
    %611 = vector.load %arg13[%c1_154, %c0_155, %c0_156] : memref<4x128x2048xbf16, #tpu.memory_space<vmem>>, vector<1x128x2048xbf16>
    %612 = vector.shape_cast %611 : vector<1x128x2048xbf16> to vector<128x2048xbf16>
    %cst_157 = arith.constant dense<0.000000e+00> : vector<16x2048xf32>
    %613 = tpu.matmul %128, %612, %cst_157 {dimension_numbers = #tpu.dot_dimension_numbers<[1], [0], [0], [1], [0, 0, 1, 1], [], []>} : vector<16x128xbf16>, vector<128x2048xbf16>, vector<16x2048xf32> -> vector<16x2048xf32>
    %614 = vector.extract_strided_slice %121 {offsets = [0, 80], sizes = [16, 1], strides = [1, 1]} : vector<16x128xf32> to vector<16x1xf32>
    %615 = vector.extract_strided_slice %613 {offsets = [0, 0], sizes = [16, 128], strides = [1, 1]} : vector<16x2048xf32> to vector<16x128xf32>
    %616 = vector.broadcast %614 : vector<16x1xf32> to vector<16x128xf32>
    %617 = arith.mulf %616, %615 : vector<16x128xf32>
    %618 = arith.addf %604, %617 : vector<16x128xf32>
    %619 = vector.extract_strided_slice %121 {offsets = [0, 81], sizes = [16, 1], strides = [1, 1]} : vector<16x128xf32> to vector<16x1xf32>
    %620 = vector.extract_strided_slice %613 {offsets = [0, 128], sizes = [16, 128], strides = [1, 1]} : vector<16x2048xf32> to vector<16x128xf32>
    %621 = vector.broadcast %619 : vector<16x1xf32> to vector<16x128xf32>
    %622 = arith.mulf %621, %620 : vector<16x128xf32>
    %623 = arith.addf %618, %622 : vector<16x128xf32>
    %624 = vector.extract_strided_slice %121 {offsets = [0, 82], sizes = [16, 1], strides = [1, 1]} : vector<16x128xf32> to vector<16x1xf32>
    %625 = vector.extract_strided_slice %613 {offsets = [0, 256], sizes = [16, 128], strides = [1, 1]} : vector<16x2048xf32> to vector<16x128xf32>
    %626 = vector.broadcast %624 : vector<16x1xf32> to vector<16x128xf32>
    %627 = arith.mulf %626, %625 : vector<16x128xf32>
    %628 = arith.addf %623, %627 : vector<16x128xf32>
    %629 = vector.extract_strided_slice %121 {offsets = [0, 83], sizes = [16, 1], strides = [1, 1]} : vector<16x128xf32> to vector<16x1xf32>
    %630 = vector.extract_strided_slice %613 {offsets = [0, 384], sizes = [16, 128], strides = [1, 1]} : vector<16x2048xf32> to vector<16x128xf32>
    %631 = vector.broadcast %629 : vector<16x1xf32> to vector<16x128xf32>
    %632 = arith.mulf %631, %630 : vector<16x128xf32>
    %633 = arith.addf %628, %632 : vector<16x128xf32>
    %634 = vector.extract_strided_slice %121 {offsets = [0, 84], sizes = [16, 1], strides = [1, 1]} : vector<16x128xf32> to vector<16x1xf32>
    %635 = vector.extract_strided_slice %613 {offsets = [0, 512], sizes = [16, 128], strides = [1, 1]} : vector<16x2048xf32> to vector<16x128xf32>
    %636 = vector.broadcast %634 : vector<16x1xf32> to vector<16x128xf32>
    %637 = arith.mulf %636, %635 : vector<16x128xf32>
    %638 = arith.addf %633, %637 : vector<16x128xf32>
    %639 = vector.extract_strided_slice %121 {offsets = [0, 85], sizes = [16, 1], strides = [1, 1]} : vector<16x128xf32> to vector<16x1xf32>
    %640 = vector.extract_strided_slice %613 {offsets = [0, 640], sizes = [16, 128], strides = [1, 1]} : vector<16x2048xf32> to vector<16x128xf32>
    %641 = vector.broadcast %639 : vector<16x1xf32> to vector<16x128xf32>
    %642 = arith.mulf %641, %640 : vector<16x128xf32>
    %643 = arith.addf %638, %642 : vector<16x128xf32>
    %644 = vector.extract_strided_slice %121 {offsets = [0, 86], sizes = [16, 1], strides = [1, 1]} : vector<16x128xf32> to vector<16x1xf32>
    %645 = vector.extract_strided_slice %613 {offsets = [0, 768], sizes = [16, 128], strides = [1, 1]} : vector<16x2048xf32> to vector<16x128xf32>
    %646 = vector.broadcast %644 : vector<16x1xf32> to vector<16x128xf32>
    %647 = arith.mulf %646, %645 : vector<16x128xf32>
    %648 = arith.addf %643, %647 : vector<16x128xf32>
    %649 = vector.extract_strided_slice %121 {offsets = [0, 87], sizes = [16, 1], strides = [1, 1]} : vector<16x128xf32> to vector<16x1xf32>
    %650 = vector.extract_strided_slice %613 {offsets = [0, 896], sizes = [16, 128], strides = [1, 1]} : vector<16x2048xf32> to vector<16x128xf32>
    %651 = vector.broadcast %649 : vector<16x1xf32> to vector<16x128xf32>
    %652 = arith.mulf %651, %650 : vector<16x128xf32>
    %653 = arith.addf %648, %652 : vector<16x128xf32>
    %654 = vector.extract_strided_slice %121 {offsets = [0, 88], sizes = [16, 1], strides = [1, 1]} : vector<16x128xf32> to vector<16x1xf32>
    %655 = vector.extract_strided_slice %613 {offsets = [0, 1024], sizes = [16, 128], strides = [1, 1]} : vector<16x2048xf32> to vector<16x128xf32>
    %656 = vector.broadcast %654 : vector<16x1xf32> to vector<16x128xf32>
    %657 = arith.mulf %656, %655 : vector<16x128xf32>
    %658 = arith.addf %653, %657 : vector<16x128xf32>
    %659 = vector.extract_strided_slice %121 {offsets = [0, 89], sizes = [16, 1], strides = [1, 1]} : vector<16x128xf32> to vector<16x1xf32>
    %660 = vector.extract_strided_slice %613 {offsets = [0, 1152], sizes = [16, 128], strides = [1, 1]} : vector<16x2048xf32> to vector<16x128xf32>
    %661 = vector.broadcast %659 : vector<16x1xf32> to vector<16x128xf32>
    %662 = arith.mulf %661, %660 : vector<16x128xf32>
    %663 = arith.addf %658, %662 : vector<16x128xf32>
    %664 = vector.extract_strided_slice %121 {offsets = [0, 90], sizes = [16, 1], strides = [1, 1]} : vector<16x128xf32> to vector<16x1xf32>
    %665 = vector.extract_strided_slice %613 {offsets = [0, 1280], sizes = [16, 128], strides = [1, 1]} : vector<16x2048xf32> to vector<16x128xf32>
    %666 = vector.broadcast %664 : vector<16x1xf32> to vector<16x128xf32>
    %667 = arith.mulf %666, %665 : vector<16x128xf32>
    %668 = arith.addf %663, %667 : vector<16x128xf32>
    %669 = vector.extract_strided_slice %121 {offsets = [0, 91], sizes = [16, 1], strides = [1, 1]} : vector<16x128xf32> to vector<16x1xf32>
    %670 = vector.extract_strided_slice %613 {offsets = [0, 1408], sizes = [16, 128], strides = [1, 1]} : vector<16x2048xf32> to vector<16x128xf32>
    %671 = vector.broadcast %669 : vector<16x1xf32> to vector<16x128xf32>
    %672 = arith.mulf %671, %670 : vector<16x128xf32>
    %673 = arith.addf %668, %672 : vector<16x128xf32>
    %674 = vector.extract_strided_slice %121 {offsets = [0, 92], sizes = [16, 1], strides = [1, 1]} : vector<16x128xf32> to vector<16x1xf32>
    %675 = vector.extract_strided_slice %613 {offsets = [0, 1536], sizes = [16, 128], strides = [1, 1]} : vector<16x2048xf32> to vector<16x128xf32>
    %676 = vector.broadcast %674 : vector<16x1xf32> to vector<16x128xf32>
    %677 = arith.mulf %676, %675 : vector<16x128xf32>
    %678 = arith.addf %673, %677 : vector<16x128xf32>
    %679 = vector.extract_strided_slice %121 {offsets = [0, 93], sizes = [16, 1], strides = [1, 1]} : vector<16x128xf32> to vector<16x1xf32>
    %680 = vector.extract_strided_slice %613 {offsets = [0, 1664], sizes = [16, 128], strides = [1, 1]} : vector<16x2048xf32> to vector<16x128xf32>
    %681 = vector.broadcast %679 : vector<16x1xf32> to vector<16x128xf32>
    %682 = arith.mulf %681, %680 : vector<16x128xf32>
    %683 = arith.addf %678, %682 : vector<16x128xf32>
    %684 = vector.extract_strided_slice %121 {offsets = [0, 94], sizes = [16, 1], strides = [1, 1]} : vector<16x128xf32> to vector<16x1xf32>
    %685 = vector.extract_strided_slice %613 {offsets = [0, 1792], sizes = [16, 128], strides = [1, 1]} : vector<16x2048xf32> to vector<16x128xf32>
    %686 = vector.broadcast %684 : vector<16x1xf32> to vector<16x128xf32>
    %687 = arith.mulf %686, %685 : vector<16x128xf32>
    %688 = arith.addf %683, %687 : vector<16x128xf32>
    %689 = vector.extract_strided_slice %121 {offsets = [0, 95], sizes = [16, 1], strides = [1, 1]} : vector<16x128xf32> to vector<16x1xf32>
    %690 = vector.extract_strided_slice %613 {offsets = [0, 1920], sizes = [16, 128], strides = [1, 1]} : vector<16x2048xf32> to vector<16x128xf32>
    %691 = vector.broadcast %689 : vector<16x1xf32> to vector<16x128xf32>
    %692 = arith.mulf %691, %690 : vector<16x128xf32>
    %693 = arith.addf %688, %692 : vector<16x128xf32>
    %c6_i32_158 = arith.constant 6 : i32
    %c2_i32_159 = arith.constant 2 : i32
    %c2_i32_160 = arith.constant 2 : i32
    %c0_i32_161 = arith.constant 0 : i32
    %c0_i32_162 = arith.constant 0 : i32
    %694 = tpu.memref_slice %arg10[%c6_i32_158, %c0_i32_161, %c0_i32_162] : memref<8x128x2048xbf16, #tpu.memory_space<any>> -> memref<1x128x2048xbf16, #tpu.memory_space<any>>
    %695 = tpu.memref_squeeze %694 : memref<1x128x2048xbf16, #tpu.memory_space<any>> -> memref<128x2048xbf16, #tpu.memory_space<any>>
    %c0_i32_163 = arith.constant 0 : i32
    %c0_i32_164 = arith.constant 0 : i32
    %696 = tpu.memref_slice %arg13[%c2_i32_159, %c0_i32_163, %c0_i32_164] : memref<4x128x2048xbf16, #tpu.memory_space<vmem>> -> memref<1x128x2048xbf16, #tpu.memory_space<vmem>>
    %697 = tpu.memref_squeeze %696 : memref<1x128x2048xbf16, #tpu.memory_space<vmem>> -> memref<128x2048xbf16, #tpu.memory_space<vmem>>
    %698 = tpu.memref_slice %arg14[%c2_i32_160] : memref<4x!tpu.dma_semaphore, #tpu.memory_space<semaphore_mem>> -> memref<1x!tpu.dma_semaphore, #tpu.memory_space<semaphore_mem>>
    %699 = tpu.memref_squeeze %698 : memref<1x!tpu.dma_semaphore, #tpu.memory_space<semaphore_mem>> -> memref<!tpu.dma_semaphore, #tpu.memory_space<semaphore_mem>>
    tpu.wait_dma2 semaphore(%699 : memref<!tpu.dma_semaphore, #tpu.memory_space<semaphore_mem>>) src(%695 : memref<128x2048xbf16, #tpu.memory_space<any>>) dst(%697 : memref<128x2048xbf16, #tpu.memory_space<vmem>>)
    %c2_165 = arith.constant 2 : index
    %c0_166 = arith.constant 0 : index
    %c0_167 = arith.constant 0 : index
    %700 = vector.load %arg13[%c2_165, %c0_166, %c0_167] : memref<4x128x2048xbf16, #tpu.memory_space<vmem>>, vector<1x128x2048xbf16>
    %701 = vector.shape_cast %700 : vector<1x128x2048xbf16> to vector<128x2048xbf16>
    %cst_168 = arith.constant dense<0.000000e+00> : vector<16x2048xf32>
    %702 = tpu.matmul %128, %701, %cst_168 {dimension_numbers = #tpu.dot_dimension_numbers<[1], [0], [0], [1], [0, 0, 1, 1], [], []>} : vector<16x128xbf16>, vector<128x2048xbf16>, vector<16x2048xf32> -> vector<16x2048xf32>
    %703 = vector.extract_strided_slice %121 {offsets = [0, 96], sizes = [16, 1], strides = [1, 1]} : vector<16x128xf32> to vector<16x1xf32>
    %704 = vector.extract_strided_slice %702 {offsets = [0, 0], sizes = [16, 128], strides = [1, 1]} : vector<16x2048xf32> to vector<16x128xf32>
    %705 = vector.broadcast %703 : vector<16x1xf32> to vector<16x128xf32>
    %706 = arith.mulf %705, %704 : vector<16x128xf32>
    %707 = arith.addf %693, %706 : vector<16x128xf32>
    %708 = vector.extract_strided_slice %121 {offsets = [0, 97], sizes = [16, 1], strides = [1, 1]} : vector<16x128xf32> to vector<16x1xf32>
    %709 = vector.extract_strided_slice %702 {offsets = [0, 128], sizes = [16, 128], strides = [1, 1]} : vector<16x2048xf32> to vector<16x128xf32>
    %710 = vector.broadcast %708 : vector<16x1xf32> to vector<16x128xf32>
    %711 = arith.mulf %710, %709 : vector<16x128xf32>
    %712 = arith.addf %707, %711 : vector<16x128xf32>
    %713 = vector.extract_strided_slice %121 {offsets = [0, 98], sizes = [16, 1], strides = [1, 1]} : vector<16x128xf32> to vector<16x1xf32>
    %714 = vector.extract_strided_slice %702 {offsets = [0, 256], sizes = [16, 128], strides = [1, 1]} : vector<16x2048xf32> to vector<16x128xf32>
    %715 = vector.broadcast %713 : vector<16x1xf32> to vector<16x128xf32>
    %716 = arith.mulf %715, %714 : vector<16x128xf32>
    %717 = arith.addf %712, %716 : vector<16x128xf32>
    %718 = vector.extract_strided_slice %121 {offsets = [0, 99], sizes = [16, 1], strides = [1, 1]} : vector<16x128xf32> to vector<16x1xf32>
    %719 = vector.extract_strided_slice %702 {offsets = [0, 384], sizes = [16, 128], strides = [1, 1]} : vector<16x2048xf32> to vector<16x128xf32>
    %720 = vector.broadcast %718 : vector<16x1xf32> to vector<16x128xf32>
    %721 = arith.mulf %720, %719 : vector<16x128xf32>
    %722 = arith.addf %717, %721 : vector<16x128xf32>
    %723 = vector.extract_strided_slice %121 {offsets = [0, 100], sizes = [16, 1], strides = [1, 1]} : vector<16x128xf32> to vector<16x1xf32>
    %724 = vector.extract_strided_slice %702 {offsets = [0, 512], sizes = [16, 128], strides = [1, 1]} : vector<16x2048xf32> to vector<16x128xf32>
    %725 = vector.broadcast %723 : vector<16x1xf32> to vector<16x128xf32>
    %726 = arith.mulf %725, %724 : vector<16x128xf32>
    %727 = arith.addf %722, %726 : vector<16x128xf32>
    %728 = vector.extract_strided_slice %121 {offsets = [0, 101], sizes = [16, 1], strides = [1, 1]} : vector<16x128xf32> to vector<16x1xf32>
    %729 = vector.extract_strided_slice %702 {offsets = [0, 640], sizes = [16, 128], strides = [1, 1]} : vector<16x2048xf32> to vector<16x128xf32>
    %730 = vector.broadcast %728 : vector<16x1xf32> to vector<16x128xf32>
    %731 = arith.mulf %730, %729 : vector<16x128xf32>
    %732 = arith.addf %727, %731 : vector<16x128xf32>
    %733 = vector.extract_strided_slice %121 {offsets = [0, 102], sizes = [16, 1], strides = [1, 1]} : vector<16x128xf32> to vector<16x1xf32>
    %734 = vector.extract_strided_slice %702 {offsets = [0, 768], sizes = [16, 128], strides = [1, 1]} : vector<16x2048xf32> to vector<16x128xf32>
    %735 = vector.broadcast %733 : vector<16x1xf32> to vector<16x128xf32>
    %736 = arith.mulf %735, %734 : vector<16x128xf32>
    %737 = arith.addf %732, %736 : vector<16x128xf32>
    %738 = vector.extract_strided_slice %121 {offsets = [0, 103], sizes = [16, 1], strides = [1, 1]} : vector<16x128xf32> to vector<16x1xf32>
    %739 = vector.extract_strided_slice %702 {offsets = [0, 896], sizes = [16, 128], strides = [1, 1]} : vector<16x2048xf32> to vector<16x128xf32>
    %740 = vector.broadcast %738 : vector<16x1xf32> to vector<16x128xf32>
    %741 = arith.mulf %740, %739 : vector<16x128xf32>
    %742 = arith.addf %737, %741 : vector<16x128xf32>
    %743 = vector.extract_strided_slice %121 {offsets = [0, 104], sizes = [16, 1], strides = [1, 1]} : vector<16x128xf32> to vector<16x1xf32>
    %744 = vector.extract_strided_slice %702 {offsets = [0, 1024], sizes = [16, 128], strides = [1, 1]} : vector<16x2048xf32> to vector<16x128xf32>
    %745 = vector.broadcast %743 : vector<16x1xf32> to vector<16x128xf32>
    %746 = arith.mulf %745, %744 : vector<16x128xf32>
    %747 = arith.addf %742, %746 : vector<16x128xf32>
    %748 = vector.extract_strided_slice %121 {offsets = [0, 105], sizes = [16, 1], strides = [1, 1]} : vector<16x128xf32> to vector<16x1xf32>
    %749 = vector.extract_strided_slice %702 {offsets = [0, 1152], sizes = [16, 128], strides = [1, 1]} : vector<16x2048xf32> to vector<16x128xf32>
    %750 = vector.broadcast %748 : vector<16x1xf32> to vector<16x128xf32>
    %751 = arith.mulf %750, %749 : vector<16x128xf32>
    %752 = arith.addf %747, %751 : vector<16x128xf32>
    %753 = vector.extract_strided_slice %121 {offsets = [0, 106], sizes = [16, 1], strides = [1, 1]} : vector<16x128xf32> to vector<16x1xf32>
    %754 = vector.extract_strided_slice %702 {offsets = [0, 1280], sizes = [16, 128], strides = [1, 1]} : vector<16x2048xf32> to vector<16x128xf32>
    %755 = vector.broadcast %753 : vector<16x1xf32> to vector<16x128xf32>
    %756 = arith.mulf %755, %754 : vector<16x128xf32>
    %757 = arith.addf %752, %756 : vector<16x128xf32>
    %758 = vector.extract_strided_slice %121 {offsets = [0, 107], sizes = [16, 1], strides = [1, 1]} : vector<16x128xf32> to vector<16x1xf32>
    %759 = vector.extract_strided_slice %702 {offsets = [0, 1408], sizes = [16, 128], strides = [1, 1]} : vector<16x2048xf32> to vector<16x128xf32>
    %760 = vector.broadcast %758 : vector<16x1xf32> to vector<16x128xf32>
    %761 = arith.mulf %760, %759 : vector<16x128xf32>
    %762 = arith.addf %757, %761 : vector<16x128xf32>
    %763 = vector.extract_strided_slice %121 {offsets = [0, 108], sizes = [16, 1], strides = [1, 1]} : vector<16x128xf32> to vector<16x1xf32>
    %764 = vector.extract_strided_slice %702 {offsets = [0, 1536], sizes = [16, 128], strides = [1, 1]} : vector<16x2048xf32> to vector<16x128xf32>
    %765 = vector.broadcast %763 : vector<16x1xf32> to vector<16x128xf32>
    %766 = arith.mulf %765, %764 : vector<16x128xf32>
    %767 = arith.addf %762, %766 : vector<16x128xf32>
    %768 = vector.extract_strided_slice %121 {offsets = [0, 109], sizes = [16, 1], strides = [1, 1]} : vector<16x128xf32> to vector<16x1xf32>
    %769 = vector.extract_strided_slice %702 {offsets = [0, 1664], sizes = [16, 128], strides = [1, 1]} : vector<16x2048xf32> to vector<16x128xf32>
    %770 = vector.broadcast %768 : vector<16x1xf32> to vector<16x128xf32>
    %771 = arith.mulf %770, %769 : vector<16x128xf32>
    %772 = arith.addf %767, %771 : vector<16x128xf32>
    %773 = vector.extract_strided_slice %121 {offsets = [0, 110], sizes = [16, 1], strides = [1, 1]} : vector<16x128xf32> to vector<16x1xf32>
    %774 = vector.extract_strided_slice %702 {offsets = [0, 1792], sizes = [16, 128], strides = [1, 1]} : vector<16x2048xf32> to vector<16x128xf32>
    %775 = vector.broadcast %773 : vector<16x1xf32> to vector<16x128xf32>
    %776 = arith.mulf %775, %774 : vector<16x128xf32>
    %777 = arith.addf %772, %776 : vector<16x128xf32>
    %778 = vector.extract_strided_slice %121 {offsets = [0, 111], sizes = [16, 1], strides = [1, 1]} : vector<16x128xf32> to vector<16x1xf32>
    %779 = vector.extract_strided_slice %702 {offsets = [0, 1920], sizes = [16, 128], strides = [1, 1]} : vector<16x2048xf32> to vector<16x128xf32>
    %780 = vector.broadcast %778 : vector<16x1xf32> to vector<16x128xf32>
    %781 = arith.mulf %780, %779 : vector<16x128xf32>
    %782 = arith.addf %777, %781 : vector<16x128xf32>
    %c7_i32_169 = arith.constant 7 : i32
    %c3_i32_170 = arith.constant 3 : i32
    %c3_i32_171 = arith.constant 3 : i32
    %c0_i32_172 = arith.constant 0 : i32
    %c0_i32_173 = arith.constant 0 : i32
    %783 = tpu.memref_slice %arg10[%c7_i32_169, %c0_i32_172, %c0_i32_173] : memref<8x128x2048xbf16, #tpu.memory_space<any>> -> memref<1x128x2048xbf16, #tpu.memory_space<any>>
    %784 = tpu.memref_squeeze %783 : memref<1x128x2048xbf16, #tpu.memory_space<any>> -> memref<128x2048xbf16, #tpu.memory_space<any>>
    %c0_i32_174 = arith.constant 0 : i32
    %c0_i32_175 = arith.constant 0 : i32
    %785 = tpu.memref_slice %arg13[%c3_i32_170, %c0_i32_174, %c0_i32_175] : memref<4x128x2048xbf16, #tpu.memory_space<vmem>> -> memref<1x128x2048xbf16, #tpu.memory_space<vmem>>
    %786 = tpu.memref_squeeze %785 : memref<1x128x2048xbf16, #tpu.memory_space<vmem>> -> memref<128x2048xbf16, #tpu.memory_space<vmem>>
    %787 = tpu.memref_slice %arg14[%c3_i32_171] : memref<4x!tpu.dma_semaphore, #tpu.memory_space<semaphore_mem>> -> memref<1x!tpu.dma_semaphore, #tpu.memory_space<semaphore_mem>>
    %788 = tpu.memref_squeeze %787 : memref<1x!tpu.dma_semaphore, #tpu.memory_space<semaphore_mem>> -> memref<!tpu.dma_semaphore, #tpu.memory_space<semaphore_mem>>
    tpu.wait_dma2 semaphore(%788 : memref<!tpu.dma_semaphore, #tpu.memory_space<semaphore_mem>>) src(%784 : memref<128x2048xbf16, #tpu.memory_space<any>>) dst(%786 : memref<128x2048xbf16, #tpu.memory_space<vmem>>)
    %c3_176 = arith.constant 3 : index
    %c0_177 = arith.constant 0 : index
    %c0_178 = arith.constant 0 : index
    %789 = vector.load %arg13[%c3_176, %c0_177, %c0_178] : memref<4x128x2048xbf16, #tpu.memory_space<vmem>>, vector<1x128x2048xbf16>
    %790 = vector.shape_cast %789 : vector<1x128x2048xbf16> to vector<128x2048xbf16>
    %cst_179 = arith.constant dense<0.000000e+00> : vector<16x2048xf32>
    %791 = tpu.matmul %128, %790, %cst_179 {dimension_numbers = #tpu.dot_dimension_numbers<[1], [0], [0], [1], [0, 0, 1, 1], [], []>} : vector<16x128xbf16>, vector<128x2048xbf16>, vector<16x2048xf32> -> vector<16x2048xf32>
    %792 = vector.extract_strided_slice %121 {offsets = [0, 112], sizes = [16, 1], strides = [1, 1]} : vector<16x128xf32> to vector<16x1xf32>
    %793 = vector.extract_strided_slice %791 {offsets = [0, 0], sizes = [16, 128], strides = [1, 1]} : vector<16x2048xf32> to vector<16x128xf32>
    %794 = vector.broadcast %792 : vector<16x1xf32> to vector<16x128xf32>
    %795 = arith.mulf %794, %793 : vector<16x128xf32>
    %796 = arith.addf %782, %795 : vector<16x128xf32>
    %797 = vector.extract_strided_slice %121 {offsets = [0, 113], sizes = [16, 1], strides = [1, 1]} : vector<16x128xf32> to vector<16x1xf32>
    %798 = vector.extract_strided_slice %791 {offsets = [0, 128], sizes = [16, 128], strides = [1, 1]} : vector<16x2048xf32> to vector<16x128xf32>
    %799 = vector.broadcast %797 : vector<16x1xf32> to vector<16x128xf32>
    %800 = arith.mulf %799, %798 : vector<16x128xf32>
    %801 = arith.addf %796, %800 : vector<16x128xf32>
    %802 = vector.extract_strided_slice %121 {offsets = [0, 114], sizes = [16, 1], strides = [1, 1]} : vector<16x128xf32> to vector<16x1xf32>
    %803 = vector.extract_strided_slice %791 {offsets = [0, 256], sizes = [16, 128], strides = [1, 1]} : vector<16x2048xf32> to vector<16x128xf32>
    %804 = vector.broadcast %802 : vector<16x1xf32> to vector<16x128xf32>
    %805 = arith.mulf %804, %803 : vector<16x128xf32>
    %806 = arith.addf %801, %805 : vector<16x128xf32>
    %807 = vector.extract_strided_slice %121 {offsets = [0, 115], sizes = [16, 1], strides = [1, 1]} : vector<16x128xf32> to vector<16x1xf32>
    %808 = vector.extract_strided_slice %791 {offsets = [0, 384], sizes = [16, 128], strides = [1, 1]} : vector<16x2048xf32> to vector<16x128xf32>
    %809 = vector.broadcast %807 : vector<16x1xf32> to vector<16x128xf32>
    %810 = arith.mulf %809, %808 : vector<16x128xf32>
    %811 = arith.addf %806, %810 : vector<16x128xf32>
    %812 = vector.extract_strided_slice %121 {offsets = [0, 116], sizes = [16, 1], strides = [1, 1]} : vector<16x128xf32> to vector<16x1xf32>
    %813 = vector.extract_strided_slice %791 {offsets = [0, 512], sizes = [16, 128], strides = [1, 1]} : vector<16x2048xf32> to vector<16x128xf32>
    %814 = vector.broadcast %812 : vector<16x1xf32> to vector<16x128xf32>
    %815 = arith.mulf %814, %813 : vector<16x128xf32>
    %816 = arith.addf %811, %815 : vector<16x128xf32>
    %817 = vector.extract_strided_slice %121 {offsets = [0, 117], sizes = [16, 1], strides = [1, 1]} : vector<16x128xf32> to vector<16x1xf32>
    %818 = vector.extract_strided_slice %791 {offsets = [0, 640], sizes = [16, 128], strides = [1, 1]} : vector<16x2048xf32> to vector<16x128xf32>
    %819 = vector.broadcast %817 : vector<16x1xf32> to vector<16x128xf32>
    %820 = arith.mulf %819, %818 : vector<16x128xf32>
    %821 = arith.addf %816, %820 : vector<16x128xf32>
    %822 = vector.extract_strided_slice %121 {offsets = [0, 118], sizes = [16, 1], strides = [1, 1]} : vector<16x128xf32> to vector<16x1xf32>
    %823 = vector.extract_strided_slice %791 {offsets = [0, 768], sizes = [16, 128], strides = [1, 1]} : vector<16x2048xf32> to vector<16x128xf32>
    %824 = vector.broadcast %822 : vector<16x1xf32> to vector<16x128xf32>
    %825 = arith.mulf %824, %823 : vector<16x128xf32>
    %826 = arith.addf %821, %825 : vector<16x128xf32>
    %827 = vector.extract_strided_slice %121 {offsets = [0, 119], sizes = [16, 1], strides = [1, 1]} : vector<16x128xf32> to vector<16x1xf32>
    %828 = vector.extract_strided_slice %791 {offsets = [0, 896], sizes = [16, 128], strides = [1, 1]} : vector<16x2048xf32> to vector<16x128xf32>
    %829 = vector.broadcast %827 : vector<16x1xf32> to vector<16x128xf32>
    %830 = arith.mulf %829, %828 : vector<16x128xf32>
    %831 = arith.addf %826, %830 : vector<16x128xf32>
    %832 = vector.extract_strided_slice %121 {offsets = [0, 120], sizes = [16, 1], strides = [1, 1]} : vector<16x128xf32> to vector<16x1xf32>
    %833 = vector.extract_strided_slice %791 {offsets = [0, 1024], sizes = [16, 128], strides = [1, 1]} : vector<16x2048xf32> to vector<16x128xf32>
    %834 = vector.broadcast %832 : vector<16x1xf32> to vector<16x128xf32>
    %835 = arith.mulf %834, %833 : vector<16x128xf32>
    %836 = arith.addf %831, %835 : vector<16x128xf32>
    %837 = vector.extract_strided_slice %121 {offsets = [0, 121], sizes = [16, 1], strides = [1, 1]} : vector<16x128xf32> to vector<16x1xf32>
    %838 = vector.extract_strided_slice %791 {offsets = [0, 1152], sizes = [16, 128], strides = [1, 1]} : vector<16x2048xf32> to vector<16x128xf32>
    %839 = vector.broadcast %837 : vector<16x1xf32> to vector<16x128xf32>
    %840 = arith.mulf %839, %838 : vector<16x128xf32>
    %841 = arith.addf %836, %840 : vector<16x128xf32>
    %842 = vector.extract_strided_slice %121 {offsets = [0, 122], sizes = [16, 1], strides = [1, 1]} : vector<16x128xf32> to vector<16x1xf32>
    %843 = vector.extract_strided_slice %791 {offsets = [0, 1280], sizes = [16, 128], strides = [1, 1]} : vector<16x2048xf32> to vector<16x128xf32>
    %844 = vector.broadcast %842 : vector<16x1xf32> to vector<16x128xf32>
    %845 = arith.mulf %844, %843 : vector<16x128xf32>
    %846 = arith.addf %841, %845 : vector<16x128xf32>
    %847 = vector.extract_strided_slice %121 {offsets = [0, 123], sizes = [16, 1], strides = [1, 1]} : vector<16x128xf32> to vector<16x1xf32>
    %848 = vector.extract_strided_slice %791 {offsets = [0, 1408], sizes = [16, 128], strides = [1, 1]} : vector<16x2048xf32> to vector<16x128xf32>
    %849 = vector.broadcast %847 : vector<16x1xf32> to vector<16x128xf32>
    %850 = arith.mulf %849, %848 : vector<16x128xf32>
    %851 = arith.addf %846, %850 : vector<16x128xf32>
    %852 = vector.extract_strided_slice %121 {offsets = [0, 124], sizes = [16, 1], strides = [1, 1]} : vector<16x128xf32> to vector<16x1xf32>
    %853 = vector.extract_strided_slice %791 {offsets = [0, 1536], sizes = [16, 128], strides = [1, 1]} : vector<16x2048xf32> to vector<16x128xf32>
    %854 = vector.broadcast %852 : vector<16x1xf32> to vector<16x128xf32>
    %855 = arith.mulf %854, %853 : vector<16x128xf32>
    %856 = arith.addf %851, %855 : vector<16x128xf32>
    %857 = vector.extract_strided_slice %121 {offsets = [0, 125], sizes = [16, 1], strides = [1, 1]} : vector<16x128xf32> to vector<16x1xf32>
    %858 = vector.extract_strided_slice %791 {offsets = [0, 1664], sizes = [16, 128], strides = [1, 1]} : vector<16x2048xf32> to vector<16x128xf32>
    %859 = vector.broadcast %857 : vector<16x1xf32> to vector<16x128xf32>
    %860 = arith.mulf %859, %858 : vector<16x128xf32>
    %861 = arith.addf %856, %860 : vector<16x128xf32>
    %862 = vector.extract_strided_slice %121 {offsets = [0, 126], sizes = [16, 1], strides = [1, 1]} : vector<16x128xf32> to vector<16x1xf32>
    %863 = vector.extract_strided_slice %791 {offsets = [0, 1792], sizes = [16, 128], strides = [1, 1]} : vector<16x2048xf32> to vector<16x128xf32>
    %864 = vector.broadcast %862 : vector<16x1xf32> to vector<16x128xf32>
    %865 = arith.mulf %864, %863 : vector<16x128xf32>
    %866 = arith.addf %861, %865 : vector<16x128xf32>
    %867 = vector.extract_strided_slice %121 {offsets = [0, 127], sizes = [16, 1], strides = [1, 1]} : vector<16x128xf32> to vector<16x1xf32>
    %868 = vector.extract_strided_slice %791 {offsets = [0, 1920], sizes = [16, 128], strides = [1, 1]} : vector<16x2048xf32> to vector<16x128xf32>
    %869 = vector.broadcast %867 : vector<16x1xf32> to vector<16x128xf32>
    %870 = arith.mulf %869, %868 : vector<16x128xf32>
    %871 = arith.addf %866, %870 : vector<16x128xf32>
    %872 = arith.negf %871 : vector<16x128xf32>
    %873 = math.exp %872 : vector<16x128xf32>
    %cst_180 = arith.constant 1.000000e+00 : f32
    %874 = vector.broadcast %cst_180 : f32 to vector<16x128xf32>
    %875 = arith.addf %874, %873 : vector<16x128xf32>
    %876 = arith.divf %874, %875 : vector<16x128xf32>
    %c0_181 = arith.constant 0 : index
    %877 = memref.load %arg11[%c0_181] : memref<1xf32, #tpu.memory_space<smem>>
    %878 = vector.broadcast %877 : f32 to vector<16x128xf32>
    %879 = arith.mulf %878, %876 : vector<16x128xf32>
    %880 = arith.mulf %879, %19 : vector<16x128xf32>
    %cst_182 = arith.constant 1.000000e+00 : f32
    %881 = vector.broadcast %cst_182 : f32 to vector<16x128xf32>
    %882 = arith.subf %881, %876 : vector<16x128xf32>
    %883 = arith.mulf %882, %21 : vector<16x128xf32>
    %884 = arith.addf %880, %883 : vector<16x128xf32>
    %885 = vector.shape_cast %884 : vector<16x128xf32> to vector<2x8x128xf32>
    %c0_183 = arith.constant 0 : index
    %c0_184 = arith.constant 0 : index
    %c0_185 = arith.constant 0 : index
    %886 = vector.load %arg12[%c0_183, %c0_184, %c0_185] : memref<2x8x128xf32, #tpu.memory_space<vmem>>, vector<2x8x128xf32>
    tpu.vector_store %arg12[%c0_183, %c0_184, %c0_185], %885 {strides = array<i32>} : memref<2x8x128xf32, #tpu.memory_space<vmem>>, vector<2x8x128xf32>,
    return
  }
}

</mosaic_0001>

<llo_original>
// kernel: tpu_custom_call.1
$region0: #{tpu_custom_call.1}
  #allocation0 [shape = 'u32[]', space=smem, size = 0x4, offset = 0x4, fixed_abs, tag = 'smem constant byte address 0x4 - core index']
  #allocation1 [shape = 'u32[144,128]{1,0:T(1,128)}', space=vmem, size = 0x12000, scoped, tag = 'internal scratch']
  #allocation2 [shape = 'bf16[4,128,2048]{2,1,0:T(16,128)(2,1)}', space=vmem, size = 0x200000, scoped, tag = 'scratch operand']
  #allocation3 [shape = 's32[4]{0}', space=sflag, size = 0x10, scoped, tag = 'scratch operand']
  #allocation4 [shape = 'f32[1]{0:T(128)S(6)}', space=smem, size = 0x200, scoped, tag = 'scoped memory for tpu_custom_call.1']
  #allocation23 [shape = 's32[]', space=sflag, size = 0x4, offset = 0, fixed_abs, tag = 'sflag constant byte address 0x0 - dummy sync flag']
  #allocation25 [shape = 's32[]', space=sflag, size = 0x4, offset = 0, fixed_abs, tag = 'sflag constant byte address 0x0 - dummy sync flag']
  #allocation27 [shape = 's32[]', space=sflag, size = 0x4, offset = 0, fixed_abs, tag = 'sflag constant byte address 0x0 - dummy sync flag']
  #allocation29 [shape = 's32[]', space=sflag, size = 0x4, offset = 0, fixed_abs, tag = 'sflag constant byte address 0x0 - dummy sync flag']
  #allocation31 [shape = 's32[]', space=sflag, size = 0x4, offset = 0, fixed_abs, tag = 'sflag constant byte address 0x0 - dummy sync flag']
  #allocation33 [shape = 's32[]', space=sflag, size = 0x4, offset = 0, fixed_abs, tag = 'sflag constant byte address 0x0 - dummy sync flag']
  #allocation35 [shape = 's32[]', space=sflag, size = 0x4, offset = 0, fixed_abs, tag = 'sflag constant byte address 0x0 - dummy sync flag']
  #allocation37 [shape = 's32[]', space=sflag, size = 0x4, offset = 0, fixed_abs, tag = 'sflag constant byte address 0x0 - dummy sync flag']
  %s0 = inlined_call_operand.hbm [shape: f32[2,8,128], index: 0, kind: input, shape index: {}]
  %s1 = inlined_call_operand.hbm [shape: f32[2,8,128], index: 1, kind: input, shape index: {}]
  %s2 = inlined_call_operand.hbm [shape: f32[128,256], index: 2, kind: input, shape index: {}]
  %s3 = inlined_call_operand.hbm [shape: f32[1,256], index: 3, kind: input, shape index: {}]
  %s4 = inlined_call_operand.hbm [shape: f32[128,256], index: 4, kind: input, shape index: {}]
  %s5 = inlined_call_operand.hbm [shape: f32[1,256], index: 5, kind: input, shape index: {}]
  %s6 = inlined_call_operand.hbm [shape: f32[256,128], index: 6, kind: input, shape index: {}]
  %s7 = inlined_call_operand.hbm [shape: f32[1,128], index: 7, kind: input, shape index: {}]
  %s8 = inlined_call_operand.hbm [shape: f32[256,128], index: 8, kind: input, shape index: {}]
  %s9 = inlined_call_operand.hbm [shape: f32[1,128], index: 9, kind: input, shape index: {}]
  %s10 = inlined_call_operand.hbm [shape: bf16[8,128,2048], index: 10, kind: input, shape index: {}]
  %s11 = inlined_call_operand.<no memory space> [shape: f32[1], index: 11, kind: input, shape index: {}]
  %s12 = inlined_call_operand.hbm [shape: f32[2,8,128], index: 12, kind: output, shape index: {}]
  %s13 = sld [smem:[#allocation0]]
  $region94: #{tpu_custom_call.1} parent=0
    _
  %s15 = ssub.s32 1, %s13
  %s16 = scalar_select 0, %s15, %s13
  %17 = sst [smem:[#allocation4]] %s11
  $region1: #{tpu_custom_call.1} parent=0
    #allocation5 [shape = 'u8[8192]{0}', space=vmem, size = 0x2000, scoped, tag = 'input window, operand 0, single buffered']
    #allocation6 [shape = 's32[1]{0}', space=sflag, size = 0x4, scoped, tag = 'scoped memory for tpu_custom_call.1']
    #allocation7 [shape = 's32[1]{0}', space=sflag, size = 0x4, scoped, tag = 'scoped memory for tpu_custom_call.1']
    #allocation8 [shape = 'u8[8192]{0}', space=vmem, size = 0x2000, scoped, tag = 'input window, operand 1, single buffered']
    #allocation9 [shape = 's32[1]{0}', space=sflag, size = 0x4, scoped, tag = 'scoped memory for tpu_custom_call.1']
    #allocation10 [shape = 'u8[131072]{0}', space=vmem, size = 0x20000, scoped, tag = 'input window, operand 2, single buffered']
    #allocation11 [shape = 'u8[1024]{0}', space=vmem, size = 0x400, scoped, tag = 'input window, operand 3, single buffered']
    #allocation12 [shape = 's32[1]{0}', space=sflag, size = 0x4, scoped, tag = 'scoped memory for tpu_custom_call.1']
    #allocation13 [shape = 'u8[131072]{0}', space=vmem, size = 0x20000, scoped, tag = 'input window, operand 4, single buffered']
    #allocation14 [shape = 'u8[1024]{0}', space=vmem, size = 0x400, scoped, tag = 'input window, operand 5, single buffered']
    #allocation15 [shape = 's32[1]{0}', space=sflag, size = 0x4, scoped, tag = 'scoped memory for tpu_custom_call.1']
    #allocation16 [shape = 'u8[131072]{0}', space=vmem, size = 0x20000, scoped, tag = 'input window, operand 6, single buffered']
    #allocation17 [shape = 'u8[512]{0}', space=vmem, size = 0x400, scoped, tag = 'input window, operand 7, single buffered']
    #allocation18 [shape = 's32[1]{0}', space=sflag, size = 0x4, scoped, tag = 'scoped memory for tpu_custom_call.1']
    #allocation19 [shape = 'u8[131072]{0}', space=vmem, size = 0x20000, scoped, tag = 'input window, operand 8, single buffered']
    #allocation20 [shape = 'u8[512]{0}', space=vmem, size = 0x400, scoped, tag = 'input window, operand 9, single buffered']
    #allocation21 [shape = 's32[1]{0}', space=sflag, size = 0x4, scoped, tag = 'scoped memory for tpu_custom_call.1']
    #allocation22 [shape = 'u8[8192]{0}', space=vmem, size = 0x2000, scoped, tag = 'output window, operand 0, single buffered']
    #allocation24 [shape = 'u32[9]{0}', space=smem, size = 0x24, scoped, tag = 'DMA stride descriptor']
    #allocation26 [shape = 'u32[9]{0}', space=smem, size = 0x24, scoped, tag = 'DMA stride descriptor']
    #allocation28 [shape = 'u32[9]{0}', space=smem, size = 0x24, scoped, tag = 'DMA stride descriptor']
    #allocation30 [shape = 'u32[9]{0}', space=smem, size = 0x24, scoped, tag = 'DMA stride descriptor']
    #allocation32 [shape = 'u32[9]{0}', space=smem, size = 0x24, scoped, tag = 'DMA stride descriptor']
    #allocation34 [shape = 'u32[9]{0}', space=smem, size = 0x24, scoped, tag = 'DMA stride descriptor']
    #allocation36 [shape = 'u32[9]{0}', space=smem, size = 0x24, scoped, tag = 'DMA stride descriptor']
    #allocation38 [shape = 'u32[9]{0}', space=smem, size = 0x24, scoped, tag = 'DMA stride descriptor']
    %18 = vsyncpa [#allocation6], 0
    %19 = vsyncpa [#allocation9], 0
    %20 = vsyncpa [#allocation12], 0
    %21 = vsyncpa [#allocation15], 0
    %22 = vsyncpa [#allocation18], 0
    %23 = vsyncpa [#allocation21], 0
    %24 = vsyncpa [#allocation7], 0
    // Predicated region
    $region2: #{tpu_custom_call.1} parent=1 // pred_check
      _
    $region3: #{tpu_custom_call.1} parent=1 // pred_check_branch
      %26 = sbr.rel (0) target = $region5
    $region4: #{tpu_custom_call.1} parent=1 // pred_region
      %s28 = ssub.s32 256, 256
      %29 = vsyncadd [#allocation6], %s28
      %s30 = sshll.u32 [#allocation5], 4
      %s31 = int_to_ptr.vmem [resolvable:$true] %s30
      %36 = dma.hbm_to_vmem [thread:$0]  %s0, 256, %s31, [#allocation6], 128, 128, 8
    $region5: #{tpu_custom_call.1} parent=1 // pred_fallthru
      _
    // Predicated region
    $region6: #{tpu_custom_call.1} parent=1 // pred_check
      _
    $region7: #{tpu_custom_call.1} parent=1 // pred_check_branch
      %38 = sbr.rel (0) target = $region9
    $region8: #{tpu_custom_call.1} parent=1 // pred_region
      %s40 = ssub.s32 256, 256
      %41 = vsyncadd [#allocation9], %s40
      %s42 = sshll.u32 [#allocation8], 4
      %s43 = int_to_ptr.vmem [resolvable:$true] %s42
      %48 = dma.hbm_to_vmem [thread:$0]  %s1, 256, %s43, [#allocation9], 128, 128, 8
    $region9: #{tpu_custom_call.1} parent=1 // pred_fallthru
      _
    // Predicated region
    $region10: #{tpu_custom_call.1} parent=1 // pred_check
      _
    $region11: #{tpu_custom_call.1} parent=1 // pred_check_branch
      %50 = sbr.rel (0) target = $region13
    $region12: #{tpu_custom_call.1} parent=1 // pred_region
      %s52 = ssub.s32 4096, 4096
      %53 = vsyncadd [#allocation9], %s52
      %s54 = sshll.u32 [#allocation10], 4
      %s55 = int_to_ptr.vmem [resolvable:$true] %s54
      %60 = dma.hbm_to_vmem [thread:$0]  %s2, 4096, %s55, [#allocation9], 256, 256, 16
    $region13: #{tpu_custom_call.1} parent=1 // pred_fallthru
      _
    // Predicated region
    $region14: #{tpu_custom_call.1} parent=1 // pred_check
      _
    $region15: #{tpu_custom_call.1} parent=1 // pred_check_branch
      %62 = sbr.rel (0) target = $region17
    $region16: #{tpu_custom_call.1} parent=1 // pred_region
      %s64 = ssub.s32 32, 32
      %65 = vsyncadd [#allocation12], %s64
      %s67 = sshll.u32 [#allocation11], 4
      %s68 = int_to_ptr.vmem [resolvable:$true] %s67
      %70 = dma.hbm_to_vmem [thread:$0]  %s3, 32, %s68, [#allocation12]
    $region17: #{tpu_custom_call.1} parent=1 // pred_fallthru
      _
    // Predicated region
    $region18: #{tpu_custom_call.1} parent=1 // pred_check
      _
    $region19: #{tpu_custom_call.1} parent=1 // pred_check_branch
      %72 = sbr.rel (0) target = $region21
    $region20: #{tpu_custom_call.1} parent=1 // pred_region
      %s74 = ssub.s32 4096, 4096
      %75 = vsyncadd [#allocation12], %s74
      %s76 = sshll.u32 [#allocation13], 4
      %s77 = int_to_ptr.vmem [resolvable:$true] %s76
      %82 = dma.hbm_to_vmem [thread:$0]  %s4, 4096, %s77, [#allocation12], 256, 256, 16
    $region21: #{tpu_custom_call.1} parent=1 // pred_fallthru
      _
    // Predicated region
    $region22: #{tpu_custom_call.1} parent=1 // pred_check
      _
    $region23: #{tpu_custom_call.1} parent=1 // pred_check_branch
      %84 = sbr.rel (0) target = $region25
    $region24: #{tpu_custom_call.1} parent=1 // pred_region
      %s86 = ssub.s32 32, 32
      %87 = vsyncadd [#allocation15], %s86
      %s89 = sshll.u32 [#allocation14], 4
      %s90 = int_to_ptr.vmem [resolvable:$true] %s89
      %92 = dma.hbm_to_vmem [thread:$0]  %s5, 32, %s90, [#allocation15]
    $region25: #{tpu_custom_call.1} parent=1 // pred_fallthru
      _
    // Predicated region
    $region26: #{tpu_custom_call.1} parent=1 // pred_check
      _
    $region27: #{tpu_custom_call.1} parent=1 // pred_check_branch
      %94 = sbr.rel (0) target = $region29
    $region28: #{tpu_custom_call.1} parent=1 // pred_region
      %s96 = ssub.s32 4096, 4096
      %97 = vsyncadd [#allocation15], %s96
      %s98 = sshll.u32 [#allocation16], 4
      %s99 = int_to_ptr.vmem [resolvable:$true] %s98
      %104 = dma.hbm_to_vmem [thread:$0]  %s6, 4096, %s99, [#allocation15], 128, 128, 8
    $region29: #{tpu_custom_call.1} parent=1 // pred_fallthru
      _
    // Predicated region
    $region30: #{tpu_custom_call.1} parent=1 // pred_check
      _
    $region31: #{tpu_custom_call.1} parent=1 // pred_check_branch
      %106 = sbr.rel (0) target = $region33
    $region32: #{tpu_custom_call.1} parent=1 // pred_region
      %s108 = ssub.s32 16, 16
      %109 = vsyncadd [#allocation18], %s108
      %s111 = sshll.u32 [#allocation17], 4
      %s112 = int_to_ptr.vmem [resolvable:$true] %s111
      %114 = dma.hbm_to_vmem [thread:$0]  %s7, 16, %s112, [#allocation18]
    $region33: #{tpu_custom_call.1} parent=1 // pred_fallthru
      _
    // Predicated region
    $region34: #{tpu_custom_call.1} parent=1 // pred_check
      _
    $region35: #{tpu_custom_call.1} parent=1 // pred_check_branch
      %116 = sbr.rel (0) target = $region37
    $region36: #{tpu_custom_call.1} parent=1 // pred_region
      %s118 = ssub.s32 4096, 4096
      %119 = vsyncadd [#allocation18], %s118
      %s120 = sshll.u32 [#allocation19], 4
      %s121 = int_to_ptr.vmem [resolvable:$true] %s120
      %126 = dma.hbm_to_vmem [thread:$0]  %s8, 4096, %s121, [#allocation18], 128, 128, 8
    $region37: #{tpu_custom_call.1} parent=1 // pred_fallthru
      _
    // Predicated region
    $region38: #{tpu_custom_call.1} parent=1 // pred_check
      _
    $region39: #{tpu_custom_call.1} parent=1 // pred_check_branch
      %128 = sbr.rel (0) target = $region41
    $region40: #{tpu_custom_call.1} parent=1 // pred_region
      %s130 = ssub.s32 16, 16
      %131 = vsyncadd [#allocation21], %s130
      %s133 = sshll.u32 [#allocation20], 4
      %s134 = int_to_ptr.vmem [resolvable:$true] %s133
      %136 = dma.hbm_to_vmem [thread:$0]  %s9, 16, %s134, [#allocation21]
    $region41: #{tpu_custom_call.1} parent=1 // pred_fallthru
      _
    // Predicated region
    $region42: #{tpu_custom_call.1} parent=1 // pred_check
      _
    $region43: #{tpu_custom_call.1} parent=1 // pred_check_branch
      %138 = sbr.rel (0) target = $region45
    $region44: #{tpu_custom_call.1} parent=1 // pred_region
      _
    $region45: #{tpu_custom_call.1} parent=1 // pred_fallthru
      _
    // Predicated region
    $region46: #{tpu_custom_call.1} parent=1 // pred_check
      _
    $region47: #{tpu_custom_call.1} parent=1 // pred_check_branch
      %140 = sbr.rel (0) target = $region49
    $region48: #{tpu_custom_call.1} parent=1 // pred_region
      %141 = dma.done [#allocation6], 256
    $region49: #{tpu_custom_call.1} parent=1 // pred_fallthru
      _
    // Predicated region
    $region50: #{tpu_custom_call.1} parent=1 // pred_check
      _
    $region51: #{tpu_custom_call.1} parent=1 // pred_check_branch
      %143 = sbr.rel (0) target = $region53
    $region52: #{tpu_custom_call.1} parent=1 // pred_region
      %144 = dma.done [#allocation9], 256
    $region53: #{tpu_custom_call.1} parent=1 // pred_fallthru
      _
    // Predicated region
    $region54: #{tpu_custom_call.1} parent=1 // pred_check
      _
    $region55: #{tpu_custom_call.1} parent=1 // pred_check_branch
      %146 = sbr.rel (0) target = $region57
    $region56: #{tpu_custom_call.1} parent=1 // pred_region
      %147 = dma.done [#allocation9], 4096
    $region57: #{tpu_custom_call.1} parent=1 // pred_fallthru
      _
    // Predicated region
    $region58: #{tpu_custom_call.1} parent=1 // pred_check
      _
    $region59: #{tpu_custom_call.1} parent=1 // pred_check_branch
      %149 = sbr.rel (0) target = $region61
    $region60: #{tpu_custom_call.1} parent=1 // pred_region
      %150 = dma.done [#allocation12], 32
    $region61: #{tpu_custom_call.1} parent=1 // pred_fallthru
      _
    // Predicated region
    $region62: #{tpu_custom_call.1} parent=1 // pred_check
      _
    $region63: #{tpu_custom_call.1} parent=1 // pred_check_branch
      %152 = sbr.rel (0) target = $region65
    $region64: #{tpu_custom_call.1} parent=1 // pred_region
      %153 = dma.done [#allocation12], 4096
    $region65: #{tpu_custom_call.1} parent=1 // pred_fallthru
      _
    // Predicated region
    $region66: #{tpu_custom_call.1} parent=1 // pred_check
      _
    $region67: #{tpu_custom_call.1} parent=1 // pred_check_branch
      %155 = sbr.rel (0) target = $region69
    $region68: #{tpu_custom_call.1} parent=1 // pred_region
      %156 = dma.done [#allocation15], 32
    $region69: #{tpu_custom_call.1} parent=1 // pred_fallthru
      _
    // Predicated region
    $region70: #{tpu_custom_call.1} parent=1 // pred_check
      _
    $region71: #{tpu_custom_call.1} parent=1 // pred_check_branch
      %158 = sbr.rel (0) target = $region73
    $region72: #{tpu_custom_call.1} parent=1 // pred_region
      %159 = dma.done [#allocation15], 4096
    $region73: #{tpu_custom_call.1} parent=1 // pred_fallthru
      _
    // Predicated region
    $region74: #{tpu_custom_call.1} parent=1 // pred_check
      _
    $region75: #{tpu_custom_call.1} parent=1 // pred_check_branch
      %161 = sbr.rel (0) target = $region77
    $region76: #{tpu_custom_call.1} parent=1 // pred_region
      %162 = dma.done [#allocation18], 16
    $region77: #{tpu_custom_call.1} parent=1 // pred_fallthru
      _
    // Predicated region
    $region78: #{tpu_custom_call.1} parent=1 // pred_check
      _
    $region79: #{tpu_custom_call.1} parent=1 // pred_check_branch
      %164 = sbr.rel (0) target = $region81
    $region80: #{tpu_custom_call.1} parent=1 // pred_region
      %165 = dma.done [#allocation18], 4096
    $region81: #{tpu_custom_call.1} parent=1 // pred_fallthru
      _
    // Predicated region
    $region82: #{tpu_custom_call.1} parent=1 // pred_check
      _
    $region83: #{tpu_custom_call.1} parent=1 // pred_check_branch
      %167 = sbr.rel (0) target = $region85
    $region84: #{tpu_custom_call.1} parent=1 // pred_region
      %168 = dma.done [#allocation21], 16
    $region85: #{tpu_custom_call.1} parent=1 // pred_fallthru
      _
    %s171 = sshll.u32 1, 14
    %s172 = sxor.u32 4294967295, %s171
    %s174 = sld [smem:[#allocation0]]
    %s175 = sadd.s32 2, %s174
    %s177 = sshll.u32 7, 26
    %s178 = sxor.u32 4294967295, %s177
    %s179 = sand.u32 0, %s178
    %s180 = sshll.u32 %s175, 26
    %s181 = sor.u32 %s179, %s180
    %s182 = sshll.u32 [#allocation2], 4
    %s183 = int_to_ptr.vmem [resolvable:$true] %s182
    %186 = sst [smem:[#allocation24]] 2048
    %s187 = scalar_lea.smem [#allocation24], 1
    %188 = sst [smem:[%s187]] 2048
    %s189 = scalar_lea.smem [#allocation24], 2
    %190 = sst [smem:[%s189]] 16
    %s191 = scalar_lea.smem [#allocation24], 3
    %192 = sst [smem:[%s191]] 64
    %s193 = scalar_lea.smem [#allocation24], 4
    %194 = sst [smem:[%s193]] 128
    %s195 = scalar_lea.smem [#allocation24], 5
    %196 = sst [smem:[%s195]] 2
    %s197 = scalar_lea.smem [#allocation24], 6
    %198 = sst [smem:[%s197]] 1024
    %s199 = scalar_lea.smem [#allocation24], 7
    %200 = sst [smem:[%s199]] 64
    %s201 = scalar_lea.smem [#allocation24], 8
    %202 = sst [smem:[%s201]] 4
    %204 = dma.general %s10, 16384, %s183, [#allocation3], [#allocation23], [#allocation24], %s181, 0
    %s205 = scalar_lea.hbm %s10, 16384
    %s206 = scalar_lea.vmem [#allocation2], 1024
    %s207 = scalar_lea.sflag [#allocation3], 1
    %s209 = sshll.u32 1, 14
    %s210 = sxor.u32 4294967295, %s209
    %s212 = sadd.s32 2, %s174
    %s214 = sshll.u32 7, 26
    %s215 = sxor.u32 4294967295, %s214
    %s216 = sand.u32 0, %s215
    %s217 = sshll.u32 %s212, 26
    %s218 = sor.u32 %s216, %s217
    %s219 = sshll.u32 %s206, 4
    %s220 = int_to_ptr.vmem [resolvable:$true] %s219
    %223 = sst [smem:[#allocation26]] 2048
    %s224 = scalar_lea.smem [#allocation26], 1
    %225 = sst [smem:[%s224]] 2048
    %s226 = scalar_lea.smem [#allocation26], 2
    %227 = sst [smem:[%s226]] 16
    %s228 = scalar_lea.smem [#allocation26], 3
    %229 = sst [smem:[%s228]] 64
    %s230 = scalar_lea.smem [#allocation26], 4
    %231 = sst [smem:[%s230]] 128
    %s232 = scalar_lea.smem [#allocation26], 5
    %233 = sst [smem:[%s232]] 2
    %s234 = scalar_lea.smem [#allocation26], 6
    %235 = sst [smem:[%s234]] 1024
    %s236 = scalar_lea.smem [#allocation26], 7
    %237 = sst [smem:[%s236]] 64
    %s238 = scalar_lea.smem [#allocation26], 8
    %239 = sst [smem:[%s238]] 4
    %241 = dma.general %s205, 16384, %s220, %s207, [#allocation25], [#allocation26], %s218, 0
    %s242 = scalar_lea.hbm %s10, 32768
    %s243 = scalar_lea.vmem [#allocation2], 2048
    %s244 = scalar_lea.sflag [#allocation3], 2
    %s246 = sshll.u32 1, 14
    %s247 = sxor.u32 4294967295, %s246
    %s249 = sadd.s32 2, %s174
    %s251 = sshll.u32 7, 26
    %s252 = sxor.u32 4294967295, %s251
    %s253 = sand.u32 0, %s252
    %s254 = sshll.u32 %s249, 26
    %s255 = sor.u32 %s253, %s254
    %s256 = sshll.u32 %s243, 4
    %s257 = int_to_ptr.vmem [resolvable:$true] %s256
    %260 = sst [smem:[#allocation28]] 2048
    %s261 = scalar_lea.smem [#allocation28], 1
    %262 = sst [smem:[%s261]] 2048
    %s263 = scalar_lea.smem [#allocation28], 2
    %264 = sst [smem:[%s263]] 16
    %s265 = scalar_lea.smem [#allocation28], 3
    %266 = sst [smem:[%s265]] 64
    %s267 = scalar_lea.smem [#allocation28], 4
    %268 = sst [smem:[%s267]] 128
    %s269 = scalar_lea.smem [#allocation28], 5
    %270 = sst [smem:[%s269]] 2
    %s271 = scalar_lea.smem [#allocation28], 6
    %272 = sst [smem:[%s271]] 1024
    %s273 = scalar_lea.smem [#allocation28], 7
    %274 = sst [smem:[%s273]] 64
    %s275 = scalar_lea.smem [#allocation28], 8
    %276 = sst [smem:[%s275]] 4
    %278 = dma.general %s242, 16384, %s257, %s244, [#allocation27], [#allocation28], %s255, 0
    %v279 = vld [vmem:[#allocation5] sm:$0xff]
    %v280 = vld [vmem:[#allocation5 + $0x8] sm:$0xff]
    %v281 = vld [vmem:[#allocation8] sm:$0xff]
    %v282 = vld [vmem:[#allocation8 + $0x8] sm:$0xff]
    %v283 = vld [vmem:[#allocation10] sm:$0xff]
    %v284 = vld [vmem:[#allocation10 + $0x8] sm:$0xff]
    %v285 = vld [vmem:[#allocation10 + $0x10] sm:$0xff]
    %v286 = vld [vmem:[#allocation10 + $0x18] sm:$0xff]
    %v287 = vld [vmem:[#allocation10 + $0x20] sm:$0xff]
    %v288 = vld [vmem:[#allocation10 + $0x28] sm:$0xff]
    %v289 = vld [vmem:[#allocation10 + $0x30] sm:$0xff]
    %v290 = vld [vmem:[#allocation10 + $0x38] sm:$0xff]
    %v291 = vld [vmem:[#allocation10 + $0x40] sm:$0xff]
    %v292 = vld [vmem:[#allocation10 + $0x48] sm:$0xff]
    %v293 = vld [vmem:[#allocation10 + $0x50] sm:$0xff]
    %v294 = vld [vmem:[#allocation10 + $0x58] sm:$0xff]
    %v295 = vld [vmem:[#allocation10 + $0x60] sm:$0xff]
    %v296 = vld [vmem:[#allocation10 + $0x68] sm:$0xff]
    %v297 = vld [vmem:[#allocation10 + $0x70] sm:$0xff]
    %v298 = vld [vmem:[#allocation10 + $0x78] sm:$0xff]
    %v299 = vld [vmem:[#allocation10 + $0x80] sm:$0xff]
    %v300 = vld [vmem:[#allocation10 + $0x88] sm:$0xff]
    %v301 = vld [vmem:[#allocation10 + $0x90] sm:$0xff]
    %v302 = vld [vmem:[#allocation10 + $0x98] sm:$0xff]
    %v303 = vld [vmem:[#allocation10 + $0xa0] sm:$0xff]
    %v304 = vld [vmem:[#allocation10 + $0xa8] sm:$0xff]
    %v305 = vld [vmem:[#allocation10 + $0xb0] sm:$0xff]
    %v306 = vld [vmem:[#allocation10 + $0xb8] sm:$0xff]
    %v307 = vld [vmem:[#allocation10 + $0xc0] sm:$0xff]
    %v308 = vld [vmem:[#allocation10 + $0xc8] sm:$0xff]
    %v309 = vld [vmem:[#allocation10 + $0xd0] sm:$0xff]
    %v310 = vld [vmem:[#allocation10 + $0xd8] sm:$0xff]
    %v311 = vld [vmem:[#allocation10 + $0xe0] sm:$0xff]
    %v312 = vld [vmem:[#allocation10 + $0xe8] sm:$0xff]
    %v313 = vld [vmem:[#allocation10 + $0xf0] sm:$0xff]
    %v314 = vld [vmem:[#allocation10 + $0xf8] sm:$0xff]
    %v315 = vld [vmem:[#allocation11] sm:$0x3]
    %v317 = vlaneseq
    %v318 = vshrl.u32 %v317, 7
    %v319 = vsub.s32 0, %v318
    %v320 = vrot.slane %v315, %v319
    %v321 = vlaneseq
    %v322 = vshrl.u32 %v321, 7
    %v323 = vsub.s32 1, %v322
    %v324 = vrot.slane %v315, %v323
    %327 = vmatprep.subr.mxu0 %v284
    %328 = vmatpush1.msra.mxu0 %v283
    %329 = vmatprep.subr.mxu0 %v286
    %330 = vmatpush1.msra.mxu0 %v285
    %331 = vmatprep.subr.mxu0 %v288
    %332 = vmatpush1.msra.mxu0 %v287
    %333 = vmatprep.subr.mxu0 %v290
    %334 = vmatpush1.msra.mxu0 %v289
    %335 = vmatprep.subr.mxu0 %v292
    %336 = vmatpush1.msra.mxu0 %v291
    %337 = vmatprep.subr.mxu0 %v294
    %338 = vmatpush1.msra.mxu0 %v293
    %339 = vmatprep.subr.mxu0 %v296
    %340 = vmatpush1.msra.mxu0 %v295
    %341 = vmatprep.subr.mxu0 %v298
    %342 = vmatpush1.msra.mxu0 %v297
    %343 = vmatprep.subr.mxu0 %v300
    %344 = vmatpush1.msra.mxu0 %v299
    %345 = vmatprep.subr.mxu0 %v302
    %346 = vmatpush1.msra.mxu0 %v301
    %347 = vmatprep.subr.mxu0 %v304
    %348 = vmatpush1.msra.mxu0 %v303
    %349 = vmatprep.subr.mxu0 %v306
    %350 = vmatpush1.msra.mxu0 %v305
    %351 = vmatprep.subr.mxu0 %v308
    %352 = vmatpush1.msra.mxu0 %v307
    %353 = vmatprep.subr.mxu0 %v310
    %354 = vmatpush1.msra.mxu0 %v309
    %355 = vmatprep.subr.mxu0 %v312
    %356 = vmatpush1.msra.mxu0 %v311
    %357 = vmatprep.subr.mxu0 %v314
    %358 = vmatpush1.msra.mxu0 %v313
    %359 = vmatprep.subr.mxu0 0.0
    %360 = vmatpush1.msra.mxu0 0.0
    %361 = vmatprep.subr.mxu0 0.0
    %362 = vmatpush1.msra.mxu0 0.0
    %363 = vmatprep.subr.mxu0 0.0
    %364 = vmatpush1.msra.mxu0 0.0
    %365 = vmatprep.subr.mxu0 0.0
    %366 = vmatpush1.msra.mxu0 0.0
    %367 = vmatprep.subr.mxu0 0.0
    %368 = vmatpush1.msra.mxu0 0.0
    %369 = vmatprep.subr.mxu0 0.0
    %370 = vmatpush1.msra.mxu0 0.0
    %371 = vmatprep.subr.mxu0 0.0
    %372 = vmatpush1.msra.mxu0 0.0
    %373 = vmatprep.subr.mxu0 0.0
    %374 = vmatpush1.msra.mxu0 0.0
    %375 = vmatprep.subr.mxu0 0.0
    %376 = vmatpush1.msra.mxu0 0.0
    %377 = vmatprep.subr.mxu0 0.0
    %378 = vmatpush1.msra.mxu0 0.0
    %379 = vmatprep.subr.mxu0 0.0
    %380 = vmatpush1.msra.mxu0 0.0
    %381 = vmatprep.subr.mxu0 0.0
    %382 = vmatpush1.msra.mxu0 0.0
    %383 = vmatprep.subr.mxu0 0.0
    %384 = vmatpush1.msra.mxu0 0.0
    %385 = vmatprep.subr.mxu0 0.0
    %386 = vmatpush1.msra.mxu0 0.0
    %387 = vmatprep.subr.mxu0 0.0
    %388 = vmatpush1.msra.mxu0 0.0
    %389 = vmatprep.subr.mxu0 0.0
    %390 = vmatpush1.msra.mxu0 0.0
    %391 = vmatprep.mubr.f32.mxu0 0.0
    %392 = vmatmul.mubr.f32.gmra.mrb[0].mxu0 %v279
    %v393 = vpop.f32.mrb[0].mxu0
    %v394 = vadd.f32 %v320, %v393
    %v395 = vpop.f32.mrb[0].mxu0
    %v396 = vadd.f32 %v324, %v395
    %397 = vmatprep.mubr.f32.mxu0 0.0
    %398 = vmatmul.mubr.f32.gmra.mrb[0].mxu0 %v280
    %v399 = vpop.f32.mrb[0].mxu0
    %v400 = vadd.f32 %v320, %v399
    %v401 = vpop.f32.mrb[0].mxu0
    %v402 = vadd.f32 %v324, %v401
    %403 = vdwg.mxu0
    %v404 = vld [vmem:[#allocation13] sm:$0xff]
    %v405 = vld [vmem:[#allocation13 + $0x8] sm:$0xff]
    %v406 = vld [vmem:[#allocation13 + $0x10] sm:$0xff]
    %v407 = vld [vmem:[#allocation13 + $0x18] sm:$0xff]
    %v408 = vld [vmem:[#allocation13 + $0x20] sm:$0xff]
    %v409 = vld [vmem:[#allocation13 + $0x28] sm:$0xff]
    %v410 = vld [vmem:[#allocation13 + $0x30] sm:$0xff]
    %v411 = vld [vmem:[#allocation13 + $0x38] sm:$0xff]
    %v412 = vld [vmem:[#allocation13 + $0x40] sm:$0xff]
    %v413 = vld [vmem:[#allocation13 + $0x48] sm:$0xff]
    %v414 = vld [vmem:[#allocation13 + $0x50] sm:$0xff]
    %v415 = vld [vmem:[#allocation13 + $0x58] sm:$0xff]
    %v416 = vld [vmem:[#allocation13 + $0x60] sm:$0xff]
    %v417 = vld [vmem:[#allocation13 + $0x68] sm:$0xff]
    %v418 = vld [vmem:[#allocation13 + $0x70] sm:$0xff]
    %v419 = vld [vmem:[#allocation13 + $0x78] sm:$0xff]
    %v420 = vld [vmem:[#allocation13 + $0x80] sm:$0xff]
    %v421 = vld [vmem:[#allocation13 + $0x88] sm:$0xff]
    %v422 = vld [vmem:[#allocation13 + $0x90] sm:$0xff]
    %v423 = vld [vmem:[#allocation13 + $0x98] sm:$0xff]
    %v424 = vld [vmem:[#allocation13 + $0xa0] sm:$0xff]
    %v425 = vld [vmem:[#allocation13 + $0xa8] sm:$0xff]
    %v426 = vld [vmem:[#allocation13 + $0xb0] sm:$0xff]
    %v427 = vld [vmem:[#allocation13 + $0xb8] sm:$0xff]
    %v428 = vld [vmem:[#allocation13 + $0xc0] sm:$0xff]
    %v429 = vld [vmem:[#allocation13 + $0xc8] sm:$0xff]
    %v430 = vld [vmem:[#allocation13 + $0xd0] sm:$0xff]
    %v431 = vld [vmem:[#allocation13 + $0xd8] sm:$0xff]
    %v432 = vld [vmem:[#allocation13 + $0xe0] sm:$0xff]
    %v433 = vld [vmem:[#allocation13 + $0xe8] sm:$0xff]
    %v434 = vld [vmem:[#allocation13 + $0xf0] sm:$0xff]
    %v435 = vld [vmem:[#allocation13 + $0xf8] sm:$0xff]
    %v436 = vld [vmem:[#allocation14] sm:$0x3]
    %v438 = vlaneseq
    %v439 = vshrl.u32 %v438, 7
    %v440 = vsub.s32 0, %v439
    %v441 = vrot.slane %v436, %v440
    %v442 = vlaneseq
    %v443 = vshrl.u32 %v442, 7
    %v444 = vsub.s32 1, %v443
    %v445 = vrot.slane %v436, %v444
    %448 = vmatprep.subr.mxu0 %v405
    %449 = vmatpush1.msra.mxu0 %v404
    %450 = vmatprep.subr.mxu0 %v407
    %451 = vmatpush1.msra.mxu0 %v406
    %452 = vmatprep.subr.mxu0 %v409
    %453 = vmatpush1.msra.mxu0 %v408
    %454 = vmatprep.subr.mxu0 %v411
    %455 = vmatpush1.msra.mxu0 %v410
    %456 = vmatprep.subr.mxu0 %v413
    %457 = vmatpush1.msra.mxu0 %v412
    %458 = vmatprep.subr.mxu0 %v415
    %459 = vmatpush1.msra.mxu0 %v414
    %460 = vmatprep.subr.mxu0 %v417
    %461 = vmatpush1.msra.mxu0 %v416
    %462 = vmatprep.subr.mxu0 %v419
    %463 = vmatpush1.msra.mxu0 %v418
    %464 = vmatprep.subr.mxu0 %v421
    %465 = vmatpush1.msra.mxu0 %v420
    %466 = vmatprep.subr.mxu0 %v423
    %467 = vmatpush1.msra.mxu0 %v422
    %468 = vmatprep.subr.mxu0 %v425
    %469 = vmatpush1.msra.mxu0 %v424
    %470 = vmatprep.subr.mxu0 %v427
    %471 = vmatpush1.msra.mxu0 %v426
    %472 = vmatprep.subr.mxu0 %v429
    %473 = vmatpush1.msra.mxu0 %v428
    %474 = vmatprep.subr.mxu0 %v431
    %475 = vmatpush1.msra.mxu0 %v430
    %476 = vmatprep.subr.mxu0 %v433
    %477 = vmatpush1.msra.mxu0 %v432
    %478 = vmatprep.subr.mxu0 %v435
    %479 = vmatpush1.msra.mxu0 %v434
    %480 = vmatprep.subr.mxu0 0.0
    %481 = vmatpush1.msra.mxu0 0.0
    %482 = vmatprep.subr.mxu0 0.0
    %483 = vmatpush1.msra.mxu0 0.0
    %484 = vmatprep.subr.mxu0 0.0
    %485 = vmatpush1.msra.mxu0 0.0
    %486 = vmatprep.subr.mxu0 0.0
    %487 = vmatpush1.msra.mxu0 0.0
    %488 = vmatprep.subr.mxu0 0.0
    %489 = vmatpush1.msra.mxu0 0.0
    %490 = vmatprep.subr.mxu0 0.0
    %491 = vmatpush1.msra.mxu0 0.0
    %492 = vmatprep.subr.mxu0 0.0
    %493 = vmatpush1.msra.mxu0 0.0
    %494 = vmatprep.subr.mxu0 0.0
    %495 = vmatpush1.msra.mxu0 0.0
    %496 = vmatprep.subr.mxu0 0.0
    %497 = vmatpush1.msra.mxu0 0.0
    %498 = vmatprep.subr.mxu0 0.0
    %499 = vmatpush1.msra.mxu0 0.0
    %500 = vmatprep.subr.mxu0 0.0
    %501 = vmatpush1.msra.mxu0 0.0
    %502 = vmatprep.subr.mxu0 0.0
    %503 = vmatpush1.msra.mxu0 0.0
    %504 = vmatprep.subr.mxu0 0.0
    %505 = vmatpush1.msra.mxu0 0.0
    %506 = vmatprep.subr.mxu0 0.0
    %507 = vmatpush1.msra.mxu0 0.0
    %508 = vmatprep.subr.mxu0 0.0
    %509 = vmatpush1.msra.mxu0 0.0
    %510 = vmatprep.subr.mxu0 0.0
    %511 = vmatpush1.msra.mxu0 0.0
    %512 = vmatprep.mubr.f32.mxu0 0.0
    %513 = vmatmul.mubr.f32.gmra.mrb[0].mxu0 %v281
    %v514 = vpop.f32.mrb[0].mxu0
    %v515 = vadd.f32 %v441, %v514
    %v516 = vpop.f32.mrb[0].mxu0
    %v517 = vadd.f32 %v445, %v516
    %518 = vmatprep.mubr.f32.mxu0 0.0
    %519 = vmatmul.mubr.f32.gmra.mrb[0].mxu0 %v282
    %v520 = vpop.f32.mrb[0].mxu0
    %v521 = vadd.f32 %v441, %v520
    %v522 = vpop.f32.mrb[0].mxu0
    %v523 = vadd.f32 %v445, %v522
    %524 = vdwg.mxu0
    %525 = vmatprep.subr.mxu0 0.0
    %526 = vmatpush1.xpose.msra.mxu0 %v517
    %527 = vmatprep.subr.mxu0 0.0
    %528 = vmatpush1.xpose.msra.mxu0 0.0
    %529 = vmatprep.subr.mxu0 0.0
    %530 = vmatpush1.xpose.msra.mxu0 0.0
    %531 = vmatprep.subr.mxu0 0.0
    %532 = vmatpush1.xpose.msra.mxu0 0.0
    %533 = vmatprep.subr.mxu0 0.0
    %534 = vmatpush1.xpose.msra.mxu0 0.0
    %535 = vmatprep.subr.mxu0 0.0
    %536 = vmatpush1.xpose.msra.mxu0 0.0
    %537 = vmatprep.subr.mxu0 0.0
    %538 = vmatpush1.xpose.msra.mxu0 0.0
    %539 = vmatprep.subr.mxu0 0.0
    %540 = vmatpush1.xpose.msra.mxu0 0.0
    %541 = vmatprep.subr.mxu0 0.0
    %542 = vmatpush1.xpose.msra.mxu0 0.0
    %543 = vmatprep.subr.mxu0 0.0
    %544 = vmatpush1.xpose.msra.mxu0 0.0
    %545 = vmatprep.subr.mxu0 0.0
    %546 = vmatpush1.xpose.msra.mxu0 0.0
    %547 = vmatprep.subr.mxu0 0.0
    %548 = vmatpush1.xpose.msra.mxu0 0.0
    %549 = vmatprep.subr.mxu0 0.0
    %550 = vmatpush1.xpose.msra.mxu0 0.0
    %551 = vmatprep.subr.mxu0 0.0
    %552 = vmatpush1.xpose.msra.mxu0 0.0
    %553 = vmatprep.subr.mxu0 0.0
    %554 = vmatpush1.xpose.msra.mxu0 0.0
    %555 = vmatprep.subr.mxu0 0.0
    %556 = vmatpush1.xpose.msra.mxu0 0.0
    %557 = vmatprep.subr.mxu0 0.0
    %558 = vmatpush1.xpose.msra.mxu0 0.0
    %559 = vmatprep.subr.mxu0 0.0
    %560 = vmatpush1.xpose.msra.mxu0 0.0
    %561 = vmatprep.subr.mxu0 0.0
    %562 = vmatpush1.xpose.msra.mxu0 0.0
    %563 = vmatprep.subr.mxu0 0.0
    %564 = vmatpush1.xpose.msra.mxu0 0.0
    %565 = vmatprep.subr.mxu0 0.0
    %566 = vmatpush1.xpose.msra.mxu0 0.0
    %567 = vmatprep.subr.mxu0 0.0
    %568 = vmatpush1.xpose.msra.mxu0 0.0
    %569 = vmatprep.subr.mxu0 0.0
    %570 = vmatpush1.xpose.msra.mxu0 0.0
    %571 = vmatprep.subr.mxu0 0.0
    %572 = vmatpush1.xpose.msra.mxu0 0.0
    %573 = vmatprep.subr.mxu0 0.0
    %574 = vmatpush1.xpose.msra.mxu0 0.0
    %575 = vmatprep.subr.mxu0 0.0
    %576 = vmatpush1.xpose.msra.mxu0 0.0
    %577 = vmatprep.subr.mxu0 0.0
    %578 = vmatpush1.xpose.msra.mxu0 0.0
    %579 = vmatprep.subr.mxu0 0.0
    %580 = vmatpush1.xpose.msra.mxu0 0.0
    %581 = vmatprep.subr.mxu0 0.0
    %582 = vmatpush1.xpose.msra.mxu0 0.0
    %583 = vmatprep.subr.mxu0 0.0
    %584 = vmatpush1.xpose.msra.mxu0 0.0
    %585 = vmatprep.subr.mxu0 0.0
    %586 = vmatpush1.xpose.msra.mxu0 0.0
    %587 = vmatprep.subr.mxu0 0.0
    %588 = vmatpush1.xpose.msra.mxu0 0.0
    %589 = vmatprep.mubr.f32.mxu0 0.0
    %590 = vmatmul.mubr.f32.gmra.mrb[0].mxu0 %v394
    %v591 = vpop.f32.mrb[0].mxu0
    %v592 = vadd.f32 0.0, %v591
    %v593 = vpop.f32.mrb[0].mxu0
    %594 = vdwg.mxu0
    %595 = vmatprep.subr.mxu0 0.0
    %596 = vmatpush1.xpose.msra.mxu0 %v523
    %597 = vmatprep.subr.mxu0 0.0
    %598 = vmatpush1.xpose.msra.mxu0 0.0
    %599 = vmatprep.subr.mxu0 0.0
    %600 = vmatpush1.xpose.msra.mxu0 0.0
    %601 = vmatprep.subr.mxu0 0.0
    %602 = vmatpush1.xpose.msra.mxu0 0.0
    %603 = vmatprep.subr.mxu0 0.0
    %604 = vmatpush1.xpose.msra.mxu0 0.0
    %605 = vmatprep.subr.mxu0 0.0
    %606 = vmatpush1.xpose.msra.mxu0 0.0
    %607 = vmatprep.subr.mxu0 0.0
    %608 = vmatpush1.xpose.msra.mxu0 0.0
    %609 = vmatprep.subr.mxu0 0.0
    %610 = vmatpush1.xpose.msra.mxu0 0.0
    %611 = vmatprep.subr.mxu0 0.0
    %612 = vmatpush1.xpose.msra.mxu0 0.0
    %613 = vmatprep.subr.mxu0 0.0
    %614 = vmatpush1.xpose.msra.mxu0 0.0
    %615 = vmatprep.subr.mxu0 0.0
    %616 = vmatpush1.xpose.msra.mxu0 0.0
    %617 = vmatprep.subr.mxu0 0.0
    %618 = vmatpush1.xpose.msra.mxu0 0.0
    %619 = vmatprep.subr.mxu0 0.0
    %620 = vmatpush1.xpose.msra.mxu0 0.0
    %621 = vmatprep.subr.mxu0 0.0
    %622 = vmatpush1.xpose.msra.mxu0 0.0
    %623 = vmatprep.subr.mxu0 0.0
    %624 = vmatpush1.xpose.msra.mxu0 0.0
    %625 = vmatprep.subr.mxu0 0.0
    %626 = vmatpush1.xpose.msra.mxu0 0.0
    %627 = vmatprep.subr.mxu0 0.0
    %628 = vmatpush1.xpose.msra.mxu0 0.0
    %629 = vmatprep.subr.mxu0 0.0
    %630 = vmatpush1.xpose.msra.mxu0 0.0
    %631 = vmatprep.subr.mxu0 0.0
    %632 = vmatpush1.xpose.msra.mxu0 0.0
    %633 = vmatprep.subr.mxu0 0.0
    %634 = vmatpush1.xpose.msra.mxu0 0.0
    %635 = vmatprep.subr.mxu0 0.0
    %636 = vmatpush1.xpose.msra.mxu0 0.0
    %637 = vmatprep.subr.mxu0 0.0
    %638 = vmatpush1.xpose.msra.mxu0 0.0
    %639 = vmatprep.subr.mxu0 0.0
    %640 = vmatpush1.xpose.msra.mxu0 0.0
    %641 = vmatprep.subr.mxu0 0.0
    %642 = vmatpush1.xpose.msra.mxu0 0.0
    %643 = vmatprep.subr.mxu0 0.0
    %644 = vmatpush1.xpose.msra.mxu0 0.0
    %645 = vmatprep.subr.mxu0 0.0
    %646 = vmatpush1.xpose.msra.mxu0 0.0
    %647 = vmatprep.subr.mxu0 0.0
    %648 = vmatpush1.xpose.msra.mxu0 0.0
    %649 = vmatprep.subr.mxu0 0.0
    %650 = vmatpush1.xpose.msra.mxu0 0.0
    %651 = vmatprep.subr.mxu0 0.0
    %652 = vmatpush1.xpose.msra.mxu0 0.0
    %653 = vmatprep.subr.mxu0 0.0
    %654 = vmatpush1.xpose.msra.mxu0 0.0
    %655 = vmatprep.subr.mxu0 0.0
    %656 = vmatpush1.xpose.msra.mxu0 0.0
    %657 = vmatprep.subr.mxu0 0.0
    %658 = vmatpush1.xpose.msra.mxu0 0.0
    %659 = vmatprep.mubr.f32.mxu0 0.0
    %660 = vmatmul.mubr.f32.gmra.mrb[0].mxu0 %v400
    %v661 = vpop.f32.mrb[0].mxu0
    %v662 = vadd.f32 0.0, %v661
    %v663 = vpop.f32.mrb[0].mxu0
    %664 = vdwg.mxu0
    %vm665 = vcmask 64512
    %v666 = vsel %vm665, %v592, -inf
    %667 = vmax.xlane.f32.xlu0 %v666
    %v668 = vpop.xlane.xlu0 %667
    %v669 = vsel %vm665, %v662, -inf
    %670 = vmax.xlane.f32.xlu0 %v669
    %v671 = vpop.xlane.xlu0 %670
    %v672 = vsub.f32 %v592, %v668
    %v673 = vsub.f32 %v662, %v671
    %v674 = vmul.f32 %v672, 1.442695
    %v675 = vpow.pop %v674
    %v676 = vmul.f32 %v673, 1.442695
    %v677 = vpow.pop %v676
    %v678 = vsel %vm665, %v675, 0.0
    %679 = vadd.xlane.f32.xlu0 %v678
    %v680 = vpop.xlane.xlu0 %679
    %v681 = vsel %vm665, %v677, 0.0
    %682 = vadd.xlane.f32.xlu0 %v681
    %v683 = vpop.xlane.xlu0 %682
    %v684 = vrcp.pop %v680
    %v685 = vmul.f32 0.088388346, %v684
    %v686 = vrcp.pop %v683
    %v687 = vmul.f32 0.088388346, %v686
    %v688 = vmul.f32 %v675, %v685
    %v689 = vmul.f32 %v677, %v687
    %v691 = vsel %vm665, %v688, 0
    %693 = vmatprep.subr.mxu0 0.0
    %694 = vmatpush1.msra.mxu0 %v281
    %695 = vmatprep.subr.mxu0 0.0
    %696 = vmatpush1.msra.mxu0 0.0
    %697 = vmatprep.subr.mxu0 0.0
    %698 = vmatpush1.msra.mxu0 0.0
    %699 = vmatprep.subr.mxu0 0.0
    %700 = vmatpush1.msra.mxu0 0.0
    %701 = vmatprep.subr.mxu0 0.0
    %702 = vmatpush1.msra.mxu0 0.0
    %703 = vmatprep.subr.mxu0 0.0
    %704 = vmatpush1.msra.mxu0 0.0
    %705 = vmatprep.subr.mxu0 0.0
    %706 = vmatpush1.msra.mxu0 0.0
    %707 = vmatprep.subr.mxu0 0.0
    %708 = vmatpush1.msra.mxu0 0.0
    %709 = vmatprep.subr.mxu0 0.0
    %710 = vmatpush1.msra.mxu0 0.0
    %711 = vmatprep.subr.mxu0 0.0
    %712 = vmatpush1.msra.mxu0 0.0
    %713 = vmatprep.subr.mxu0 0.0
    %714 = vmatpush1.msra.mxu0 0.0
    %715 = vmatprep.subr.mxu0 0.0
    %716 = vmatpush1.msra.mxu0 0.0
    %717 = vmatprep.subr.mxu0 0.0
    %718 = vmatpush1.msra.mxu0 0.0
    %719 = vmatprep.subr.mxu0 0.0
    %720 = vmatpush1.msra.mxu0 0.0
    %721 = vmatprep.subr.mxu0 0.0
    %722 = vmatpush1.msra.mxu0 0.0
    %723 = vmatprep.subr.mxu0 0.0
    %724 = vmatpush1.msra.mxu0 0.0
    %725 = vmatprep.subr.mxu0 0.0
    %726 = vmatpush1.msra.mxu0 0.0
    %727 = vmatprep.subr.mxu0 0.0
    %728 = vmatpush1.msra.mxu0 0.0
    %729 = vmatprep.subr.mxu0 0.0
    %730 = vmatpush1.msra.mxu0 0.0
    %731 = vmatprep.subr.mxu0 0.0
    %732 = vmatpush1.msra.mxu0 0.0
    %733 = vmatprep.subr.mxu0 0.0
    %734 = vmatpush1.msra.mxu0 0.0
    %735 = vmatprep.subr.mxu0 0.0
    %736 = vmatpush1.msra.mxu0 0.0
    %737 = vmatprep.subr.mxu0 0.0
    %738 = vmatpush1.msra.mxu0 0.0
    %739 = vmatprep.subr.mxu0 0.0
    %740 = vmatpush1.msra.mxu0 0.0
    %741 = vmatprep.subr.mxu0 0.0
    %742 = vmatpush1.msra.mxu0 0.0
    %743 = vmatprep.subr.mxu0 0.0
    %744 = vmatpush1.msra.mxu0 0.0
    %745 = vmatprep.subr.mxu0 0.0
    %746 = vmatpush1.msra.mxu0 0.0
    %747 = vmatprep.subr.mxu0 0.0
    %748 = vmatpush1.msra.mxu0 0.0
    %749 = vmatprep.subr.mxu0 0.0
    %750 = vmatpush1.msra.mxu0 0.0
    %751 = vmatprep.subr.mxu0 0.0
    %752 = vmatpush1.msra.mxu0 0.0
    %753 = vmatprep.subr.mxu0 0.0
    %754 = vmatpush1.msra.mxu0 0.0
    %755 = vmatprep.subr.mxu0 0.0
    %756 = vmatpush1.msra.mxu0 0.0
    %757 = vmatprep.mubr.f32.mxu0 0.0
    %758 = vmatmul.mubr.f32.gmra.mrb[0].mxu0 %v691
    %v759 = vpop.f32.mrb[0].mxu0
    %v760 = vadd.f32 0.0, %v759
    %v761 = vpop.f32.mrb[0].mxu0
    %762 = vdwg.mxu0
    %v764 = vsel %vm665, %v689, 0
    %766 = vmatprep.subr.mxu0 0.0
    %767 = vmatpush1.msra.mxu0 %v282
    %768 = vmatprep.subr.mxu0 0.0
    %769 = vmatpush1.msra.mxu0 0.0
    %770 = vmatprep.subr.mxu0 0.0
    %771 = vmatpush1.msra.mxu0 0.0
    %772 = vmatprep.subr.mxu0 0.0
    %773 = vmatpush1.msra.mxu0 0.0
    %774 = vmatprep.subr.mxu0 0.0
    %775 = vmatpush1.msra.mxu0 0.0
    %776 = vmatprep.subr.mxu0 0.0
    %777 = vmatpush1.msra.mxu0 0.0
    %778 = vmatprep.subr.mxu0 0.0
    %779 = vmatpush1.msra.mxu0 0.0
    %780 = vmatprep.subr.mxu0 0.0
    %781 = vmatpush1.msra.mxu0 0.0
    %782 = vmatprep.subr.mxu0 0.0
    %783 = vmatpush1.msra.mxu0 0.0
    %784 = vmatprep.subr.mxu0 0.0
    %785 = vmatpush1.msra.mxu0 0.0
    %786 = vmatprep.subr.mxu0 0.0
    %787 = vmatpush1.msra.mxu0 0.0
    %788 = vmatprep.subr.mxu0 0.0
    %789 = vmatpush1.msra.mxu0 0.0
    %790 = vmatprep.subr.mxu0 0.0
    %791 = vmatpush1.msra.mxu0 0.0
    %792 = vmatprep.subr.mxu0 0.0
    %793 = vmatpush1.msra.mxu0 0.0
    %794 = vmatprep.subr.mxu0 0.0
    %795 = vmatpush1.msra.mxu0 0.0
    %796 = vmatprep.subr.mxu0 0.0
    %797 = vmatpush1.msra.mxu0 0.0
    %798 = vmatprep.subr.mxu0 0.0
    %799 = vmatpush1.msra.mxu0 0.0
    %800 = vmatprep.subr.mxu0 0.0
    %801 = vmatpush1.msra.mxu0 0.0
    %802 = vmatprep.subr.mxu0 0.0
    %803 = vmatpush1.msra.mxu0 0.0
    %804 = vmatprep.subr.mxu0 0.0
    %805 = vmatpush1.msra.mxu0 0.0
    %806 = vmatprep.subr.mxu0 0.0
    %807 = vmatpush1.msra.mxu0 0.0
    %808 = vmatprep.subr.mxu0 0.0
    %809 = vmatpush1.msra.mxu0 0.0
    %810 = vmatprep.subr.mxu0 0.0
    %811 = vmatpush1.msra.mxu0 0.0
    %812 = vmatprep.subr.mxu0 0.0
    %813 = vmatpush1.msra.mxu0 0.0
    %814 = vmatprep.subr.mxu0 0.0
    %815 = vmatpush1.msra.mxu0 0.0
    %816 = vmatprep.subr.mxu0 0.0
    %817 = vmatpush1.msra.mxu0 0.0
    %818 = vmatprep.subr.mxu0 0.0
    %819 = vmatpush1.msra.mxu0 0.0
    %820 = vmatprep.subr.mxu0 0.0
    %821 = vmatpush1.msra.mxu0 0.0
    %822 = vmatprep.subr.mxu0 0.0
    %823 = vmatpush1.msra.mxu0 0.0
    %824 = vmatprep.subr.mxu0 0.0
    %825 = vmatpush1.msra.mxu0 0.0
    %826 = vmatprep.subr.mxu0 0.0
    %827 = vmatpush1.msra.mxu0 0.0
    %828 = vmatprep.subr.mxu0 0.0
    %829 = vmatpush1.msra.mxu0 0.0
    %830 = vmatprep.mubr.f32.mxu0 0.0
    %831 = vmatmul.mubr.f32.gmra.mrb[0].mxu0 %v764
    %v832 = vpop.f32.mrb[0].mxu0
    %v833 = vadd.f32 0.0, %v832
    %v834 = vpop.f32.mrb[0].mxu0
    %835 = vdwg.mxu0
    %836 = vmatprep.subr.mxu0 0.0
    %837 = vmatpush1.xpose.msra.mxu0 %v396
    %838 = vmatprep.subr.mxu0 0.0
    %839 = vmatpush1.xpose.msra.mxu0 0.0
    %840 = vmatprep.subr.mxu0 0.0
    %841 = vmatpush1.xpose.msra.mxu0 0.0
    %842 = vmatprep.subr.mxu0 0.0
    %843 = vmatpush1.xpose.msra.mxu0 0.0
    %844 = vmatprep.subr.mxu0 0.0
    %845 = vmatpush1.xpose.msra.mxu0 0.0
    %846 = vmatprep.subr.mxu0 0.0
    %847 = vmatpush1.xpose.msra.mxu0 0.0
    %848 = vmatprep.subr.mxu0 0.0
    %849 = vmatpush1.xpose.msra.mxu0 0.0
    %850 = vmatprep.subr.mxu0 0.0
    %851 = vmatpush1.xpose.msra.mxu0 0.0
    %852 = vmatprep.subr.mxu0 0.0
    %853 = vmatpush1.xpose.msra.mxu0 0.0
    %854 = vmatprep.subr.mxu0 0.0
    %855 = vmatpush1.xpose.msra.mxu0 0.0
    %856 = vmatprep.subr.mxu0 0.0
    %857 = vmatpush1.xpose.msra.mxu0 0.0
    %858 = vmatprep.subr.mxu0 0.0
    %859 = vmatpush1.xpose.msra.mxu0 0.0
    %860 = vmatprep.subr.mxu0 0.0
    %861 = vmatpush1.xpose.msra.mxu0 0.0
    %862 = vmatprep.subr.mxu0 0.0
    %863 = vmatpush1.xpose.msra.mxu0 0.0
    %864 = vmatprep.subr.mxu0 0.0
    %865 = vmatpush1.xpose.msra.mxu0 0.0
    %866 = vmatprep.subr.mxu0 0.0
    %867 = vmatpush1.xpose.msra.mxu0 0.0
    %868 = vmatprep.subr.mxu0 0.0
    %869 = vmatpush1.xpose.msra.mxu0 0.0
    %870 = vmatprep.subr.mxu0 0.0
    %871 = vmatpush1.xpose.msra.mxu0 0.0
    %872 = vmatprep.subr.mxu0 0.0
    %873 = vmatpush1.xpose.msra.mxu0 0.0
    %874 = vmatprep.subr.mxu0 0.0
    %875 = vmatpush1.xpose.msra.mxu0 0.0
    %876 = vmatprep.subr.mxu0 0.0
    %877 = vmatpush1.xpose.msra.mxu0 0.0
    %878 = vmatprep.subr.mxu0 0.0
    %879 = vmatpush1.xpose.msra.mxu0 0.0
    %880 = vmatprep.subr.mxu0 0.0
    %881 = vmatpush1.xpose.msra.mxu0 0.0
    %882 = vmatprep.subr.mxu0 0.0
    %883 = vmatpush1.xpose.msra.mxu0 0.0
    %884 = vmatprep.subr.mxu0 0.0
    %885 = vmatpush1.xpose.msra.mxu0 0.0
    %886 = vmatprep.subr.mxu0 0.0
    %887 = vmatpush1.xpose.msra.mxu0 0.0
    %888 = vmatprep.subr.mxu0 0.0
    %889 = vmatpush1.xpose.msra.mxu0 0.0
    %890 = vmatprep.subr.mxu0 0.0
    %891 = vmatpush1.xpose.msra.mxu0 0.0
    %892 = vmatprep.subr.mxu0 0.0
    %893 = vmatpush1.xpose.msra.mxu0 0.0
    %894 = vmatprep.subr.mxu0 0.0
    %895 = vmatpush1.xpose.msra.mxu0 0.0
    %896 = vmatprep.subr.mxu0 0.0
    %897 = vmatpush1.xpose.msra.mxu0 0.0
    %898 = vmatprep.subr.mxu0 0.0
    %899 = vmatpush1.xpose.msra.mxu0 0.0
    %900 = vmatprep.mubr.f32.mxu0 0.0
    %901 = vmatmul.mubr.f32.gmra.mrb[0].mxu0 %v394
    %v902 = vpop.f32.mrb[0].mxu0
    %v903 = vadd.f32 0.0, %v902
    %v904 = vpop.f32.mrb[0].mxu0
    %905 = vdwg.mxu0
    %906 = vmatprep.subr.mxu0 0.0
    %907 = vmatpush1.xpose.msra.mxu0 %v402
    %908 = vmatprep.subr.mxu0 0.0
    %909 = vmatpush1.xpose.msra.mxu0 0.0
    %910 = vmatprep.subr.mxu0 0.0
    %911 = vmatpush1.xpose.msra.mxu0 0.0
    %912 = vmatprep.subr.mxu0 0.0
    %913 = vmatpush1.xpose.msra.mxu0 0.0
    %914 = vmatprep.subr.mxu0 0.0
    %915 = vmatpush1.xpose.msra.mxu0 0.0
    %916 = vmatprep.subr.mxu0 0.0
    %917 = vmatpush1.xpose.msra.mxu0 0.0
    %918 = vmatprep.subr.mxu0 0.0
    %919 = vmatpush1.xpose.msra.mxu0 0.0
    %920 = vmatprep.subr.mxu0 0.0
    %921 = vmatpush1.xpose.msra.mxu0 0.0
    %922 = vmatprep.subr.mxu0 0.0
    %923 = vmatpush1.xpose.msra.mxu0 0.0
    %924 = vmatprep.subr.mxu0 0.0
    %925 = vmatpush1.xpose.msra.mxu0 0.0
    %926 = vmatprep.subr.mxu0 0.0
    %927 = vmatpush1.xpose.msra.mxu0 0.0
    %928 = vmatprep.subr.mxu0 0.0
    %929 = vmatpush1.xpose.msra.mxu0 0.0
    %930 = vmatprep.subr.mxu0 0.0
    %931 = vmatpush1.xpose.msra.mxu0 0.0
    %932 = vmatprep.subr.mxu0 0.0
    %933 = vmatpush1.xpose.msra.mxu0 0.0
    %934 = vmatprep.subr.mxu0 0.0
    %935 = vmatpush1.xpose.msra.mxu0 0.0
    %936 = vmatprep.subr.mxu0 0.0
    %937 = vmatpush1.xpose.msra.mxu0 0.0
    %938 = vmatprep.subr.mxu0 0.0
    %939 = vmatpush1.xpose.msra.mxu0 0.0
    %940 = vmatprep.subr.mxu0 0.0
    %941 = vmatpush1.xpose.msra.mxu0 0.0
    %942 = vmatprep.subr.mxu0 0.0
    %943 = vmatpush1.xpose.msra.mxu0 0.0
    %944 = vmatprep.subr.mxu0 0.0
    %945 = vmatpush1.xpose.msra.mxu0 0.0
    %946 = vmatprep.subr.mxu0 0.0
    %947 = vmatpush1.xpose.msra.mxu0 0.0
    %948 = vmatprep.subr.mxu0 0.0
    %949 = vmatpush1.xpose.msra.mxu0 0.0
    %950 = vmatprep.subr.mxu0 0.0
    %951 = vmatpush1.xpose.msra.mxu0 0.0
    %952 = vmatprep.subr.mxu0 0.0
    %953 = vmatpush1.xpose.msra.mxu0 0.0
    %954 = vmatprep.subr.mxu0 0.0
    %955 = vmatpush1.xpose.msra.mxu0 0.0
    %956 = vmatprep.subr.mxu0 0.0
    %957 = vmatpush1.xpose.msra.mxu0 0.0
    %958 = vmatprep.subr.mxu0 0.0
    %959 = vmatpush1.xpose.msra.mxu0 0.0
    %960 = vmatprep.subr.mxu0 0.0
    %961 = vmatpush1.xpose.msra.mxu0 0.0
    %962 = vmatprep.subr.mxu0 0.0
    %963 = vmatpush1.xpose.msra.mxu0 0.0
    %964 = vmatprep.subr.mxu0 0.0
    %965 = vmatpush1.xpose.msra.mxu0 0.0
    %966 = vmatprep.subr.mxu0 0.0
    %967 = vmatpush1.xpose.msra.mxu0 0.0
    %968 = vmatprep.subr.mxu0 0.0
    %969 = vmatpush1.xpose.msra.mxu0 0.0
    %970 = vmatprep.mubr.f32.mxu0 0.0
    %971 = vmatmul.mubr.f32.gmra.mrb[0].mxu0 %v400
    %v972 = vpop.f32.mrb[0].mxu0
    %v973 = vadd.f32 0.0, %v972
    %v974 = vpop.f32.mrb[0].mxu0
    %975 = vdwg.mxu0
    %v976 = vsel %vm665, %v903, -inf
    %977 = vmax.xlane.f32.xlu0 %v976
    %v978 = vpop.xlane.xlu0 %977
    %v979 = vsel %vm665, %v973, -inf
    %980 = vmax.xlane.f32.xlu0 %v979
    %v981 = vpop.xlane.xlu0 %980
    %v982 = vsub.f32 %v903, %v978
    %v983 = vsub.f32 %v973, %v981
    %v984 = vmul.f32 %v982, 1.442695
    %v985 = vpow.pop %v984
    %v986 = vmul.f32 %v983, 1.442695
    %v987 = vpow.pop %v986
    %v988 = vsel %vm665, %v985, 0.0
    %989 = vadd.xlane.f32.xlu0 %v988
    %v990 = vpop.xlane.xlu0 %989
    %v991 = vsel %vm665, %v987, 0.0
    %992 = vadd.xlane.f32.xlu0 %v991
    %v993 = vpop.xlane.xlu0 %992
    %v994 = vrcp.pop %v990
    %v995 = vmul.f32 0.088388346, %v994
    %v996 = vrcp.pop %v993
    %v997 = vmul.f32 0.088388346, %v996
    %v998 = vmul.f32 %v985, %v995
    %v999 = vmul.f32 %v987, %v997
    %v1001 = vsel %vm665, %v998, 0
    %1003 = vmatprep.subr.mxu0 0.0
    %1004 = vmatpush1.msra.mxu0 %v279
    %1005 = vmatprep.subr.mxu0 0.0
    %1006 = vmatpush1.msra.mxu0 0.0
    %1007 = vmatprep.subr.mxu0 0.0
    %1008 = vmatpush1.msra.mxu0 0.0
    %1009 = vmatprep.subr.mxu0 0.0
    %1010 = vmatpush1.msra.mxu0 0.0
    %1011 = vmatprep.subr.mxu0 0.0
    %1012 = vmatpush1.msra.mxu0 0.0
    %1013 = vmatprep.subr.mxu0 0.0
    %1014 = vmatpush1.msra.mxu0 0.0
    %1015 = vmatprep.subr.mxu0 0.0
    %1016 = vmatpush1.msra.mxu0 0.0
    %1017 = vmatprep.subr.mxu0 0.0
    %1018 = vmatpush1.msra.mxu0 0.0
    %1019 = vmatprep.subr.mxu0 0.0
    %1020 = vmatpush1.msra.mxu0 0.0
    %1021 = vmatprep.subr.mxu0 0.0
    %1022 = vmatpush1.msra.mxu0 0.0
    %1023 = vmatprep.subr.mxu0 0.0
    %1024 = vmatpush1.msra.mxu0 0.0
    %1025 = vmatprep.subr.mxu0 0.0
    %1026 = vmatpush1.msra.mxu0 0.0
    %1027 = vmatprep.subr.mxu0 0.0
    %1028 = vmatpush1.msra.mxu0 0.0
    %1029 = vmatprep.subr.mxu0 0.0
    %1030 = vmatpush1.msra.mxu0 0.0
    %1031 = vmatprep.subr.mxu0 0.0
    %1032 = vmatpush1.msra.mxu0 0.0
    %1033 = vmatprep.subr.mxu0 0.0
    %1034 = vmatpush1.msra.mxu0 0.0
    %1035 = vmatprep.subr.mxu0 0.0
    %1036 = vmatpush1.msra.mxu0 0.0
    %1037 = vmatprep.subr.mxu0 0.0
    %1038 = vmatpush1.msra.mxu0 0.0
    %1039 = vmatprep.subr.mxu0 0.0
    %1040 = vmatpush1.msra.mxu0 0.0
    %1041 = vmatprep.subr.mxu0 0.0
    %1042 = vmatpush1.msra.mxu0 0.0
    %1043 = vmatprep.subr.mxu0 0.0
    %1044 = vmatpush1.msra.mxu0 0.0
    %1045 = vmatprep.subr.mxu0 0.0
    %1046 = vmatpush1.msra.mxu0 0.0
    %1047 = vmatprep.subr.mxu0 0.0
    %1048 = vmatpush1.msra.mxu0 0.0
    %1049 = vmatprep.subr.mxu0 0.0
    %1050 = vmatpush1.msra.mxu0 0.0
    %1051 = vmatprep.subr.mxu0 0.0
    %1052 = vmatpush1.msra.mxu0 0.0
    %1053 = vmatprep.subr.mxu0 0.0
    %1054 = vmatpush1.msra.mxu0 0.0
    %1055 = vmatprep.subr.mxu0 0.0
    %1056 = vmatpush1.msra.mxu0 0.0
    %1057 = vmatprep.subr.mxu0 0.0
    %1058 = vmatpush1.msra.mxu0 0.0
    %1059 = vmatprep.subr.mxu0 0.0
    %1060 = vmatpush1.msra.mxu0 0.0
    %1061 = vmatprep.subr.mxu0 0.0
    %1062 = vmatpush1.msra.mxu0 0.0
    %1063 = vmatprep.subr.mxu0 0.0
    %1064 = vmatpush1.msra.mxu0 0.0
    %1065 = vmatprep.subr.mxu0 0.0
    %1066 = vmatpush1.msra.mxu0 0.0
    %1067 = vmatprep.mubr.f32.mxu0 0.0
    %1068 = vmatmul.mubr.f32.gmra.mrb[0].mxu0 %v1001
    %v1069 = vpop.f32.mrb[0].mxu0
    %v1070 = vadd.f32 0.0, %v1069
    %v1071 = vpop.f32.mrb[0].mxu0
    %1072 = vdwg.mxu0
    %v1074 = vsel %vm665, %v999, 0
    %1076 = vmatprep.subr.mxu0 0.0
    %1077 = vmatpush1.msra.mxu0 %v280
    %1078 = vmatprep.subr.mxu0 0.0
    %1079 = vmatpush1.msra.mxu0 0.0
    %1080 = vmatprep.subr.mxu0 0.0
    %1081 = vmatpush1.msra.mxu0 0.0
    %1082 = vmatprep.subr.mxu0 0.0
    %1083 = vmatpush1.msra.mxu0 0.0
    %1084 = vmatprep.subr.mxu0 0.0
    %1085 = vmatpush1.msra.mxu0 0.0
    %1086 = vmatprep.subr.mxu0 0.0
    %1087 = vmatpush1.msra.mxu0 0.0
    %1088 = vmatprep.subr.mxu0 0.0
    %1089 = vmatpush1.msra.mxu0 0.0
    %1090 = vmatprep.subr.mxu0 0.0
    %1091 = vmatpush1.msra.mxu0 0.0
    %1092 = vmatprep.subr.mxu0 0.0
    %1093 = vmatpush1.msra.mxu0 0.0
    %1094 = vmatprep.subr.mxu0 0.0
    %1095 = vmatpush1.msra.mxu0 0.0
    %1096 = vmatprep.subr.mxu0 0.0
    %1097 = vmatpush1.msra.mxu0 0.0
    %1098 = vmatprep.subr.mxu0 0.0
    %1099 = vmatpush1.msra.mxu0 0.0
    %1100 = vmatprep.subr.mxu0 0.0
    %1101 = vmatpush1.msra.mxu0 0.0
    %1102 = vmatprep.subr.mxu0 0.0
    %1103 = vmatpush1.msra.mxu0 0.0
    %1104 = vmatprep.subr.mxu0 0.0
    %1105 = vmatpush1.msra.mxu0 0.0
    %1106 = vmatprep.subr.mxu0 0.0
    %1107 = vmatpush1.msra.mxu0 0.0
    %1108 = vmatprep.subr.mxu0 0.0
    %1109 = vmatpush1.msra.mxu0 0.0
    %1110 = vmatprep.subr.mxu0 0.0
    %1111 = vmatpush1.msra.mxu0 0.0
    %1112 = vmatprep.subr.mxu0 0.0
    %1113 = vmatpush1.msra.mxu0 0.0
    %1114 = vmatprep.subr.mxu0 0.0
    %1115 = vmatpush1.msra.mxu0 0.0
    %1116 = vmatprep.subr.mxu0 0.0
    %1117 = vmatpush1.msra.mxu0 0.0
    %1118 = vmatprep.subr.mxu0 0.0
    %1119 = vmatpush1.msra.mxu0 0.0
    %1120 = vmatprep.subr.mxu0 0.0
    %1121 = vmatpush1.msra.mxu0 0.0
    %1122 = vmatprep.subr.mxu0 0.0
    %1123 = vmatpush1.msra.mxu0 0.0
    %1124 = vmatprep.subr.mxu0 0.0
    %1125 = vmatpush1.msra.mxu0 0.0
    %1126 = vmatprep.subr.mxu0 0.0
    %1127 = vmatpush1.msra.mxu0 0.0
    %1128 = vmatprep.subr.mxu0 0.0
    %1129 = vmatpush1.msra.mxu0 0.0
    %1130 = vmatprep.subr.mxu0 0.0
    %1131 = vmatpush1.msra.mxu0 0.0
    %1132 = vmatprep.subr.mxu0 0.0
    %1133 = vmatpush1.msra.mxu0 0.0
    %1134 = vmatprep.subr.mxu0 0.0
    %1135 = vmatpush1.msra.mxu0 0.0
    %1136 = vmatprep.subr.mxu0 0.0
    %1137 = vmatpush1.msra.mxu0 0.0
    %1138 = vmatprep.subr.mxu0 0.0
    %1139 = vmatpush1.msra.mxu0 0.0
    %1140 = vmatprep.mubr.f32.mxu0 0.0
    %1141 = vmatmul.mubr.f32.gmra.mrb[0].mxu0 %v1074
    %v1142 = vpop.f32.mrb[0].mxu0
    %v1143 = vadd.f32 0.0, %v1142
    %v1144 = vpop.f32.mrb[0].mxu0
    %1145 = vdwg.mxu0
    %1146 = vmatprep.subr.mxu0 0.0
    %1147 = vmatpush1.xpose.msra.mxu0 %v396
    %1148 = vmatprep.subr.mxu0 0.0
    %1149 = vmatpush1.xpose.msra.mxu0 0.0
    %1150 = vmatprep.subr.mxu0 0.0
    %1151 = vmatpush1.xpose.msra.mxu0 0.0
    %1152 = vmatprep.subr.mxu0 0.0
    %1153 = vmatpush1.xpose.msra.mxu0 0.0
    %1154 = vmatprep.subr.mxu0 0.0
    %1155 = vmatpush1.xpose.msra.mxu0 0.0
    %1156 = vmatprep.subr.mxu0 0.0
    %1157 = vmatpush1.xpose.msra.mxu0 0.0
    %1158 = vmatprep.subr.mxu0 0.0
    %1159 = vmatpush1.xpose.msra.mxu0 0.0
    %1160 = vmatprep.subr.mxu0 0.0
    %1161 = vmatpush1.xpose.msra.mxu0 0.0
    %1162 = vmatprep.subr.mxu0 0.0
    %1163 = vmatpush1.xpose.msra.mxu0 0.0
    %1164 = vmatprep.subr.mxu0 0.0
    %1165 = vmatpush1.xpose.msra.mxu0 0.0
    %1166 = vmatprep.subr.mxu0 0.0
    %1167 = vmatpush1.xpose.msra.mxu0 0.0
    %1168 = vmatprep.subr.mxu0 0.0
    %1169 = vmatpush1.xpose.msra.mxu0 0.0
    %1170 = vmatprep.subr.mxu0 0.0
    %1171 = vmatpush1.xpose.msra.mxu0 0.0
    %1172 = vmatprep.subr.mxu0 0.0
    %1173 = vmatpush1.xpose.msra.mxu0 0.0
    %1174 = vmatprep.subr.mxu0 0.0
    %1175 = vmatpush1.xpose.msra.mxu0 0.0
    %1176 = vmatprep.subr.mxu0 0.0
    %1177 = vmatpush1.xpose.msra.mxu0 0.0
    %1178 = vmatprep.subr.mxu0 0.0
    %1179 = vmatpush1.xpose.msra.mxu0 0.0
    %1180 = vmatprep.subr.mxu0 0.0
    %1181 = vmatpush1.xpose.msra.mxu0 0.0
    %1182 = vmatprep.subr.mxu0 0.0
    %1183 = vmatpush1.xpose.msra.mxu0 0.0
    %1184 = vmatprep.subr.mxu0 0.0
    %1185 = vmatpush1.xpose.msra.mxu0 0.0
    %1186 = vmatprep.subr.mxu0 0.0
    %1187 = vmatpush1.xpose.msra.mxu0 0.0
    %1188 = vmatprep.subr.mxu0 0.0
    %1189 = vmatpush1.xpose.msra.mxu0 0.0
    %1190 = vmatprep.subr.mxu0 0.0
    %1191 = vmatpush1.xpose.msra.mxu0 0.0
    %1192 = vmatprep.subr.mxu0 0.0
    %1193 = vmatpush1.xpose.msra.mxu0 0.0
    %1194 = vmatprep.subr.mxu0 0.0
    %1195 = vmatpush1.xpose.msra.mxu0 0.0
    %1196 = vmatprep.subr.mxu0 0.0
    %1197 = vmatpush1.xpose.msra.mxu0 0.0
    %1198 = vmatprep.subr.mxu0 0.0
    %1199 = vmatpush1.xpose.msra.mxu0 0.0
    %1200 = vmatprep.subr.mxu0 0.0
    %1201 = vmatpush1.xpose.msra.mxu0 0.0
    %1202 = vmatprep.subr.mxu0 0.0
    %1203 = vmatpush1.xpose.msra.mxu0 0.0
    %1204 = vmatprep.subr.mxu0 0.0
    %1205 = vmatpush1.xpose.msra.mxu0 0.0
    %1206 = vmatprep.subr.mxu0 0.0
    %1207 = vmatpush1.xpose.msra.mxu0 0.0
    %1208 = vmatprep.subr.mxu0 0.0
    %1209 = vmatpush1.xpose.msra.mxu0 0.0
    %1210 = vmatprep.mubr.f32.mxu0 0.0
    %1211 = vmatmul.mubr.f32.gmra.mrb[0].mxu0 %v515
    %v1212 = vpop.f32.mrb[0].mxu0
    %v1213 = vadd.f32 0.0, %v1212
    %v1214 = vpop.f32.mrb[0].mxu0
    %1215 = vdwg.mxu0
    %1216 = vmatprep.subr.mxu0 0.0
    %1217 = vmatpush1.xpose.msra.mxu0 %v402
    %1218 = vmatprep.subr.mxu0 0.0
    %1219 = vmatpush1.xpose.msra.mxu0 0.0
    %1220 = vmatprep.subr.mxu0 0.0
    %1221 = vmatpush1.xpose.msra.mxu0 0.0
    %1222 = vmatprep.subr.mxu0 0.0
    %1223 = vmatpush1.xpose.msra.mxu0 0.0
    %1224 = vmatprep.subr.mxu0 0.0
    %1225 = vmatpush1.xpose.msra.mxu0 0.0
    %1226 = vmatprep.subr.mxu0 0.0
    %1227 = vmatpush1.xpose.msra.mxu0 0.0
    %1228 = vmatprep.subr.mxu0 0.0
    %1229 = vmatpush1.xpose.msra.mxu0 0.0
    %1230 = vmatprep.subr.mxu0 0.0
    %1231 = vmatpush1.xpose.msra.mxu0 0.0
    %1232 = vmatprep.subr.mxu0 0.0
    %1233 = vmatpush1.xpose.msra.mxu0 0.0
    %1234 = vmatprep.subr.mxu0 0.0
    %1235 = vmatpush1.xpose.msra.mxu0 0.0
    %1236 = vmatprep.subr.mxu0 0.0
    %1237 = vmatpush1.xpose.msra.mxu0 0.0
    %1238 = vmatprep.subr.mxu0 0.0
    %1239 = vmatpush1.xpose.msra.mxu0 0.0
    %1240 = vmatprep.subr.mxu0 0.0
    %1241 = vmatpush1.xpose.msra.mxu0 0.0
    %1242 = vmatprep.subr.mxu0 0.0
    %1243 = vmatpush1.xpose.msra.mxu0 0.0
    %1244 = vmatprep.subr.mxu0 0.0
    %1245 = vmatpush1.xpose.msra.mxu0 0.0
    %1246 = vmatprep.subr.mxu0 0.0
    %1247 = vmatpush1.xpose.msra.mxu0 0.0
    %1248 = vmatprep.subr.mxu0 0.0
    %1249 = vmatpush1.xpose.msra.mxu0 0.0
    %1250 = vmatprep.subr.mxu0 0.0
    %1251 = vmatpush1.xpose.msra.mxu0 0.0
    %1252 = vmatprep.subr.mxu0 0.0
    %1253 = vmatpush1.xpose.msra.mxu0 0.0
    %1254 = vmatprep.subr.mxu0 0.0
    %1255 = vmatpush1.xpose.msra.mxu0 0.0
    %1256 = vmatprep.subr.mxu0 0.0
    %1257 = vmatpush1.xpose.msra.mxu0 0.0
    %1258 = vmatprep.subr.mxu0 0.0
    %1259 = vmatpush1.xpose.msra.mxu0 0.0
    %1260 = vmatprep.subr.mxu0 0.0
    %1261 = vmatpush1.xpose.msra.mxu0 0.0
    %1262 = vmatprep.subr.mxu0 0.0
    %1263 = vmatpush1.xpose.msra.mxu0 0.0
    %1264 = vmatprep.subr.mxu0 0.0
    %1265 = vmatpush1.xpose.msra.mxu0 0.0
    %1266 = vmatprep.subr.mxu0 0.0
    %1267 = vmatpush1.xpose.msra.mxu0 0.0
    %1268 = vmatprep.subr.mxu0 0.0
    %1269 = vmatpush1.xpose.msra.mxu0 0.0
    %1270 = vmatprep.subr.mxu0 0.0
    %1271 = vmatpush1.xpose.msra.mxu0 0.0
    %1272 = vmatprep.subr.mxu0 0.0
    %1273 = vmatpush1.xpose.msra.mxu0 0.0
    %1274 = vmatprep.subr.mxu0 0.0
    %1275 = vmatpush1.xpose.msra.mxu0 0.0
    %1276 = vmatprep.subr.mxu0 0.0
    %1277 = vmatpush1.xpose.msra.mxu0 0.0
    %1278 = vmatprep.subr.mxu0 0.0
    %1279 = vmatpush1.xpose.msra.mxu0 0.0
    %1280 = vmatprep.mubr.f32.mxu0 0.0
    %1281 = vmatmul.mubr.f32.gmra.mrb[0].mxu0 %v521
    %v1282 = vpop.f32.mrb[0].mxu0
    %v1283 = vadd.f32 0.0, %v1282
    %v1284 = vpop.f32.mrb[0].mxu0
    %1285 = vdwg.mxu0
    %v1286 = vsel %vm665, %v1213, -inf
    %1287 = vmax.xlane.f32.xlu0 %v1286
    %v1288 = vpop.xlane.xlu0 %1287
    %v1289 = vsel %vm665, %v1283, -inf
    %1290 = vmax.xlane.f32.xlu0 %v1289
    %v1291 = vpop.xlane.xlu0 %1290
    %v1292 = vsub.f32 %v1213, %v1288
    %v1293 = vsub.f32 %v1283, %v1291
    %v1294 = vmul.f32 %v1292, 1.442695
    %v1295 = vpow.pop %v1294
    %v1296 = vmul.f32 %v1293, 1.442695
    %v1297 = vpow.pop %v1296
    %v1298 = vsel %vm665, %v1295, 0.0
    %1299 = vadd.xlane.f32.xlu0 %v1298
    %v1300 = vpop.xlane.xlu0 %1299
    %v1301 = vsel %vm665, %v1297, 0.0
    %1302 = vadd.xlane.f32.xlu0 %v1301
    %v1303 = vpop.xlane.xlu0 %1302
    %v1304 = vrcp.pop %v1300
    %v1305 = vmul.f32 0.088388346, %v1304
    %v1306 = vrcp.pop %v1303
    %v1307 = vmul.f32 0.088388346, %v1306
    %v1308 = vmul.f32 %v1295, %v1305
    %v1309 = vmul.f32 %v1297, %v1307
    %v1311 = vsel %vm665, %v1308, 0
    %1313 = vmatprep.subr.mxu0 0.0
    %1314 = vmatpush1.msra.mxu0 %v279
    %1315 = vmatprep.subr.mxu0 0.0
    %1316 = vmatpush1.msra.mxu0 0.0
    %1317 = vmatprep.subr.mxu0 0.0
    %1318 = vmatpush1.msra.mxu0 0.0
    %1319 = vmatprep.subr.mxu0 0.0
    %1320 = vmatpush1.msra.mxu0 0.0
    %1321 = vmatprep.subr.mxu0 0.0
    %1322 = vmatpush1.msra.mxu0 0.0
    %1323 = vmatprep.subr.mxu0 0.0
    %1324 = vmatpush1.msra.mxu0 0.0
    %1325 = vmatprep.subr.mxu0 0.0
    %1326 = vmatpush1.msra.mxu0 0.0
    %1327 = vmatprep.subr.mxu0 0.0
    %1328 = vmatpush1.msra.mxu0 0.0
    %1329 = vmatprep.subr.mxu0 0.0
    %1330 = vmatpush1.msra.mxu0 0.0
    %1331 = vmatprep.subr.mxu0 0.0
    %1332 = vmatpush1.msra.mxu0 0.0
    %1333 = vmatprep.subr.mxu0 0.0
    %1334 = vmatpush1.msra.mxu0 0.0
    %1335 = vmatprep.subr.mxu0 0.0
    %1336 = vmatpush1.msra.mxu0 0.0
    %1337 = vmatprep.subr.mxu0 0.0
    %1338 = vmatpush1.msra.mxu0 0.0
    %1339 = vmatprep.subr.mxu0 0.0
    %1340 = vmatpush1.msra.mxu0 0.0
    %1341 = vmatprep.subr.mxu0 0.0
    %1342 = vmatpush1.msra.mxu0 0.0
    %1343 = vmatprep.subr.mxu0 0.0
    %1344 = vmatpush1.msra.mxu0 0.0
    %1345 = vmatprep.subr.mxu0 0.0
    %1346 = vmatpush1.msra.mxu0 0.0
    %1347 = vmatprep.subr.mxu0 0.0
    %1348 = vmatpush1.msra.mxu0 0.0
    %1349 = vmatprep.subr.mxu0 0.0
    %1350 = vmatpush1.msra.mxu0 0.0
    %1351 = vmatprep.subr.mxu0 0.0
    %1352 = vmatpush1.msra.mxu0 0.0
    %1353 = vmatprep.subr.mxu0 0.0
    %1354 = vmatpush1.msra.mxu0 0.0
    %1355 = vmatprep.subr.mxu0 0.0
    %1356 = vmatpush1.msra.mxu0 0.0
    %1357 = vmatprep.subr.mxu0 0.0
    %1358 = vmatpush1.msra.mxu0 0.0
    %1359 = vmatprep.subr.mxu0 0.0
    %1360 = vmatpush1.msra.mxu0 0.0
    %1361 = vmatprep.subr.mxu0 0.0
    %1362 = vmatpush1.msra.mxu0 0.0
    %1363 = vmatprep.subr.mxu0 0.0
    %1364 = vmatpush1.msra.mxu0 0.0
    %1365 = vmatprep.subr.mxu0 0.0
    %1366 = vmatpush1.msra.mxu0 0.0
    %1367 = vmatprep.subr.mxu0 0.0
    %1368 = vmatpush1.msra.mxu0 0.0
    %1369 = vmatprep.subr.mxu0 0.0
    %1370 = vmatpush1.msra.mxu0 0.0
    %1371 = vmatprep.subr.mxu0 0.0
    %1372 = vmatpush1.msra.mxu0 0.0
    %1373 = vmatprep.subr.mxu0 0.0
    %1374 = vmatpush1.msra.mxu0 0.0
    %1375 = vmatprep.subr.mxu0 0.0
    %1376 = vmatpush1.msra.mxu0 0.0
    %1377 = vmatprep.mubr.f32.mxu0 0.0
    %1378 = vmatmul.mubr.f32.gmra.mrb[0].mxu0 %v1311
    %v1379 = vpop.f32.mrb[0].mxu0
    %v1380 = vadd.f32 0.0, %v1379
    %v1381 = vpop.f32.mrb[0].mxu0
    %1382 = vdwg.mxu0
    %v1384 = vsel %vm665, %v1309, 0
    %1386 = vmatprep.subr.mxu0 0.0
    %1387 = vmatpush1.msra.mxu0 %v280
    %1388 = vmatprep.subr.mxu0 0.0
    %1389 = vmatpush1.msra.mxu0 0.0
    %1390 = vmatprep.subr.mxu0 0.0
    %1391 = vmatpush1.msra.mxu0 0.0
    %1392 = vmatprep.subr.mxu0 0.0
    %1393 = vmatpush1.msra.mxu0 0.0
    %1394 = vmatprep.subr.mxu0 0.0
    %1395 = vmatpush1.msra.mxu0 0.0
    %1396 = vmatprep.subr.mxu0 0.0
    %1397 = vmatpush1.msra.mxu0 0.0
    %1398 = vmatprep.subr.mxu0 0.0
    %1399 = vmatpush1.msra.mxu0 0.0
    %1400 = vmatprep.subr.mxu0 0.0
    %1401 = vmatpush1.msra.mxu0 0.0
    %1402 = vmatprep.subr.mxu0 0.0
    %1403 = vmatpush1.msra.mxu0 0.0
    %1404 = vmatprep.subr.mxu0 0.0
    %1405 = vmatpush1.msra.mxu0 0.0
    %1406 = vmatprep.subr.mxu0 0.0
    %1407 = vmatpush1.msra.mxu0 0.0
    %1408 = vmatprep.subr.mxu0 0.0
    %1409 = vmatpush1.msra.mxu0 0.0
    %1410 = vmatprep.subr.mxu0 0.0
    %1411 = vmatpush1.msra.mxu0 0.0
    %1412 = vmatprep.subr.mxu0 0.0
    %1413 = vmatpush1.msra.mxu0 0.0
    %1414 = vmatprep.subr.mxu0 0.0
    %1415 = vmatpush1.msra.mxu0 0.0
    %1416 = vmatprep.subr.mxu0 0.0
    %1417 = vmatpush1.msra.mxu0 0.0
    %1418 = vmatprep.subr.mxu0 0.0
    %1419 = vmatpush1.msra.mxu0 0.0
    %1420 = vmatprep.subr.mxu0 0.0
    %1421 = vmatpush1.msra.mxu0 0.0
    %1422 = vmatprep.subr.mxu0 0.0
    %1423 = vmatpush1.msra.mxu0 0.0
    %1424 = vmatprep.subr.mxu0 0.0
    %1425 = vmatpush1.msra.mxu0 0.0
    %1426 = vmatprep.subr.mxu0 0.0
    %1427 = vmatpush1.msra.mxu0 0.0
    %1428 = vmatprep.subr.mxu0 0.0
    %1429 = vmatpush1.msra.mxu0 0.0
    %1430 = vmatprep.subr.mxu0 0.0
    %1431 = vmatpush1.msra.mxu0 0.0
    %1432 = vmatprep.subr.mxu0 0.0
    %1433 = vmatpush1.msra.mxu0 0.0
    %1434 = vmatprep.subr.mxu0 0.0
    %1435 = vmatpush1.msra.mxu0 0.0
    %1436 = vmatprep.subr.mxu0 0.0
    %1437 = vmatpush1.msra.mxu0 0.0
    %1438 = vmatprep.subr.mxu0 0.0
    %1439 = vmatpush1.msra.mxu0 0.0
    %1440 = vmatprep.subr.mxu0 0.0
    %1441 = vmatpush1.msra.mxu0 0.0
    %1442 = vmatprep.subr.mxu0 0.0
    %1443 = vmatpush1.msra.mxu0 0.0
    %1444 = vmatprep.subr.mxu0 0.0
    %1445 = vmatpush1.msra.mxu0 0.0
    %1446 = vmatprep.subr.mxu0 0.0
    %1447 = vmatpush1.msra.mxu0 0.0
    %1448 = vmatprep.subr.mxu0 0.0
    %1449 = vmatpush1.msra.mxu0 0.0
    %1450 = vmatprep.mubr.f32.mxu0 0.0
    %1451 = vmatmul.mubr.f32.gmra.mrb[0].mxu0 %v1384
    %v1452 = vpop.f32.mrb[0].mxu0
    %v1453 = vadd.f32 0.0, %v1452
    %v1454 = vpop.f32.mrb[0].mxu0
    %1455 = vdwg.mxu0
    %1456 = vmatprep.subr.mxu0 0.0
    %1457 = vmatpush1.xpose.msra.mxu0 %v517
    %1458 = vmatprep.subr.mxu0 0.0
    %1459 = vmatpush1.xpose.msra.mxu0 0.0
    %1460 = vmatprep.subr.mxu0 0.0
    %1461 = vmatpush1.xpose.msra.mxu0 0.0
    %1462 = vmatprep.subr.mxu0 0.0
    %1463 = vmatpush1.xpose.msra.mxu0 0.0
    %1464 = vmatprep.subr.mxu0 0.0
    %1465 = vmatpush1.xpose.msra.mxu0 0.0
    %1466 = vmatprep.subr.mxu0 0.0
    %1467 = vmatpush1.xpose.msra.mxu0 0.0
    %1468 = vmatprep.subr.mxu0 0.0
    %1469 = vmatpush1.xpose.msra.mxu0 0.0
    %1470 = vmatprep.subr.mxu0 0.0
    %1471 = vmatpush1.xpose.msra.mxu0 0.0
    %1472 = vmatprep.subr.mxu0 0.0
    %1473 = vmatpush1.xpose.msra.mxu0 0.0
    %1474 = vmatprep.subr.mxu0 0.0
    %1475 = vmatpush1.xpose.msra.mxu0 0.0
    %1476 = vmatprep.subr.mxu0 0.0
    %1477 = vmatpush1.xpose.msra.mxu0 0.0
    %1478 = vmatprep.subr.mxu0 0.0
    %1479 = vmatpush1.xpose.msra.mxu0 0.0
    %1480 = vmatprep.subr.mxu0 0.0
    %1481 = vmatpush1.xpose.msra.mxu0 0.0
    %1482 = vmatprep.subr.mxu0 0.0
    %1483 = vmatpush1.xpose.msra.mxu0 0.0
    %1484 = vmatprep.subr.mxu0 0.0
    %1485 = vmatpush1.xpose.msra.mxu0 0.0
    %1486 = vmatprep.subr.mxu0 0.0
    %1487 = vmatpush1.xpose.msra.mxu0 0.0
    %1488 = vmatprep.subr.mxu0 0.0
    %1489 = vmatpush1.xpose.msra.mxu0 0.0
    %1490 = vmatprep.subr.mxu0 0.0
    %1491 = vmatpush1.xpose.msra.mxu0 0.0
    %1492 = vmatprep.subr.mxu0 0.0
    %1493 = vmatpush1.xpose.msra.mxu0 0.0
    %1494 = vmatprep.subr.mxu0 0.0
    %1495 = vmatpush1.xpose.msra.mxu0 0.0
    %1496 = vmatprep.subr.mxu0 0.0
    %1497 = vmatpush1.xpose.msra.mxu0 0.0
    %1498 = vmatprep.subr.mxu0 0.0
    %1499 = vmatpush1.xpose.msra.mxu0 0.0
    %1500 = vmatprep.subr.mxu0 0.0
    %1501 = vmatpush1.xpose.msra.mxu0 0.0
    %1502 = vmatprep.subr.mxu0 0.0
    %1503 = vmatpush1.xpose.msra.mxu0 0.0
    %1504 = vmatprep.subr.mxu0 0.0
    %1505 = vmatpush1.xpose.msra.mxu0 0.0
    %1506 = vmatprep.subr.mxu0 0.0
    %1507 = vmatpush1.xpose.msra.mxu0 0.0
    %1508 = vmatprep.subr.mxu0 0.0
    %1509 = vmatpush1.xpose.msra.mxu0 0.0
    %1510 = vmatprep.subr.mxu0 0.0
    %1511 = vmatpush1.xpose.msra.mxu0 0.0
    %1512 = vmatprep.subr.mxu0 0.0
    %1513 = vmatpush1.xpose.msra.mxu0 0.0
    %1514 = vmatprep.subr.mxu0 0.0
    %1515 = vmatpush1.xpose.msra.mxu0 0.0
    %1516 = vmatprep.subr.mxu0 0.0
    %1517 = vmatpush1.xpose.msra.mxu0 0.0
    %1518 = vmatprep.subr.mxu0 0.0
    %1519 = vmatpush1.xpose.msra.mxu0 0.0
    %1520 = vmatprep.mubr.f32.mxu0 0.0
    %1521 = vmatmul.mubr.f32.gmra.mrb[0].mxu0 %v515
    %v1522 = vpop.f32.mrb[0].mxu0
    %v1523 = vadd.f32 0.0, %v1522
    %v1524 = vpop.f32.mrb[0].mxu0
    %1525 = vdwg.mxu0
    %1526 = vmatprep.subr.mxu0 0.0
    %1527 = vmatpush1.xpose.msra.mxu0 %v523
    %1528 = vmatprep.subr.mxu0 0.0
    %1529 = vmatpush1.xpose.msra.mxu0 0.0
    %1530 = vmatprep.subr.mxu0 0.0
    %1531 = vmatpush1.xpose.msra.mxu0 0.0
    %1532 = vmatprep.subr.mxu0 0.0
    %1533 = vmatpush1.xpose.msra.mxu0 0.0
    %1534 = vmatprep.subr.mxu0 0.0
    %1535 = vmatpush1.xpose.msra.mxu0 0.0
    %1536 = vmatprep.subr.mxu0 0.0
    %1537 = vmatpush1.xpose.msra.mxu0 0.0
    %1538 = vmatprep.subr.mxu0 0.0
    %1539 = vmatpush1.xpose.msra.mxu0 0.0
    %1540 = vmatprep.subr.mxu0 0.0
    %1541 = vmatpush1.xpose.msra.mxu0 0.0
    %1542 = vmatprep.subr.mxu0 0.0
    %1543 = vmatpush1.xpose.msra.mxu0 0.0
    %1544 = vmatprep.subr.mxu0 0.0
    %1545 = vmatpush1.xpose.msra.mxu0 0.0
    %1546 = vmatprep.subr.mxu0 0.0
    %1547 = vmatpush1.xpose.msra.mxu0 0.0
    %1548 = vmatprep.subr.mxu0 0.0
    %1549 = vmatpush1.xpose.msra.mxu0 0.0
    %1550 = vmatprep.subr.mxu0 0.0
    %1551 = vmatpush1.xpose.msra.mxu0 0.0
    %1552 = vmatprep.subr.mxu0 0.0
    %1553 = vmatpush1.xpose.msra.mxu0 0.0
    %1554 = vmatprep.subr.mxu0 0.0
    %1555 = vmatpush1.xpose.msra.mxu0 0.0
    %1556 = vmatprep.subr.mxu0 0.0
    %1557 = vmatpush1.xpose.msra.mxu0 0.0
    %1558 = vmatprep.subr.mxu0 0.0
    %1559 = vmatpush1.xpose.msra.mxu0 0.0
    %1560 = vmatprep.subr.mxu0 0.0
    %1561 = vmatpush1.xpose.msra.mxu0 0.0
    %1562 = vmatprep.subr.mxu0 0.0
    %1563 = vmatpush1.xpose.msra.mxu0 0.0
    %1564 = vmatprep.subr.mxu0 0.0
    %1565 = vmatpush1.xpose.msra.mxu0 0.0
    %1566 = vmatprep.subr.mxu0 0.0
    %1567 = vmatpush1.xpose.msra.mxu0 0.0
    %1568 = vmatprep.subr.mxu0 0.0
    %1569 = vmatpush1.xpose.msra.mxu0 0.0
    %1570 = vmatprep.subr.mxu0 0.0
    %1571 = vmatpush1.xpose.msra.mxu0 0.0
    %1572 = vmatprep.subr.mxu0 0.0
    %1573 = vmatpush1.xpose.msra.mxu0 0.0
    %1574 = vmatprep.subr.mxu0 0.0
    %1575 = vmatpush1.xpose.msra.mxu0 0.0
    %1576 = vmatprep.subr.mxu0 0.0
    %1577 = vmatpush1.xpose.msra.mxu0 0.0
    %1578 = vmatprep.subr.mxu0 0.0
    %1579 = vmatpush1.xpose.msra.mxu0 0.0
    %1580 = vmatprep.subr.mxu0 0.0
    %1581 = vmatpush1.xpose.msra.mxu0 0.0
    %1582 = vmatprep.subr.mxu0 0.0
    %1583 = vmatpush1.xpose.msra.mxu0 0.0
    %1584 = vmatprep.subr.mxu0 0.0
    %1585 = vmatpush1.xpose.msra.mxu0 0.0
    %1586 = vmatprep.subr.mxu0 0.0
    %1587 = vmatpush1.xpose.msra.mxu0 0.0
    %1588 = vmatprep.subr.mxu0 0.0
    %1589 = vmatpush1.xpose.msra.mxu0 0.0
    %1590 = vmatprep.mubr.f32.mxu0 0.0
    %1591 = vmatmul.mubr.f32.gmra.mrb[0].mxu0 %v521
    %v1592 = vpop.f32.mrb[0].mxu0
    %v1593 = vadd.f32 0.0, %v1592
    %v1594 = vpop.f32.mrb[0].mxu0
    %1595 = vdwg.mxu0
    %v1596 = vsel %vm665, %v1523, -inf
    %1597 = vmax.xlane.f32.xlu0 %v1596
    %v1598 = vpop.xlane.xlu0 %1597
    %v1599 = vsel %vm665, %v1593, -inf
    %1600 = vmax.xlane.f32.xlu0 %v1599
    %v1601 = vpop.xlane.xlu0 %1600
    %v1602 = vsub.f32 %v1523, %v1598
    %v1603 = vsub.f32 %v1593, %v1601
    %v1604 = vmul.f32 %v1602, 1.442695
    %v1605 = vpow.pop %v1604
    %v1606 = vmul.f32 %v1603, 1.442695
    %v1607 = vpow.pop %v1606
    %v1608 = vsel %vm665, %v1605, 0.0
    %1609 = vadd.xlane.f32.xlu0 %v1608
    %v1610 = vpop.xlane.xlu0 %1609
    %v1611 = vsel %vm665, %v1607, 0.0
    %1612 = vadd.xlane.f32.xlu0 %v1611
    %v1613 = vpop.xlane.xlu0 %1612
    %v1614 = vrcp.pop %v1610
    %v1615 = vmul.f32 0.088388346, %v1614
    %v1616 = vrcp.pop %v1613
    %v1617 = vmul.f32 0.088388346, %v1616
    %v1618 = vmul.f32 %v1605, %v1615
    %v1619 = vmul.f32 %v1607, %v1617
    %v1621 = vsel %vm665, %v1618, 0
    %1623 = vmatprep.subr.mxu0 0.0
    %1624 = vmatpush1.msra.mxu0 %v281
    %1625 = vmatprep.subr.mxu0 0.0
    %1626 = vmatpush1.msra.mxu0 0.0
    %1627 = vmatprep.subr.mxu0 0.0
    %1628 = vmatpush1.msra.mxu0 0.0
    %1629 = vmatprep.subr.mxu0 0.0
    %1630 = vmatpush1.msra.mxu0 0.0
    %1631 = vmatprep.subr.mxu0 0.0
    %1632 = vmatpush1.msra.mxu0 0.0
    %1633 = vmatprep.subr.mxu0 0.0
    %1634 = vmatpush1.msra.mxu0 0.0
    %1635 = vmatprep.subr.mxu0 0.0
    %1636 = vmatpush1.msra.mxu0 0.0
    %1637 = vmatprep.subr.mxu0 0.0
    %1638 = vmatpush1.msra.mxu0 0.0
    %1639 = vmatprep.subr.mxu0 0.0
    %1640 = vmatpush1.msra.mxu0 0.0
    %1641 = vmatprep.subr.mxu0 0.0
    %1642 = vmatpush1.msra.mxu0 0.0
    %1643 = vmatprep.subr.mxu0 0.0
    %1644 = vmatpush1.msra.mxu0 0.0
    %1645 = vmatprep.subr.mxu0 0.0
    %1646 = vmatpush1.msra.mxu0 0.0
    %1647 = vmatprep.subr.mxu0 0.0
    %1648 = vmatpush1.msra.mxu0 0.0
    %1649 = vmatprep.subr.mxu0 0.0
    %1650 = vmatpush1.msra.mxu0 0.0
    %1651 = vmatprep.subr.mxu0 0.0
    %1652 = vmatpush1.msra.mxu0 0.0
    %1653 = vmatprep.subr.mxu0 0.0
    %1654 = vmatpush1.msra.mxu0 0.0
    %1655 = vmatprep.subr.mxu0 0.0
    %1656 = vmatpush1.msra.mxu0 0.0
    %1657 = vmatprep.subr.mxu0 0.0
    %1658 = vmatpush1.msra.mxu0 0.0
    %1659 = vmatprep.subr.mxu0 0.0
    %1660 = vmatpush1.msra.mxu0 0.0
    %1661 = vmatprep.subr.mxu0 0.0
    %1662 = vmatpush1.msra.mxu0 0.0
    %1663 = vmatprep.subr.mxu0 0.0
    %1664 = vmatpush1.msra.mxu0 0.0
    %1665 = vmatprep.subr.mxu0 0.0
    %1666 = vmatpush1.msra.mxu0 0.0
    %1667 = vmatprep.subr.mxu0 0.0
    %1668 = vmatpush1.msra.mxu0 0.0
    %1669 = vmatprep.subr.mxu0 0.0
    %1670 = vmatpush1.msra.mxu0 0.0
    %1671 = vmatprep.subr.mxu0 0.0
    %1672 = vmatpush1.msra.mxu0 0.0
    %1673 = vmatprep.subr.mxu0 0.0
    %1674 = vmatpush1.msra.mxu0 0.0
    %1675 = vmatprep.subr.mxu0 0.0
    %1676 = vmatpush1.msra.mxu0 0.0
    %1677 = vmatprep.subr.mxu0 0.0
    %1678 = vmatpush1.msra.mxu0 0.0
    %1679 = vmatprep.subr.mxu0 0.0
    %1680 = vmatpush1.msra.mxu0 0.0
    %1681 = vmatprep.subr.mxu0 0.0
    %1682 = vmatpush1.msra.mxu0 0.0
    %1683 = vmatprep.subr.mxu0 0.0
    %1684 = vmatpush1.msra.mxu0 0.0
    %1685 = vmatprep.subr.mxu0 0.0
    %1686 = vmatpush1.msra.mxu0 0.0
    %1687 = vmatprep.mubr.f32.mxu0 0.0
    %1688 = vmatmul.mubr.f32.gmra.mrb[0].mxu0 %v1621
    %v1689 = vpop.f32.mrb[0].mxu0
    %v1690 = vadd.f32 0.0, %v1689
    %v1691 = vpop.f32.mrb[0].mxu0
    %1692 = vdwg.mxu0
    %v1694 = vsel %vm665, %v1619, 0
    %1696 = vmatprep.subr.mxu0 0.0
    %1697 = vmatpush1.msra.mxu0 %v282
    %1698 = vmatprep.subr.mxu0 0.0
    %1699 = vmatpush1.msra.mxu0 0.0
    %1700 = vmatprep.subr.mxu0 0.0
    %1701 = vmatpush1.msra.mxu0 0.0
    %1702 = vmatprep.subr.mxu0 0.0
    %1703 = vmatpush1.msra.mxu0 0.0
    %1704 = vmatprep.subr.mxu0 0.0
    %1705 = vmatpush1.msra.mxu0 0.0
    %1706 = vmatprep.subr.mxu0 0.0
    %1707 = vmatpush1.msra.mxu0 0.0
    %1708 = vmatprep.subr.mxu0 0.0
    %1709 = vmatpush1.msra.mxu0 0.0
    %1710 = vmatprep.subr.mxu0 0.0
    %1711 = vmatpush1.msra.mxu0 0.0
    %1712 = vmatprep.subr.mxu0 0.0
    %1713 = vmatpush1.msra.mxu0 0.0
    %1714 = vmatprep.subr.mxu0 0.0
    %1715 = vmatpush1.msra.mxu0 0.0
    %1716 = vmatprep.subr.mxu0 0.0
    %1717 = vmatpush1.msra.mxu0 0.0
    %1718 = vmatprep.subr.mxu0 0.0
    %1719 = vmatpush1.msra.mxu0 0.0
    %1720 = vmatprep.subr.mxu0 0.0
    %1721 = vmatpush1.msra.mxu0 0.0
    %1722 = vmatprep.subr.mxu0 0.0
    %1723 = vmatpush1.msra.mxu0 0.0
    %1724 = vmatprep.subr.mxu0 0.0
    %1725 = vmatpush1.msra.mxu0 0.0
    %1726 = vmatprep.subr.mxu0 0.0
    %1727 = vmatpush1.msra.mxu0 0.0
    %1728 = vmatprep.subr.mxu0 0.0
    %1729 = vmatpush1.msra.mxu0 0.0
    %1730 = vmatprep.subr.mxu0 0.0
    %1731 = vmatpush1.msra.mxu0 0.0
    %1732 = vmatprep.subr.mxu0 0.0
    %1733 = vmatpush1.msra.mxu0 0.0
    %1734 = vmatprep.subr.mxu0 0.0
    %1735 = vmatpush1.msra.mxu0 0.0
    %1736 = vmatprep.subr.mxu0 0.0
    %1737 = vmatpush1.msra.mxu0 0.0
    %1738 = vmatprep.subr.mxu0 0.0
    %1739 = vmatpush1.msra.mxu0 0.0
    %1740 = vmatprep.subr.mxu0 0.0
    %1741 = vmatpush1.msra.mxu0 0.0
    %1742 = vmatprep.subr.mxu0 0.0
    %1743 = vmatpush1.msra.mxu0 0.0
    %1744 = vmatprep.subr.mxu0 0.0
    %1745 = vmatpush1.msra.mxu0 0.0
    %1746 = vmatprep.subr.mxu0 0.0
    %1747 = vmatpush1.msra.mxu0 0.0
    %1748 = vmatprep.subr.mxu0 0.0
    %1749 = vmatpush1.msra.mxu0 0.0
    %1750 = vmatprep.subr.mxu0 0.0
    %1751 = vmatpush1.msra.mxu0 0.0
    %1752 = vmatprep.subr.mxu0 0.0
    %1753 = vmatpush1.msra.mxu0 0.0
    %1754 = vmatprep.subr.mxu0 0.0
    %1755 = vmatpush1.msra.mxu0 0.0
    %1756 = vmatprep.subr.mxu0 0.0
    %1757 = vmatpush1.msra.mxu0 0.0
    %1758 = vmatprep.subr.mxu0 0.0
    %1759 = vmatpush1.msra.mxu0 0.0
    %1760 = vmatprep.mubr.f32.mxu0 0.0
    %1761 = vmatmul.mubr.f32.gmra.mrb[0].mxu0 %v1694
    %v1762 = vpop.f32.mrb[0].mxu0
    %v1763 = vadd.f32 0.0, %v1762
    %v1764 = vpop.f32.mrb[0].mxu0
    %1765 = vdwg.mxu0
    %v1766 = vld [vmem:[#allocation16] sm:$0xff]
    %v1767 = vld [vmem:[#allocation16 + $0x8] sm:$0xff]
    %v1768 = vld [vmem:[#allocation16 + $0x10] sm:$0xff]
    %v1769 = vld [vmem:[#allocation16 + $0x18] sm:$0xff]
    %v1770 = vld [vmem:[#allocation16 + $0x20] sm:$0xff]
    %v1771 = vld [vmem:[#allocation16 + $0x28] sm:$0xff]
    %v1772 = vld [vmem:[#allocation16 + $0x30] sm:$0xff]
    %v1773 = vld [vmem:[#allocation16 + $0x38] sm:$0xff]
    %v1774 = vld [vmem:[#allocation16 + $0x40] sm:$0xff]
    %v1775 = vld [vmem:[#allocation16 + $0x48] sm:$0xff]
    %v1776 = vld [vmem:[#allocation16 + $0x50] sm:$0xff]
    %v1777 = vld [vmem:[#allocation16 + $0x58] sm:$0xff]
    %v1778 = vld [vmem:[#allocation16 + $0x60] sm:$0xff]
    %v1779 = vld [vmem:[#allocation16 + $0x68] sm:$0xff]
    %v1780 = vld [vmem:[#allocation16 + $0x70] sm:$0xff]
    %v1781 = vld [vmem:[#allocation16 + $0x78] sm:$0xff]
    %v1782 = vld [vmem:[#allocation16 + $0x80] sm:$0xff]
    %v1783 = vld [vmem:[#allocation16 + $0x88] sm:$0xff]
    %v1784 = vld [vmem:[#allocation16 + $0x90] sm:$0xff]
    %v1785 = vld [vmem:[#allocation16 + $0x98] sm:$0xff]
    %v1786 = vld [vmem:[#allocation16 + $0xa0] sm:$0xff]
    %v1787 = vld [vmem:[#allocation16 + $0xa8] sm:$0xff]
    %v1788 = vld [vmem:[#allocation16 + $0xb0] sm:$0xff]
    %v1789 = vld [vmem:[#allocation16 + $0xb8] sm:$0xff]
    %v1790 = vld [vmem:[#allocation16 + $0xc0] sm:$0xff]
    %v1791 = vld [vmem:[#allocation16 + $0xc8] sm:$0xff]
    %v1792 = vld [vmem:[#allocation16 + $0xd0] sm:$0xff]
    %v1793 = vld [vmem:[#allocation16 + $0xd8] sm:$0xff]
    %v1794 = vld [vmem:[#allocation16 + $0xe0] sm:$0xff]
    %v1795 = vld [vmem:[#allocation16 + $0xe8] sm:$0xff]
    %v1796 = vld [vmem:[#allocation16 + $0xf0] sm:$0xff]
    %v1797 = vld [vmem:[#allocation16 + $0xf8] sm:$0xff]
    %v1798 = vld [vmem:[#allocation17] sm:$0x1]
    %v1800 = vlaneseq
    %v1801 = vshrl.u32 %v1800, 7
    %v1802 = vsub.s32 0, %v1801
    %v1803 = vrot.slane %v1798, %v1802
    %1805 = vmatprep.subr.mxu0 0.0
    %1806 = vmatpush1.msra.mxu0 %v1766
    %1807 = vmatprep.subr.mxu0 0.0
    %1808 = vmatpush1.msra.mxu0 %v1767
    %1809 = vmatprep.subr.mxu0 0.0
    %1810 = vmatpush1.msra.mxu0 %v1768
    %1811 = vmatprep.subr.mxu0 0.0
    %1812 = vmatpush1.msra.mxu0 %v1769
    %1813 = vmatprep.subr.mxu0 0.0
    %1814 = vmatpush1.msra.mxu0 %v1770
    %1815 = vmatprep.subr.mxu0 0.0
    %1816 = vmatpush1.msra.mxu0 %v1771
    %1817 = vmatprep.subr.mxu0 0.0
    %1818 = vmatpush1.msra.mxu0 %v1772
    %1819 = vmatprep.subr.mxu0 0.0
    %1820 = vmatpush1.msra.mxu0 %v1773
    %1821 = vmatprep.subr.mxu0 0.0
    %1822 = vmatpush1.msra.mxu0 %v1774
    %1823 = vmatprep.subr.mxu0 0.0
    %1824 = vmatpush1.msra.mxu0 %v1775
    %1825 = vmatprep.subr.mxu0 0.0
    %1826 = vmatpush1.msra.mxu0 %v1776
    %1827 = vmatprep.subr.mxu0 0.0
    %1828 = vmatpush1.msra.mxu0 %v1777
    %1829 = vmatprep.subr.mxu0 0.0
    %1830 = vmatpush1.msra.mxu0 %v1778
    %1831 = vmatprep.subr.mxu0 0.0
    %1832 = vmatpush1.msra.mxu0 %v1779
    %1833 = vmatprep.subr.mxu0 0.0
    %1834 = vmatpush1.msra.mxu0 %v1780
    %1835 = vmatprep.subr.mxu0 0.0
    %1836 = vmatpush1.msra.mxu0 %v1781
    %1837 = vmatprep.subr.mxu0 0.0
    %1838 = vmatpush1.msra.mxu0 %v1782
    %1839 = vmatprep.subr.mxu0 0.0
    %1840 = vmatpush1.msra.mxu0 %v1783
    %1841 = vmatprep.subr.mxu0 0.0
    %1842 = vmatpush1.msra.mxu0 %v1784
    %1843 = vmatprep.subr.mxu0 0.0
    %1844 = vmatpush1.msra.mxu0 %v1785
    %1845 = vmatprep.subr.mxu0 0.0
    %1846 = vmatpush1.msra.mxu0 %v1786
    %1847 = vmatprep.subr.mxu0 0.0
    %1848 = vmatpush1.msra.mxu0 %v1787
    %1849 = vmatprep.subr.mxu0 0.0
    %1850 = vmatpush1.msra.mxu0 %v1788
    %1851 = vmatprep.subr.mxu0 0.0
    %1852 = vmatpush1.msra.mxu0 %v1789
    %1853 = vmatprep.subr.mxu0 0.0
    %1854 = vmatpush1.msra.mxu0 %v1790
    %1855 = vmatprep.subr.mxu0 0.0
    %1856 = vmatpush1.msra.mxu0 %v1791
    %1857 = vmatprep.subr.mxu0 0.0
    %1858 = vmatpush1.msra.mxu0 %v1792
    %1859 = vmatprep.subr.mxu0 0.0
    %1860 = vmatpush1.msra.mxu0 %v1793
    %1861 = vmatprep.subr.mxu0 0.0
    %1862 = vmatpush1.msra.mxu0 %v1794
    %1863 = vmatprep.subr.mxu0 0.0
    %1864 = vmatpush1.msra.mxu0 %v1795
    %1865 = vmatprep.subr.mxu0 0.0
    %1866 = vmatpush1.msra.mxu0 %v1796
    %1867 = vmatprep.subr.mxu0 0.0
    %1868 = vmatpush1.msra.mxu0 %v1797
    %1869 = vmatprep.mubr.f32.mxu0 %v1070
    %1870 = vmatmul.mubr.f32.gmra.mrb[0].mxu0 %v760
    %v1871 = vpop.f32.mrb[0].mxu0
    %v1872 = vadd.f32 %v1803, %v1871
    %v1873 = vpop.f32.mrb[0].mxu0
    %1874 = vmatprep.mubr.f32.mxu0 %v1143
    %1875 = vmatmul.mubr.f32.gmra.mrb[0].mxu0 %v833
    %v1876 = vpop.f32.mrb[0].mxu0
    %v1877 = vadd.f32 %v1803, %v1876
    %v1878 = vpop.f32.mrb[0].mxu0
    %1879 = vdwg.mxu0
    %v1880 = vld [vmem:[#allocation19] sm:$0xff]
    %v1881 = vld [vmem:[#allocation19 + $0x8] sm:$0xff]
    %v1882 = vld [vmem:[#allocation19 + $0x10] sm:$0xff]
    %v1883 = vld [vmem:[#allocation19 + $0x18] sm:$0xff]
    %v1884 = vld [vmem:[#allocation19 + $0x20] sm:$0xff]
    %v1885 = vld [vmem:[#allocation19 + $0x28] sm:$0xff]
    %v1886 = vld [vmem:[#allocation19 + $0x30] sm:$0xff]
    %v1887 = vld [vmem:[#allocation19 + $0x38] sm:$0xff]
    %v1888 = vld [vmem:[#allocation19 + $0x40] sm:$0xff]
    %v1889 = vld [vmem:[#allocation19 + $0x48] sm:$0xff]
    %v1890 = vld [vmem:[#allocation19 + $0x50] sm:$0xff]
    %v1891 = vld [vmem:[#allocation19 + $0x58] sm:$0xff]
    %v1892 = vld [vmem:[#allocation19 + $0x60] sm:$0xff]
    %v1893 = vld [vmem:[#allocation19 + $0x68] sm:$0xff]
    %v1894 = vld [vmem:[#allocation19 + $0x70] sm:$0xff]
    %v1895 = vld [vmem:[#allocation19 + $0x78] sm:$0xff]
    %v1896 = vld [vmem:[#allocation19 + $0x80] sm:$0xff]
    %v1897 = vld [vmem:[#allocation19 + $0x88] sm:$0xff]
    %v1898 = vld [vmem:[#allocation19 + $0x90] sm:$0xff]
    %v1899 = vld [vmem:[#allocation19 + $0x98] sm:$0xff]
    %v1900 = vld [vmem:[#allocation19 + $0xa0] sm:$0xff]
    %v1901 = vld [vmem:[#allocation19 + $0xa8] sm:$0xff]
    %v1902 = vld [vmem:[#allocation19 + $0xb0] sm:$0xff]
    %v1903 = vld [vmem:[#allocation19 + $0xb8] sm:$0xff]
    %v1904 = vld [vmem:[#allocation19 + $0xc0] sm:$0xff]
    %v1905 = vld [vmem:[#allocation19 + $0xc8] sm:$0xff]
    %v1906 = vld [vmem:[#allocation19 + $0xd0] sm:$0xff]
    %v1907 = vld [vmem:[#allocation19 + $0xd8] sm:$0xff]
    %v1908 = vld [vmem:[#allocation19 + $0xe0] sm:$0xff]
    %v1909 = vld [vmem:[#allocation19 + $0xe8] sm:$0xff]
    %v1910 = vld [vmem:[#allocation19 + $0xf0] sm:$0xff]
    %v1911 = vld [vmem:[#allocation19 + $0xf8] sm:$0xff]
    %v1912 = vld [vmem:[#allocation20] sm:$0x1]
    %v1914 = vlaneseq
    %v1915 = vshrl.u32 %v1914, 7
    %v1916 = vsub.s32 0, %v1915
    %v1917 = vrot.slane %v1912, %v1916
    %1919 = vmatprep.subr.mxu0 0.0
    %1920 = vmatpush1.msra.mxu0 %v1880
    %1921 = vmatprep.subr.mxu0 0.0
    %1922 = vmatpush1.msra.mxu0 %v1881
    %1923 = vmatprep.subr.mxu0 0.0
    %1924 = vmatpush1.msra.mxu0 %v1882
    %1925 = vmatprep.subr.mxu0 0.0
    %1926 = vmatpush1.msra.mxu0 %v1883
    %1927 = vmatprep.subr.mxu0 0.0
    %1928 = vmatpush1.msra.mxu0 %v1884
    %1929 = vmatprep.subr.mxu0 0.0
    %1930 = vmatpush1.msra.mxu0 %v1885
    %1931 = vmatprep.subr.mxu0 0.0
    %1932 = vmatpush1.msra.mxu0 %v1886
    %1933 = vmatprep.subr.mxu0 0.0
    %1934 = vmatpush1.msra.mxu0 %v1887
    %1935 = vmatprep.subr.mxu0 0.0
    %1936 = vmatpush1.msra.mxu0 %v1888
    %1937 = vmatprep.subr.mxu0 0.0
    %1938 = vmatpush1.msra.mxu0 %v1889
    %1939 = vmatprep.subr.mxu0 0.0
    %1940 = vmatpush1.msra.mxu0 %v1890
    %1941 = vmatprep.subr.mxu0 0.0
    %1942 = vmatpush1.msra.mxu0 %v1891
    %1943 = vmatprep.subr.mxu0 0.0
    %1944 = vmatpush1.msra.mxu0 %v1892
    %1945 = vmatprep.subr.mxu0 0.0
    %1946 = vmatpush1.msra.mxu0 %v1893
    %1947 = vmatprep.subr.mxu0 0.0
    %1948 = vmatpush1.msra.mxu0 %v1894
    %1949 = vmatprep.subr.mxu0 0.0
    %1950 = vmatpush1.msra.mxu0 %v1895
    %1951 = vmatprep.subr.mxu0 0.0
    %1952 = vmatpush1.msra.mxu0 %v1896
    %1953 = vmatprep.subr.mxu0 0.0
    %1954 = vmatpush1.msra.mxu0 %v1897
    %1955 = vmatprep.subr.mxu0 0.0
    %1956 = vmatpush1.msra.mxu0 %v1898
    %1957 = vmatprep.subr.mxu0 0.0
    %1958 = vmatpush1.msra.mxu0 %v1899
    %1959 = vmatprep.subr.mxu0 0.0
    %1960 = vmatpush1.msra.mxu0 %v1900
    %1961 = vmatprep.subr.mxu0 0.0
    %1962 = vmatpush1.msra.mxu0 %v1901
    %1963 = vmatprep.subr.mxu0 0.0
    %1964 = vmatpush1.msra.mxu0 %v1902
    %1965 = vmatprep.subr.mxu0 0.0
    %1966 = vmatpush1.msra.mxu0 %v1903
    %1967 = vmatprep.subr.mxu0 0.0
    %1968 = vmatpush1.msra.mxu0 %v1904
    %1969 = vmatprep.subr.mxu0 0.0
    %1970 = vmatpush1.msra.mxu0 %v1905
    %1971 = vmatprep.subr.mxu0 0.0
    %1972 = vmatpush1.msra.mxu0 %v1906
    %1973 = vmatprep.subr.mxu0 0.0
    %1974 = vmatpush1.msra.mxu0 %v1907
    %1975 = vmatprep.subr.mxu0 0.0
    %1976 = vmatpush1.msra.mxu0 %v1908
    %1977 = vmatprep.subr.mxu0 0.0
    %1978 = vmatpush1.msra.mxu0 %v1909
    %1979 = vmatprep.subr.mxu0 0.0
    %1980 = vmatpush1.msra.mxu0 %v1910
    %1981 = vmatprep.subr.mxu0 0.0
    %1982 = vmatpush1.msra.mxu0 %v1911
    %1983 = vmatprep.mubr.f32.mxu0 %v1690
    %1984 = vmatmul.mubr.f32.gmra.mrb[0].mxu0 %v1380
    %v1985 = vpop.f32.mrb[0].mxu0
    %v1986 = vadd.f32 %v1917, %v1985
    %v1987 = vpop.f32.mrb[0].mxu0
    %1988 = vmatprep.mubr.f32.mxu0 %v1763
    %1989 = vmatmul.mubr.f32.gmra.mrb[0].mxu0 %v1453
    %v1990 = vpop.f32.mrb[0].mxu0
    %v1991 = vadd.f32 %v1917, %v1990
    %v1992 = vpop.f32.mrb[0].mxu0
    %1993 = vdwg.mxu0
    %v1994 = vmul.f32 %v1872, %v1070
    %v1995 = vmul.f32 %v1877, %v1143
    %v1996 = vxor.u32 %v1994, 2147483648
    %v1997 = vxor.u32 %v1995, 2147483648
    %v1998 = vmul.f32 %v1996, 1.442695
    %v1999 = vpow.pop %v1998
    %v2000 = vmul.f32 %v1997, 1.442695
    %v2001 = vpow.pop %v2000
    %v2002 = vadd.f32 %v1999, 1.0
    %v2003 = vadd.f32 %v2001, 1.0
    %v2004 = vrcp.pop %v2002
    %v2005 = vmul.f32 1.0, %v2004
    %v2006 = vrcp.pop %v2003
    %v2007 = vmul.f32 1.0, %v2006
    %v2008 = vmul.f32 %v1986, %v1690
    %v2009 = vmul.f32 %v1991, %v1763
    %v2010 = vxor.u32 %v2008, 2147483648
    %v2011 = vxor.u32 %v2009, 2147483648
    %v2012 = vmul.f32 %v2010, 1.442695
    %v2013 = vpow.pop %v2012
    %v2014 = vmul.f32 %v2011, 1.442695
    %v2015 = vpow.pop %v2014
    %v2016 = vadd.f32 %v2013, 1.0
    %v2017 = vadd.f32 %v2015, 1.0
    %v2018 = vrcp.pop %v2016
    %v2019 = vmul.f32 1.0, %v2018
    %v2020 = vrcp.pop %v2017
    %v2021 = vmul.f32 1.0, %v2020
    %v2022 = vpack.c.bf16 %v2021, %v2019
    %s2023 = scalar_lea.hbm %s10, 49152
    %s2024 = scalar_lea.vmem [#allocation2], 3072
    %s2025 = scalar_lea.sflag [#allocation3], 3
    %s2027 = sshll.u32 1, 14
    %s2028 = sxor.u32 4294967295, %s2027
    %s2030 = sadd.s32 2, %s174
    %s2032 = sshll.u32 7, 26
    %s2033 = sxor.u32 4294967295, %s2032
    %s2034 = sand.u32 0, %s2033
    %s2035 = sshll.u32 %s2030, 26
    %s2036 = sor.u32 %s2034, %s2035
    %s2037 = sshll.u32 %s2024, 4
    %s2038 = int_to_ptr.vmem [resolvable:$true] %s2037
    %2041 = sst [smem:[#allocation30]] 2048
    %s2042 = scalar_lea.smem [#allocation30], 1
    %2043 = sst [smem:[%s2042]] 2048
    %s2044 = scalar_lea.smem [#allocation30], 2
    %2045 = sst [smem:[%s2044]] 16
    %s2046 = scalar_lea.smem [#allocation30], 3
    %2047 = sst [smem:[%s2046]] 64
    %s2048 = scalar_lea.smem [#allocation30], 4
    %2049 = sst [smem:[%s2048]] 128
    %s2050 = scalar_lea.smem [#allocation30], 5
    %2051 = sst [smem:[%s2050]] 2
    %s2052 = scalar_lea.smem [#allocation30], 6
    %2053 = sst [smem:[%s2052]] 1024
    %s2054 = scalar_lea.smem [#allocation30], 7
    %2055 = sst [smem:[%s2054]] 64
    %s2056 = scalar_lea.smem [#allocation30], 8
    %2057 = sst [smem:[%s2056]] 4
    %2059 = dma.general %s2023, 16384, %s2038, %s2025, [#allocation29], [#allocation30], %s2036, 0
    %s2060 = smul.u32 4, 16
    %s2061 = smul.u32 %s2060, 16
    %s2062 = sshll.u32 %s2061, 4
    %2063 = dma.done [#allocation3], %s2062
    %v2064 = vld [vmem:[#allocation2] sm:$0xff]
    %v2065 = vld [vmem:[#allocation2 + $0x8] sm:$0xff]
    %v2066 = vld [vmem:[#allocation2 + $0x10] sm:$0xff]
    %v2067 = vld [vmem:[#allocation2 + $0x18] sm:$0xff]
    %v2068 = vld [vmem:[#allocation2 + $0x20] sm:$0xff]
    %v2069 = vld [vmem:[#allocation2 + $0x28] sm:$0xff]
    %v2070 = vld [vmem:[#allocation2 + $0x30] sm:$0xff]
    %v2071 = vld [vmem:[#allocation2 + $0x38] sm:$0xff]
    %v2072 = vld [vmem:[#allocation2 + $0x40] sm:$0xff]
    %v2073 = vld [vmem:[#allocation2 + $0x48] sm:$0xff]
    %v2074 = vld [vmem:[#allocation2 + $0x50] sm:$0xff]
    %v2075 = vld [vmem:[#allocation2 + $0x58] sm:$0xff]
    %v2076 = vld [vmem:[#allocation2 + $0x60] sm:$0xff]
    %v2077 = vld [vmem:[#allocation2 + $0x68] sm:$0xff]
    %v2078 = vld [vmem:[#allocation2 + $0x70] sm:$0xff]
    %v2079 = vld [vmem:[#allocation2 + $0x78] sm:$0xff]
    %v2080 = vld [vmem:[#allocation2 + $0x80] sm:$0xff]
    %v2081 = vld [vmem:[#allocation2 + $0x88] sm:$0xff]
    %v2082 = vld [vmem:[#allocation2 + $0x90] sm:$0xff]
    %v2083 = vld [vmem:[#allocation2 + $0x98] sm:$0xff]
    %v2084 = vld [vmem:[#allocation2 + $0xa0] sm:$0xff]
    %v2085 = vld [vmem:[#allocation2 + $0xa8] sm:$0xff]
    %v2086 = vld [vmem:[#allocation2 + $0xb0] sm:$0xff]
    %v2087 = vld [vmem:[#allocation2 + $0xb8] sm:$0xff]
    %v2088 = vld [vmem:[#allocation2 + $0xc0] sm:$0xff]
    %v2089 = vld [vmem:[#allocation2 + $0xc8] sm:$0xff]
    %v2090 = vld [vmem:[#allocation2 + $0xd0] sm:$0xff]
    %v2091 = vld [vmem:[#allocation2 + $0xd8] sm:$0xff]
    %v2092 = vld [vmem:[#allocation2 + $0xe0] sm:$0xff]
    %v2093 = vld [vmem:[#allocation2 + $0xe8] sm:$0xff]
    %v2094 = vld [vmem:[#allocation2 + $0xf0] sm:$0xff]
    %v2095 = vld [vmem:[#allocation2 + $0xf8] sm:$0xff]
    %v2096 = vld [vmem:[#allocation2 + $0x100] sm:$0xff]
    %v2097 = vld [vmem:[#allocation2 + $0x108] sm:$0xff]
    %v2098 = vld [vmem:[#allocation2 + $0x110] sm:$0xff]
    %v2099 = vld [vmem:[#allocation2 + $0x118] sm:$0xff]
    %v2100 = vld [vmem:[#allocation2 + $0x120] sm:$0xff]
    %v2101 = vld [vmem:[#allocation2 + $0x128] sm:$0xff]
    %v2102 = vld [vmem:[#allocation2 + $0x130] sm:$0xff]
    %v2103 = vld [vmem:[#allocation2 + $0x138] sm:$0xff]
    %v2104 = vld [vmem:[#allocation2 + $0x140] sm:$0xff]
    %v2105 = vld [vmem:[#allocation2 + $0x148] sm:$0xff]
    %v2106 = vld [vmem:[#allocation2 + $0x150] sm:$0xff]
    %v2107 = vld [vmem:[#allocation2 + $0x158] sm:$0xff]
    %v2108 = vld [vmem:[#allocation2 + $0x160] sm:$0xff]
    %v2109 = vld [vmem:[#allocation2 + $0x168] sm:$0xff]
    %v2110 = vld [vmem:[#allocation2 + $0x170] sm:$0xff]
    %v2111 = vld [vmem:[#allocation2 + $0x178] sm:$0xff]
    %v2112 = vld [vmem:[#allocation2 + $0x180] sm:$0xff]
    %v2113 = vld [vmem:[#allocation2 + $0x188] sm:$0xff]
    %v2114 = vld [vmem:[#allocation2 + $0x190] sm:$0xff]
    %v2115 = vld [vmem:[#allocation2 + $0x198] sm:$0xff]
    %v2116 = vld [vmem:[#allocation2 + $0x1a0] sm:$0xff]
    %v2117 = vld [vmem:[#allocation2 + $0x1a8] sm:$0xff]
    %v2118 = vld [vmem:[#allocation2 + $0x1b0] sm:$0xff]
    %v2119 = vld [vmem:[#allocation2 + $0x1b8] sm:$0xff]
    %v2120 = vld [vmem:[#allocation2 + $0x1c0] sm:$0xff]
    %v2121 = vld [vmem:[#allocation2 + $0x1c8] sm:$0xff]
    %v2122 = vld [vmem:[#allocation2 + $0x1d0] sm:$0xff]
    %v2123 = vld [vmem:[#allocation2 + $0x1d8] sm:$0xff]
    %v2124 = vld [vmem:[#allocation2 + $0x1e0] sm:$0xff]
    %v2125 = vld [vmem:[#allocation2 + $0x1e8] sm:$0xff]
    %v2126 = vld [vmem:[#allocation2 + $0x1f0] sm:$0xff]
    %v2127 = vld [vmem:[#allocation2 + $0x1f8] sm:$0xff]
    %v2128 = vld [vmem:[#allocation2 + $0x200] sm:$0xff]
    %v2129 = vld [vmem:[#allocation2 + $0x208] sm:$0xff]
    %v2130 = vld [vmem:[#allocation2 + $0x210] sm:$0xff]
    %v2131 = vld [vmem:[#allocation2 + $0x218] sm:$0xff]
    %v2132 = vld [vmem:[#allocation2 + $0x220] sm:$0xff]
    %v2133 = vld [vmem:[#allocation2 + $0x228] sm:$0xff]
    %v2134 = vld [vmem:[#allocation2 + $0x230] sm:$0xff]
    %v2135 = vld [vmem:[#allocation2 + $0x238] sm:$0xff]
    %v2136 = vld [vmem:[#allocation2 + $0x240] sm:$0xff]
    %v2137 = vld [vmem:[#allocation2 + $0x248] sm:$0xff]
    %v2138 = vld [vmem:[#allocation2 + $0x250] sm:$0xff]
    %v2139 = vld [vmem:[#allocation2 + $0x258] sm:$0xff]
    %v2140 = vld [vmem:[#allocation2 + $0x260] sm:$0xff]
    %v2141 = vld [vmem:[#allocation2 + $0x268] sm:$0xff]
    %v2142 = vld [vmem:[#allocation2 + $0x270] sm:$0xff]
    %v2143 = vld [vmem:[#allocation2 + $0x278] sm:$0xff]
    %v2144 = vld [vmem:[#allocation2 + $0x280] sm:$0xff]
    %v2145 = vld [vmem:[#allocation2 + $0x288] sm:$0xff]
    %v2146 = vld [vmem:[#allocation2 + $0x290] sm:$0xff]
    %v2147 = vld [vmem:[#allocation2 + $0x298] sm:$0xff]
    %v2148 = vld [vmem:[#allocation2 + $0x2a0] sm:$0xff]
    %v2149 = vld [vmem:[#allocation2 + $0x2a8] sm:$0xff]
    %v2150 = vld [vmem:[#allocation2 + $0x2b0] sm:$0xff]
    %v2151 = vld [vmem:[#allocation2 + $0x2b8] sm:$0xff]
    %v2152 = vld [vmem:[#allocation2 + $0x2c0] sm:$0xff]
    %v2153 = vld [vmem:[#allocation2 + $0x2c8] sm:$0xff]
    %v2154 = vld [vmem:[#allocation2 + $0x2d0] sm:$0xff]
    %v2155 = vld [vmem:[#allocation2 + $0x2d8] sm:$0xff]
    %v2156 = vld [vmem:[#allocation2 + $0x2e0] sm:$0xff]
    %v2157 = vld [vmem:[#allocation2 + $0x2e8] sm:$0xff]
    %v2158 = vld [vmem:[#allocation2 + $0x2f0] sm:$0xff]
    %v2159 = vld [vmem:[#allocation2 + $0x2f8] sm:$0xff]
    %v2160 = vld [vmem:[#allocation2 + $0x300] sm:$0xff]
    %v2161 = vld [vmem:[#allocation2 + $0x308] sm:$0xff]
    %v2162 = vld [vmem:[#allocation2 + $0x310] sm:$0xff]
    %v2163 = vld [vmem:[#allocation2 + $0x318] sm:$0xff]
    %v2164 = vld [vmem:[#allocation2 + $0x320] sm:$0xff]
    %v2165 = vld [vmem:[#allocation2 + $0x328] sm:$0xff]
    %v2166 = vld [vmem:[#allocation2 + $0x330] sm:$0xff]
    %v2167 = vld [vmem:[#allocation2 + $0x338] sm:$0xff]
    %v2168 = vld [vmem:[#allocation2 + $0x340] sm:$0xff]
    %v2169 = vld [vmem:[#allocation2 + $0x348] sm:$0xff]
    %v2170 = vld [vmem:[#allocation2 + $0x350] sm:$0xff]
    %v2171 = vld [vmem:[#allocation2 + $0x358] sm:$0xff]
    %v2172 = vld [vmem:[#allocation2 + $0x360] sm:$0xff]
    %v2173 = vld [vmem:[#allocation2 + $0x368] sm:$0xff]
    %v2174 = vld [vmem:[#allocation2 + $0x370] sm:$0xff]
    %v2175 = vld [vmem:[#allocation2 + $0x378] sm:$0xff]
    %v2176 = vld [vmem:[#allocation2 + $0x380] sm:$0xff]
    %v2177 = vld [vmem:[#allocation2 + $0x388] sm:$0xff]
    %v2178 = vld [vmem:[#allocation2 + $0x390] sm:$0xff]
    %v2179 = vld [vmem:[#allocation2 + $0x398] sm:$0xff]
    %v2180 = vld [vmem:[#allocation2 + $0x3a0] sm:$0xff]
    %v2181 = vld [vmem:[#allocation2 + $0x3a8] sm:$0xff]
    %v2182 = vld [vmem:[#allocation2 + $0x3b0] sm:$0xff]
    %v2183 = vld [vmem:[#allocation2 + $0x3b8] sm:$0xff]
    %v2184 = vld [vmem:[#allocation2 + $0x3c0] sm:$0xff]
    %v2185 = vld [vmem:[#allocation2 + $0x3c8] sm:$0xff]
    %v2186 = vld [vmem:[#allocation2 + $0x3d0] sm:$0xff]
    %v2187 = vld [vmem:[#allocation2 + $0x3d8] sm:$0xff]
    %v2188 = vld [vmem:[#allocation2 + $0x3e0] sm:$0xff]
    %v2189 = vld [vmem:[#allocation2 + $0x3e8] sm:$0xff]
    %v2190 = vld [vmem:[#allocation2 + $0x3f0] sm:$0xff]
    %v2191 = vld [vmem:[#allocation2 + $0x3f8] sm:$0xff]
    %2192 = vmatprep.subr.bf16.mxu0 %v2065
    %2193 = vmatpush1.bf16.msra.mxu0 %v2064
    %2194 = vmatprep.subr.bf16.mxu0 %v2081
    %2195 = vmatpush1.bf16.msra.mxu0 %v2080
    %2196 = vmatprep.subr.bf16.mxu0 %v2097
    %2197 = vmatpush1.bf16.msra.mxu0 %v2096
    %2198 = vmatprep.subr.bf16.mxu0 %v2113
    %2199 = vmatpush1.bf16.msra.mxu0 %v2112
    %2200 = vmatprep.subr.bf16.mxu0 %v2129
    %2201 = vmatpush1.bf16.msra.mxu0 %v2128
    %2202 = vmatprep.subr.bf16.mxu0 %v2145
    %2203 = vmatpush1.bf16.msra.mxu0 %v2144
    %2204 = vmatprep.subr.bf16.mxu0 %v2161
    %2205 = vmatpush1.bf16.msra.mxu0 %v2160
    %2206 = vmatprep.subr.bf16.mxu0 %v2177
    %2207 = vmatpush1.bf16.msra.mxu0 %v2176
    %2208 = vmatprep.subr.bf16.mxu0 0
    %2209 = vmatpush1.bf16.msra.mxu0 0
    %2210 = vmatprep.subr.bf16.mxu0 0
    %2211 = vmatpush1.bf16.msra.mxu0 0
    %2212 = vmatprep.subr.bf16.mxu0 0
    %2213 = vmatpush1.bf16.msra.mxu0 0
    %2214 = vmatprep.subr.bf16.mxu0 0
    %2215 = vmatpush1.bf16.msra.mxu0 0
    %2216 = vmatprep.subr.bf16.mxu0 0
    %2217 = vmatpush1.bf16.msra.mxu0 0
    %2218 = vmatprep.subr.bf16.mxu0 0
    %2219 = vmatpush1.bf16.msra.mxu0 0
    %2220 = vmatprep.subr.bf16.mxu0 0
    %2221 = vmatpush1.bf16.msra.mxu0 0
    %2222 = vmatprep.subr.bf16.mxu0 0
    %2223 = vmatpush1.bf16.msra.mxu0 0
    %2224 = vmatprep.mubr.bf16.mxu0 0
    %2225 = vmatmul.mubr.bf16.gmra.mrb[0].mxu0 %v2022
    %v2226 = vpop.f32.mrb[0].mxu0
    %v2227 = vadd.f32 0.0, %v2226
    %v2228 = vpop.f32.mrb[0].mxu0
    %v2229 = vadd.f32 0.0, %v2228
    %v2230 = vpop.f32.mrb[0].mxu0
    %v2231 = vadd.f32 0.0, %v2230
    %v2232 = vpop.f32.mrb[0].mxu0
    %v2233 = vadd.f32 0.0, %v2232
    %2234 = vdwg.mxu0
    %2235 = vmatprep.subr.bf16.mxu0 %v2067
    %2236 = vmatpush1.bf16.msra.mxu0 %v2066
    %2237 = vmatprep.subr.bf16.mxu0 %v2083
    %2238 = vmatpush1.bf16.msra.mxu0 %v2082
    %2239 = vmatprep.subr.bf16.mxu0 %v2099
    %2240 = vmatpush1.bf16.msra.mxu0 %v2098
    %2241 = vmatprep.subr.bf16.mxu0 %v2115
    %2242 = vmatpush1.bf16.msra.mxu0 %v2114
    %2243 = vmatprep.subr.bf16.mxu0 %v2131
    %2244 = vmatpush1.bf16.msra.mxu0 %v2130
    %2245 = vmatprep.subr.bf16.mxu0 %v2147
    %2246 = vmatpush1.bf16.msra.mxu0 %v2146
    %2247 = vmatprep.subr.bf16.mxu0 %v2163
    %2248 = vmatpush1.bf16.msra.mxu0 %v2162
    %2249 = vmatprep.subr.bf16.mxu0 %v2179
    %2250 = vmatpush1.bf16.msra.mxu0 %v2178
    %2251 = vmatprep.subr.bf16.mxu0 0
    %2252 = vmatpush1.bf16.msra.mxu0 0
    %2253 = vmatprep.subr.bf16.mxu0 0
    %2254 = vmatpush1.bf16.msra.mxu0 0
    %2255 = vmatprep.subr.bf16.mxu0 0
    %2256 = vmatpush1.bf16.msra.mxu0 0
    %2257 = vmatprep.subr.bf16.mxu0 0
    %2258 = vmatpush1.bf16.msra.mxu0 0
    %2259 = vmatprep.subr.bf16.mxu0 0
    %2260 = vmatpush1.bf16.msra.mxu0 0
    %2261 = vmatprep.subr.bf16.mxu0 0
    %2262 = vmatpush1.bf16.msra.mxu0 0
    %2263 = vmatprep.subr.bf16.mxu0 0
    %2264 = vmatpush1.bf16.msra.mxu0 0
    %2265 = vmatprep.subr.bf16.mxu0 0
    %2266 = vmatpush1.bf16.msra.mxu0 0
    %2267 = vmatprep.mubr.bf16.mxu0 0
    %2268 = vmatmul.mubr.bf16.gmra.mrb[0].mxu0 %v2022
    %v2269 = vpop.f32.mrb[0].mxu0
    %v2270 = vadd.f32 0.0, %v2269
    %v2271 = vpop.f32.mrb[0].mxu0
    %v2272 = vadd.f32 0.0, %v2271
    %v2273 = vpop.f32.mrb[0].mxu0
    %v2274 = vadd.f32 0.0, %v2273
    %v2275 = vpop.f32.mrb[0].mxu0
    %v2276 = vadd.f32 0.0, %v2275
    %2277 = vdwg.mxu0
    %2278 = vmatprep.subr.bf16.mxu0 %v2069
    %2279 = vmatpush1.bf16.msra.mxu0 %v2068
    %2280 = vmatprep.subr.bf16.mxu0 %v2085
    %2281 = vmatpush1.bf16.msra.mxu0 %v2084
    %2282 = vmatprep.subr.bf16.mxu0 %v2101
    %2283 = vmatpush1.bf16.msra.mxu0 %v2100
    %2284 = vmatprep.subr.bf16.mxu0 %v2117
    %2285 = vmatpush1.bf16.msra.mxu0 %v2116
    %2286 = vmatprep.subr.bf16.mxu0 %v2133
    %2287 = vmatpush1.bf16.msra.mxu0 %v2132
    %2288 = vmatprep.subr.bf16.mxu0 %v2149
    %2289 = vmatpush1.bf16.msra.mxu0 %v2148
    %2290 = vmatprep.subr.bf16.mxu0 %v2165
    %2291 = vmatpush1.bf16.msra.mxu0 %v2164
    %2292 = vmatprep.subr.bf16.mxu0 %v2181
    %2293 = vmatpush1.bf16.msra.mxu0 %v2180
    %2294 = vmatprep.subr.bf16.mxu0 0
    %2295 = vmatpush1.bf16.msra.mxu0 0
    %2296 = vmatprep.subr.bf16.mxu0 0
    %2297 = vmatpush1.bf16.msra.mxu0 0
    %2298 = vmatprep.subr.bf16.mxu0 0
    %2299 = vmatpush1.bf16.msra.mxu0 0
    %2300 = vmatprep.subr.bf16.mxu0 0
    %2301 = vmatpush1.bf16.msra.mxu0 0
    %2302 = vmatprep.subr.bf16.mxu0 0
    %2303 = vmatpush1.bf16.msra.mxu0 0
    %2304 = vmatprep.subr.bf16.mxu0 0
    %2305 = vmatpush1.bf16.msra.mxu0 0
    %2306 = vmatprep.subr.bf16.mxu0 0
    %2307 = vmatpush1.bf16.msra.mxu0 0
    %2308 = vmatprep.subr.bf16.mxu0 0
    %2309 = vmatpush1.bf16.msra.mxu0 0
    %2310 = vmatprep.mubr.bf16.mxu0 0
    %2311 = vmatmul.mubr.bf16.gmra.mrb[0].mxu0 %v2022
    %v2312 = vpop.f32.mrb[0].mxu0
    %v2313 = vadd.f32 0.0, %v2312
    %v2314 = vpop.f32.mrb[0].mxu0
    %v2315 = vadd.f32 0.0, %v2314
    %v2316 = vpop.f32.mrb[0].mxu0
    %v2317 = vadd.f32 0.0, %v2316
    %v2318 = vpop.f32.mrb[0].mxu0
    %v2319 = vadd.f32 0.0, %v2318
    %2320 = vdwg.mxu0
    %2321 = vmatprep.subr.bf16.mxu0 %v2071
    %2322 = vmatpush1.bf16.msra.mxu0 %v2070
    %2323 = vmatprep.subr.bf16.mxu0 %v2087
    %2324 = vmatpush1.bf16.msra.mxu0 %v2086
    %2325 = vmatprep.subr.bf16.mxu0 %v2103
    %2326 = vmatpush1.bf16.msra.mxu0 %v2102
    %2327 = vmatprep.subr.bf16.mxu0 %v2119
    %2328 = vmatpush1.bf16.msra.mxu0 %v2118
    %2329 = vmatprep.subr.bf16.mxu0 %v2135
    %2330 = vmatpush1.bf16.msra.mxu0 %v2134
    %2331 = vmatprep.subr.bf16.mxu0 %v2151
    %2332 = vmatpush1.bf16.msra.mxu0 %v2150
    %2333 = vmatprep.subr.bf16.mxu0 %v2167
    %2334 = vmatpush1.bf16.msra.mxu0 %v2166
    %2335 = vmatprep.subr.bf16.mxu0 %v2183
    %2336 = vmatpush1.bf16.msra.mxu0 %v2182
    %2337 = vmatprep.subr.bf16.mxu0 0
    %2338 = vmatpush1.bf16.msra.mxu0 0
    %2339 = vmatprep.subr.bf16.mxu0 0
    %2340 = vmatpush1.bf16.msra.mxu0 0
    %2341 = vmatprep.subr.bf16.mxu0 0
    %2342 = vmatpush1.bf16.msra.mxu0 0
    %2343 = vmatprep.subr.bf16.mxu0 0
    %2344 = vmatpush1.bf16.msra.mxu0 0
    %2345 = vmatprep.subr.bf16.mxu0 0
    %2346 = vmatpush1.bf16.msra.mxu0 0
    %2347 = vmatprep.subr.bf16.mxu0 0
    %2348 = vmatpush1.bf16.msra.mxu0 0
    %2349 = vmatprep.subr.bf16.mxu0 0
    %2350 = vmatpush1.bf16.msra.mxu0 0
    %2351 = vmatprep.subr.bf16.mxu0 0
    %2352 = vmatpush1.bf16.msra.mxu0 0
    %2353 = vmatprep.mubr.bf16.mxu0 0
    %2354 = vmatmul.mubr.bf16.gmra.mrb[0].mxu0 %v2022
    %v2355 = vpop.f32.mrb[0].mxu0
    %v2356 = vadd.f32 0.0, %v2355
    %v2357 = vpop.f32.mrb[0].mxu0
    %v2358 = vadd.f32 0.0, %v2357
    %v2359 = vpop.f32.mrb[0].mxu0
    %v2360 = vadd.f32 0.0, %v2359
    %v2361 = vpop.f32.mrb[0].mxu0
    %v2362 = vadd.f32 0.0, %v2361
    %2363 = vdwg.mxu0
    %2364 = vmatprep.subr.bf16.mxu0 %v2073
    %2365 = vmatpush1.bf16.msra.mxu0 %v2072
    %2366 = vmatprep.subr.bf16.mxu0 %v2089
    %2367 = vmatpush1.bf16.msra.mxu0 %v2088
    %2368 = vmatprep.subr.bf16.mxu0 %v2105
    %2369 = vmatpush1.bf16.msra.mxu0 %v2104
    %2370 = vmatprep.subr.bf16.mxu0 %v2121
    %2371 = vmatpush1.bf16.msra.mxu0 %v2120
    %2372 = vmatprep.subr.bf16.mxu0 %v2137
    %2373 = vmatpush1.bf16.msra.mxu0 %v2136
    %2374 = vmatprep.subr.bf16.mxu0 %v2153
    %2375 = vmatpush1.bf16.msra.mxu0 %v2152
    %2376 = vmatprep.subr.bf16.mxu0 %v2169
    %2377 = vmatpush1.bf16.msra.mxu0 %v2168
    %2378 = vmatprep.subr.bf16.mxu0 %v2185
    %2379 = vmatpush1.bf16.msra.mxu0 %v2184
    %2380 = vmatprep.subr.bf16.mxu0 0
    %2381 = vmatpush1.bf16.msra.mxu0 0
    %2382 = vmatprep.subr.bf16.mxu0 0
    %2383 = vmatpush1.bf16.msra.mxu0 0
    %2384 = vmatprep.subr.bf16.mxu0 0
    %2385 = vmatpush1.bf16.msra.mxu0 0
    %2386 = vmatprep.subr.bf16.mxu0 0
    %2387 = vmatpush1.bf16.msra.mxu0 0
    %2388 = vmatprep.subr.bf16.mxu0 0
    %2389 = vmatpush1.bf16.msra.mxu0 0
    %2390 = vmatprep.subr.bf16.mxu0 0
    %2391 = vmatpush1.bf16.msra.mxu0 0
    %2392 = vmatprep.subr.bf16.mxu0 0
    %2393 = vmatpush1.bf16.msra.mxu0 0
    %2394 = vmatprep.subr.bf16.mxu0 0
    %2395 = vmatpush1.bf16.msra.mxu0 0
    %2396 = vmatprep.mubr.bf16.mxu0 0
    %2397 = vmatmul.mubr.bf16.gmra.mrb[0].mxu0 %v2022
    %v2398 = vpop.f32.mrb[0].mxu0
    %v2399 = vadd.f32 0.0, %v2398
    %v2400 = vpop.f32.mrb[0].mxu0
    %v2401 = vadd.f32 0.0, %v2400
    %v2402 = vpop.f32.mrb[0].mxu0
    %v2403 = vadd.f32 0.0, %v2402
    %v2404 = vpop.f32.mrb[0].mxu0
    %v2405 = vadd.f32 0.0, %v2404
    %2406 = vdwg.mxu0
    %2407 = vmatprep.subr.bf16.mxu0 %v2075
    %2408 = vmatpush1.bf16.msra.mxu0 %v2074
    %2409 = vmatprep.subr.bf16.mxu0 %v2091
    %2410 = vmatpush1.bf16.msra.mxu0 %v2090
    %2411 = vmatprep.subr.bf16.mxu0 %v2107
    %2412 = vmatpush1.bf16.msra.mxu0 %v2106
    %2413 = vmatprep.subr.bf16.mxu0 %v2123
    %2414 = vmatpush1.bf16.msra.mxu0 %v2122
    %2415 = vmatprep.subr.bf16.mxu0 %v2139
    %2416 = vmatpush1.bf16.msra.mxu0 %v2138
    %2417 = vmatprep.subr.bf16.mxu0 %v2155
    %2418 = vmatpush1.bf16.msra.mxu0 %v2154
    %2419 = vmatprep.subr.bf16.mxu0 %v2171
    %2420 = vmatpush1.bf16.msra.mxu0 %v2170
    %2421 = vmatprep.subr.bf16.mxu0 %v2187
    %2422 = vmatpush1.bf16.msra.mxu0 %v2186
    %2423 = vmatprep.subr.bf16.mxu0 0
    %2424 = vmatpush1.bf16.msra.mxu0 0
    %2425 = vmatprep.subr.bf16.mxu0 0
    %2426 = vmatpush1.bf16.msra.mxu0 0
    %2427 = vmatprep.subr.bf16.mxu0 0
    %2428 = vmatpush1.bf16.msra.mxu0 0
    %2429 = vmatprep.subr.bf16.mxu0 0
    %2430 = vmatpush1.bf16.msra.mxu0 0
    %2431 = vmatprep.subr.bf16.mxu0 0
    %2432 = vmatpush1.bf16.msra.mxu0 0
    %2433 = vmatprep.subr.bf16.mxu0 0
    %2434 = vmatpush1.bf16.msra.mxu0 0
    %2435 = vmatprep.subr.bf16.mxu0 0
    %2436 = vmatpush1.bf16.msra.mxu0 0
    %2437 = vmatprep.subr.bf16.mxu0 0
    %2438 = vmatpush1.bf16.msra.mxu0 0
    %2439 = vmatprep.mubr.bf16.mxu0 0
    %2440 = vmatmul.mubr.bf16.gmra.mrb[0].mxu0 %v2022
    %v2441 = vpop.f32.mrb[0].mxu0
    %v2442 = vadd.f32 0.0, %v2441
    %v2443 = vpop.f32.mrb[0].mxu0
    %v2444 = vadd.f32 0.0, %v2443
    %v2445 = vpop.f32.mrb[0].mxu0
    %v2446 = vadd.f32 0.0, %v2445
    %v2447 = vpop.f32.mrb[0].mxu0
    %v2448 = vadd.f32 0.0, %v2447
    %2449 = vdwg.mxu0
    %2450 = vmatprep.subr.bf16.mxu0 %v2077
    %2451 = vmatpush1.bf16.msra.mxu0 %v2076
    %2452 = vmatprep.subr.bf16.mxu0 %v2093
    %2453 = vmatpush1.bf16.msra.mxu0 %v2092
    %2454 = vmatprep.subr.bf16.mxu0 %v2109
    %2455 = vmatpush1.bf16.msra.mxu0 %v2108
    %2456 = vmatprep.subr.bf16.mxu0 %v2125
    %2457 = vmatpush1.bf16.msra.mxu0 %v2124
    %2458 = vmatprep.subr.bf16.mxu0 %v2141
    %2459 = vmatpush1.bf16.msra.mxu0 %v2140
    %2460 = vmatprep.subr.bf16.mxu0 %v2157
    %2461 = vmatpush1.bf16.msra.mxu0 %v2156
    %2462 = vmatprep.subr.bf16.mxu0 %v2173
    %2463 = vmatpush1.bf16.msra.mxu0 %v2172
    %2464 = vmatprep.subr.bf16.mxu0 %v2189
    %2465 = vmatpush1.bf16.msra.mxu0 %v2188
    %2466 = vmatprep.subr.bf16.mxu0 0
    %2467 = vmatpush1.bf16.msra.mxu0 0
    %2468 = vmatprep.subr.bf16.mxu0 0
    %2469 = vmatpush1.bf16.msra.mxu0 0
    %2470 = vmatprep.subr.bf16.mxu0 0
    %2471 = vmatpush1.bf16.msra.mxu0 0
    %2472 = vmatprep.subr.bf16.mxu0 0
    %2473 = vmatpush1.bf16.msra.mxu0 0
    %2474 = vmatprep.subr.bf16.mxu0 0
    %2475 = vmatpush1.bf16.msra.mxu0 0
    %2476 = vmatprep.subr.bf16.mxu0 0
    %2477 = vmatpush1.bf16.msra.mxu0 0
    %2478 = vmatprep.subr.bf16.mxu0 0
    %2479 = vmatpush1.bf16.msra.mxu0 0
    %2480 = vmatprep.subr.bf16.mxu0 0
    %2481 = vmatpush1.bf16.msra.mxu0 0
    %2482 = vmatprep.mubr.bf16.mxu0 0
    %2483 = vmatmul.mubr.bf16.gmra.mrb[0].mxu0 %v2022
    %v2484 = vpop.f32.mrb[0].mxu0
    %v2485 = vadd.f32 0.0, %v2484
    %v2486 = vpop.f32.mrb[0].mxu0
    %v2487 = vadd.f32 0.0, %v2486
    %v2488 = vpop.f32.mrb[0].mxu0
    %v2489 = vadd.f32 0.0, %v2488
    %v2490 = vpop.f32.mrb[0].mxu0
    %v2491 = vadd.f32 0.0, %v2490
    %2492 = vdwg.mxu0
    %2493 = vmatprep.subr.bf16.mxu0 %v2079
    %2494 = vmatpush1.bf16.msra.mxu0 %v2078
    %2495 = vmatprep.subr.bf16.mxu0 %v2095
    %2496 = vmatpush1.bf16.msra.mxu0 %v2094
    %2497 = vmatprep.subr.bf16.mxu0 %v2111
    %2498 = vmatpush1.bf16.msra.mxu0 %v2110
    %2499 = vmatprep.subr.bf16.mxu0 %v2127
    %2500 = vmatpush1.bf16.msra.mxu0 %v2126
    %2501 = vmatprep.subr.bf16.mxu0 %v2143
    %2502 = vmatpush1.bf16.msra.mxu0 %v2142
    %2503 = vmatprep.subr.bf16.mxu0 %v2159
    %2504 = vmatpush1.bf16.msra.mxu0 %v2158
    %2505 = vmatprep.subr.bf16.mxu0 %v2175
    %2506 = vmatpush1.bf16.msra.mxu0 %v2174
    %2507 = vmatprep.subr.bf16.mxu0 %v2191
    %2508 = vmatpush1.bf16.msra.mxu0 %v2190
    %2509 = vmatprep.subr.bf16.mxu0 0
    %2510 = vmatpush1.bf16.msra.mxu0 0
    %2511 = vmatprep.subr.bf16.mxu0 0
    %2512 = vmatpush1.bf16.msra.mxu0 0
    %2513 = vmatprep.subr.bf16.mxu0 0
    %2514 = vmatpush1.bf16.msra.mxu0 0
    %2515 = vmatprep.subr.bf16.mxu0 0
    %2516 = vmatpush1.bf16.msra.mxu0 0
    %2517 = vmatprep.subr.bf16.mxu0 0
    %2518 = vmatpush1.bf16.msra.mxu0 0
    %2519 = vmatprep.subr.bf16.mxu0 0
    %2520 = vmatpush1.bf16.msra.mxu0 0
    %2521 = vmatprep.subr.bf16.mxu0 0
    %2522 = vmatpush1.bf16.msra.mxu0 0
    %2523 = vmatprep.subr.bf16.mxu0 0
    %2524 = vmatpush1.bf16.msra.mxu0 0
    %2525 = vmatprep.mubr.bf16.mxu0 0
    %2526 = vmatmul.mubr.bf16.gmra.mrb[0].mxu0 %v2022
    %v2527 = vpop.f32.mrb[0].mxu0
    %v2528 = vadd.f32 0.0, %v2527
    %v2529 = vpop.f32.mrb[0].mxu0
    %v2530 = vadd.f32 0.0, %v2529
    %v2531 = vpop.f32.mrb[0].mxu0
    %v2532 = vadd.f32 0.0, %v2531
    %v2533 = vpop.f32.mrb[0].mxu0
    %v2534 = vadd.f32 0.0, %v2533
    %2535 = vdwg.mxu0
    %2537 = vset.pattern.permute.xlu0 0
    %2538 = vperm.xlu0 %2537, %v2005
    %v2539 = vpop.permute.xlu0 %2538
    %2542 = vset.pattern.permute.xlu0 0
    %2543 = vperm.xlu0 %2542, %v2007
    %v2544 = vpop.permute.xlu0 %2543
    %v2546 = vmul.f32 %v2539, %v2227
    %v2547 = vmul.f32 %v2544, %v2231
    %v2548 = vadd.f32 %v2546, 0.0
    %v2549 = vadd.f32 %v2547, 0.0
    %2550 = vset.pattern.permute.xlu0 1
    %2551 = vperm.xlu0 %2550, %v2005
    %v2552 = vpop.permute.xlu0 %2551
    %2554 = vset.pattern.permute.xlu0 1
    %2555 = vperm.xlu0 %2554, %v2007
    %v2556 = vpop.permute.xlu0 %2555
    %v2558 = vmul.f32 %v2552, %v2229
    %v2559 = vmul.f32 %v2556, %v2233
    %v2560 = vadd.f32 %v2548, %v2558
    %v2561 = vadd.f32 %v2549, %v2559
    %2562 = vset.pattern.permute.xlu0 2
    %2563 = vperm.xlu0 %2562, %v2005
    %v2564 = vpop.permute.xlu0 %2563
    %2566 = vset.pattern.permute.xlu0 2
    %2567 = vperm.xlu0 %2566, %v2007
    %v2568 = vpop.permute.xlu0 %2567
    %v2570 = vmul.f32 %v2564, %v2270
    %v2571 = vmul.f32 %v2568, %v2274
    %v2572 = vadd.f32 %v2560, %v2570
    %v2573 = vadd.f32 %v2561, %v2571
    %2574 = vset.pattern.permute.xlu0 3
    %2575 = vperm.xlu0 %2574, %v2005
    %v2576 = vpop.permute.xlu0 %2575
    %2578 = vset.pattern.permute.xlu0 3
    %2579 = vperm.xlu0 %2578, %v2007
    %v2580 = vpop.permute.xlu0 %2579
    %v2582 = vmul.f32 %v2576, %v2272
    %v2583 = vmul.f32 %v2580, %v2276
    %v2584 = vadd.f32 %v2572, %v2582
    %v2585 = vadd.f32 %v2573, %v2583
    %2586 = vset.pattern.permute.xlu0 4
    %2587 = vperm.xlu0 %2586, %v2005
    %v2588 = vpop.permute.xlu0 %2587
    %2590 = vset.pattern.permute.xlu0 4
    %2591 = vperm.xlu0 %2590, %v2007
    %v2592 = vpop.permute.xlu0 %2591
    %v2594 = vmul.f32 %v2588, %v2313
    %v2595 = vmul.f32 %v2592, %v2317
    %v2596 = vadd.f32 %v2584, %v2594
    %v2597 = vadd.f32 %v2585, %v2595
    %2598 = vset.pattern.permute.xlu0 5
    %2599 = vperm.xlu0 %2598, %v2005
    %v2600 = vpop.permute.xlu0 %2599
    %2602 = vset.pattern.permute.xlu0 5
    %2603 = vperm.xlu0 %2602, %v2007
    %v2604 = vpop.permute.xlu0 %2603
    %v2606 = vmul.f32 %v2600, %v2315
    %v2607 = vmul.f32 %v2604, %v2319
    %v2608 = vadd.f32 %v2596, %v2606
    %v2609 = vadd.f32 %v2597, %v2607
    %2610 = vset.pattern.permute.xlu0 6
    %2611 = vperm.xlu0 %2610, %v2005
    %v2612 = vpop.permute.xlu0 %2611
    %2614 = vset.pattern.permute.xlu0 6
    %2615 = vperm.xlu0 %2614, %v2007
    %v2616 = vpop.permute.xlu0 %2615
    %v2618 = vmul.f32 %v2612, %v2356
    %v2619 = vmul.f32 %v2616, %v2360
    %v2620 = vadd.f32 %v2608, %v2618
    %v2621 = vadd.f32 %v2609, %v2619
    %2622 = vset.pattern.permute.xlu0 7
    %2623 = vperm.xlu0 %2622, %v2005
    %v2624 = vpop.permute.xlu0 %2623
    %2626 = vset.pattern.permute.xlu0 7
    %2627 = vperm.xlu0 %2626, %v2007
    %v2628 = vpop.permute.xlu0 %2627
    %v2630 = vmul.f32 %v2624, %v2358
    %v2631 = vmul.f32 %v2628, %v2362
    %v2632 = vadd.f32 %v2620, %v2630
    %v2633 = vadd.f32 %v2621, %v2631
    %2634 = vset.pattern.permute.xlu0 8
    %2635 = vperm.xlu0 %2634, %v2005
    %v2636 = vpop.permute.xlu0 %2635
    %2638 = vset.pattern.permute.xlu0 8
    %2639 = vperm.xlu0 %2638, %v2007
    %v2640 = vpop.permute.xlu0 %2639
    %v2642 = vmul.f32 %v2636, %v2399
    %v2643 = vmul.f32 %v2640, %v2403
    %v2644 = vadd.f32 %v2632, %v2642
    %v2645 = vadd.f32 %v2633, %v2643
    %2646 = vset.pattern.permute.xlu0 9
    %2647 = vperm.xlu0 %2646, %v2005
    %v2648 = vpop.permute.xlu0 %2647
    %2650 = vset.pattern.permute.xlu0 9
    %2651 = vperm.xlu0 %2650, %v2007
    %v2652 = vpop.permute.xlu0 %2651
    %v2654 = vmul.f32 %v2648, %v2401
    %v2655 = vmul.f32 %v2652, %v2405
    %v2656 = vadd.f32 %v2644, %v2654
    %v2657 = vadd.f32 %v2645, %v2655
    %2658 = vset.pattern.permute.xlu0 10
    %2659 = vperm.xlu0 %2658, %v2005
    %v2660 = vpop.permute.xlu0 %2659
    %2662 = vset.pattern.permute.xlu0 10
    %2663 = vperm.xlu0 %2662, %v2007
    %v2664 = vpop.permute.xlu0 %2663
    %v2666 = vmul.f32 %v2660, %v2442
    %v2667 = vmul.f32 %v2664, %v2446
    %v2668 = vadd.f32 %v2656, %v2666
    %v2669 = vadd.f32 %v2657, %v2667
    %2670 = vset.pattern.permute.xlu0 11
    %2671 = vperm.xlu0 %2670, %v2005
    %v2672 = vpop.permute.xlu0 %2671
    %2674 = vset.pattern.permute.xlu0 11
    %2675 = vperm.xlu0 %2674, %v2007
    %v2676 = vpop.permute.xlu0 %2675
    %v2678 = vmul.f32 %v2672, %v2444
    %v2679 = vmul.f32 %v2676, %v2448
    %v2680 = vadd.f32 %v2668, %v2678
    %v2681 = vadd.f32 %v2669, %v2679
    %2682 = vset.pattern.permute.xlu0 12
    %2683 = vperm.xlu0 %2682, %v2005
    %v2684 = vpop.permute.xlu0 %2683
    %2686 = vset.pattern.permute.xlu0 12
    %2687 = vperm.xlu0 %2686, %v2007
    %v2688 = vpop.permute.xlu0 %2687
    %v2690 = vmul.f32 %v2684, %v2485
    %v2691 = vmul.f32 %v2688, %v2489
    %v2692 = vadd.f32 %v2680, %v2690
    %v2693 = vadd.f32 %v2681, %v2691
    %2694 = vset.pattern.permute.xlu0 13
    %2695 = vperm.xlu0 %2694, %v2005
    %v2696 = vpop.permute.xlu0 %2695
    %2698 = vset.pattern.permute.xlu0 13
    %2699 = vperm.xlu0 %2698, %v2007
    %v2700 = vpop.permute.xlu0 %2699
    %v2702 = vmul.f32 %v2696, %v2487
    %v2703 = vmul.f32 %v2700, %v2491
    %v2704 = vadd.f32 %v2692, %v2702
    %v2705 = vadd.f32 %v2693, %v2703
    %2706 = vset.pattern.permute.xlu0 14
    %2707 = vperm.xlu0 %2706, %v2005
    %v2708 = vpop.permute.xlu0 %2707
    %2710 = vset.pattern.permute.xlu0 14
    %2711 = vperm.xlu0 %2710, %v2007
    %v2712 = vpop.permute.xlu0 %2711
    %v2714 = vmul.f32 %v2708, %v2528
    %v2715 = vmul.f32 %v2712, %v2532
    %v2716 = vadd.f32 %v2704, %v2714
    %v2717 = vadd.f32 %v2705, %v2715
    %2718 = vset.pattern.permute.xlu0 15
    %2719 = vperm.xlu0 %2718, %v2005
    %v2720 = vpop.permute.xlu0 %2719
    %2722 = vset.pattern.permute.xlu0 15
    %2723 = vperm.xlu0 %2722, %v2007
    %v2724 = vpop.permute.xlu0 %2723
    %v2726 = vmul.f32 %v2720, %v2530
    %v2727 = vmul.f32 %v2724, %v2534
    %v2728 = vadd.f32 %v2716, %v2726
    %v2729 = vadd.f32 %v2717, %v2727
    %s2730 = scalar_lea.hbm %s10, 65536
    %s2732 = sshll.u32 1, 14
    %s2733 = sxor.u32 4294967295, %s2732
    %s2735 = sadd.s32 2, %s174
    %s2737 = sshll.u32 7, 26
    %s2738 = sxor.u32 4294967295, %s2737
    %s2739 = sand.u32 0, %s2738
    %s2740 = sshll.u32 %s2735, 26
    %s2741 = sor.u32 %s2739, %s2740
    %s2742 = sshll.u32 [#allocation2], 4
    %s2743 = int_to_ptr.vmem [resolvable:$true] %s2742
    %2746 = sst [smem:[#allocation32]] 2048
    %s2747 = scalar_lea.smem [#allocation32], 1
    %2748 = sst [smem:[%s2747]] 2048
    %s2749 = scalar_lea.smem [#allocation32], 2
    %2750 = sst [smem:[%s2749]] 16
    %s2751 = scalar_lea.smem [#allocation32], 3
    %2752 = sst [smem:[%s2751]] 64
    %s2753 = scalar_lea.smem [#allocation32], 4
    %2754 = sst [smem:[%s2753]] 128
    %s2755 = scalar_lea.smem [#allocation32], 5
    %2756 = sst [smem:[%s2755]] 2
    %s2757 = scalar_lea.smem [#allocation32], 6
    %2758 = sst [smem:[%s2757]] 1024
    %s2759 = scalar_lea.smem [#allocation32], 7
    %2760 = sst [smem:[%s2759]] 64
    %s2761 = scalar_lea.smem [#allocation32], 8
    %2762 = sst [smem:[%s2761]] 4
    %2764 = dma.general %s2730, 16384, %s2743, [#allocation3], [#allocation31], [#allocation32], %s2741, 0
    %s2765 = sshll.u32 %s2061, 4
    %2766 = dma.done %s207, %s2765
    %v2767 = vld [vmem:[%s206] sm:$0xff]
    %v2768 = vld [vmem:[%s206 + $0x8] sm:$0xff]
    %v2769 = vld [vmem:[%s206 + $0x10] sm:$0xff]
    %v2770 = vld [vmem:[%s206 + $0x18] sm:$0xff]
    %v2771 = vld [vmem:[%s206 + $0x20] sm:$0xff]
    %v2772 = vld [vmem:[%s206 + $0x28] sm:$0xff]
    %v2773 = vld [vmem:[%s206 + $0x30] sm:$0xff]
    %v2774 = vld [vmem:[%s206 + $0x38] sm:$0xff]
    %v2775 = vld [vmem:[%s206 + $0x40] sm:$0xff]
    %v2776 = vld [vmem:[%s206 + $0x48] sm:$0xff]
    %v2777 = vld [vmem:[%s206 + $0x50] sm:$0xff]
    %v2778 = vld [vmem:[%s206 + $0x58] sm:$0xff]
    %v2779 = vld [vmem:[%s206 + $0x60] sm:$0xff]
    %v2780 = vld [vmem:[%s206 + $0x68] sm:$0xff]
    %v2781 = vld [vmem:[%s206 + $0x70] sm:$0xff]
    %v2782 = vld [vmem:[%s206 + $0x78] sm:$0xff]
    %v2783 = vld [vmem:[%s206 + $0x80] sm:$0xff]
    %v2784 = vld [vmem:[%s206 + $0x88] sm:$0xff]
    %v2785 = vld [vmem:[%s206 + $0x90] sm:$0xff]
    %v2786 = vld [vmem:[%s206 + $0x98] sm:$0xff]
    %v2787 = vld [vmem:[%s206 + $0xa0] sm:$0xff]
    %v2788 = vld [vmem:[%s206 + $0xa8] sm:$0xff]
    %v2789 = vld [vmem:[%s206 + $0xb0] sm:$0xff]
    %v2790 = vld [vmem:[%s206 + $0xb8] sm:$0xff]
    %v2791 = vld [vmem:[%s206 + $0xc0] sm:$0xff]
    %v2792 = vld [vmem:[%s206 + $0xc8] sm:$0xff]
    %v2793 = vld [vmem:[%s206 + $0xd0] sm:$0xff]
    %v2794 = vld [vmem:[%s206 + $0xd8] sm:$0xff]
    %v2795 = vld [vmem:[%s206 + $0xe0] sm:$0xff]
    %v2796 = vld [vmem:[%s206 + $0xe8] sm:$0xff]
    %v2797 = vld [vmem:[%s206 + $0xf0] sm:$0xff]
    %v2798 = vld [vmem:[%s206 + $0xf8] sm:$0xff]
    %v2799 = vld [vmem:[%s206 + $0x100] sm:$0xff]
    %v2800 = vld [vmem:[%s206 + $0x108] sm:$0xff]
    %v2801 = vld [vmem:[%s206 + $0x110] sm:$0xff]
    %v2802 = vld [vmem:[%s206 + $0x118] sm:$0xff]
    %v2803 = vld [vmem:[%s206 + $0x120] sm:$0xff]
    %v2804 = vld [vmem:[%s206 + $0x128] sm:$0xff]
    %v2805 = vld [vmem:[%s206 + $0x130] sm:$0xff]
    %v2806 = vld [vmem:[%s206 + $0x138] sm:$0xff]
    %v2807 = vld [vmem:[%s206 + $0x140] sm:$0xff]
    %v2808 = vld [vmem:[%s206 + $0x148] sm:$0xff]
    %v2809 = vld [vmem:[%s206 + $0x150] sm:$0xff]
    %v2810 = vld [vmem:[%s206 + $0x158] sm:$0xff]
    %v2811 = vld [vmem:[%s206 + $0x160] sm:$0xff]
    %v2812 = vld [vmem:[%s206 + $0x168] sm:$0xff]
    %v2813 = vld [vmem:[%s206 + $0x170] sm:$0xff]
    %v2814 = vld [vmem:[%s206 + $0x178] sm:$0xff]
    %v2815 = vld [vmem:[%s206 + $0x180] sm:$0xff]
    %v2816 = vld [vmem:[%s206 + $0x188] sm:$0xff]
    %v2817 = vld [vmem:[%s206 + $0x190] sm:$0xff]
    %v2818 = vld [vmem:[%s206 + $0x198] sm:$0xff]
    %v2819 = vld [vmem:[%s206 + $0x1a0] sm:$0xff]
    %v2820 = vld [vmem:[%s206 + $0x1a8] sm:$0xff]
    %v2821 = vld [vmem:[%s206 + $0x1b0] sm:$0xff]
    %v2822 = vld [vmem:[%s206 + $0x1b8] sm:$0xff]
    %v2823 = vld [vmem:[%s206 + $0x1c0] sm:$0xff]
    %v2824 = vld [vmem:[%s206 + $0x1c8] sm:$0xff]
    %v2825 = vld [vmem:[%s206 + $0x1d0] sm:$0xff]
    %v2826 = vld [vmem:[%s206 + $0x1d8] sm:$0xff]
    %v2827 = vld [vmem:[%s206 + $0x1e0] sm:$0xff]
    %v2828 = vld [vmem:[%s206 + $0x1e8] sm:$0xff]
    %v2829 = vld [vmem:[%s206 + $0x1f0] sm:$0xff]
    %v2830 = vld [vmem:[%s206 + $0x1f8] sm:$0xff]
    %v2831 = vld [vmem:[%s206 + $0x200] sm:$0xff]
    %v2832 = vld [vmem:[%s206 + $0x208] sm:$0xff]
    %v2833 = vld [vmem:[%s206 + $0x210] sm:$0xff]
    %v2834 = vld [vmem:[%s206 + $0x218] sm:$0xff]
    %v2835 = vld [vmem:[%s206 + $0x220] sm:$0xff]
    %v2836 = vld [vmem:[%s206 + $0x228] sm:$0xff]
    %v2837 = vld [vmem:[%s206 + $0x230] sm:$0xff]
    %v2838 = vld [vmem:[%s206 + $0x238] sm:$0xff]
    %v2839 = vld [vmem:[%s206 + $0x240] sm:$0xff]
    %v2840 = vld [vmem:[%s206 + $0x248] sm:$0xff]
    %v2841 = vld [vmem:[%s206 + $0x250] sm:$0xff]
    %v2842 = vld [vmem:[%s206 + $0x258] sm:$0xff]
    %v2843 = vld [vmem:[%s206 + $0x260] sm:$0xff]
    %v2844 = vld [vmem:[%s206 + $0x268] sm:$0xff]
    %v2845 = vld [vmem:[%s206 + $0x270] sm:$0xff]
    %v2846 = vld [vmem:[%s206 + $0x278] sm:$0xff]
    %v2847 = vld [vmem:[%s206 + $0x280] sm:$0xff]
    %v2848 = vld [vmem:[%s206 + $0x288] sm:$0xff]
    %v2849 = vld [vmem:[%s206 + $0x290] sm:$0xff]
    %v2850 = vld [vmem:[%s206 + $0x298] sm:$0xff]
    %v2851 = vld [vmem:[%s206 + $0x2a0] sm:$0xff]
    %v2852 = vld [vmem:[%s206 + $0x2a8] sm:$0xff]
    %v2853 = vld [vmem:[%s206 + $0x2b0] sm:$0xff]
    %v2854 = vld [vmem:[%s206 + $0x2b8] sm:$0xff]
    %v2855 = vld [vmem:[%s206 + $0x2c0] sm:$0xff]
    %v2856 = vld [vmem:[%s206 + $0x2c8] sm:$0xff]
    %v2857 = vld [vmem:[%s206 + $0x2d0] sm:$0xff]
    %v2858 = vld [vmem:[%s206 + $0x2d8] sm:$0xff]
    %v2859 = vld [vmem:[%s206 + $0x2e0] sm:$0xff]
    %v2860 = vld [vmem:[%s206 + $0x2e8] sm:$0xff]
    %v2861 = vld [vmem:[%s206 + $0x2f0] sm:$0xff]
    %v2862 = vld [vmem:[%s206 + $0x2f8] sm:$0xff]
    %v2863 = vld [vmem:[%s206 + $0x300] sm:$0xff]
    %v2864 = vld [vmem:[%s206 + $0x308] sm:$0xff]
    %v2865 = vld [vmem:[%s206 + $0x310] sm:$0xff]
    %v2866 = vld [vmem:[%s206 + $0x318] sm:$0xff]
    %v2867 = vld [vmem:[%s206 + $0x320] sm:$0xff]
    %v2868 = vld [vmem:[%s206 + $0x328] sm:$0xff]
    %v2869 = vld [vmem:[%s206 + $0x330] sm:$0xff]
    %v2870 = vld [vmem:[%s206 + $0x338] sm:$0xff]
    %v2871 = vld [vmem:[%s206 + $0x340] sm:$0xff]
    %v2872 = vld [vmem:[%s206 + $0x348] sm:$0xff]
    %v2873 = vld [vmem:[%s206 + $0x350] sm:$0xff]
    %v2874 = vld [vmem:[%s206 + $0x358] sm:$0xff]
    %v2875 = vld [vmem:[%s206 + $0x360] sm:$0xff]
    %v2876 = vld [vmem:[%s206 + $0x368] sm:$0xff]
    %v2877 = vld [vmem:[%s206 + $0x370] sm:$0xff]
    %v2878 = vld [vmem:[%s206 + $0x378] sm:$0xff]
    %v2879 = vld [vmem:[%s206 + $0x380] sm:$0xff]
    %v2880 = vld [vmem:[%s206 + $0x388] sm:$0xff]
    %v2881 = vld [vmem:[%s206 + $0x390] sm:$0xff]
    %v2882 = vld [vmem:[%s206 + $0x398] sm:$0xff]
    %v2883 = vld [vmem:[%s206 + $0x3a0] sm:$0xff]
    %v2884 = vld [vmem:[%s206 + $0x3a8] sm:$0xff]
    %v2885 = vld [vmem:[%s206 + $0x3b0] sm:$0xff]
    %v2886 = vld [vmem:[%s206 + $0x3b8] sm:$0xff]
    %v2887 = vld [vmem:[%s206 + $0x3c0] sm:$0xff]
    %v2888 = vld [vmem:[%s206 + $0x3c8] sm:$0xff]
    %v2889 = vld [vmem:[%s206 + $0x3d0] sm:$0xff]
    %v2890 = vld [vmem:[%s206 + $0x3d8] sm:$0xff]
    %v2891 = vld [vmem:[%s206 + $0x3e0] sm:$0xff]
    %v2892 = vld [vmem:[%s206 + $0x3e8] sm:$0xff]
    %v2893 = vld [vmem:[%s206 + $0x3f0] sm:$0xff]
    %v2894 = vld [vmem:[%s206 + $0x3f8] sm:$0xff]
    %2895 = vmatprep.subr.bf16.mxu0 %v2768
    %2896 = vmatpush1.bf16.msra.mxu0 %v2767
    %2897 = vmatprep.subr.bf16.mxu0 %v2784
    %2898 = vmatpush1.bf16.msra.mxu0 %v2783
    %2899 = vmatprep.subr.bf16.mxu0 %v2800
    %2900 = vmatpush1.bf16.msra.mxu0 %v2799
    %2901 = vmatprep.subr.bf16.mxu0 %v2816
    %2902 = vmatpush1.bf16.msra.mxu0 %v2815
    %2903 = vmatprep.subr.bf16.mxu0 %v2832
    %2904 = vmatpush1.bf16.msra.mxu0 %v2831
    %2905 = vmatprep.subr.bf16.mxu0 %v2848
    %2906 = vmatpush1.bf16.msra.mxu0 %v2847
    %2907 = vmatprep.subr.bf16.mxu0 %v2864
    %2908 = vmatpush1.bf16.msra.mxu0 %v2863
    %2909 = vmatprep.subr.bf16.mxu0 %v2880
    %2910 = vmatpush1.bf16.msra.mxu0 %v2879
    %2911 = vmatprep.subr.bf16.mxu0 0
    %2912 = vmatpush1.bf16.msra.mxu0 0
    %2913 = vmatprep.subr.bf16.mxu0 0
    %2914 = vmatpush1.bf16.msra.mxu0 0
    %2915 = vmatprep.subr.bf16.mxu0 0
    %2916 = vmatpush1.bf16.msra.mxu0 0
    %2917 = vmatprep.subr.bf16.mxu0 0
    %2918 = vmatpush1.bf16.msra.mxu0 0
    %2919 = vmatprep.subr.bf16.mxu0 0
    %2920 = vmatpush1.bf16.msra.mxu0 0
    %2921 = vmatprep.subr.bf16.mxu0 0
    %2922 = vmatpush1.bf16.msra.mxu0 0
    %2923 = vmatprep.subr.bf16.mxu0 0
    %2924 = vmatpush1.bf16.msra.mxu0 0
    %2925 = vmatprep.subr.bf16.mxu0 0
    %2926 = vmatpush1.bf16.msra.mxu0 0
    %2927 = vmatprep.mubr.bf16.mxu0 0
    %2928 = vmatmul.mubr.bf16.gmra.mrb[0].mxu0 %v2022
    %v2929 = vpop.f32.mrb[0].mxu0
    %v2930 = vadd.f32 0.0, %v2929
    %v2931 = vpop.f32.mrb[0].mxu0
    %v2932 = vadd.f32 0.0, %v2931
    %v2933 = vpop.f32.mrb[0].mxu0
    %v2934 = vadd.f32 0.0, %v2933
    %v2935 = vpop.f32.mrb[0].mxu0
    %v2936 = vadd.f32 0.0, %v2935
    %2937 = vdwg.mxu0
    %2938 = vmatprep.subr.bf16.mxu0 %v2770
    %2939 = vmatpush1.bf16.msra.mxu0 %v2769
    %2940 = vmatprep.subr.bf16.mxu0 %v2786
    %2941 = vmatpush1.bf16.msra.mxu0 %v2785
    %2942 = vmatprep.subr.bf16.mxu0 %v2802
    %2943 = vmatpush1.bf16.msra.mxu0 %v2801
    %2944 = vmatprep.subr.bf16.mxu0 %v2818
    %2945 = vmatpush1.bf16.msra.mxu0 %v2817
    %2946 = vmatprep.subr.bf16.mxu0 %v2834
    %2947 = vmatpush1.bf16.msra.mxu0 %v2833
    %2948 = vmatprep.subr.bf16.mxu0 %v2850
    %2949 = vmatpush1.bf16.msra.mxu0 %v2849
    %2950 = vmatprep.subr.bf16.mxu0 %v2866
    %2951 = vmatpush1.bf16.msra.mxu0 %v2865
    %2952 = vmatprep.subr.bf16.mxu0 %v2882
    %2953 = vmatpush1.bf16.msra.mxu0 %v2881
    %2954 = vmatprep.subr.bf16.mxu0 0
    %2955 = vmatpush1.bf16.msra.mxu0 0
    %2956 = vmatprep.subr.bf16.mxu0 0
    %2957 = vmatpush1.bf16.msra.mxu0 0
    %2958 = vmatprep.subr.bf16.mxu0 0
    %2959 = vmatpush1.bf16.msra.mxu0 0
    %2960 = vmatprep.subr.bf16.mxu0 0
    %2961 = vmatpush1.bf16.msra.mxu0 0
    %2962 = vmatprep.subr.bf16.mxu0 0
    %2963 = vmatpush1.bf16.msra.mxu0 0
    %2964 = vmatprep.subr.bf16.mxu0 0
    %2965 = vmatpush1.bf16.msra.mxu0 0
    %2966 = vmatprep.subr.bf16.mxu0 0
    %2967 = vmatpush1.bf16.msra.mxu0 0
    %2968 = vmatprep.subr.bf16.mxu0 0
    %2969 = vmatpush1.bf16.msra.mxu0 0
    %2970 = vmatprep.mubr.bf16.mxu0 0
    %2971 = vmatmul.mubr.bf16.gmra.mrb[0].mxu0 %v2022
    %v2972 = vpop.f32.mrb[0].mxu0
    %v2973 = vadd.f32 0.0, %v2972
    %v2974 = vpop.f32.mrb[0].mxu0
    %v2975 = vadd.f32 0.0, %v2974
    %v2976 = vpop.f32.mrb[0].mxu0
    %v2977 = vadd.f32 0.0, %v2976
    %v2978 = vpop.f32.mrb[0].mxu0
    %v2979 = vadd.f32 0.0, %v2978
    %2980 = vdwg.mxu0
    %2981 = vmatprep.subr.bf16.mxu0 %v2772
    %2982 = vmatpush1.bf16.msra.mxu0 %v2771
    %2983 = vmatprep.subr.bf16.mxu0 %v2788
    %2984 = vmatpush1.bf16.msra.mxu0 %v2787
    %2985 = vmatprep.subr.bf16.mxu0 %v2804
    %2986 = vmatpush1.bf16.msra.mxu0 %v2803
    %2987 = vmatprep.subr.bf16.mxu0 %v2820
    %2988 = vmatpush1.bf16.msra.mxu0 %v2819
    %2989 = vmatprep.subr.bf16.mxu0 %v2836
    %2990 = vmatpush1.bf16.msra.mxu0 %v2835
    %2991 = vmatprep.subr.bf16.mxu0 %v2852
    %2992 = vmatpush1.bf16.msra.mxu0 %v2851
    %2993 = vmatprep.subr.bf16.mxu0 %v2868
    %2994 = vmatpush1.bf16.msra.mxu0 %v2867
    %2995 = vmatprep.subr.bf16.mxu0 %v2884
    %2996 = vmatpush1.bf16.msra.mxu0 %v2883
    %2997 = vmatprep.subr.bf16.mxu0 0
    %2998 = vmatpush1.bf16.msra.mxu0 0
    %2999 = vmatprep.subr.bf16.mxu0 0
    %3000 = vmatpush1.bf16.msra.mxu0 0
    %3001 = vmatprep.subr.bf16.mxu0 0
    %3002 = vmatpush1.bf16.msra.mxu0 0
    %3003 = vmatprep.subr.bf16.mxu0 0
    %3004 = vmatpush1.bf16.msra.mxu0 0
    %3005 = vmatprep.subr.bf16.mxu0 0
    %3006 = vmatpush1.bf16.msra.mxu0 0
    %3007 = vmatprep.subr.bf16.mxu0 0
    %3008 = vmatpush1.bf16.msra.mxu0 0
    %3009 = vmatprep.subr.bf16.mxu0 0
    %3010 = vmatpush1.bf16.msra.mxu0 0
    %3011 = vmatprep.subr.bf16.mxu0 0
    %3012 = vmatpush1.bf16.msra.mxu0 0
    %3013 = vmatprep.mubr.bf16.mxu0 0
    %3014 = vmatmul.mubr.bf16.gmra.mrb[0].mxu0 %v2022
    %v3015 = vpop.f32.mrb[0].mxu0
    %v3016 = vadd.f32 0.0, %v3015
    %v3017 = vpop.f32.mrb[0].mxu0
    %v3018 = vadd.f32 0.0, %v3017
    %v3019 = vpop.f32.mrb[0].mxu0
    %v3020 = vadd.f32 0.0, %v3019
    %v3021 = vpop.f32.mrb[0].mxu0
    %v3022 = vadd.f32 0.0, %v3021
    %3023 = vdwg.mxu0
    %3024 = vmatprep.subr.bf16.mxu0 %v2774
    %3025 = vmatpush1.bf16.msra.mxu0 %v2773
    %3026 = vmatprep.subr.bf16.mxu0 %v2790
    %3027 = vmatpush1.bf16.msra.mxu0 %v2789
    %3028 = vmatprep.subr.bf16.mxu0 %v2806
    %3029 = vmatpush1.bf16.msra.mxu0 %v2805
    %3030 = vmatprep.subr.bf16.mxu0 %v2822
    %3031 = vmatpush1.bf16.msra.mxu0 %v2821
    %3032 = vmatprep.subr.bf16.mxu0 %v2838
    %3033 = vmatpush1.bf16.msra.mxu0 %v2837
    %3034 = vmatprep.subr.bf16.mxu0 %v2854
    %3035 = vmatpush1.bf16.msra.mxu0 %v2853
    %3036 = vmatprep.subr.bf16.mxu0 %v2870
    %3037 = vmatpush1.bf16.msra.mxu0 %v2869
    %3038 = vmatprep.subr.bf16.mxu0 %v2886
    %3039 = vmatpush1.bf16.msra.mxu0 %v2885
    %3040 = vmatprep.subr.bf16.mxu0 0
    %3041 = vmatpush1.bf16.msra.mxu0 0
    %3042 = vmatprep.subr.bf16.mxu0 0
    %3043 = vmatpush1.bf16.msra.mxu0 0
    %3044 = vmatprep.subr.bf16.mxu0 0
    %3045 = vmatpush1.bf16.msra.mxu0 0
    %3046 = vmatprep.subr.bf16.mxu0 0
    %3047 = vmatpush1.bf16.msra.mxu0 0
    %3048 = vmatprep.subr.bf16.mxu0 0
    %3049 = vmatpush1.bf16.msra.mxu0 0
    %3050 = vmatprep.subr.bf16.mxu0 0
    %3051 = vmatpush1.bf16.msra.mxu0 0
    %3052 = vmatprep.subr.bf16.mxu0 0
    %3053 = vmatpush1.bf16.msra.mxu0 0
    %3054 = vmatprep.subr.bf16.mxu0 0
    %3055 = vmatpush1.bf16.msra.mxu0 0
    %3056 = vmatprep.mubr.bf16.mxu0 0
    %3057 = vmatmul.mubr.bf16.gmra.mrb[0].mxu0 %v2022
    %v3058 = vpop.f32.mrb[0].mxu0
    %v3059 = vadd.f32 0.0, %v3058
    %v3060 = vpop.f32.mrb[0].mxu0
    %v3061 = vadd.f32 0.0, %v3060
    %v3062 = vpop.f32.mrb[0].mxu0
    %v3063 = vadd.f32 0.0, %v3062
    %v3064 = vpop.f32.mrb[0].mxu0
    %v3065 = vadd.f32 0.0, %v3064
    %3066 = vdwg.mxu0
    %3067 = vmatprep.subr.bf16.mxu0 %v2776
    %3068 = vmatpush1.bf16.msra.mxu0 %v2775
    %3069 = vmatprep.subr.bf16.mxu0 %v2792
    %3070 = vmatpush1.bf16.msra.mxu0 %v2791
    %3071 = vmatprep.subr.bf16.mxu0 %v2808
    %3072 = vmatpush1.bf16.msra.mxu0 %v2807
    %3073 = vmatprep.subr.bf16.mxu0 %v2824
    %3074 = vmatpush1.bf16.msra.mxu0 %v2823
    %3075 = vmatprep.subr.bf16.mxu0 %v2840
    %3076 = vmatpush1.bf16.msra.mxu0 %v2839
    %3077 = vmatprep.subr.bf16.mxu0 %v2856
    %3078 = vmatpush1.bf16.msra.mxu0 %v2855
    %3079 = vmatprep.subr.bf16.mxu0 %v2872
    %3080 = vmatpush1.bf16.msra.mxu0 %v2871
    %3081 = vmatprep.subr.bf16.mxu0 %v2888
    %3082 = vmatpush1.bf16.msra.mxu0 %v2887
    %3083 = vmatprep.subr.bf16.mxu0 0
    %3084 = vmatpush1.bf16.msra.mxu0 0
    %3085 = vmatprep.subr.bf16.mxu0 0
    %3086 = vmatpush1.bf16.msra.mxu0 0
    %3087 = vmatprep.subr.bf16.mxu0 0
    %3088 = vmatpush1.bf16.msra.mxu0 0
    %3089 = vmatprep.subr.bf16.mxu0 0
    %3090 = vmatpush1.bf16.msra.mxu0 0
    %3091 = vmatprep.subr.bf16.mxu0 0
    %3092 = vmatpush1.bf16.msra.mxu0 0
    %3093 = vmatprep.subr.bf16.mxu0 0
    %3094 = vmatpush1.bf16.msra.mxu0 0
    %3095 = vmatprep.subr.bf16.mxu0 0
    %3096 = vmatpush1.bf16.msra.mxu0 0
    %3097 = vmatprep.subr.bf16.mxu0 0
    %3098 = vmatpush1.bf16.msra.mxu0 0
    %3099 = vmatprep.mubr.bf16.mxu0 0
    %3100 = vmatmul.mubr.bf16.gmra.mrb[0].mxu0 %v2022
    %v3101 = vpop.f32.mrb[0].mxu0
    %v3102 = vadd.f32 0.0, %v3101
    %v3103 = vpop.f32.mrb[0].mxu0
    %v3104 = vadd.f32 0.0, %v3103
    %v3105 = vpop.f32.mrb[0].mxu0
    %v3106 = vadd.f32 0.0, %v3105
    %v3107 = vpop.f32.mrb[0].mxu0
    %v3108 = vadd.f32 0.0, %v3107
    %3109 = vdwg.mxu0
    %3110 = vmatprep.subr.bf16.mxu0 %v2778
    %3111 = vmatpush1.bf16.msra.mxu0 %v2777
    %3112 = vmatprep.subr.bf16.mxu0 %v2794
    %3113 = vmatpush1.bf16.msra.mxu0 %v2793
    %3114 = vmatprep.subr.bf16.mxu0 %v2810
    %3115 = vmatpush1.bf16.msra.mxu0 %v2809
    %3116 = vmatprep.subr.bf16.mxu0 %v2826
    %3117 = vmatpush1.bf16.msra.mxu0 %v2825
    %3118 = vmatprep.subr.bf16.mxu0 %v2842
    %3119 = vmatpush1.bf16.msra.mxu0 %v2841
    %3120 = vmatprep.subr.bf16.mxu0 %v2858
    %3121 = vmatpush1.bf16.msra.mxu0 %v2857
    %3122 = vmatprep.subr.bf16.mxu0 %v2874
    %3123 = vmatpush1.bf16.msra.mxu0 %v2873
    %3124 = vmatprep.subr.bf16.mxu0 %v2890
    %3125 = vmatpush1.bf16.msra.mxu0 %v2889
    %3126 = vmatprep.subr.bf16.mxu0 0
    %3127 = vmatpush1.bf16.msra.mxu0 0
    %3128 = vmatprep.subr.bf16.mxu0 0
    %3129 = vmatpush1.bf16.msra.mxu0 0
    %3130 = vmatprep.subr.bf16.mxu0 0
    %3131 = vmatpush1.bf16.msra.mxu0 0
    %3132 = vmatprep.subr.bf16.mxu0 0
    %3133 = vmatpush1.bf16.msra.mxu0 0
    %3134 = vmatprep.subr.bf16.mxu0 0
    %3135 = vmatpush1.bf16.msra.mxu0 0
    %3136 = vmatprep.subr.bf16.mxu0 0
    %3137 = vmatpush1.bf16.msra.mxu0 0
    %3138 = vmatprep.subr.bf16.mxu0 0
    %3139 = vmatpush1.bf16.msra.mxu0 0
    %3140 = vmatprep.subr.bf16.mxu0 0
    %3141 = vmatpush1.bf16.msra.mxu0 0
    %3142 = vmatprep.mubr.bf16.mxu0 0
    %3143 = vmatmul.mubr.bf16.gmra.mrb[0].mxu0 %v2022
    %v3144 = vpop.f32.mrb[0].mxu0
    %v3145 = vadd.f32 0.0, %v3144
    %v3146 = vpop.f32.mrb[0].mxu0
    %v3147 = vadd.f32 0.0, %v3146
    %v3148 = vpop.f32.mrb[0].mxu0
    %v3149 = vadd.f32 0.0, %v3148
    %v3150 = vpop.f32.mrb[0].mxu0
    %v3151 = vadd.f32 0.0, %v3150
    %3152 = vdwg.mxu0
    %3153 = vmatprep.subr.bf16.mxu0 %v2780
    %3154 = vmatpush1.bf16.msra.mxu0 %v2779
    %3155 = vmatprep.subr.bf16.mxu0 %v2796
    %3156 = vmatpush1.bf16.msra.mxu0 %v2795
    %3157 = vmatprep.subr.bf16.mxu0 %v2812
    %3158 = vmatpush1.bf16.msra.mxu0 %v2811
    %3159 = vmatprep.subr.bf16.mxu0 %v2828
    %3160 = vmatpush1.bf16.msra.mxu0 %v2827
    %3161 = vmatprep.subr.bf16.mxu0 %v2844
    %3162 = vmatpush1.bf16.msra.mxu0 %v2843
    %3163 = vmatprep.subr.bf16.mxu0 %v2860
    %3164 = vmatpush1.bf16.msra.mxu0 %v2859
    %3165 = vmatprep.subr.bf16.mxu0 %v2876
    %3166 = vmatpush1.bf16.msra.mxu0 %v2875
    %3167 = vmatprep.subr.bf16.mxu0 %v2892
    %3168 = vmatpush1.bf16.msra.mxu0 %v2891
    %3169 = vmatprep.subr.bf16.mxu0 0
    %3170 = vmatpush1.bf16.msra.mxu0 0
    %3171 = vmatprep.subr.bf16.mxu0 0
    %3172 = vmatpush1.bf16.msra.mxu0 0
    %3173 = vmatprep.subr.bf16.mxu0 0
    %3174 = vmatpush1.bf16.msra.mxu0 0
    %3175 = vmatprep.subr.bf16.mxu0 0
    %3176 = vmatpush1.bf16.msra.mxu0 0
    %3177 = vmatprep.subr.bf16.mxu0 0
    %3178 = vmatpush1.bf16.msra.mxu0 0
    %3179 = vmatprep.subr.bf16.mxu0 0
    %3180 = vmatpush1.bf16.msra.mxu0 0
    %3181 = vmatprep.subr.bf16.mxu0 0
    %3182 = vmatpush1.bf16.msra.mxu0 0
    %3183 = vmatprep.subr.bf16.mxu0 0
    %3184 = vmatpush1.bf16.msra.mxu0 0
    %3185 = vmatprep.mubr.bf16.mxu0 0
    %3186 = vmatmul.mubr.bf16.gmra.mrb[0].mxu0 %v2022
    %v3187 = vpop.f32.mrb[0].mxu0
    %v3188 = vadd.f32 0.0, %v3187
    %v3189 = vpop.f32.mrb[0].mxu0
    %v3190 = vadd.f32 0.0, %v3189
    %v3191 = vpop.f32.mrb[0].mxu0
    %v3192 = vadd.f32 0.0, %v3191
    %v3193 = vpop.f32.mrb[0].mxu0
    %v3194 = vadd.f32 0.0, %v3193
    %3195 = vdwg.mxu0
    %3196 = vmatprep.subr.bf16.mxu0 %v2782
    %3197 = vmatpush1.bf16.msra.mxu0 %v2781
    %3198 = vmatprep.subr.bf16.mxu0 %v2798
    %3199 = vmatpush1.bf16.msra.mxu0 %v2797
    %3200 = vmatprep.subr.bf16.mxu0 %v2814
    %3201 = vmatpush1.bf16.msra.mxu0 %v2813
    %3202 = vmatprep.subr.bf16.mxu0 %v2830
    %3203 = vmatpush1.bf16.msra.mxu0 %v2829
    %3204 = vmatprep.subr.bf16.mxu0 %v2846
    %3205 = vmatpush1.bf16.msra.mxu0 %v2845
    %3206 = vmatprep.subr.bf16.mxu0 %v2862
    %3207 = vmatpush1.bf16.msra.mxu0 %v2861
    %3208 = vmatprep.subr.bf16.mxu0 %v2878
    %3209 = vmatpush1.bf16.msra.mxu0 %v2877
    %3210 = vmatprep.subr.bf16.mxu0 %v2894
    %3211 = vmatpush1.bf16.msra.mxu0 %v2893
    %3212 = vmatprep.subr.bf16.mxu0 0
    %3213 = vmatpush1.bf16.msra.mxu0 0
    %3214 = vmatprep.subr.bf16.mxu0 0
    %3215 = vmatpush1.bf16.msra.mxu0 0
    %3216 = vmatprep.subr.bf16.mxu0 0
    %3217 = vmatpush1.bf16.msra.mxu0 0
    %3218 = vmatprep.subr.bf16.mxu0 0
    %3219 = vmatpush1.bf16.msra.mxu0 0
    %3220 = vmatprep.subr.bf16.mxu0 0
    %3221 = vmatpush1.bf16.msra.mxu0 0
    %3222 = vmatprep.subr.bf16.mxu0 0
    %3223 = vmatpush1.bf16.msra.mxu0 0
    %3224 = vmatprep.subr.bf16.mxu0 0
    %3225 = vmatpush1.bf16.msra.mxu0 0
    %3226 = vmatprep.subr.bf16.mxu0 0
    %3227 = vmatpush1.bf16.msra.mxu0 0
    %3228 = vmatprep.mubr.bf16.mxu0 0
    %3229 = vmatmul.mubr.bf16.gmra.mrb[0].mxu0 %v2022
    %v3230 = vpop.f32.mrb[0].mxu0
    %v3231 = vadd.f32 0.0, %v3230
    %v3232 = vpop.f32.mrb[0].mxu0
    %v3233 = vadd.f32 0.0, %v3232
    %v3234 = vpop.f32.mrb[0].mxu0
    %v3235 = vadd.f32 0.0, %v3234
    %v3236 = vpop.f32.mrb[0].mxu0
    %v3237 = vadd.f32 0.0, %v3236
    %3238 = vdwg.mxu0
    %3239 = vset.pattern.permute.xlu0 16
    %3240 = vperm.xlu0 %3239, %v2005
    %v3241 = vpop.permute.xlu0 %3240
    %3243 = vset.pattern.permute.xlu0 16
    %3244 = vperm.xlu0 %3243, %v2007
    %v3245 = vpop.permute.xlu0 %3244
    %v3247 = vmul.f32 %v3241, %v2930
    %v3248 = vmul.f32 %v3245, %v2934
    %v3249 = vadd.f32 %v2728, %v3247
    %v3250 = vadd.f32 %v2729, %v3248
    %3251 = vset.pattern.permute.xlu0 17
    %3252 = vperm.xlu0 %3251, %v2005
    %v3253 = vpop.permute.xlu0 %3252
    %3255 = vset.pattern.permute.xlu0 17
    %3256 = vperm.xlu0 %3255, %v2007
    %v3257 = vpop.permute.xlu0 %3256
    %v3259 = vmul.f32 %v3253, %v2932
    %v3260 = vmul.f32 %v3257, %v2936
    %v3261 = vadd.f32 %v3249, %v3259
    %v3262 = vadd.f32 %v3250, %v3260
    %3263 = vset.pattern.permute.xlu0 18
    %3264 = vperm.xlu0 %3263, %v2005
    %v3265 = vpop.permute.xlu0 %3264
    %3267 = vset.pattern.permute.xlu0 18
    %3268 = vperm.xlu0 %3267, %v2007
    %v3269 = vpop.permute.xlu0 %3268
    %v3271 = vmul.f32 %v3265, %v2973
    %v3272 = vmul.f32 %v3269, %v2977
    %v3273 = vadd.f32 %v3261, %v3271
    %v3274 = vadd.f32 %v3262, %v3272
    %3275 = vset.pattern.permute.xlu0 19
    %3276 = vperm.xlu0 %3275, %v2005
    %v3277 = vpop.permute.xlu0 %3276
    %3279 = vset.pattern.permute.xlu0 19
    %3280 = vperm.xlu0 %3279, %v2007
    %v3281 = vpop.permute.xlu0 %3280
    %v3283 = vmul.f32 %v3277, %v2975
    %v3284 = vmul.f32 %v3281, %v2979
    %v3285 = vadd.f32 %v3273, %v3283
    %v3286 = vadd.f32 %v3274, %v3284
    %3287 = vset.pattern.permute.xlu0 20
    %3288 = vperm.xlu0 %3287, %v2005
    %v3289 = vpop.permute.xlu0 %3288
    %3291 = vset.pattern.permute.xlu0 20
    %3292 = vperm.xlu0 %3291, %v2007
    %v3293 = vpop.permute.xlu0 %3292
    %v3295 = vmul.f32 %v3289, %v3016
    %v3296 = vmul.f32 %v3293, %v3020
    %v3297 = vadd.f32 %v3285, %v3295
    %v3298 = vadd.f32 %v3286, %v3296
    %3299 = vset.pattern.permute.xlu0 21
    %3300 = vperm.xlu0 %3299, %v2005
    %v3301 = vpop.permute.xlu0 %3300
    %3303 = vset.pattern.permute.xlu0 21
    %3304 = vperm.xlu0 %3303, %v2007
    %v3305 = vpop.permute.xlu0 %3304
    %v3307 = vmul.f32 %v3301, %v3018
    %v3308 = vmul.f32 %v3305, %v3022
    %v3309 = vadd.f32 %v3297, %v3307
    %v3310 = vadd.f32 %v3298, %v3308
    %3311 = vset.pattern.permute.xlu0 22
    %3312 = vperm.xlu0 %3311, %v2005
    %v3313 = vpop.permute.xlu0 %3312
    %3315 = vset.pattern.permute.xlu0 22
    %3316 = vperm.xlu0 %3315, %v2007
    %v3317 = vpop.permute.xlu0 %3316
    %v3319 = vmul.f32 %v3313, %v3059
    %v3320 = vmul.f32 %v3317, %v3063
    %v3321 = vadd.f32 %v3309, %v3319
    %v3322 = vadd.f32 %v3310, %v3320
    %3323 = vset.pattern.permute.xlu0 23
    %3324 = vperm.xlu0 %3323, %v2005
    %v3325 = vpop.permute.xlu0 %3324
    %3327 = vset.pattern.permute.xlu0 23
    %3328 = vperm.xlu0 %3327, %v2007
    %v3329 = vpop.permute.xlu0 %3328
    %v3331 = vmul.f32 %v3325, %v3061
    %v3332 = vmul.f32 %v3329, %v3065
    %v3333 = vadd.f32 %v3321, %v3331
    %v3334 = vadd.f32 %v3322, %v3332
    %3335 = vset.pattern.permute.xlu0 24
    %3336 = vperm.xlu0 %3335, %v2005
    %v3337 = vpop.permute.xlu0 %3336
    %3339 = vset.pattern.permute.xlu0 24
    %3340 = vperm.xlu0 %3339, %v2007
    %v3341 = vpop.permute.xlu0 %3340
    %v3343 = vmul.f32 %v3337, %v3102
    %v3344 = vmul.f32 %v3341, %v3106
    %v3345 = vadd.f32 %v3333, %v3343
    %v3346 = vadd.f32 %v3334, %v3344
    %3347 = vset.pattern.permute.xlu0 25
    %3348 = vperm.xlu0 %3347, %v2005
    %v3349 = vpop.permute.xlu0 %3348
    %3351 = vset.pattern.permute.xlu0 25
    %3352 = vperm.xlu0 %3351, %v2007
    %v3353 = vpop.permute.xlu0 %3352
    %v3355 = vmul.f32 %v3349, %v3104
    %v3356 = vmul.f32 %v3353, %v3108
    %v3357 = vadd.f32 %v3345, %v3355
    %v3358 = vadd.f32 %v3346, %v3356
    %3359 = vset.pattern.permute.xlu0 26
    %3360 = vperm.xlu0 %3359, %v2005
    %v3361 = vpop.permute.xlu0 %3360
    %3363 = vset.pattern.permute.xlu0 26
    %3364 = vperm.xlu0 %3363, %v2007
    %v3365 = vpop.permute.xlu0 %3364
    %v3367 = vmul.f32 %v3361, %v3145
    %v3368 = vmul.f32 %v3365, %v3149
    %v3369 = vadd.f32 %v3357, %v3367
    %v3370 = vadd.f32 %v3358, %v3368
    %3371 = vset.pattern.permute.xlu0 27
    %3372 = vperm.xlu0 %3371, %v2005
    %v3373 = vpop.permute.xlu0 %3372
    %3375 = vset.pattern.permute.xlu0 27
    %3376 = vperm.xlu0 %3375, %v2007
    %v3377 = vpop.permute.xlu0 %3376
    %v3379 = vmul.f32 %v3373, %v3147
    %v3380 = vmul.f32 %v3377, %v3151
    %v3381 = vadd.f32 %v3369, %v3379
    %v3382 = vadd.f32 %v3370, %v3380
    %3383 = vset.pattern.permute.xlu0 28
    %3384 = vperm.xlu0 %3383, %v2005
    %v3385 = vpop.permute.xlu0 %3384
    %3387 = vset.pattern.permute.xlu0 28
    %3388 = vperm.xlu0 %3387, %v2007
    %v3389 = vpop.permute.xlu0 %3388
    %v3391 = vmul.f32 %v3385, %v3188
    %v3392 = vmul.f32 %v3389, %v3192
    %v3393 = vadd.f32 %v3381, %v3391
    %v3394 = vadd.f32 %v3382, %v3392
    %3395 = vset.pattern.permute.xlu0 29
    %3396 = vperm.xlu0 %3395, %v2005
    %v3397 = vpop.permute.xlu0 %3396
    %3399 = vset.pattern.permute.xlu0 29
    %3400 = vperm.xlu0 %3399, %v2007
    %v3401 = vpop.permute.xlu0 %3400
    %v3403 = vmul.f32 %v3397, %v3190
    %v3404 = vmul.f32 %v3401, %v3194
    %v3405 = vadd.f32 %v3393, %v3403
    %v3406 = vadd.f32 %v3394, %v3404
    %3407 = vset.pattern.permute.xlu0 30
    %3408 = vperm.xlu0 %3407, %v2005
    %v3409 = vpop.permute.xlu0 %3408
    %3411 = vset.pattern.permute.xlu0 30
    %3412 = vperm.xlu0 %3411, %v2007
    %v3413 = vpop.permute.xlu0 %3412
    %v3415 = vmul.f32 %v3409, %v3231
    %v3416 = vmul.f32 %v3413, %v3235
    %v3417 = vadd.f32 %v3405, %v3415
    %v3418 = vadd.f32 %v3406, %v3416
    %3419 = vset.pattern.permute.xlu0 31
    %3420 = vperm.xlu0 %3419, %v2005
    %v3421 = vpop.permute.xlu0 %3420
    %3423 = vset.pattern.permute.xlu0 31
    %3424 = vperm.xlu0 %3423, %v2007
    %v3425 = vpop.permute.xlu0 %3424
    %v3427 = vmul.f32 %v3421, %v3233
    %v3428 = vmul.f32 %v3425, %v3237
    %v3429 = vadd.f32 %v3417, %v3427
    %v3430 = vadd.f32 %v3418, %v3428
    %s3431 = scalar_lea.hbm %s10, 81920
    %s3433 = sshll.u32 1, 14
    %s3434 = sxor.u32 4294967295, %s3433
    %s3436 = sadd.s32 2, %s174
    %s3438 = sshll.u32 7, 26
    %s3439 = sxor.u32 4294967295, %s3438
    %s3440 = sand.u32 0, %s3439
    %s3441 = sshll.u32 %s3436, 26
    %s3442 = sor.u32 %s3440, %s3441
    %s3443 = sshll.u32 %s206, 4
    %s3444 = int_to_ptr.vmem [resolvable:$true] %s3443
    %3447 = sst [smem:[#allocation34]] 2048
    %s3448 = scalar_lea.smem [#allocation34], 1
    %3449 = sst [smem:[%s3448]] 2048
    %s3450 = scalar_lea.smem [#allocation34], 2
    %3451 = sst [smem:[%s3450]] 16
    %s3452 = scalar_lea.smem [#allocation34], 3
    %3453 = sst [smem:[%s3452]] 64
    %s3454 = scalar_lea.smem [#allocation34], 4
    %3455 = sst [smem:[%s3454]] 128
    %s3456 = scalar_lea.smem [#allocation34], 5
    %3457 = sst [smem:[%s3456]] 2
    %s3458 = scalar_lea.smem [#allocation34], 6
    %3459 = sst [smem:[%s3458]] 1024
    %s3460 = scalar_lea.smem [#allocation34], 7
    %3461 = sst [smem:[%s3460]] 64
    %s3462 = scalar_lea.smem [#allocation34], 8
    %3463 = sst [smem:[%s3462]] 4
    %3465 = dma.general %s3431, 16384, %s3444, %s207, [#allocation33], [#allocation34], %s3442, 0
    %s3466 = sshll.u32 %s2061, 4
    %3467 = dma.done %s244, %s3466
    %v3468 = vld [vmem:[%s243] sm:$0xff]
    %v3469 = vld [vmem:[%s243 + $0x8] sm:$0xff]
    %v3470 = vld [vmem:[%s243 + $0x10] sm:$0xff]
    %v3471 = vld [vmem:[%s243 + $0x18] sm:$0xff]
    %v3472 = vld [vmem:[%s243 + $0x20] sm:$0xff]
    %v3473 = vld [vmem:[%s243 + $0x28] sm:$0xff]
    %v3474 = vld [vmem:[%s243 + $0x30] sm:$0xff]
    %v3475 = vld [vmem:[%s243 + $0x38] sm:$0xff]
    %v3476 = vld [vmem:[%s243 + $0x40] sm:$0xff]
    %v3477 = vld [vmem:[%s243 + $0x48] sm:$0xff]
    %v3478 = vld [vmem:[%s243 + $0x50] sm:$0xff]
    %v3479 = vld [vmem:[%s243 + $0x58] sm:$0xff]
    %v3480 = vld [vmem:[%s243 + $0x60] sm:$0xff]
    %v3481 = vld [vmem:[%s243 + $0x68] sm:$0xff]
    %v3482 = vld [vmem:[%s243 + $0x70] sm:$0xff]
    %v3483 = vld [vmem:[%s243 + $0x78] sm:$0xff]
    %v3484 = vld [vmem:[%s243 + $0x80] sm:$0xff]
    %v3485 = vld [vmem:[%s243 + $0x88] sm:$0xff]
    %v3486 = vld [vmem:[%s243 + $0x90] sm:$0xff]
    %v3487 = vld [vmem:[%s243 + $0x98] sm:$0xff]
    %v3488 = vld [vmem:[%s243 + $0xa0] sm:$0xff]
    %v3489 = vld [vmem:[%s243 + $0xa8] sm:$0xff]
    %v3490 = vld [vmem:[%s243 + $0xb0] sm:$0xff]
    %v3491 = vld [vmem:[%s243 + $0xb8] sm:$0xff]
    %v3492 = vld [vmem:[%s243 + $0xc0] sm:$0xff]
    %v3493 = vld [vmem:[%s243 + $0xc8] sm:$0xff]
    %v3494 = vld [vmem:[%s243 + $0xd0] sm:$0xff]
    %v3495 = vld [vmem:[%s243 + $0xd8] sm:$0xff]
    %v3496 = vld [vmem:[%s243 + $0xe0] sm:$0xff]
    %v3497 = vld [vmem:[%s243 + $0xe8] sm:$0xff]
    %v3498 = vld [vmem:[%s243 + $0xf0] sm:$0xff]
    %v3499 = vld [vmem:[%s243 + $0xf8] sm:$0xff]
    %v3500 = vld [vmem:[%s243 + $0x100] sm:$0xff]
    %v3501 = vld [vmem:[%s243 + $0x108] sm:$0xff]
    %v3502 = vld [vmem:[%s243 + $0x110] sm:$0xff]
    %v3503 = vld [vmem:[%s243 + $0x118] sm:$0xff]
    %v3504 = vld [vmem:[%s243 + $0x120] sm:$0xff]
    %v3505 = vld [vmem:[%s243 + $0x128] sm:$0xff]
    %v3506 = vld [vmem:[%s243 + $0x130] sm:$0xff]
    %v3507 = vld [vmem:[%s243 + $0x138] sm:$0xff]
    %v3508 = vld [vmem:[%s243 + $0x140] sm:$0xff]
    %v3509 = vld [vmem:[%s243 + $0x148] sm:$0xff]
    %v3510 = vld [vmem:[%s243 + $0x150] sm:$0xff]
    %v3511 = vld [vmem:[%s243 + $0x158] sm:$0xff]
    %v3512 = vld [vmem:[%s243 + $0x160] sm:$0xff]
    %v3513 = vld [vmem:[%s243 + $0x168] sm:$0xff]
    %v3514 = vld [vmem:[%s243 + $0x170] sm:$0xff]
    %v3515 = vld [vmem:[%s243 + $0x178] sm:$0xff]
    %v3516 = vld [vmem:[%s243 + $0x180] sm:$0xff]
    %v3517 = vld [vmem:[%s243 + $0x188] sm:$0xff]
    %v3518 = vld [vmem:[%s243 + $0x190] sm:$0xff]
    %v3519 = vld [vmem:[%s243 + $0x198] sm:$0xff]
    %v3520 = vld [vmem:[%s243 + $0x1a0] sm:$0xff]
    %v3521 = vld [vmem:[%s243 + $0x1a8] sm:$0xff]
    %v3522 = vld [vmem:[%s243 + $0x1b0] sm:$0xff]
    %v3523 = vld [vmem:[%s243 + $0x1b8] sm:$0xff]
    %v3524 = vld [vmem:[%s243 + $0x1c0] sm:$0xff]
    %v3525 = vld [vmem:[%s243 + $0x1c8] sm:$0xff]
    %v3526 = vld [vmem:[%s243 + $0x1d0] sm:$0xff]
    %v3527 = vld [vmem:[%s243 + $0x1d8] sm:$0xff]
    %v3528 = vld [vmem:[%s243 + $0x1e0] sm:$0xff]
    %v3529 = vld [vmem:[%s243 + $0x1e8] sm:$0xff]
    %v3530 = vld [vmem:[%s243 + $0x1f0] sm:$0xff]
    %v3531 = vld [vmem:[%s243 + $0x1f8] sm:$0xff]
    %v3532 = vld [vmem:[%s243 + $0x200] sm:$0xff]
    %v3533 = vld [vmem:[%s243 + $0x208] sm:$0xff]
    %v3534 = vld [vmem:[%s243 + $0x210] sm:$0xff]
    %v3535 = vld [vmem:[%s243 + $0x218] sm:$0xff]
    %v3536 = vld [vmem:[%s243 + $0x220] sm:$0xff]
    %v3537 = vld [vmem:[%s243 + $0x228] sm:$0xff]
    %v3538 = vld [vmem:[%s243 + $0x230] sm:$0xff]
    %v3539 = vld [vmem:[%s243 + $0x238] sm:$0xff]
    %v3540 = vld [vmem:[%s243 + $0x240] sm:$0xff]
    %v3541 = vld [vmem:[%s243 + $0x248] sm:$0xff]
    %v3542 = vld [vmem:[%s243 + $0x250] sm:$0xff]
    %v3543 = vld [vmem:[%s243 + $0x258] sm:$0xff]
    %v3544 = vld [vmem:[%s243 + $0x260] sm:$0xff]
    %v3545 = vld [vmem:[%s243 + $0x268] sm:$0xff]
    %v3546 = vld [vmem:[%s243 + $0x270] sm:$0xff]
    %v3547 = vld [vmem:[%s243 + $0x278] sm:$0xff]
    %v3548 = vld [vmem:[%s243 + $0x280] sm:$0xff]
    %v3549 = vld [vmem:[%s243 + $0x288] sm:$0xff]
    %v3550 = vld [vmem:[%s243 + $0x290] sm:$0xff]
    %v3551 = vld [vmem:[%s243 + $0x298] sm:$0xff]
    %v3552 = vld [vmem:[%s243 + $0x2a0] sm:$0xff]
    %v3553 = vld [vmem:[%s243 + $0x2a8] sm:$0xff]
    %v3554 = vld [vmem:[%s243 + $0x2b0] sm:$0xff]
    %v3555 = vld [vmem:[%s243 + $0x2b8] sm:$0xff]
    %v3556 = vld [vmem:[%s243 + $0x2c0] sm:$0xff]
    %v3557 = vld [vmem:[%s243 + $0x2c8] sm:$0xff]
    %v3558 = vld [vmem:[%s243 + $0x2d0] sm:$0xff]
    %v3559 = vld [vmem:[%s243 + $0x2d8] sm:$0xff]
    %v3560 = vld [vmem:[%s243 + $0x2e0] sm:$0xff]
    %v3561 = vld [vmem:[%s243 + $0x2e8] sm:$0xff]
    %v3562 = vld [vmem:[%s243 + $0x2f0] sm:$0xff]
    %v3563 = vld [vmem:[%s243 + $0x2f8] sm:$0xff]
    %v3564 = vld [vmem:[%s243 + $0x300] sm:$0xff]
    %v3565 = vld [vmem:[%s243 + $0x308] sm:$0xff]
    %v3566 = vld [vmem:[%s243 + $0x310] sm:$0xff]
    %v3567 = vld [vmem:[%s243 + $0x318] sm:$0xff]
    %v3568 = vld [vmem:[%s243 + $0x320] sm:$0xff]
    %v3569 = vld [vmem:[%s243 + $0x328] sm:$0xff]
    %v3570 = vld [vmem:[%s243 + $0x330] sm:$0xff]
    %v3571 = vld [vmem:[%s243 + $0x338] sm:$0xff]
    %v3572 = vld [vmem:[%s243 + $0x340] sm:$0xff]
    %v3573 = vld [vmem:[%s243 + $0x348] sm:$0xff]
    %v3574 = vld [vmem:[%s243 + $0x350] sm:$0xff]
    %v3575 = vld [vmem:[%s243 + $0x358] sm:$0xff]
    %v3576 = vld [vmem:[%s243 + $0x360] sm:$0xff]
    %v3577 = vld [vmem:[%s243 + $0x368] sm:$0xff]
    %v3578 = vld [vmem:[%s243 + $0x370] sm:$0xff]
    %v3579 = vld [vmem:[%s243 + $0x378] sm:$0xff]
    %v3580 = vld [vmem:[%s243 + $0x380] sm:$0xff]
    %v3581 = vld [vmem:[%s243 + $0x388] sm:$0xff]
    %v3582 = vld [vmem:[%s243 + $0x390] sm:$0xff]
    %v3583 = vld [vmem:[%s243 + $0x398] sm:$0xff]
    %v3584 = vld [vmem:[%s243 + $0x3a0] sm:$0xff]
    %v3585 = vld [vmem:[%s243 + $0x3a8] sm:$0xff]
    %v3586 = vld [vmem:[%s243 + $0x3b0] sm:$0xff]
    %v3587 = vld [vmem:[%s243 + $0x3b8] sm:$0xff]
    %v3588 = vld [vmem:[%s243 + $0x3c0] sm:$0xff]
    %v3589 = vld [vmem:[%s243 + $0x3c8] sm:$0xff]
    %v3590 = vld [vmem:[%s243 + $0x3d0] sm:$0xff]
    %v3591 = vld [vmem:[%s243 + $0x3d8] sm:$0xff]
    %v3592 = vld [vmem:[%s243 + $0x3e0] sm:$0xff]
    %v3593 = vld [vmem:[%s243 + $0x3e8] sm:$0xff]
    %v3594 = vld [vmem:[%s243 + $0x3f0] sm:$0xff]
    %v3595 = vld [vmem:[%s243 + $0x3f8] sm:$0xff]
    %3596 = vmatprep.subr.bf16.mxu0 %v3469
    %3597 = vmatpush1.bf16.msra.mxu0 %v3468
    %3598 = vmatprep.subr.bf16.mxu0 %v3485
    %3599 = vmatpush1.bf16.msra.mxu0 %v3484
    %3600 = vmatprep.subr.bf16.mxu0 %v3501
    %3601 = vmatpush1.bf16.msra.mxu0 %v3500
    %3602 = vmatprep.subr.bf16.mxu0 %v3517
    %3603 = vmatpush1.bf16.msra.mxu0 %v3516
    %3604 = vmatprep.subr.bf16.mxu0 %v3533
    %3605 = vmatpush1.bf16.msra.mxu0 %v3532
    %3606 = vmatprep.subr.bf16.mxu0 %v3549
    %3607 = vmatpush1.bf16.msra.mxu0 %v3548
    %3608 = vmatprep.subr.bf16.mxu0 %v3565
    %3609 = vmatpush1.bf16.msra.mxu0 %v3564
    %3610 = vmatprep.subr.bf16.mxu0 %v3581
    %3611 = vmatpush1.bf16.msra.mxu0 %v3580
    %3612 = vmatprep.subr.bf16.mxu0 0
    %3613 = vmatpush1.bf16.msra.mxu0 0
    %3614 = vmatprep.subr.bf16.mxu0 0
    %3615 = vmatpush1.bf16.msra.mxu0 0
    %3616 = vmatprep.subr.bf16.mxu0 0
    %3617 = vmatpush1.bf16.msra.mxu0 0
    %3618 = vmatprep.subr.bf16.mxu0 0
    %3619 = vmatpush1.bf16.msra.mxu0 0
    %3620 = vmatprep.subr.bf16.mxu0 0
    %3621 = vmatpush1.bf16.msra.mxu0 0
    %3622 = vmatprep.subr.bf16.mxu0 0
    %3623 = vmatpush1.bf16.msra.mxu0 0
    %3624 = vmatprep.subr.bf16.mxu0 0
    %3625 = vmatpush1.bf16.msra.mxu0 0
    %3626 = vmatprep.subr.bf16.mxu0 0
    %3627 = vmatpush1.bf16.msra.mxu0 0
    %3628 = vmatprep.mubr.bf16.mxu0 0
    %3629 = vmatmul.mubr.bf16.gmra.mrb[0].mxu0 %v2022
    %v3630 = vpop.f32.mrb[0].mxu0
    %v3631 = vadd.f32 0.0, %v3630
    %v3632 = vpop.f32.mrb[0].mxu0
    %v3633 = vadd.f32 0.0, %v3632
    %v3634 = vpop.f32.mrb[0].mxu0
    %v3635 = vadd.f32 0.0, %v3634
    %v3636 = vpop.f32.mrb[0].mxu0
    %v3637 = vadd.f32 0.0, %v3636
    %3638 = vdwg.mxu0
    %3639 = vmatprep.subr.bf16.mxu0 %v3471
    %3640 = vmatpush1.bf16.msra.mxu0 %v3470
    %3641 = vmatprep.subr.bf16.mxu0 %v3487
    %3642 = vmatpush1.bf16.msra.mxu0 %v3486
    %3643 = vmatprep.subr.bf16.mxu0 %v3503
    %3644 = vmatpush1.bf16.msra.mxu0 %v3502
    %3645 = vmatprep.subr.bf16.mxu0 %v3519
    %3646 = vmatpush1.bf16.msra.mxu0 %v3518
    %3647 = vmatprep.subr.bf16.mxu0 %v3535
    %3648 = vmatpush1.bf16.msra.mxu0 %v3534
    %3649 = vmatprep.subr.bf16.mxu0 %v3551
    %3650 = vmatpush1.bf16.msra.mxu0 %v3550
    %3651 = vmatprep.subr.bf16.mxu0 %v3567
    %3652 = vmatpush1.bf16.msra.mxu0 %v3566
    %3653 = vmatprep.subr.bf16.mxu0 %v3583
    %3654 = vmatpush1.bf16.msra.mxu0 %v3582
    %3655 = vmatprep.subr.bf16.mxu0 0
    %3656 = vmatpush1.bf16.msra.mxu0 0
    %3657 = vmatprep.subr.bf16.mxu0 0
    %3658 = vmatpush1.bf16.msra.mxu0 0
    %3659 = vmatprep.subr.bf16.mxu0 0
    %3660 = vmatpush1.bf16.msra.mxu0 0
    %3661 = vmatprep.subr.bf16.mxu0 0
    %3662 = vmatpush1.bf16.msra.mxu0 0
    %3663 = vmatprep.subr.bf16.mxu0 0
    %3664 = vmatpush1.bf16.msra.mxu0 0
    %3665 = vmatprep.subr.bf16.mxu0 0
    %3666 = vmatpush1.bf16.msra.mxu0 0
    %3667 = vmatprep.subr.bf16.mxu0 0
    %3668 = vmatpush1.bf16.msra.mxu0 0
    %3669 = vmatprep.subr.bf16.mxu0 0
    %3670 = vmatpush1.bf16.msra.mxu0 0
    %3671 = vmatprep.mubr.bf16.mxu0 0
    %3672 = vmatmul.mubr.bf16.gmra.mrb[0].mxu0 %v2022
    %v3673 = vpop.f32.mrb[0].mxu0
    %v3674 = vadd.f32 0.0, %v3673
    %v3675 = vpop.f32.mrb[0].mxu0
    %v3676 = vadd.f32 0.0, %v3675
    %v3677 = vpop.f32.mrb[0].mxu0
    %v3678 = vadd.f32 0.0, %v3677
    %v3679 = vpop.f32.mrb[0].mxu0
    %v3680 = vadd.f32 0.0, %v3679
    %3681 = vdwg.mxu0
    %3682 = vmatprep.subr.bf16.mxu0 %v3473
    %3683 = vmatpush1.bf16.msra.mxu0 %v3472
    %3684 = vmatprep.subr.bf16.mxu0 %v3489
    %3685 = vmatpush1.bf16.msra.mxu0 %v3488
    %3686 = vmatprep.subr.bf16.mxu0 %v3505
    %3687 = vmatpush1.bf16.msra.mxu0 %v3504
    %3688 = vmatprep.subr.bf16.mxu0 %v3521
    %3689 = vmatpush1.bf16.msra.mxu0 %v3520
    %3690 = vmatprep.subr.bf16.mxu0 %v3537
    %3691 = vmatpush1.bf16.msra.mxu0 %v3536
    %3692 = vmatprep.subr.bf16.mxu0 %v3553
    %3693 = vmatpush1.bf16.msra.mxu0 %v3552
    %3694 = vmatprep.subr.bf16.mxu0 %v3569
    %3695 = vmatpush1.bf16.msra.mxu0 %v3568
    %3696 = vmatprep.subr.bf16.mxu0 %v3585
    %3697 = vmatpush1.bf16.msra.mxu0 %v3584
    %3698 = vmatprep.subr.bf16.mxu0 0
    %3699 = vmatpush1.bf16.msra.mxu0 0
    %3700 = vmatprep.subr.bf16.mxu0 0
    %3701 = vmatpush1.bf16.msra.mxu0 0
    %3702 = vmatprep.subr.bf16.mxu0 0
    %3703 = vmatpush1.bf16.msra.mxu0 0
    %3704 = vmatprep.subr.bf16.mxu0 0
    %3705 = vmatpush1.bf16.msra.mxu0 0
    %3706 = vmatprep.subr.bf16.mxu0 0
    %3707 = vmatpush1.bf16.msra.mxu0 0
    %3708 = vmatprep.subr.bf16.mxu0 0
    %3709 = vmatpush1.bf16.msra.mxu0 0
    %3710 = vmatprep.subr.bf16.mxu0 0
    %3711 = vmatpush1.bf16.msra.mxu0 0
    %3712 = vmatprep.subr.bf16.mxu0 0
    %3713 = vmatpush1.bf16.msra.mxu0 0
    %3714 = vmatprep.mubr.bf16.mxu0 0
    %3715 = vmatmul.mubr.bf16.gmra.mrb[0].mxu0 %v2022
    %v3716 = vpop.f32.mrb[0].mxu0
    %v3717 = vadd.f32 0.0, %v3716
    %v3718 = vpop.f32.mrb[0].mxu0
    %v3719 = vadd.f32 0.0, %v3718
    %v3720 = vpop.f32.mrb[0].mxu0
    %v3721 = vadd.f32 0.0, %v3720
    %v3722 = vpop.f32.mrb[0].mxu0
    %v3723 = vadd.f32 0.0, %v3722
    %3724 = vdwg.mxu0
    %3725 = vmatprep.subr.bf16.mxu0 %v3475
    %3726 = vmatpush1.bf16.msra.mxu0 %v3474
    %3727 = vmatprep.subr.bf16.mxu0 %v3491
    %3728 = vmatpush1.bf16.msra.mxu0 %v3490
    %3729 = vmatprep.subr.bf16.mxu0 %v3507
    %3730 = vmatpush1.bf16.msra.mxu0 %v3506
    %3731 = vmatprep.subr.bf16.mxu0 %v3523
    %3732 = vmatpush1.bf16.msra.mxu0 %v3522
    %3733 = vmatprep.subr.bf16.mxu0 %v3539
    %3734 = vmatpush1.bf16.msra.mxu0 %v3538
    %3735 = vmatprep.subr.bf16.mxu0 %v3555
    %3736 = vmatpush1.bf16.msra.mxu0 %v3554
    %3737 = vmatprep.subr.bf16.mxu0 %v3571
    %3738 = vmatpush1.bf16.msra.mxu0 %v3570
    %3739 = vmatprep.subr.bf16.mxu0 %v3587
    %3740 = vmatpush1.bf16.msra.mxu0 %v3586
    %3741 = vmatprep.subr.bf16.mxu0 0
    %3742 = vmatpush1.bf16.msra.mxu0 0
    %3743 = vmatprep.subr.bf16.mxu0 0
    %3744 = vmatpush1.bf16.msra.mxu0 0
    %3745 = vmatprep.subr.bf16.mxu0 0
    %3746 = vmatpush1.bf16.msra.mxu0 0
    %3747 = vmatprep.subr.bf16.mxu0 0
    %3748 = vmatpush1.bf16.msra.mxu0 0
    %3749 = vmatprep.subr.bf16.mxu0 0
    %3750 = vmatpush1.bf16.msra.mxu0 0
    %3751 = vmatprep.subr.bf16.mxu0 0
    %3752 = vmatpush1.bf16.msra.mxu0 0
    %3753 = vmatprep.subr.bf16.mxu0 0
    %3754 = vmatpush1.bf16.msra.mxu0 0
    %3755 = vmatprep.subr.bf16.mxu0 0
    %3756 = vmatpush1.bf16.msra.mxu0 0
    %3757 = vmatprep.mubr.bf16.mxu0 0
    %3758 = vmatmul.mubr.bf16.gmra.mrb[0].mxu0 %v2022
    %v3759 = vpop.f32.mrb[0].mxu0
    %v3760 = vadd.f32 0.0, %v3759
    %v3761 = vpop.f32.mrb[0].mxu0
    %v3762 = vadd.f32 0.0, %v3761
    %v3763 = vpop.f32.mrb[0].mxu0
    %v3764 = vadd.f32 0.0, %v3763
    %v3765 = vpop.f32.mrb[0].mxu0
    %v3766 = vadd.f32 0.0, %v3765
    %3767 = vdwg.mxu0
    %3768 = vmatprep.subr.bf16.mxu0 %v3477
    %3769 = vmatpush1.bf16.msra.mxu0 %v3476
    %3770 = vmatprep.subr.bf16.mxu0 %v3493
    %3771 = vmatpush1.bf16.msra.mxu0 %v3492
    %3772 = vmatprep.subr.bf16.mxu0 %v3509
    %3773 = vmatpush1.bf16.msra.mxu0 %v3508
    %3774 = vmatprep.subr.bf16.mxu0 %v3525
    %3775 = vmatpush1.bf16.msra.mxu0 %v3524
    %3776 = vmatprep.subr.bf16.mxu0 %v3541
    %3777 = vmatpush1.bf16.msra.mxu0 %v3540
    %3778 = vmatprep.subr.bf16.mxu0 %v3557
    %3779 = vmatpush1.bf16.msra.mxu0 %v3556
    %3780 = vmatprep.subr.bf16.mxu0 %v3573
    %3781 = vmatpush1.bf16.msra.mxu0 %v3572
    %3782 = vmatprep.subr.bf16.mxu0 %v3589
    %3783 = vmatpush1.bf16.msra.mxu0 %v3588
    %3784 = vmatprep.subr.bf16.mxu0 0
    %3785 = vmatpush1.bf16.msra.mxu0 0
    %3786 = vmatprep.subr.bf16.mxu0 0
    %3787 = vmatpush1.bf16.msra.mxu0 0
    %3788 = vmatprep.subr.bf16.mxu0 0
    %3789 = vmatpush1.bf16.msra.mxu0 0
    %3790 = vmatprep.subr.bf16.mxu0 0
    %3791 = vmatpush1.bf16.msra.mxu0 0
    %3792 = vmatprep.subr.bf16.mxu0 0
    %3793 = vmatpush1.bf16.msra.mxu0 0
    %3794 = vmatprep.subr.bf16.mxu0 0
    %3795 = vmatpush1.bf16.msra.mxu0 0
    %3796 = vmatprep.subr.bf16.mxu0 0
    %3797 = vmatpush1.bf16.msra.mxu0 0
    %3798 = vmatprep.subr.bf16.mxu0 0
    %3799 = vmatpush1.bf16.msra.mxu0 0
    %3800 = vmatprep.mubr.bf16.mxu0 0
    %3801 = vmatmul.mubr.bf16.gmra.mrb[0].mxu0 %v2022
    %v3802 = vpop.f32.mrb[0].mxu0
    %v3803 = vadd.f32 0.0, %v3802
    %v3804 = vpop.f32.mrb[0].mxu0
    %v3805 = vadd.f32 0.0, %v3804
    %v3806 = vpop.f32.mrb[0].mxu0
    %v3807 = vadd.f32 0.0, %v3806
    %v3808 = vpop.f32.mrb[0].mxu0
    %v3809 = vadd.f32 0.0, %v3808
    %3810 = vdwg.mxu0
    %3811 = vmatprep.subr.bf16.mxu0 %v3479
    %3812 = vmatpush1.bf16.msra.mxu0 %v3478
    %3813 = vmatprep.subr.bf16.mxu0 %v3495
    %3814 = vmatpush1.bf16.msra.mxu0 %v3494
    %3815 = vmatprep.subr.bf16.mxu0 %v3511
    %3816 = vmatpush1.bf16.msra.mxu0 %v3510
    %3817 = vmatprep.subr.bf16.mxu0 %v3527
    %3818 = vmatpush1.bf16.msra.mxu0 %v3526
    %3819 = vmatprep.subr.bf16.mxu0 %v3543
    %3820 = vmatpush1.bf16.msra.mxu0 %v3542
    %3821 = vmatprep.subr.bf16.mxu0 %v3559
    %3822 = vmatpush1.bf16.msra.mxu0 %v3558
    %3823 = vmatprep.subr.bf16.mxu0 %v3575
    %3824 = vmatpush1.bf16.msra.mxu0 %v3574
    %3825 = vmatprep.subr.bf16.mxu0 %v3591
    %3826 = vmatpush1.bf16.msra.mxu0 %v3590
    %3827 = vmatprep.subr.bf16.mxu0 0
    %3828 = vmatpush1.bf16.msra.mxu0 0
    %3829 = vmatprep.subr.bf16.mxu0 0
    %3830 = vmatpush1.bf16.msra.mxu0 0
    %3831 = vmatprep.subr.bf16.mxu0 0
    %3832 = vmatpush1.bf16.msra.mxu0 0
    %3833 = vmatprep.subr.bf16.mxu0 0
    %3834 = vmatpush1.bf16.msra.mxu0 0
    %3835 = vmatprep.subr.bf16.mxu0 0
    %3836 = vmatpush1.bf16.msra.mxu0 0
    %3837 = vmatprep.subr.bf16.mxu0 0
    %3838 = vmatpush1.bf16.msra.mxu0 0
    %3839 = vmatprep.subr.bf16.mxu0 0
    %3840 = vmatpush1.bf16.msra.mxu0 0
    %3841 = vmatprep.subr.bf16.mxu0 0
    %3842 = vmatpush1.bf16.msra.mxu0 0
    %3843 = vmatprep.mubr.bf16.mxu0 0
    %3844 = vmatmul.mubr.bf16.gmra.mrb[0].mxu0 %v2022
    %v3845 = vpop.f32.mrb[0].mxu0
    %v3846 = vadd.f32 0.0, %v3845
    %v3847 = vpop.f32.mrb[0].mxu0
    %v3848 = vadd.f32 0.0, %v3847
    %v3849 = vpop.f32.mrb[0].mxu0
    %v3850 = vadd.f32 0.0, %v3849
    %v3851 = vpop.f32.mrb[0].mxu0
    %v3852 = vadd.f32 0.0, %v3851
    %3853 = vdwg.mxu0
    %3854 = vmatprep.subr.bf16.mxu0 %v3481
    %3855 = vmatpush1.bf16.msra.mxu0 %v3480
    %3856 = vmatprep.subr.bf16.mxu0 %v3497
    %3857 = vmatpush1.bf16.msra.mxu0 %v3496
    %3858 = vmatprep.subr.bf16.mxu0 %v3513
    %3859 = vmatpush1.bf16.msra.mxu0 %v3512
    %3860 = vmatprep.subr.bf16.mxu0 %v3529
    %3861 = vmatpush1.bf16.msra.mxu0 %v3528
    %3862 = vmatprep.subr.bf16.mxu0 %v3545
    %3863 = vmatpush1.bf16.msra.mxu0 %v3544
    %3864 = vmatprep.subr.bf16.mxu0 %v3561
    %3865 = vmatpush1.bf16.msra.mxu0 %v3560
    %3866 = vmatprep.subr.bf16.mxu0 %v3577
    %3867 = vmatpush1.bf16.msra.mxu0 %v3576
    %3868 = vmatprep.subr.bf16.mxu0 %v3593
    %3869 = vmatpush1.bf16.msra.mxu0 %v3592
    %3870 = vmatprep.subr.bf16.mxu0 0
    %3871 = vmatpush1.bf16.msra.mxu0 0
    %3872 = vmatprep.subr.bf16.mxu0 0
    %3873 = vmatpush1.bf16.msra.mxu0 0
    %3874 = vmatprep.subr.bf16.mxu0 0
    %3875 = vmatpush1.bf16.msra.mxu0 0
    %3876 = vmatprep.subr.bf16.mxu0 0
    %3877 = vmatpush1.bf16.msra.mxu0 0
    %3878 = vmatprep.subr.bf16.mxu0 0
    %3879 = vmatpush1.bf16.msra.mxu0 0
    %3880 = vmatprep.subr.bf16.mxu0 0
    %3881 = vmatpush1.bf16.msra.mxu0 0
    %3882 = vmatprep.subr.bf16.mxu0 0
    %3883 = vmatpush1.bf16.msra.mxu0 0
    %3884 = vmatprep.subr.bf16.mxu0 0
    %3885 = vmatpush1.bf16.msra.mxu0 0
    %3886 = vmatprep.mubr.bf16.mxu0 0
    %3887 = vmatmul.mubr.bf16.gmra.mrb[0].mxu0 %v2022
    %v3888 = vpop.f32.mrb[0].mxu0
    %v3889 = vadd.f32 0.0, %v3888
    %v3890 = vpop.f32.mrb[0].mxu0
    %v3891 = vadd.f32 0.0, %v3890
    %v3892 = vpop.f32.mrb[0].mxu0
    %v3893 = vadd.f32 0.0, %v3892
    %v3894 = vpop.f32.mrb[0].mxu0
    %v3895 = vadd.f32 0.0, %v3894
    %3896 = vdwg.mxu0
    %3897 = vmatprep.subr.bf16.mxu0 %v3483
    %3898 = vmatpush1.bf16.msra.mxu0 %v3482
    %3899 = vmatprep.subr.bf16.mxu0 %v3499
    %3900 = vmatpush1.bf16.msra.mxu0 %v3498
    %3901 = vmatprep.subr.bf16.mxu0 %v3515
    %3902 = vmatpush1.bf16.msra.mxu0 %v3514
    %3903 = vmatprep.subr.bf16.mxu0 %v3531
    %3904 = vmatpush1.bf16.msra.mxu0 %v3530
    %3905 = vmatprep.subr.bf16.mxu0 %v3547
    %3906 = vmatpush1.bf16.msra.mxu0 %v3546
    %3907 = vmatprep.subr.bf16.mxu0 %v3563
    %3908 = vmatpush1.bf16.msra.mxu0 %v3562
    %3909 = vmatprep.subr.bf16.mxu0 %v3579
    %3910 = vmatpush1.bf16.msra.mxu0 %v3578
    %3911 = vmatprep.subr.bf16.mxu0 %v3595
    %3912 = vmatpush1.bf16.msra.mxu0 %v3594
    %3913 = vmatprep.subr.bf16.mxu0 0
    %3914 = vmatpush1.bf16.msra.mxu0 0
    %3915 = vmatprep.subr.bf16.mxu0 0
    %3916 = vmatpush1.bf16.msra.mxu0 0
    %3917 = vmatprep.subr.bf16.mxu0 0
    %3918 = vmatpush1.bf16.msra.mxu0 0
    %3919 = vmatprep.subr.bf16.mxu0 0
    %3920 = vmatpush1.bf16.msra.mxu0 0
    %3921 = vmatprep.subr.bf16.mxu0 0
    %3922 = vmatpush1.bf16.msra.mxu0 0
    %3923 = vmatprep.subr.bf16.mxu0 0
    %3924 = vmatpush1.bf16.msra.mxu0 0
    %3925 = vmatprep.subr.bf16.mxu0 0
    %3926 = vmatpush1.bf16.msra.mxu0 0
    %3927 = vmatprep.subr.bf16.mxu0 0
    %3928 = vmatpush1.bf16.msra.mxu0 0
    %3929 = vmatprep.mubr.bf16.mxu0 0
    %3930 = vmatmul.mubr.bf16.gmra.mrb[0].mxu0 %v2022
    %v3931 = vpop.f32.mrb[0].mxu0
    %v3932 = vadd.f32 0.0, %v3931
    %v3933 = vpop.f32.mrb[0].mxu0
    %v3934 = vadd.f32 0.0, %v3933
    %v3935 = vpop.f32.mrb[0].mxu0
    %v3936 = vadd.f32 0.0, %v3935
    %v3937 = vpop.f32.mrb[0].mxu0
    %v3938 = vadd.f32 0.0, %v3937
    %3939 = vdwg.mxu0
    %3940 = vset.pattern.permute.xlu0 32
    %3941 = vperm.xlu0 %3940, %v2005
    %v3942 = vpop.permute.xlu0 %3941
    %3944 = vset.pattern.permute.xlu0 32
    %3945 = vperm.xlu0 %3944, %v2007
    %v3946 = vpop.permute.xlu0 %3945
    %v3948 = vmul.f32 %v3942, %v3631
    %v3949 = vmul.f32 %v3946, %v3635
    %v3950 = vadd.f32 %v3429, %v3948
    %v3951 = vadd.f32 %v3430, %v3949
    %3952 = vset.pattern.permute.xlu0 33
    %3953 = vperm.xlu0 %3952, %v2005
    %v3954 = vpop.permute.xlu0 %3953
    %3956 = vset.pattern.permute.xlu0 33
    %3957 = vperm.xlu0 %3956, %v2007
    %v3958 = vpop.permute.xlu0 %3957
    %v3960 = vmul.f32 %v3954, %v3633
    %v3961 = vmul.f32 %v3958, %v3637
    %v3962 = vadd.f32 %v3950, %v3960
    %v3963 = vadd.f32 %v3951, %v3961
    %3964 = vset.pattern.permute.xlu0 34
    %3965 = vperm.xlu0 %3964, %v2005
    %v3966 = vpop.permute.xlu0 %3965
    %3968 = vset.pattern.permute.xlu0 34
    %3969 = vperm.xlu0 %3968, %v2007
    %v3970 = vpop.permute.xlu0 %3969
    %v3972 = vmul.f32 %v3966, %v3674
    %v3973 = vmul.f32 %v3970, %v3678
    %v3974 = vadd.f32 %v3962, %v3972
    %v3975 = vadd.f32 %v3963, %v3973
    %3976 = vset.pattern.permute.xlu0 35
    %3977 = vperm.xlu0 %3976, %v2005
    %v3978 = vpop.permute.xlu0 %3977
    %3980 = vset.pattern.permute.xlu0 35
    %3981 = vperm.xlu0 %3980, %v2007
    %v3982 = vpop.permute.xlu0 %3981
    %v3984 = vmul.f32 %v3978, %v3676
    %v3985 = vmul.f32 %v3982, %v3680
    %v3986 = vadd.f32 %v3974, %v3984
    %v3987 = vadd.f32 %v3975, %v3985
    %3988 = vset.pattern.permute.xlu0 36
    %3989 = vperm.xlu0 %3988, %v2005
    %v3990 = vpop.permute.xlu0 %3989
    %3992 = vset.pattern.permute.xlu0 36
    %3993 = vperm.xlu0 %3992, %v2007
    %v3994 = vpop.permute.xlu0 %3993
    %v3996 = vmul.f32 %v3990, %v3717
    %v3997 = vmul.f32 %v3994, %v3721
    %v3998 = vadd.f32 %v3986, %v3996
    %v3999 = vadd.f32 %v3987, %v3997
    %4000 = vset.pattern.permute.xlu0 37
    %4001 = vperm.xlu0 %4000, %v2005
    %v4002 = vpop.permute.xlu0 %4001
    %4004 = vset.pattern.permute.xlu0 37
    %4005 = vperm.xlu0 %4004, %v2007
    %v4006 = vpop.permute.xlu0 %4005
    %v4008 = vmul.f32 %v4002, %v3719
    %v4009 = vmul.f32 %v4006, %v3723
    %v4010 = vadd.f32 %v3998, %v4008
    %v4011 = vadd.f32 %v3999, %v4009
    %4012 = vset.pattern.permute.xlu0 38
    %4013 = vperm.xlu0 %4012, %v2005
    %v4014 = vpop.permute.xlu0 %4013
    %4016 = vset.pattern.permute.xlu0 38
    %4017 = vperm.xlu0 %4016, %v2007
    %v4018 = vpop.permute.xlu0 %4017
    %v4020 = vmul.f32 %v4014, %v3760
    %v4021 = vmul.f32 %v4018, %v3764
    %v4022 = vadd.f32 %v4010, %v4020
    %v4023 = vadd.f32 %v4011, %v4021
    %4024 = vset.pattern.permute.xlu0 39
    %4025 = vperm.xlu0 %4024, %v2005
    %v4026 = vpop.permute.xlu0 %4025
    %4028 = vset.pattern.permute.xlu0 39
    %4029 = vperm.xlu0 %4028, %v2007
    %v4030 = vpop.permute.xlu0 %4029
    %v4032 = vmul.f32 %v4026, %v3762
    %v4033 = vmul.f32 %v4030, %v3766
    %v4034 = vadd.f32 %v4022, %v4032
    %v4035 = vadd.f32 %v4023, %v4033
    %4036 = vset.pattern.permute.xlu0 40
    %4037 = vperm.xlu0 %4036, %v2005
    %v4038 = vpop.permute.xlu0 %4037
    %4040 = vset.pattern.permute.xlu0 40
    %4041 = vperm.xlu0 %4040, %v2007
    %v4042 = vpop.permute.xlu0 %4041
    %v4044 = vmul.f32 %v4038, %v3803
    %v4045 = vmul.f32 %v4042, %v3807
    %v4046 = vadd.f32 %v4034, %v4044
    %v4047 = vadd.f32 %v4035, %v4045
    %4048 = vset.pattern.permute.xlu0 41
    %4049 = vperm.xlu0 %4048, %v2005
    %v4050 = vpop.permute.xlu0 %4049
    %4052 = vset.pattern.permute.xlu0 41
    %4053 = vperm.xlu0 %4052, %v2007
    %v4054 = vpop.permute.xlu0 %4053
    %v4056 = vmul.f32 %v4050, %v3805
    %v4057 = vmul.f32 %v4054, %v3809
    %v4058 = vadd.f32 %v4046, %v4056
    %v4059 = vadd.f32 %v4047, %v4057
    %4060 = vset.pattern.permute.xlu0 42
    %4061 = vperm.xlu0 %4060, %v2005
    %v4062 = vpop.permute.xlu0 %4061
    %4064 = vset.pattern.permute.xlu0 42
    %4065 = vperm.xlu0 %4064, %v2007
    %v4066 = vpop.permute.xlu0 %4065
    %v4068 = vmul.f32 %v4062, %v3846
    %v4069 = vmul.f32 %v4066, %v3850
    %v4070 = vadd.f32 %v4058, %v4068
    %v4071 = vadd.f32 %v4059, %v4069
    %4072 = vset.pattern.permute.xlu0 43
    %4073 = vperm.xlu0 %4072, %v2005
    %v4074 = vpop.permute.xlu0 %4073
    %4076 = vset.pattern.permute.xlu0 43
    %4077 = vperm.xlu0 %4076, %v2007
    %v4078 = vpop.permute.xlu0 %4077
    %v4080 = vmul.f32 %v4074, %v3848
    %v4081 = vmul.f32 %v4078, %v3852
    %v4082 = vadd.f32 %v4070, %v4080
    %v4083 = vadd.f32 %v4071, %v4081
    %4084 = vset.pattern.permute.xlu0 44
    %4085 = vperm.xlu0 %4084, %v2005
    %v4086 = vpop.permute.xlu0 %4085
    %4088 = vset.pattern.permute.xlu0 44
    %4089 = vperm.xlu0 %4088, %v2007
    %v4090 = vpop.permute.xlu0 %4089
    %v4092 = vmul.f32 %v4086, %v3889
    %v4093 = vmul.f32 %v4090, %v3893
    %v4094 = vadd.f32 %v4082, %v4092
    %v4095 = vadd.f32 %v4083, %v4093
    %4096 = vset.pattern.permute.xlu0 45
    %4097 = vperm.xlu0 %4096, %v2005
    %v4098 = vpop.permute.xlu0 %4097
    %4100 = vset.pattern.permute.xlu0 45
    %4101 = vperm.xlu0 %4100, %v2007
    %v4102 = vpop.permute.xlu0 %4101
    %v4104 = vmul.f32 %v4098, %v3891
    %v4105 = vmul.f32 %v4102, %v3895
    %v4106 = vadd.f32 %v4094, %v4104
    %v4107 = vadd.f32 %v4095, %v4105
    %4108 = vset.pattern.permute.xlu0 46
    %4109 = vperm.xlu0 %4108, %v2005
    %v4110 = vpop.permute.xlu0 %4109
    %4112 = vset.pattern.permute.xlu0 46
    %4113 = vperm.xlu0 %4112, %v2007
    %v4114 = vpop.permute.xlu0 %4113
    %v4116 = vmul.f32 %v4110, %v3932
    %v4117 = vmul.f32 %v4114, %v3936
    %v4118 = vadd.f32 %v4106, %v4116
    %v4119 = vadd.f32 %v4107, %v4117
    %4120 = vset.pattern.permute.xlu0 47
    %4121 = vperm.xlu0 %4120, %v2005
    %v4122 = vpop.permute.xlu0 %4121
    %4124 = vset.pattern.permute.xlu0 47
    %4125 = vperm.xlu0 %4124, %v2007
    %v4126 = vpop.permute.xlu0 %4125
    %v4128 = vmul.f32 %v4122, %v3934
    %v4129 = vmul.f32 %v4126, %v3938
    %v4130 = vadd.f32 %v4118, %v4128
    %v4131 = vadd.f32 %v4119, %v4129
    %s4132 = scalar_lea.hbm %s10, 98304
    %s4134 = sshll.u32 1, 14
    %s4135 = sxor.u32 4294967295, %s4134
    %s4137 = sadd.s32 2, %s174
    %s4139 = sshll.u32 7, 26
    %s4140 = sxor.u32 4294967295, %s4139
    %s4141 = sand.u32 0, %s4140
    %s4142 = sshll.u32 %s4137, 26
    %s4143 = sor.u32 %s4141, %s4142
    %s4144 = sshll.u32 %s243, 4
    %s4145 = int_to_ptr.vmem [resolvable:$true] %s4144
    %4148 = sst [smem:[#allocation36]] 2048
    %s4149 = scalar_lea.smem [#allocation36], 1
    %4150 = sst [smem:[%s4149]] 2048
    %s4151 = scalar_lea.smem [#allocation36], 2
    %4152 = sst [smem:[%s4151]] 16
    %s4153 = scalar_lea.smem [#allocation36], 3
    %4154 = sst [smem:[%s4153]] 64
    %s4155 = scalar_lea.smem [#allocation36], 4
    %4156 = sst [smem:[%s4155]] 128
    %s4157 = scalar_lea.smem [#allocation36], 5
    %4158 = sst [smem:[%s4157]] 2
    %s4159 = scalar_lea.smem [#allocation36], 6
    %4160 = sst [smem:[%s4159]] 1024
    %s4161 = scalar_lea.smem [#allocation36], 7
    %4162 = sst [smem:[%s4161]] 64
    %s4163 = scalar_lea.smem [#allocation36], 8
    %4164 = sst [smem:[%s4163]] 4
    %4166 = dma.general %s4132, 16384, %s4145, %s244, [#allocation35], [#allocation36], %s4143, 0
    %s4167 = sshll.u32 %s2061, 4
    %4168 = dma.done %s2025, %s4167
    %v4169 = vld [vmem:[%s2024] sm:$0xff]
    %v4170 = vld [vmem:[%s2024 + $0x8] sm:$0xff]
    %v4171 = vld [vmem:[%s2024 + $0x10] sm:$0xff]
    %v4172 = vld [vmem:[%s2024 + $0x18] sm:$0xff]
    %v4173 = vld [vmem:[%s2024 + $0x20] sm:$0xff]
    %v4174 = vld [vmem:[%s2024 + $0x28] sm:$0xff]
    %v4175 = vld [vmem:[%s2024 + $0x30] sm:$0xff]
    %v4176 = vld [vmem:[%s2024 + $0x38] sm:$0xff]
    %v4177 = vld [vmem:[%s2024 + $0x40] sm:$0xff]
    %v4178 = vld [vmem:[%s2024 + $0x48] sm:$0xff]
    %v4179 = vld [vmem:[%s2024 + $0x50] sm:$0xff]
    %v4180 = vld [vmem:[%s2024 + $0x58] sm:$0xff]
    %v4181 = vld [vmem:[%s2024 + $0x60] sm:$0xff]
    %v4182 = vld [vmem:[%s2024 + $0x68] sm:$0xff]
    %v4183 = vld [vmem:[%s2024 + $0x70] sm:$0xff]
    %v4184 = vld [vmem:[%s2024 + $0x78] sm:$0xff]
    %v4185 = vld [vmem:[%s2024 + $0x80] sm:$0xff]
    %v4186 = vld [vmem:[%s2024 + $0x88] sm:$0xff]
    %v4187 = vld [vmem:[%s2024 + $0x90] sm:$0xff]
    %v4188 = vld [vmem:[%s2024 + $0x98] sm:$0xff]
    %v4189 = vld [vmem:[%s2024 + $0xa0] sm:$0xff]
    %v4190 = vld [vmem:[%s2024 + $0xa8] sm:$0xff]
    %v4191 = vld [vmem:[%s2024 + $0xb0] sm:$0xff]
    %v4192 = vld [vmem:[%s2024 + $0xb8] sm:$0xff]
    %v4193 = vld [vmem:[%s2024 + $0xc0] sm:$0xff]
    %v4194 = vld [vmem:[%s2024 + $0xc8] sm:$0xff]
    %v4195 = vld [vmem:[%s2024 + $0xd0] sm:$0xff]
    %v4196 = vld [vmem:[%s2024 + $0xd8] sm:$0xff]
    %v4197 = vld [vmem:[%s2024 + $0xe0] sm:$0xff]
    %v4198 = vld [vmem:[%s2024 + $0xe8] sm:$0xff]
    %v4199 = vld [vmem:[%s2024 + $0xf0] sm:$0xff]
    %v4200 = vld [vmem:[%s2024 + $0xf8] sm:$0xff]
    %v4201 = vld [vmem:[%s2024 + $0x100] sm:$0xff]
    %v4202 = vld [vmem:[%s2024 + $0x108] sm:$0xff]
    %v4203 = vld [vmem:[%s2024 + $0x110] sm:$0xff]
    %v4204 = vld [vmem:[%s2024 + $0x118] sm:$0xff]
    %v4205 = vld [vmem:[%s2024 + $0x120] sm:$0xff]
    %v4206 = vld [vmem:[%s2024 + $0x128] sm:$0xff]
    %v4207 = vld [vmem:[%s2024 + $0x130] sm:$0xff]
    %v4208 = vld [vmem:[%s2024 + $0x138] sm:$0xff]
    %v4209 = vld [vmem:[%s2024 + $0x140] sm:$0xff]
    %v4210 = vld [vmem:[%s2024 + $0x148] sm:$0xff]
    %v4211 = vld [vmem:[%s2024 + $0x150] sm:$0xff]
    %v4212 = vld [vmem:[%s2024 + $0x158] sm:$0xff]
    %v4213 = vld [vmem:[%s2024 + $0x160] sm:$0xff]
    %v4214 = vld [vmem:[%s2024 + $0x168] sm:$0xff]
    %v4215 = vld [vmem:[%s2024 + $0x170] sm:$0xff]
    %v4216 = vld [vmem:[%s2024 + $0x178] sm:$0xff]
    %v4217 = vld [vmem:[%s2024 + $0x180] sm:$0xff]
    %v4218 = vld [vmem:[%s2024 + $0x188] sm:$0xff]
    %v4219 = vld [vmem:[%s2024 + $0x190] sm:$0xff]
    %v4220 = vld [vmem:[%s2024 + $0x198] sm:$0xff]
    %v4221 = vld [vmem:[%s2024 + $0x1a0] sm:$0xff]
    %v4222 = vld [vmem:[%s2024 + $0x1a8] sm:$0xff]
    %v4223 = vld [vmem:[%s2024 + $0x1b0] sm:$0xff]
    %v4224 = vld [vmem:[%s2024 + $0x1b8] sm:$0xff]
    %v4225 = vld [vmem:[%s2024 + $0x1c0] sm:$0xff]
    %v4226 = vld [vmem:[%s2024 + $0x1c8] sm:$0xff]
    %v4227 = vld [vmem:[%s2024 + $0x1d0] sm:$0xff]
    %v4228 = vld [vmem:[%s2024 + $0x1d8] sm:$0xff]
    %v4229 = vld [vmem:[%s2024 + $0x1e0] sm:$0xff]
    %v4230 = vld [vmem:[%s2024 + $0x1e8] sm:$0xff]
    %v4231 = vld [vmem:[%s2024 + $0x1f0] sm:$0xff]
    %v4232 = vld [vmem:[%s2024 + $0x1f8] sm:$0xff]
    %v4233 = vld [vmem:[%s2024 + $0x200] sm:$0xff]
    %v4234 = vld [vmem:[%s2024 + $0x208] sm:$0xff]
    %v4235 = vld [vmem:[%s2024 + $0x210] sm:$0xff]
    %v4236 = vld [vmem:[%s2024 + $0x218] sm:$0xff]
    %v4237 = vld [vmem:[%s2024 + $0x220] sm:$0xff]
    %v4238 = vld [vmem:[%s2024 + $0x228] sm:$0xff]
    %v4239 = vld [vmem:[%s2024 + $0x230] sm:$0xff]
    %v4240 = vld [vmem:[%s2024 + $0x238] sm:$0xff]
    %v4241 = vld [vmem:[%s2024 + $0x240] sm:$0xff]
    %v4242 = vld [vmem:[%s2024 + $0x248] sm:$0xff]
    %v4243 = vld [vmem:[%s2024 + $0x250] sm:$0xff]
    %v4244 = vld [vmem:[%s2024 + $0x258] sm:$0xff]
    %v4245 = vld [vmem:[%s2024 + $0x260] sm:$0xff]
    %v4246 = vld [vmem:[%s2024 + $0x268] sm:$0xff]
    %v4247 = vld [vmem:[%s2024 + $0x270] sm:$0xff]
    %v4248 = vld [vmem:[%s2024 + $0x278] sm:$0xff]
    %v4249 = vld [vmem:[%s2024 + $0x280] sm:$0xff]
    %v4250 = vld [vmem:[%s2024 + $0x288] sm:$0xff]
    %v4251 = vld [vmem:[%s2024 + $0x290] sm:$0xff]
    %v4252 = vld [vmem:[%s2024 + $0x298] sm:$0xff]
    %v4253 = vld [vmem:[%s2024 + $0x2a0] sm:$0xff]
    %v4254 = vld [vmem:[%s2024 + $0x2a8] sm:$0xff]
    %v4255 = vld [vmem:[%s2024 + $0x2b0] sm:$0xff]
    %v4256 = vld [vmem:[%s2024 + $0x2b8] sm:$0xff]
    %v4257 = vld [vmem:[%s2024 + $0x2c0] sm:$0xff]
    %v4258 = vld [vmem:[%s2024 + $0x2c8] sm:$0xff]
    %v4259 = vld [vmem:[%s2024 + $0x2d0] sm:$0xff]
    %v4260 = vld [vmem:[%s2024 + $0x2d8] sm:$0xff]
    %v4261 = vld [vmem:[%s2024 + $0x2e0] sm:$0xff]
    %v4262 = vld [vmem:[%s2024 + $0x2e8] sm:$0xff]
    %v4263 = vld [vmem:[%s2024 + $0x2f0] sm:$0xff]
    %v4264 = vld [vmem:[%s2024 + $0x2f8] sm:$0xff]
    %v4265 = vld [vmem:[%s2024 + $0x300] sm:$0xff]
    %v4266 = vld [vmem:[%s2024 + $0x308] sm:$0xff]
    %v4267 = vld [vmem:[%s2024 + $0x310] sm:$0xff]
    %v4268 = vld [vmem:[%s2024 + $0x318] sm:$0xff]
    %v4269 = vld [vmem:[%s2024 + $0x320] sm:$0xff]
    %v4270 = vld [vmem:[%s2024 + $0x328] sm:$0xff]
    %v4271 = vld [vmem:[%s2024 + $0x330] sm:$0xff]
    %v4272 = vld [vmem:[%s2024 + $0x338] sm:$0xff]
    %v4273 = vld [vmem:[%s2024 + $0x340] sm:$0xff]
    %v4274 = vld [vmem:[%s2024 + $0x348] sm:$0xff]
    %v4275 = vld [vmem:[%s2024 + $0x350] sm:$0xff]
    %v4276 = vld [vmem:[%s2024 + $0x358] sm:$0xff]
    %v4277 = vld [vmem:[%s2024 + $0x360] sm:$0xff]
    %v4278 = vld [vmem:[%s2024 + $0x368] sm:$0xff]
    %v4279 = vld [vmem:[%s2024 + $0x370] sm:$0xff]
    %v4280 = vld [vmem:[%s2024 + $0x378] sm:$0xff]
    %v4281 = vld [vmem:[%s2024 + $0x380] sm:$0xff]
    %v4282 = vld [vmem:[%s2024 + $0x388] sm:$0xff]
    %v4283 = vld [vmem:[%s2024 + $0x390] sm:$0xff]
    %v4284 = vld [vmem:[%s2024 + $0x398] sm:$0xff]
    %v4285 = vld [vmem:[%s2024 + $0x3a0] sm:$0xff]
    %v4286 = vld [vmem:[%s2024 + $0x3a8] sm:$0xff]
    %v4287 = vld [vmem:[%s2024 + $0x3b0] sm:$0xff]
    %v4288 = vld [vmem:[%s2024 + $0x3b8] sm:$0xff]
    %v4289 = vld [vmem:[%s2024 + $0x3c0] sm:$0xff]
    %v4290 = vld [vmem:[%s2024 + $0x3c8] sm:$0xff]
    %v4291 = vld [vmem:[%s2024 + $0x3d0] sm:$0xff]
    %v4292 = vld [vmem:[%s2024 + $0x3d8] sm:$0xff]
    %v4293 = vld [vmem:[%s2024 + $0x3e0] sm:$0xff]
    %v4294 = vld [vmem:[%s2024 + $0x3e8] sm:$0xff]
    %v4295 = vld [vmem:[%s2024 + $0x3f0] sm:$0xff]
    %v4296 = vld [vmem:[%s2024 + $0x3f8] sm:$0xff]
    %4297 = vmatprep.subr.bf16.mxu0 %v4170
    %4298 = vmatpush1.bf16.msra.mxu0 %v4169
    %4299 = vmatprep.subr.bf16.mxu0 %v4186
    %4300 = vmatpush1.bf16.msra.mxu0 %v4185
    %4301 = vmatprep.subr.bf16.mxu0 %v4202
    %4302 = vmatpush1.bf16.msra.mxu0 %v4201
    %4303 = vmatprep.subr.bf16.mxu0 %v4218
    %4304 = vmatpush1.bf16.msra.mxu0 %v4217
    %4305 = vmatprep.subr.bf16.mxu0 %v4234
    %4306 = vmatpush1.bf16.msra.mxu0 %v4233
    %4307 = vmatprep.subr.bf16.mxu0 %v4250
    %4308 = vmatpush1.bf16.msra.mxu0 %v4249
    %4309 = vmatprep.subr.bf16.mxu0 %v4266
    %4310 = vmatpush1.bf16.msra.mxu0 %v4265
    %4311 = vmatprep.subr.bf16.mxu0 %v4282
    %4312 = vmatpush1.bf16.msra.mxu0 %v4281
    %4313 = vmatprep.subr.bf16.mxu0 0
    %4314 = vmatpush1.bf16.msra.mxu0 0
    %4315 = vmatprep.subr.bf16.mxu0 0
    %4316 = vmatpush1.bf16.msra.mxu0 0
    %4317 = vmatprep.subr.bf16.mxu0 0
    %4318 = vmatpush1.bf16.msra.mxu0 0
    %4319 = vmatprep.subr.bf16.mxu0 0
    %4320 = vmatpush1.bf16.msra.mxu0 0
    %4321 = vmatprep.subr.bf16.mxu0 0
    %4322 = vmatpush1.bf16.msra.mxu0 0
    %4323 = vmatprep.subr.bf16.mxu0 0
    %4324 = vmatpush1.bf16.msra.mxu0 0
    %4325 = vmatprep.subr.bf16.mxu0 0
    %4326 = vmatpush1.bf16.msra.mxu0 0
    %4327 = vmatprep.subr.bf16.mxu0 0
    %4328 = vmatpush1.bf16.msra.mxu0 0
    %4329 = vmatprep.mubr.bf16.mxu0 0
    %4330 = vmatmul.mubr.bf16.gmra.mrb[0].mxu0 %v2022
    %v4331 = vpop.f32.mrb[0].mxu0
    %v4332 = vadd.f32 0.0, %v4331
    %v4333 = vpop.f32.mrb[0].mxu0
    %v4334 = vadd.f32 0.0, %v4333
    %v4335 = vpop.f32.mrb[0].mxu0
    %v4336 = vadd.f32 0.0, %v4335
    %v4337 = vpop.f32.mrb[0].mxu0
    %v4338 = vadd.f32 0.0, %v4337
    %4339 = vdwg.mxu0
    %4340 = vmatprep.subr.bf16.mxu0 %v4172
    %4341 = vmatpush1.bf16.msra.mxu0 %v4171
    %4342 = vmatprep.subr.bf16.mxu0 %v4188
    %4343 = vmatpush1.bf16.msra.mxu0 %v4187
    %4344 = vmatprep.subr.bf16.mxu0 %v4204
    %4345 = vmatpush1.bf16.msra.mxu0 %v4203
    %4346 = vmatprep.subr.bf16.mxu0 %v4220
    %4347 = vmatpush1.bf16.msra.mxu0 %v4219
    %4348 = vmatprep.subr.bf16.mxu0 %v4236
    %4349 = vmatpush1.bf16.msra.mxu0 %v4235
    %4350 = vmatprep.subr.bf16.mxu0 %v4252
    %4351 = vmatpush1.bf16.msra.mxu0 %v4251
    %4352 = vmatprep.subr.bf16.mxu0 %v4268
    %4353 = vmatpush1.bf16.msra.mxu0 %v4267
    %4354 = vmatprep.subr.bf16.mxu0 %v4284
    %4355 = vmatpush1.bf16.msra.mxu0 %v4283
    %4356 = vmatprep.subr.bf16.mxu0 0
    %4357 = vmatpush1.bf16.msra.mxu0 0
    %4358 = vmatprep.subr.bf16.mxu0 0
    %4359 = vmatpush1.bf16.msra.mxu0 0
    %4360 = vmatprep.subr.bf16.mxu0 0
    %4361 = vmatpush1.bf16.msra.mxu0 0
    %4362 = vmatprep.subr.bf16.mxu0 0
    %4363 = vmatpush1.bf16.msra.mxu0 0
    %4364 = vmatprep.subr.bf16.mxu0 0
    %4365 = vmatpush1.bf16.msra.mxu0 0
    %4366 = vmatprep.subr.bf16.mxu0 0
    %4367 = vmatpush1.bf16.msra.mxu0 0
    %4368 = vmatprep.subr.bf16.mxu0 0
    %4369 = vmatpush1.bf16.msra.mxu0 0
    %4370 = vmatprep.subr.bf16.mxu0 0
    %4371 = vmatpush1.bf16.msra.mxu0 0
    %4372 = vmatprep.mubr.bf16.mxu0 0
    %4373 = vmatmul.mubr.bf16.gmra.mrb[0].mxu0 %v2022
    %v4374 = vpop.f32.mrb[0].mxu0
    %v4375 = vadd.f32 0.0, %v4374
    %v4376 = vpop.f32.mrb[0].mxu0
    %v4377 = vadd.f32 0.0, %v4376
    %v4378 = vpop.f32.mrb[0].mxu0
    %v4379 = vadd.f32 0.0, %v4378
    %v4380 = vpop.f32.mrb[0].mxu0
    %v4381 = vadd.f32 0.0, %v4380
    %4382 = vdwg.mxu0
    %4383 = vmatprep.subr.bf16.mxu0 %v4174
    %4384 = vmatpush1.bf16.msra.mxu0 %v4173
    %4385 = vmatprep.subr.bf16.mxu0 %v4190
    %4386 = vmatpush1.bf16.msra.mxu0 %v4189
    %4387 = vmatprep.subr.bf16.mxu0 %v4206
    %4388 = vmatpush1.bf16.msra.mxu0 %v4205
    %4389 = vmatprep.subr.bf16.mxu0 %v4222
    %4390 = vmatpush1.bf16.msra.mxu0 %v4221
    %4391 = vmatprep.subr.bf16.mxu0 %v4238
    %4392 = vmatpush1.bf16.msra.mxu0 %v4237
    %4393 = vmatprep.subr.bf16.mxu0 %v4254
    %4394 = vmatpush1.bf16.msra.mxu0 %v4253
    %4395 = vmatprep.subr.bf16.mxu0 %v4270
    %4396 = vmatpush1.bf16.msra.mxu0 %v4269
    %4397 = vmatprep.subr.bf16.mxu0 %v4286
    %4398 = vmatpush1.bf16.msra.mxu0 %v4285
    %4399 = vmatprep.subr.bf16.mxu0 0
    %4400 = vmatpush1.bf16.msra.mxu0 0
    %4401 = vmatprep.subr.bf16.mxu0 0
    %4402 = vmatpush1.bf16.msra.mxu0 0
    %4403 = vmatprep.subr.bf16.mxu0 0
    %4404 = vmatpush1.bf16.msra.mxu0 0
    %4405 = vmatprep.subr.bf16.mxu0 0
    %4406 = vmatpush1.bf16.msra.mxu0 0
    %4407 = vmatprep.subr.bf16.mxu0 0
    %4408 = vmatpush1.bf16.msra.mxu0 0
    %4409 = vmatprep.subr.bf16.mxu0 0
    %4410 = vmatpush1.bf16.msra.mxu0 0
    %4411 = vmatprep.subr.bf16.mxu0 0
    %4412 = vmatpush1.bf16.msra.mxu0 0
    %4413 = vmatprep.subr.bf16.mxu0 0
    %4414 = vmatpush1.bf16.msra.mxu0 0
    %4415 = vmatprep.mubr.bf16.mxu0 0
    %4416 = vmatmul.mubr.bf16.gmra.mrb[0].mxu0 %v2022
    %v4417 = vpop.f32.mrb[0].mxu0
    %v4418 = vadd.f32 0.0, %v4417
    %v4419 = vpop.f32.mrb[0].mxu0
    %v4420 = vadd.f32 0.0, %v4419
    %v4421 = vpop.f32.mrb[0].mxu0
    %v4422 = vadd.f32 0.0, %v4421
    %v4423 = vpop.f32.mrb[0].mxu0
    %v4424 = vadd.f32 0.0, %v4423
    %4425 = vdwg.mxu0
    %4426 = vmatprep.subr.bf16.mxu0 %v4176
    %4427 = vmatpush1.bf16.msra.mxu0 %v4175
    %4428 = vmatprep.subr.bf16.mxu0 %v4192
    %4429 = vmatpush1.bf16.msra.mxu0 %v4191
    %4430 = vmatprep.subr.bf16.mxu0 %v4208
    %4431 = vmatpush1.bf16.msra.mxu0 %v4207
    %4432 = vmatprep.subr.bf16.mxu0 %v4224
    %4433 = vmatpush1.bf16.msra.mxu0 %v4223
    %4434 = vmatprep.subr.bf16.mxu0 %v4240
    %4435 = vmatpush1.bf16.msra.mxu0 %v4239
    %4436 = vmatprep.subr.bf16.mxu0 %v4256
    %4437 = vmatpush1.bf16.msra.mxu0 %v4255
    %4438 = vmatprep.subr.bf16.mxu0 %v4272
    %4439 = vmatpush1.bf16.msra.mxu0 %v4271
    %4440 = vmatprep.subr.bf16.mxu0 %v4288
    %4441 = vmatpush1.bf16.msra.mxu0 %v4287
    %4442 = vmatprep.subr.bf16.mxu0 0
    %4443 = vmatpush1.bf16.msra.mxu0 0
    %4444 = vmatprep.subr.bf16.mxu0 0
    %4445 = vmatpush1.bf16.msra.mxu0 0
    %4446 = vmatprep.subr.bf16.mxu0 0
    %4447 = vmatpush1.bf16.msra.mxu0 0
    %4448 = vmatprep.subr.bf16.mxu0 0
    %4449 = vmatpush1.bf16.msra.mxu0 0
    %4450 = vmatprep.subr.bf16.mxu0 0
    %4451 = vmatpush1.bf16.msra.mxu0 0
    %4452 = vmatprep.subr.bf16.mxu0 0
    %4453 = vmatpush1.bf16.msra.mxu0 0
    %4454 = vmatprep.subr.bf16.mxu0 0
    %4455 = vmatpush1.bf16.msra.mxu0 0
    %4456 = vmatprep.subr.bf16.mxu0 0
    %4457 = vmatpush1.bf16.msra.mxu0 0
    %4458 = vmatprep.mubr.bf16.mxu0 0
    %4459 = vmatmul.mubr.bf16.gmra.mrb[0].mxu0 %v2022
    %v4460 = vpop.f32.mrb[0].mxu0
    %v4461 = vadd.f32 0.0, %v4460
    %v4462 = vpop.f32.mrb[0].mxu0
    %v4463 = vadd.f32 0.0, %v4462
    %v4464 = vpop.f32.mrb[0].mxu0
    %v4465 = vadd.f32 0.0, %v4464
    %v4466 = vpop.f32.mrb[0].mxu0
    %v4467 = vadd.f32 0.0, %v4466
    %4468 = vdwg.mxu0
    %4469 = vmatprep.subr.bf16.mxu0 %v4178
    %4470 = vmatpush1.bf16.msra.mxu0 %v4177
    %4471 = vmatprep.subr.bf16.mxu0 %v4194
    %4472 = vmatpush1.bf16.msra.mxu0 %v4193
    %4473 = vmatprep.subr.bf16.mxu0 %v4210
    %4474 = vmatpush1.bf16.msra.mxu0 %v4209
    %4475 = vmatprep.subr.bf16.mxu0 %v4226
    %4476 = vmatpush1.bf16.msra.mxu0 %v4225
    %4477 = vmatprep.subr.bf16.mxu0 %v4242
    %4478 = vmatpush1.bf16.msra.mxu0 %v4241
    %4479 = vmatprep.subr.bf16.mxu0 %v4258
    %4480 = vmatpush1.bf16.msra.mxu0 %v4257
    %4481 = vmatprep.subr.bf16.mxu0 %v4274
    %4482 = vmatpush1.bf16.msra.mxu0 %v4273
    %4483 = vmatprep.subr.bf16.mxu0 %v4290
    %4484 = vmatpush1.bf16.msra.mxu0 %v4289
    %4485 = vmatprep.subr.bf16.mxu0 0
    %4486 = vmatpush1.bf16.msra.mxu0 0
    %4487 = vmatprep.subr.bf16.mxu0 0
    %4488 = vmatpush1.bf16.msra.mxu0 0
    %4489 = vmatprep.subr.bf16.mxu0 0
    %4490 = vmatpush1.bf16.msra.mxu0 0
    %4491 = vmatprep.subr.bf16.mxu0 0
    %4492 = vmatpush1.bf16.msra.mxu0 0
    %4493 = vmatprep.subr.bf16.mxu0 0
    %4494 = vmatpush1.bf16.msra.mxu0 0
    %4495 = vmatprep.subr.bf16.mxu0 0
    %4496 = vmatpush1.bf16.msra.mxu0 0
    %4497 = vmatprep.subr.bf16.mxu0 0
    %4498 = vmatpush1.bf16.msra.mxu0 0
    %4499 = vmatprep.subr.bf16.mxu0 0
    %4500 = vmatpush1.bf16.msra.mxu0 0
    %4501 = vmatprep.mubr.bf16.mxu0 0
    %4502 = vmatmul.mubr.bf16.gmra.mrb[0].mxu0 %v2022
    %v4503 = vpop.f32.mrb[0].mxu0
    %v4504 = vadd.f32 0.0, %v4503
    %v4505 = vpop.f32.mrb[0].mxu0
    %v4506 = vadd.f32 0.0, %v4505
    %v4507 = vpop.f32.mrb[0].mxu0
    %v4508 = vadd.f32 0.0, %v4507
    %v4509 = vpop.f32.mrb[0].mxu0
    %v4510 = vadd.f32 0.0, %v4509
    %4511 = vdwg.mxu0
    %4512 = vmatprep.subr.bf16.mxu0 %v4180
    %4513 = vmatpush1.bf16.msra.mxu0 %v4179
    %4514 = vmatprep.subr.bf16.mxu0 %v4196
    %4515 = vmatpush1.bf16.msra.mxu0 %v4195
    %4516 = vmatprep.subr.bf16.mxu0 %v4212
    %4517 = vmatpush1.bf16.msra.mxu0 %v4211
    %4518 = vmatprep.subr.bf16.mxu0 %v4228
    %4519 = vmatpush1.bf16.msra.mxu0 %v4227
    %4520 = vmatprep.subr.bf16.mxu0 %v4244
    %4521 = vmatpush1.bf16.msra.mxu0 %v4243
    %4522 = vmatprep.subr.bf16.mxu0 %v4260
    %4523 = vmatpush1.bf16.msra.mxu0 %v4259
    %4524 = vmatprep.subr.bf16.mxu0 %v4276
    %4525 = vmatpush1.bf16.msra.mxu0 %v4275
    %4526 = vmatprep.subr.bf16.mxu0 %v4292
    %4527 = vmatpush1.bf16.msra.mxu0 %v4291
    %4528 = vmatprep.subr.bf16.mxu0 0
    %4529 = vmatpush1.bf16.msra.mxu0 0
    %4530 = vmatprep.subr.bf16.mxu0 0
    %4531 = vmatpush1.bf16.msra.mxu0 0
    %4532 = vmatprep.subr.bf16.mxu0 0
    %4533 = vmatpush1.bf16.msra.mxu0 0
    %4534 = vmatprep.subr.bf16.mxu0 0
    %4535 = vmatpush1.bf16.msra.mxu0 0
    %4536 = vmatprep.subr.bf16.mxu0 0
    %4537 = vmatpush1.bf16.msra.mxu0 0
    %4538 = vmatprep.subr.bf16.mxu0 0
    %4539 = vmatpush1.bf16.msra.mxu0 0
    %4540 = vmatprep.subr.bf16.mxu0 0
    %4541 = vmatpush1.bf16.msra.mxu0 0
    %4542 = vmatprep.subr.bf16.mxu0 0
    %4543 = vmatpush1.bf16.msra.mxu0 0
    %4544 = vmatprep.mubr.bf16.mxu0 0
    %4545 = vmatmul.mubr.bf16.gmra.mrb[0].mxu0 %v2022
    %v4546 = vpop.f32.mrb[0].mxu0
    %v4547 = vadd.f32 0.0, %v4546
    %v4548 = vpop.f32.mrb[0].mxu0
    %v4549 = vadd.f32 0.0, %v4548
    %v4550 = vpop.f32.mrb[0].mxu0
    %v4551 = vadd.f32 0.0, %v4550
    %v4552 = vpop.f32.mrb[0].mxu0
    %v4553 = vadd.f32 0.0, %v4552
    %4554 = vdwg.mxu0
    %4555 = vmatprep.subr.bf16.mxu0 %v4182
    %4556 = vmatpush1.bf16.msra.mxu0 %v4181
    %4557 = vmatprep.subr.bf16.mxu0 %v4198
    %4558 = vmatpush1.bf16.msra.mxu0 %v4197
    %4559 = vmatprep.subr.bf16.mxu0 %v4214
    %4560 = vmatpush1.bf16.msra.mxu0 %v4213
    %4561 = vmatprep.subr.bf16.mxu0 %v4230
    %4562 = vmatpush1.bf16.msra.mxu0 %v4229
    %4563 = vmatprep.subr.bf16.mxu0 %v4246
    %4564 = vmatpush1.bf16.msra.mxu0 %v4245
    %4565 = vmatprep.subr.bf16.mxu0 %v4262
    %4566 = vmatpush1.bf16.msra.mxu0 %v4261
    %4567 = vmatprep.subr.bf16.mxu0 %v4278
    %4568 = vmatpush1.bf16.msra.mxu0 %v4277
    %4569 = vmatprep.subr.bf16.mxu0 %v4294
    %4570 = vmatpush1.bf16.msra.mxu0 %v4293
    %4571 = vmatprep.subr.bf16.mxu0 0
    %4572 = vmatpush1.bf16.msra.mxu0 0
    %4573 = vmatprep.subr.bf16.mxu0 0
    %4574 = vmatpush1.bf16.msra.mxu0 0
    %4575 = vmatprep.subr.bf16.mxu0 0
    %4576 = vmatpush1.bf16.msra.mxu0 0
    %4577 = vmatprep.subr.bf16.mxu0 0
    %4578 = vmatpush1.bf16.msra.mxu0 0
    %4579 = vmatprep.subr.bf16.mxu0 0
    %4580 = vmatpush1.bf16.msra.mxu0 0
    %4581 = vmatprep.subr.bf16.mxu0 0
    %4582 = vmatpush1.bf16.msra.mxu0 0
    %4583 = vmatprep.subr.bf16.mxu0 0
    %4584 = vmatpush1.bf16.msra.mxu0 0
    %4585 = vmatprep.subr.bf16.mxu0 0
    %4586 = vmatpush1.bf16.msra.mxu0 0
    %4587 = vmatprep.mubr.bf16.mxu0 0
    %4588 = vmatmul.mubr.bf16.gmra.mrb[0].mxu0 %v2022
    %v4589 = vpop.f32.mrb[0].mxu0
    %v4590 = vadd.f32 0.0, %v4589
    %v4591 = vpop.f32.mrb[0].mxu0
    %v4592 = vadd.f32 0.0, %v4591
    %v4593 = vpop.f32.mrb[0].mxu0
    %v4594 = vadd.f32 0.0, %v4593
    %v4595 = vpop.f32.mrb[0].mxu0
    %v4596 = vadd.f32 0.0, %v4595
    %4597 = vdwg.mxu0
    %4598 = vmatprep.subr.bf16.mxu0 %v4184
    %4599 = vmatpush1.bf16.msra.mxu0 %v4183
    %4600 = vmatprep.subr.bf16.mxu0 %v4200
    %4601 = vmatpush1.bf16.msra.mxu0 %v4199
    %4602 = vmatprep.subr.bf16.mxu0 %v4216
    %4603 = vmatpush1.bf16.msra.mxu0 %v4215
    %4604 = vmatprep.subr.bf16.mxu0 %v4232
    %4605 = vmatpush1.bf16.msra.mxu0 %v4231
    %4606 = vmatprep.subr.bf16.mxu0 %v4248
    %4607 = vmatpush1.bf16.msra.mxu0 %v4247
    %4608 = vmatprep.subr.bf16.mxu0 %v4264
    %4609 = vmatpush1.bf16.msra.mxu0 %v4263
    %4610 = vmatprep.subr.bf16.mxu0 %v4280
    %4611 = vmatpush1.bf16.msra.mxu0 %v4279
    %4612 = vmatprep.subr.bf16.mxu0 %v4296
    %4613 = vmatpush1.bf16.msra.mxu0 %v4295
    %4614 = vmatprep.subr.bf16.mxu0 0
    %4615 = vmatpush1.bf16.msra.mxu0 0
    %4616 = vmatprep.subr.bf16.mxu0 0
    %4617 = vmatpush1.bf16.msra.mxu0 0
    %4618 = vmatprep.subr.bf16.mxu0 0
    %4619 = vmatpush1.bf16.msra.mxu0 0
    %4620 = vmatprep.subr.bf16.mxu0 0
    %4621 = vmatpush1.bf16.msra.mxu0 0
    %4622 = vmatprep.subr.bf16.mxu0 0
    %4623 = vmatpush1.bf16.msra.mxu0 0
    %4624 = vmatprep.subr.bf16.mxu0 0
    %4625 = vmatpush1.bf16.msra.mxu0 0
    %4626 = vmatprep.subr.bf16.mxu0 0
    %4627 = vmatpush1.bf16.msra.mxu0 0
    %4628 = vmatprep.subr.bf16.mxu0 0
    %4629 = vmatpush1.bf16.msra.mxu0 0
    %4630 = vmatprep.mubr.bf16.mxu0 0
    %4631 = vmatmul.mubr.bf16.gmra.mrb[0].mxu0 %v2022
    %v4632 = vpop.f32.mrb[0].mxu0
    %v4633 = vadd.f32 0.0, %v4632
    %v4634 = vpop.f32.mrb[0].mxu0
    %v4635 = vadd.f32 0.0, %v4634
    %v4636 = vpop.f32.mrb[0].mxu0
    %v4637 = vadd.f32 0.0, %v4636
    %v4638 = vpop.f32.mrb[0].mxu0
    %v4639 = vadd.f32 0.0, %v4638
    %4640 = vdwg.mxu0
    %4641 = vset.pattern.permute.xlu0 48
    %4642 = vperm.xlu0 %4641, %v2005
    %v4643 = vpop.permute.xlu0 %4642
    %4645 = vset.pattern.permute.xlu0 48
    %4646 = vperm.xlu0 %4645, %v2007
    %v4647 = vpop.permute.xlu0 %4646
    %v4649 = vmul.f32 %v4643, %v4332
    %v4650 = vmul.f32 %v4647, %v4336
    %v4651 = vadd.f32 %v4130, %v4649
    %v4652 = vadd.f32 %v4131, %v4650
    %4653 = vset.pattern.permute.xlu0 49
    %4654 = vperm.xlu0 %4653, %v2005
    %v4655 = vpop.permute.xlu0 %4654
    %4657 = vset.pattern.permute.xlu0 49
    %4658 = vperm.xlu0 %4657, %v2007
    %v4659 = vpop.permute.xlu0 %4658
    %v4661 = vmul.f32 %v4655, %v4334
    %v4662 = vmul.f32 %v4659, %v4338
    %v4663 = vadd.f32 %v4651, %v4661
    %v4664 = vadd.f32 %v4652, %v4662
    %4665 = vset.pattern.permute.xlu0 50
    %4666 = vperm.xlu0 %4665, %v2005
    %v4667 = vpop.permute.xlu0 %4666
    %4669 = vset.pattern.permute.xlu0 50
    %4670 = vperm.xlu0 %4669, %v2007
    %v4671 = vpop.permute.xlu0 %4670
    %v4673 = vmul.f32 %v4667, %v4375
    %v4674 = vmul.f32 %v4671, %v4379
    %v4675 = vadd.f32 %v4663, %v4673
    %v4676 = vadd.f32 %v4664, %v4674
    %4677 = vset.pattern.permute.xlu0 51
    %4678 = vperm.xlu0 %4677, %v2005
    %v4679 = vpop.permute.xlu0 %4678
    %4681 = vset.pattern.permute.xlu0 51
    %4682 = vperm.xlu0 %4681, %v2007
    %v4683 = vpop.permute.xlu0 %4682
    %v4685 = vmul.f32 %v4679, %v4377
    %v4686 = vmul.f32 %v4683, %v4381
    %v4687 = vadd.f32 %v4675, %v4685
    %v4688 = vadd.f32 %v4676, %v4686
    %4689 = vset.pattern.permute.xlu0 52
    %4690 = vperm.xlu0 %4689, %v2005
    %v4691 = vpop.permute.xlu0 %4690
    %4693 = vset.pattern.permute.xlu0 52
    %4694 = vperm.xlu0 %4693, %v2007
    %v4695 = vpop.permute.xlu0 %4694
    %v4697 = vmul.f32 %v4691, %v4418
    %v4698 = vmul.f32 %v4695, %v4422
    %v4699 = vadd.f32 %v4687, %v4697
    %v4700 = vadd.f32 %v4688, %v4698
    %4701 = vset.pattern.permute.xlu0 53
    %4702 = vperm.xlu0 %4701, %v2005
    %v4703 = vpop.permute.xlu0 %4702
    %4705 = vset.pattern.permute.xlu0 53
    %4706 = vperm.xlu0 %4705, %v2007
    %v4707 = vpop.permute.xlu0 %4706
    %v4709 = vmul.f32 %v4703, %v4420
    %v4710 = vmul.f32 %v4707, %v4424
    %v4711 = vadd.f32 %v4699, %v4709
    %v4712 = vadd.f32 %v4700, %v4710
    %4713 = vset.pattern.permute.xlu0 54
    %4714 = vperm.xlu0 %4713, %v2005
    %v4715 = vpop.permute.xlu0 %4714
    %4717 = vset.pattern.permute.xlu0 54
    %4718 = vperm.xlu0 %4717, %v2007
    %v4719 = vpop.permute.xlu0 %4718
    %v4721 = vmul.f32 %v4715, %v4461
    %v4722 = vmul.f32 %v4719, %v4465
    %v4723 = vadd.f32 %v4711, %v4721
    %v4724 = vadd.f32 %v4712, %v4722
    %4725 = vset.pattern.permute.xlu0 55
    %4726 = vperm.xlu0 %4725, %v2005
    %v4727 = vpop.permute.xlu0 %4726
    %4729 = vset.pattern.permute.xlu0 55
    %4730 = vperm.xlu0 %4729, %v2007
    %v4731 = vpop.permute.xlu0 %4730
    %v4733 = vmul.f32 %v4727, %v4463
    %v4734 = vmul.f32 %v4731, %v4467
    %v4735 = vadd.f32 %v4723, %v4733
    %v4736 = vadd.f32 %v4724, %v4734
    %4737 = vset.pattern.permute.xlu0 56
    %4738 = vperm.xlu0 %4737, %v2005
    %v4739 = vpop.permute.xlu0 %4738
    %4741 = vset.pattern.permute.xlu0 56
    %4742 = vperm.xlu0 %4741, %v2007
    %v4743 = vpop.permute.xlu0 %4742
    %v4745 = vmul.f32 %v4739, %v4504
    %v4746 = vmul.f32 %v4743, %v4508
    %v4747 = vadd.f32 %v4735, %v4745
    %v4748 = vadd.f32 %v4736, %v4746
    %4749 = vset.pattern.permute.xlu0 57
    %4750 = vperm.xlu0 %4749, %v2005
    %v4751 = vpop.permute.xlu0 %4750
    %4753 = vset.pattern.permute.xlu0 57
    %4754 = vperm.xlu0 %4753, %v2007
    %v4755 = vpop.permute.xlu0 %4754
    %v4757 = vmul.f32 %v4751, %v4506
    %v4758 = vmul.f32 %v4755, %v4510
    %v4759 = vadd.f32 %v4747, %v4757
    %v4760 = vadd.f32 %v4748, %v4758
    %4761 = vset.pattern.permute.xlu0 58
    %4762 = vperm.xlu0 %4761, %v2005
    %v4763 = vpop.permute.xlu0 %4762
    %4765 = vset.pattern.permute.xlu0 58
    %4766 = vperm.xlu0 %4765, %v2007
    %v4767 = vpop.permute.xlu0 %4766
    %v4769 = vmul.f32 %v4763, %v4547
    %v4770 = vmul.f32 %v4767, %v4551
    %v4771 = vadd.f32 %v4759, %v4769
    %v4772 = vadd.f32 %v4760, %v4770
    %4773 = vset.pattern.permute.xlu0 59
    %4774 = vperm.xlu0 %4773, %v2005
    %v4775 = vpop.permute.xlu0 %4774
    %4777 = vset.pattern.permute.xlu0 59
    %4778 = vperm.xlu0 %4777, %v2007
    %v4779 = vpop.permute.xlu0 %4778
    %v4781 = vmul.f32 %v4775, %v4549
    %v4782 = vmul.f32 %v4779, %v4553
    %v4783 = vadd.f32 %v4771, %v4781
    %v4784 = vadd.f32 %v4772, %v4782
    %4785 = vset.pattern.permute.xlu0 60
    %4786 = vperm.xlu0 %4785, %v2005
    %v4787 = vpop.permute.xlu0 %4786
    %4789 = vset.pattern.permute.xlu0 60
    %4790 = vperm.xlu0 %4789, %v2007
    %v4791 = vpop.permute.xlu0 %4790
    %v4793 = vmul.f32 %v4787, %v4590
    %v4794 = vmul.f32 %v4791, %v4594
    %v4795 = vadd.f32 %v4783, %v4793
    %v4796 = vadd.f32 %v4784, %v4794
    %4797 = vset.pattern.permute.xlu0 61
    %4798 = vperm.xlu0 %4797, %v2005
    %v4799 = vpop.permute.xlu0 %4798
    %4801 = vset.pattern.permute.xlu0 61
    %4802 = vperm.xlu0 %4801, %v2007
    %v4803 = vpop.permute.xlu0 %4802
    %v4805 = vmul.f32 %v4799, %v4592
    %v4806 = vmul.f32 %v4803, %v4596
    %v4807 = vadd.f32 %v4795, %v4805
    %v4808 = vadd.f32 %v4796, %v4806
    %4809 = vset.pattern.permute.xlu0 62
    %4810 = vperm.xlu0 %4809, %v2005
    %v4811 = vpop.permute.xlu0 %4810
    %4813 = vset.pattern.permute.xlu0 62
    %4814 = vperm.xlu0 %4813, %v2007
    %v4815 = vpop.permute.xlu0 %4814
    %v4817 = vmul.f32 %v4811, %v4633
    %v4818 = vmul.f32 %v4815, %v4637
    %v4819 = vadd.f32 %v4807, %v4817
    %v4820 = vadd.f32 %v4808, %v4818
    %4821 = vset.pattern.permute.xlu0 63
    %4822 = vperm.xlu0 %4821, %v2005
    %v4823 = vpop.permute.xlu0 %4822
    %4825 = vset.pattern.permute.xlu0 63
    %4826 = vperm.xlu0 %4825, %v2007
    %v4827 = vpop.permute.xlu0 %4826
    %v4829 = vmul.f32 %v4823, %v4635
    %v4830 = vmul.f32 %v4827, %v4639
    %v4831 = vadd.f32 %v4819, %v4829
    %v4832 = vadd.f32 %v4820, %v4830
    %s4833 = scalar_lea.hbm %s10, 114688
    %s4835 = sshll.u32 1, 14
    %s4836 = sxor.u32 4294967295, %s4835
    %s4838 = sadd.s32 2, %s174
    %s4840 = sshll.u32 7, 26
    %s4841 = sxor.u32 4294967295, %s4840
    %s4842 = sand.u32 0, %s4841
    %s4843 = sshll.u32 %s4838, 26
    %s4844 = sor.u32 %s4842, %s4843
    %s4845 = sshll.u32 %s2024, 4
    %s4846 = int_to_ptr.vmem [resolvable:$true] %s4845
    %4849 = sst [smem:[#allocation38]] 2048
    %s4850 = scalar_lea.smem [#allocation38], 1
    %4851 = sst [smem:[%s4850]] 2048
    %s4852 = scalar_lea.smem [#allocation38], 2
    %4853 = sst [smem:[%s4852]] 16
    %s4854 = scalar_lea.smem [#allocation38], 3
    %4855 = sst [smem:[%s4854]] 64
    %s4856 = scalar_lea.smem [#allocation38], 4
    %4857 = sst [smem:[%s4856]] 128
    %s4858 = scalar_lea.smem [#allocation38], 5
    %4859 = sst [smem:[%s4858]] 2
    %s4860 = scalar_lea.smem [#allocation38], 6
    %4861 = sst [smem:[%s4860]] 1024
    %s4862 = scalar_lea.smem [#allocation38], 7
    %4863 = sst [smem:[%s4862]] 64
    %s4864 = scalar_lea.smem [#allocation38], 8
    %4865 = sst [smem:[%s4864]] 4
    %4867 = dma.general %s4833, 16384, %s4846, %s2025, [#allocation37], [#allocation38], %s4844, 0
    %s4868 = sshll.u32 %s2061, 4
    %4869 = dma.done [#allocation3], %s4868
    %v4870 = vld [vmem:[#allocation2] sm:$0xff]
    %v4871 = vld [vmem:[#allocation2 + $0x8] sm:$0xff]
    %v4872 = vld [vmem:[#allocation2 + $0x10] sm:$0xff]
    %v4873 = vld [vmem:[#allocation2 + $0x18] sm:$0xff]
    %v4874 = vld [vmem:[#allocation2 + $0x20] sm:$0xff]
    %v4875 = vld [vmem:[#allocation2 + $0x28] sm:$0xff]
    %v4876 = vld [vmem:[#allocation2 + $0x30] sm:$0xff]
    %v4877 = vld [vmem:[#allocation2 + $0x38] sm:$0xff]
    %v4878 = vld [vmem:[#allocation2 + $0x40] sm:$0xff]
    %v4879 = vld [vmem:[#allocation2 + $0x48] sm:$0xff]
    %v4880 = vld [vmem:[#allocation2 + $0x50] sm:$0xff]
    %v4881 = vld [vmem:[#allocation2 + $0x58] sm:$0xff]
    %v4882 = vld [vmem:[#allocation2 + $0x60] sm:$0xff]
    %v4883 = vld [vmem:[#allocation2 + $0x68] sm:$0xff]
    %v4884 = vld [vmem:[#allocation2 + $0x70] sm:$0xff]
    %v4885 = vld [vmem:[#allocation2 + $0x78] sm:$0xff]
    %v4886 = vld [vmem:[#allocation2 + $0x80] sm:$0xff]
    %v4887 = vld [vmem:[#allocation2 + $0x88] sm:$0xff]
    %v4888 = vld [vmem:[#allocation2 + $0x90] sm:$0xff]
    %v4889 = vld [vmem:[#allocation2 + $0x98] sm:$0xff]
    %v4890 = vld [vmem:[#allocation2 + $0xa0] sm:$0xff]
    %v4891 = vld [vmem:[#allocation2 + $0xa8] sm:$0xff]
    %v4892 = vld [vmem:[#allocation2 + $0xb0] sm:$0xff]
    %v4893 = vld [vmem:[#allocation2 + $0xb8] sm:$0xff]
    %v4894 = vld [vmem:[#allocation2 + $0xc0] sm:$0xff]
    %v4895 = vld [vmem:[#allocation2 + $0xc8] sm:$0xff]
    %v4896 = vld [vmem:[#allocation2 + $0xd0] sm:$0xff]
    %v4897 = vld [vmem:[#allocation2 + $0xd8] sm:$0xff]
    %v4898 = vld [vmem:[#allocation2 + $0xe0] sm:$0xff]
    %v4899 = vld [vmem:[#allocation2 + $0xe8] sm:$0xff]
    %v4900 = vld [vmem:[#allocation2 + $0xf0] sm:$0xff]
    %v4901 = vld [vmem:[#allocation2 + $0xf8] sm:$0xff]
    %v4902 = vld [vmem:[#allocation2 + $0x100] sm:$0xff]
    %v4903 = vld [vmem:[#allocation2 + $0x108] sm:$0xff]
    %v4904 = vld [vmem:[#allocation2 + $0x110] sm:$0xff]
    %v4905 = vld [vmem:[#allocation2 + $0x118] sm:$0xff]
    %v4906 = vld [vmem:[#allocation2 + $0x120] sm:$0xff]
    %v4907 = vld [vmem:[#allocation2 + $0x128] sm:$0xff]
    %v4908 = vld [vmem:[#allocation2 + $0x130] sm:$0xff]
    %v4909 = vld [vmem:[#allocation2 + $0x138] sm:$0xff]
    %v4910 = vld [vmem:[#allocation2 + $0x140] sm:$0xff]
    %v4911 = vld [vmem:[#allocation2 + $0x148] sm:$0xff]
    %v4912 = vld [vmem:[#allocation2 + $0x150] sm:$0xff]
    %v4913 = vld [vmem:[#allocation2 + $0x158] sm:$0xff]
    %v4914 = vld [vmem:[#allocation2 + $0x160] sm:$0xff]
    %v4915 = vld [vmem:[#allocation2 + $0x168] sm:$0xff]
    %v4916 = vld [vmem:[#allocation2 + $0x170] sm:$0xff]
    %v4917 = vld [vmem:[#allocation2 + $0x178] sm:$0xff]
    %v4918 = vld [vmem:[#allocation2 + $0x180] sm:$0xff]
    %v4919 = vld [vmem:[#allocation2 + $0x188] sm:$0xff]
    %v4920 = vld [vmem:[#allocation2 + $0x190] sm:$0xff]
    %v4921 = vld [vmem:[#allocation2 + $0x198] sm:$0xff]
    %v4922 = vld [vmem:[#allocation2 + $0x1a0] sm:$0xff]
    %v4923 = vld [vmem:[#allocation2 + $0x1a8] sm:$0xff]
    %v4924 = vld [vmem:[#allocation2 + $0x1b0] sm:$0xff]
    %v4925 = vld [vmem:[#allocation2 + $0x1b8] sm:$0xff]
    %v4926 = vld [vmem:[#allocation2 + $0x1c0] sm:$0xff]
    %v4927 = vld [vmem:[#allocation2 + $0x1c8] sm:$0xff]
    %v4928 = vld [vmem:[#allocation2 + $0x1d0] sm:$0xff]
    %v4929 = vld [vmem:[#allocation2 + $0x1d8] sm:$0xff]
    %v4930 = vld [vmem:[#allocation2 + $0x1e0] sm:$0xff]
    %v4931 = vld [vmem:[#allocation2 + $0x1e8] sm:$0xff]
    %v4932 = vld [vmem:[#allocation2 + $0x1f0] sm:$0xff]
    %v4933 = vld [vmem:[#allocation2 + $0x1f8] sm:$0xff]
    %v4934 = vld [vmem:[#allocation2 + $0x200] sm:$0xff]
    %v4935 = vld [vmem:[#allocation2 + $0x208] sm:$0xff]
    %v4936 = vld [vmem:[#allocation2 + $0x210] sm:$0xff]
    %v4937 = vld [vmem:[#allocation2 + $0x218] sm:$0xff]
    %v4938 = vld [vmem:[#allocation2 + $0x220] sm:$0xff]
    %v4939 = vld [vmem:[#allocation2 + $0x228] sm:$0xff]
    %v4940 = vld [vmem:[#allocation2 + $0x230] sm:$0xff]
    %v4941 = vld [vmem:[#allocation2 + $0x238] sm:$0xff]
    %v4942 = vld [vmem:[#allocation2 + $0x240] sm:$0xff]
    %v4943 = vld [vmem:[#allocation2 + $0x248] sm:$0xff]
    %v4944 = vld [vmem:[#allocation2 + $0x250] sm:$0xff]
    %v4945 = vld [vmem:[#allocation2 + $0x258] sm:$0xff]
    %v4946 = vld [vmem:[#allocation2 + $0x260] sm:$0xff]
    %v4947 = vld [vmem:[#allocation2 + $0x268] sm:$0xff]
    %v4948 = vld [vmem:[#allocation2 + $0x270] sm:$0xff]
    %v4949 = vld [vmem:[#allocation2 + $0x278] sm:$0xff]
    %v4950 = vld [vmem:[#allocation2 + $0x280] sm:$0xff]
    %v4951 = vld [vmem:[#allocation2 + $0x288] sm:$0xff]
    %v4952 = vld [vmem:[#allocation2 + $0x290] sm:$0xff]
    %v4953 = vld [vmem:[#allocation2 + $0x298] sm:$0xff]
    %v4954 = vld [vmem:[#allocation2 + $0x2a0] sm:$0xff]
    %v4955 = vld [vmem:[#allocation2 + $0x2a8] sm:$0xff]
    %v4956 = vld [vmem:[#allocation2 + $0x2b0] sm:$0xff]
    %v4957 = vld [vmem:[#allocation2 + $0x2b8] sm:$0xff]
    %v4958 = vld [vmem:[#allocation2 + $0x2c0] sm:$0xff]
    %v4959 = vld [vmem:[#allocation2 + $0x2c8] sm:$0xff]
    %v4960 = vld [vmem:[#allocation2 + $0x2d0] sm:$0xff]
    %v4961 = vld [vmem:[#allocation2 + $0x2d8] sm:$0xff]
    %v4962 = vld [vmem:[#allocation2 + $0x2e0] sm:$0xff]
    %v4963 = vld [vmem:[#allocation2 + $0x2e8] sm:$0xff]
    %v4964 = vld [vmem:[#allocation2 + $0x2f0] sm:$0xff]
    %v4965 = vld [vmem:[#allocation2 + $0x2f8] sm:$0xff]
    %v4966 = vld [vmem:[#allocation2 + $0x300] sm:$0xff]
    %v4967 = vld [vmem:[#allocation2 + $0x308] sm:$0xff]
    %v4968 = vld [vmem:[#allocation2 + $0x310] sm:$0xff]
    %v4969 = vld [vmem:[#allocation2 + $0x318] sm:$0xff]
    %v4970 = vld [vmem:[#allocation2 + $0x320] sm:$0xff]
    %v4971 = vld [vmem:[#allocation2 + $0x328] sm:$0xff]
    %v4972 = vld [vmem:[#allocation2 + $0x330] sm:$0xff]
    %v4973 = vld [vmem:[#allocation2 + $0x338] sm:$0xff]
    %v4974 = vld [vmem:[#allocation2 + $0x340] sm:$0xff]
    %v4975 = vld [vmem:[#allocation2 + $0x348] sm:$0xff]
    %v4976 = vld [vmem:[#allocation2 + $0x350] sm:$0xff]
    %v4977 = vld [vmem:[#allocation2 + $0x358] sm:$0xff]
    %v4978 = vld [vmem:[#allocation2 + $0x360] sm:$0xff]
    %v4979 = vld [vmem:[#allocation2 + $0x368] sm:$0xff]
    %v4980 = vld [vmem:[#allocation2 + $0x370] sm:$0xff]
    %v4981 = vld [vmem:[#allocation2 + $0x378] sm:$0xff]
    %v4982 = vld [vmem:[#allocation2 + $0x380] sm:$0xff]
    %v4983 = vld [vmem:[#allocation2 + $0x388] sm:$0xff]
    %v4984 = vld [vmem:[#allocation2 + $0x390] sm:$0xff]
    %v4985 = vld [vmem:[#allocation2 + $0x398] sm:$0xff]
    %v4986 = vld [vmem:[#allocation2 + $0x3a0] sm:$0xff]
    %v4987 = vld [vmem:[#allocation2 + $0x3a8] sm:$0xff]
    %v4988 = vld [vmem:[#allocation2 + $0x3b0] sm:$0xff]
    %v4989 = vld [vmem:[#allocation2 + $0x3b8] sm:$0xff]
    %v4990 = vld [vmem:[#allocation2 + $0x3c0] sm:$0xff]
    %v4991 = vld [vmem:[#allocation2 + $0x3c8] sm:$0xff]
    %v4992 = vld [vmem:[#allocation2 + $0x3d0] sm:$0xff]
    %v4993 = vld [vmem:[#allocation2 + $0x3d8] sm:$0xff]
    %v4994 = vld [vmem:[#allocation2 + $0x3e0] sm:$0xff]
    %v4995 = vld [vmem:[#allocation2 + $0x3e8] sm:$0xff]
    %v4996 = vld [vmem:[#allocation2 + $0x3f0] sm:$0xff]
    %v4997 = vld [vmem:[#allocation2 + $0x3f8] sm:$0xff]
    %4998 = vmatprep.subr.bf16.mxu0 %v4871
    %4999 = vmatpush1.bf16.msra.mxu0 %v4870
    %5000 = vmatprep.subr.bf16.mxu0 %v4887
    %5001 = vmatpush1.bf16.msra.mxu0 %v4886
    %5002 = vmatprep.subr.bf16.mxu0 %v4903
    %5003 = vmatpush1.bf16.msra.mxu0 %v4902
    %5004 = vmatprep.subr.bf16.mxu0 %v4919
    %5005 = vmatpush1.bf16.msra.mxu0 %v4918
    %5006 = vmatprep.subr.bf16.mxu0 %v4935
    %5007 = vmatpush1.bf16.msra.mxu0 %v4934
    %5008 = vmatprep.subr.bf16.mxu0 %v4951
    %5009 = vmatpush1.bf16.msra.mxu0 %v4950
    %5010 = vmatprep.subr.bf16.mxu0 %v4967
    %5011 = vmatpush1.bf16.msra.mxu0 %v4966
    %5012 = vmatprep.subr.bf16.mxu0 %v4983
    %5013 = vmatpush1.bf16.msra.mxu0 %v4982
    %5014 = vmatprep.subr.bf16.mxu0 0
    %5015 = vmatpush1.bf16.msra.mxu0 0
    %5016 = vmatprep.subr.bf16.mxu0 0
    %5017 = vmatpush1.bf16.msra.mxu0 0
    %5018 = vmatprep.subr.bf16.mxu0 0
    %5019 = vmatpush1.bf16.msra.mxu0 0
    %5020 = vmatprep.subr.bf16.mxu0 0
    %5021 = vmatpush1.bf16.msra.mxu0 0
    %5022 = vmatprep.subr.bf16.mxu0 0
    %5023 = vmatpush1.bf16.msra.mxu0 0
    %5024 = vmatprep.subr.bf16.mxu0 0
    %5025 = vmatpush1.bf16.msra.mxu0 0
    %5026 = vmatprep.subr.bf16.mxu0 0
    %5027 = vmatpush1.bf16.msra.mxu0 0
    %5028 = vmatprep.subr.bf16.mxu0 0
    %5029 = vmatpush1.bf16.msra.mxu0 0
    %5030 = vmatprep.mubr.bf16.mxu0 0
    %5031 = vmatmul.mubr.bf16.gmra.mrb[0].mxu0 %v2022
    %v5032 = vpop.f32.mrb[0].mxu0
    %v5033 = vadd.f32 0.0, %v5032
    %v5034 = vpop.f32.mrb[0].mxu0
    %v5035 = vadd.f32 0.0, %v5034
    %v5036 = vpop.f32.mrb[0].mxu0
    %v5037 = vadd.f32 0.0, %v5036
    %v5038 = vpop.f32.mrb[0].mxu0
    %v5039 = vadd.f32 0.0, %v5038
    %5040 = vdwg.mxu0
    %5041 = vmatprep.subr.bf16.mxu0 %v4873
    %5042 = vmatpush1.bf16.msra.mxu0 %v4872
    %5043 = vmatprep.subr.bf16.mxu0 %v4889
    %5044 = vmatpush1.bf16.msra.mxu0 %v4888
    %5045 = vmatprep.subr.bf16.mxu0 %v4905
    %5046 = vmatpush1.bf16.msra.mxu0 %v4904
    %5047 = vmatprep.subr.bf16.mxu0 %v4921
    %5048 = vmatpush1.bf16.msra.mxu0 %v4920
    %5049 = vmatprep.subr.bf16.mxu0 %v4937
    %5050 = vmatpush1.bf16.msra.mxu0 %v4936
    %5051 = vmatprep.subr.bf16.mxu0 %v4953
    %5052 = vmatpush1.bf16.msra.mxu0 %v4952
    %5053 = vmatprep.subr.bf16.mxu0 %v4969
    %5054 = vmatpush1.bf16.msra.mxu0 %v4968
    %5055 = vmatprep.subr.bf16.mxu0 %v4985
    %5056 = vmatpush1.bf16.msra.mxu0 %v4984
    %5057 = vmatprep.subr.bf16.mxu0 0
    %5058 = vmatpush1.bf16.msra.mxu0 0
    %5059 = vmatprep.subr.bf16.mxu0 0
    %5060 = vmatpush1.bf16.msra.mxu0 0
    %5061 = vmatprep.subr.bf16.mxu0 0
    %5062 = vmatpush1.bf16.msra.mxu0 0
    %5063 = vmatprep.subr.bf16.mxu0 0
    %5064 = vmatpush1.bf16.msra.mxu0 0
    %5065 = vmatprep.subr.bf16.mxu0 0
    %5066 = vmatpush1.bf16.msra.mxu0 0
    %5067 = vmatprep.subr.bf16.mxu0 0
    %5068 = vmatpush1.bf16.msra.mxu0 0
    %5069 = vmatprep.subr.bf16.mxu0 0
    %5070 = vmatpush1.bf16.msra.mxu0 0
    %5071 = vmatprep.subr.bf16.mxu0 0
    %5072 = vmatpush1.bf16.msra.mxu0 0
    %5073 = vmatprep.mubr.bf16.mxu0 0
    %5074 = vmatmul.mubr.bf16.gmra.mrb[0].mxu0 %v2022
    %v5075 = vpop.f32.mrb[0].mxu0
    %v5076 = vadd.f32 0.0, %v5075
    %v5077 = vpop.f32.mrb[0].mxu0
    %v5078 = vadd.f32 0.0, %v5077
    %v5079 = vpop.f32.mrb[0].mxu0
    %v5080 = vadd.f32 0.0, %v5079
    %v5081 = vpop.f32.mrb[0].mxu0
    %v5082 = vadd.f32 0.0, %v5081
    %5083 = vdwg.mxu0
    %5084 = vmatprep.subr.bf16.mxu0 %v4875
    %5085 = vmatpush1.bf16.msra.mxu0 %v4874
    %5086 = vmatprep.subr.bf16.mxu0 %v4891
    %5087 = vmatpush1.bf16.msra.mxu0 %v4890
    %5088 = vmatprep.subr.bf16.mxu0 %v4907
    %5089 = vmatpush1.bf16.msra.mxu0 %v4906
    %5090 = vmatprep.subr.bf16.mxu0 %v4923
    %5091 = vmatpush1.bf16.msra.mxu0 %v4922
    %5092 = vmatprep.subr.bf16.mxu0 %v4939
    %5093 = vmatpush1.bf16.msra.mxu0 %v4938
    %5094 = vmatprep.subr.bf16.mxu0 %v4955
    %5095 = vmatpush1.bf16.msra.mxu0 %v4954
    %5096 = vmatprep.subr.bf16.mxu0 %v4971
    %5097 = vmatpush1.bf16.msra.mxu0 %v4970
    %5098 = vmatprep.subr.bf16.mxu0 %v4987
    %5099 = vmatpush1.bf16.msra.mxu0 %v4986
    %5100 = vmatprep.subr.bf16.mxu0 0
    %5101 = vmatpush1.bf16.msra.mxu0 0
    %5102 = vmatprep.subr.bf16.mxu0 0
    %5103 = vmatpush1.bf16.msra.mxu0 0
    %5104 = vmatprep.subr.bf16.mxu0 0
    %5105 = vmatpush1.bf16.msra.mxu0 0
    %5106 = vmatprep.subr.bf16.mxu0 0
    %5107 = vmatpush1.bf16.msra.mxu0 0
    %5108 = vmatprep.subr.bf16.mxu0 0
    %5109 = vmatpush1.bf16.msra.mxu0 0
    %5110 = vmatprep.subr.bf16.mxu0 0
    %5111 = vmatpush1.bf16.msra.mxu0 0
    %5112 = vmatprep.subr.bf16.mxu0 0
    %5113 = vmatpush1.bf16.msra.mxu0 0
    %5114 = vmatprep.subr.bf16.mxu0 0
    %5115 = vmatpush1.bf16.msra.mxu0 0
    %5116 = vmatprep.mubr.bf16.mxu0 0
    %5117 = vmatmul.mubr.bf16.gmra.mrb[0].mxu0 %v2022
    %v5118 = vpop.f32.mrb[0].mxu0
    %v5119 = vadd.f32 0.0, %v5118
    %v5120 = vpop.f32.mrb[0].mxu0
    %v5121 = vadd.f32 0.0, %v5120
    %v5122 = vpop.f32.mrb[0].mxu0
    %v5123 = vadd.f32 0.0, %v5122
    %v5124 = vpop.f32.mrb[0].mxu0
    %v5125 = vadd.f32 0.0, %v5124
    %5126 = vdwg.mxu0
    %5127 = vmatprep.subr.bf16.mxu0 %v4877
    %5128 = vmatpush1.bf16.msra.mxu0 %v4876
    %5129 = vmatprep.subr.bf16.mxu0 %v4893
    %5130 = vmatpush1.bf16.msra.mxu0 %v4892
    %5131 = vmatprep.subr.bf16.mxu0 %v4909
    %5132 = vmatpush1.bf16.msra.mxu0 %v4908
    %5133 = vmatprep.subr.bf16.mxu0 %v4925
    %5134 = vmatpush1.bf16.msra.mxu0 %v4924
    %5135 = vmatprep.subr.bf16.mxu0 %v4941
    %5136 = vmatpush1.bf16.msra.mxu0 %v4940
    %5137 = vmatprep.subr.bf16.mxu0 %v4957
    %5138 = vmatpush1.bf16.msra.mxu0 %v4956
    %5139 = vmatprep.subr.bf16.mxu0 %v4973
    %5140 = vmatpush1.bf16.msra.mxu0 %v4972
    %5141 = vmatprep.subr.bf16.mxu0 %v4989
    %5142 = vmatpush1.bf16.msra.mxu0 %v4988
    %5143 = vmatprep.subr.bf16.mxu0 0
    %5144 = vmatpush1.bf16.msra.mxu0 0
    %5145 = vmatprep.subr.bf16.mxu0 0
    %5146 = vmatpush1.bf16.msra.mxu0 0
    %5147 = vmatprep.subr.bf16.mxu0 0
    %5148 = vmatpush1.bf16.msra.mxu0 0
    %5149 = vmatprep.subr.bf16.mxu0 0
    %5150 = vmatpush1.bf16.msra.mxu0 0
    %5151 = vmatprep.subr.bf16.mxu0 0
    %5152 = vmatpush1.bf16.msra.mxu0 0
    %5153 = vmatprep.subr.bf16.mxu0 0
    %5154 = vmatpush1.bf16.msra.mxu0 0
    %5155 = vmatprep.subr.bf16.mxu0 0
    %5156 = vmatpush1.bf16.msra.mxu0 0
    %5157 = vmatprep.subr.bf16.mxu0 0
    %5158 = vmatpush1.bf16.msra.mxu0 0
    %5159 = vmatprep.mubr.bf16.mxu0 0
    %5160 = vmatmul.mubr.bf16.gmra.mrb[0].mxu0 %v2022
    %v5161 = vpop.f32.mrb[0].mxu0
    %v5162 = vadd.f32 0.0, %v5161
    %v5163 = vpop.f32.mrb[0].mxu0
    %v5164 = vadd.f32 0.0, %v5163
    %v5165 = vpop.f32.mrb[0].mxu0
    %v5166 = vadd.f32 0.0, %v5165
    %v5167 = vpop.f32.mrb[0].mxu0
    %v5168 = vadd.f32 0.0, %v5167
    %5169 = vdwg.mxu0
    %5170 = vmatprep.subr.bf16.mxu0 %v4879
    %5171 = vmatpush1.bf16.msra.mxu0 %v4878
    %5172 = vmatprep.subr.bf16.mxu0 %v4895
    %5173 = vmatpush1.bf16.msra.mxu0 %v4894
    %5174 = vmatprep.subr.bf16.mxu0 %v4911
    %5175 = vmatpush1.bf16.msra.mxu0 %v4910
    %5176 = vmatprep.subr.bf16.mxu0 %v4927
    %5177 = vmatpush1.bf16.msra.mxu0 %v4926
    %5178 = vmatprep.subr.bf16.mxu0 %v4943
    %5179 = vmatpush1.bf16.msra.mxu0 %v4942
    %5180 = vmatprep.subr.bf16.mxu0 %v4959
    %5181 = vmatpush1.bf16.msra.mxu0 %v4958
    %5182 = vmatprep.subr.bf16.mxu0 %v4975
    %5183 = vmatpush1.bf16.msra.mxu0 %v4974
    %5184 = vmatprep.subr.bf16.mxu0 %v4991
    %5185 = vmatpush1.bf16.msra.mxu0 %v4990
    %5186 = vmatprep.subr.bf16.mxu0 0
    %5187 = vmatpush1.bf16.msra.mxu0 0
    %5188 = vmatprep.subr.bf16.mxu0 0
    %5189 = vmatpush1.bf16.msra.mxu0 0
    %5190 = vmatprep.subr.bf16.mxu0 0
    %5191 = vmatpush1.bf16.msra.mxu0 0
    %5192 = vmatprep.subr.bf16.mxu0 0
    %5193 = vmatpush1.bf16.msra.mxu0 0
    %5194 = vmatprep.subr.bf16.mxu0 0
    %5195 = vmatpush1.bf16.msra.mxu0 0
    %5196 = vmatprep.subr.bf16.mxu0 0
    %5197 = vmatpush1.bf16.msra.mxu0 0
    %5198 = vmatprep.subr.bf16.mxu0 0
    %5199 = vmatpush1.bf16.msra.mxu0 0
    %5200 = vmatprep.subr.bf16.mxu0 0
    %5201 = vmatpush1.bf16.msra.mxu0 0
    %5202 = vmatprep.mubr.bf16.mxu0 0
    %5203 = vmatmul.mubr.bf16.gmra.mrb[0].mxu0 %v2022
    %v5204 = vpop.f32.mrb[0].mxu0
    %v5205 = vadd.f32 0.0, %v5204
    %v5206 = vpop.f32.mrb[0].mxu0
    %v5207 = vadd.f32 0.0, %v5206
    %v5208 = vpop.f32.mrb[0].mxu0
    %v5209 = vadd.f32 0.0, %v5208
    %v5210 = vpop.f32.mrb[0].mxu0
    %v5211 = vadd.f32 0.0, %v5210
    %5212 = vdwg.mxu0
    %5213 = vmatprep.subr.bf16.mxu0 %v4881
    %5214 = vmatpush1.bf16.msra.mxu0 %v4880
    %5215 = vmatprep.subr.bf16.mxu0 %v4897
    %5216 = vmatpush1.bf16.msra.mxu0 %v4896
    %5217 = vmatprep.subr.bf16.mxu0 %v4913
    %5218 = vmatpush1.bf16.msra.mxu0 %v4912
    %5219 = vmatprep.subr.bf16.mxu0 %v4929
    %5220 = vmatpush1.bf16.msra.mxu0 %v4928
    %5221 = vmatprep.subr.bf16.mxu0 %v4945
    %5222 = vmatpush1.bf16.msra.mxu0 %v4944
    %5223 = vmatprep.subr.bf16.mxu0 %v4961
    %5224 = vmatpush1.bf16.msra.mxu0 %v4960
    %5225 = vmatprep.subr.bf16.mxu0 %v4977
    %5226 = vmatpush1.bf16.msra.mxu0 %v4976
    %5227 = vmatprep.subr.bf16.mxu0 %v4993
    %5228 = vmatpush1.bf16.msra.mxu0 %v4992
    %5229 = vmatprep.subr.bf16.mxu0 0
    %5230 = vmatpush1.bf16.msra.mxu0 0
    %5231 = vmatprep.subr.bf16.mxu0 0
    %5232 = vmatpush1.bf16.msra.mxu0 0
    %5233 = vmatprep.subr.bf16.mxu0 0
    %5234 = vmatpush1.bf16.msra.mxu0 0
    %5235 = vmatprep.subr.bf16.mxu0 0
    %5236 = vmatpush1.bf16.msra.mxu0 0
    %5237 = vmatprep.subr.bf16.mxu0 0
    %5238 = vmatpush1.bf16.msra.mxu0 0
    %5239 = vmatprep.subr.bf16.mxu0 0
    %5240 = vmatpush1.bf16.msra.mxu0 0
    %5241 = vmatprep.subr.bf16.mxu0 0
    %5242 = vmatpush1.bf16.msra.mxu0 0
    %5243 = vmatprep.subr.bf16.mxu0 0
    %5244 = vmatpush1.bf16.msra.mxu0 0
    %5245 = vmatprep.mubr.bf16.mxu0 0
    %5246 = vmatmul.mubr.bf16.gmra.mrb[0].mxu0 %v2022
    %v5247 = vpop.f32.mrb[0].mxu0
    %v5248 = vadd.f32 0.0, %v5247
    %v5249 = vpop.f32.mrb[0].mxu0
    %v5250 = vadd.f32 0.0, %v5249
    %v5251 = vpop.f32.mrb[0].mxu0
    %v5252 = vadd.f32 0.0, %v5251
    %v5253 = vpop.f32.mrb[0].mxu0
    %v5254 = vadd.f32 0.0, %v5253
    %5255 = vdwg.mxu0
    %5256 = vmatprep.subr.bf16.mxu0 %v4883
    %5257 = vmatpush1.bf16.msra.mxu0 %v4882
    %5258 = vmatprep.subr.bf16.mxu0 %v4899
    %5259 = vmatpush1.bf16.msra.mxu0 %v4898
    %5260 = vmatprep.subr.bf16.mxu0 %v4915
    %5261 = vmatpush1.bf16.msra.mxu0 %v4914
    %5262 = vmatprep.subr.bf16.mxu0 %v4931
    %5263 = vmatpush1.bf16.msra.mxu0 %v4930
    %5264 = vmatprep.subr.bf16.mxu0 %v4947
    %5265 = vmatpush1.bf16.msra.mxu0 %v4946
    %5266 = vmatprep.subr.bf16.mxu0 %v4963
    %5267 = vmatpush1.bf16.msra.mxu0 %v4962
    %5268 = vmatprep.subr.bf16.mxu0 %v4979
    %5269 = vmatpush1.bf16.msra.mxu0 %v4978
    %5270 = vmatprep.subr.bf16.mxu0 %v4995
    %5271 = vmatpush1.bf16.msra.mxu0 %v4994
    %5272 = vmatprep.subr.bf16.mxu0 0
    %5273 = vmatpush1.bf16.msra.mxu0 0
    %5274 = vmatprep.subr.bf16.mxu0 0
    %5275 = vmatpush1.bf16.msra.mxu0 0
    %5276 = vmatprep.subr.bf16.mxu0 0
    %5277 = vmatpush1.bf16.msra.mxu0 0
    %5278 = vmatprep.subr.bf16.mxu0 0
    %5279 = vmatpush1.bf16.msra.mxu0 0
    %5280 = vmatprep.subr.bf16.mxu0 0
    %5281 = vmatpush1.bf16.msra.mxu0 0
    %5282 = vmatprep.subr.bf16.mxu0 0
    %5283 = vmatpush1.bf16.msra.mxu0 0
    %5284 = vmatprep.subr.bf16.mxu0 0
    %5285 = vmatpush1.bf16.msra.mxu0 0
    %5286 = vmatprep.subr.bf16.mxu0 0
    %5287 = vmatpush1.bf16.msra.mxu0 0
    %5288 = vmatprep.mubr.bf16.mxu0 0
    %5289 = vmatmul.mubr.bf16.gmra.mrb[0].mxu0 %v2022
    %v5290 = vpop.f32.mrb[0].mxu0
    %v5291 = vadd.f32 0.0, %v5290
    %v5292 = vpop.f32.mrb[0].mxu0
    %v5293 = vadd.f32 0.0, %v5292
    %v5294 = vpop.f32.mrb[0].mxu0
    %v5295 = vadd.f32 0.0, %v5294
    %v5296 = vpop.f32.mrb[0].mxu0
    %v5297 = vadd.f32 0.0, %v5296
    %5298 = vdwg.mxu0
    %5299 = vmatprep.subr.bf16.mxu0 %v4885
    %5300 = vmatpush1.bf16.msra.mxu0 %v4884
    %5301 = vmatprep.subr.bf16.mxu0 %v4901
    %5302 = vmatpush1.bf16.msra.mxu0 %v4900
    %5303 = vmatprep.subr.bf16.mxu0 %v4917
    %5304 = vmatpush1.bf16.msra.mxu0 %v4916
    %5305 = vmatprep.subr.bf16.mxu0 %v4933
    %5306 = vmatpush1.bf16.msra.mxu0 %v4932
    %5307 = vmatprep.subr.bf16.mxu0 %v4949
    %5308 = vmatpush1.bf16.msra.mxu0 %v4948
    %5309 = vmatprep.subr.bf16.mxu0 %v4965
    %5310 = vmatpush1.bf16.msra.mxu0 %v4964
    %5311 = vmatprep.subr.bf16.mxu0 %v4981
    %5312 = vmatpush1.bf16.msra.mxu0 %v4980
    %5313 = vmatprep.subr.bf16.mxu0 %v4997
    %5314 = vmatpush1.bf16.msra.mxu0 %v4996
    %5315 = vmatprep.subr.bf16.mxu0 0
    %5316 = vmatpush1.bf16.msra.mxu0 0
    %5317 = vmatprep.subr.bf16.mxu0 0
    %5318 = vmatpush1.bf16.msra.mxu0 0
    %5319 = vmatprep.subr.bf16.mxu0 0
    %5320 = vmatpush1.bf16.msra.mxu0 0
    %5321 = vmatprep.subr.bf16.mxu0 0
    %5322 = vmatpush1.bf16.msra.mxu0 0
    %5323 = vmatprep.subr.bf16.mxu0 0
    %5324 = vmatpush1.bf16.msra.mxu0 0
    %5325 = vmatprep.subr.bf16.mxu0 0
    %5326 = vmatpush1.bf16.msra.mxu0 0
    %5327 = vmatprep.subr.bf16.mxu0 0
    %5328 = vmatpush1.bf16.msra.mxu0 0
    %5329 = vmatprep.subr.bf16.mxu0 0
    %5330 = vmatpush1.bf16.msra.mxu0 0
    %5331 = vmatprep.mubr.bf16.mxu0 0
    %5332 = vmatmul.mubr.bf16.gmra.mrb[0].mxu0 %v2022
    %v5333 = vpop.f32.mrb[0].mxu0
    %v5334 = vadd.f32 0.0, %v5333
    %v5335 = vpop.f32.mrb[0].mxu0
    %v5336 = vadd.f32 0.0, %v5335
    %v5337 = vpop.f32.mrb[0].mxu0
    %v5338 = vadd.f32 0.0, %v5337
    %v5339 = vpop.f32.mrb[0].mxu0
    %v5340 = vadd.f32 0.0, %v5339
    %5341 = vdwg.mxu0
    %5342 = vset.pattern.permute.xlu0 64
    %5343 = vperm.xlu0 %5342, %v2005
    %v5344 = vpop.permute.xlu0 %5343
    %5346 = vset.pattern.permute.xlu0 64
    %5347 = vperm.xlu0 %5346, %v2007
    %v5348 = vpop.permute.xlu0 %5347
    %v5350 = vmul.f32 %v5344, %v5033
    %v5351 = vmul.f32 %v5348, %v5037
    %v5352 = vadd.f32 %v4831, %v5350
    %v5353 = vadd.f32 %v4832, %v5351
    %5354 = vset.pattern.permute.xlu0 65
    %5355 = vperm.xlu0 %5354, %v2005
    %v5356 = vpop.permute.xlu0 %5355
    %5358 = vset.pattern.permute.xlu0 65
    %5359 = vperm.xlu0 %5358, %v2007
    %v5360 = vpop.permute.xlu0 %5359
    %v5362 = vmul.f32 %v5356, %v5035
    %v5363 = vmul.f32 %v5360, %v5039
    %v5364 = vadd.f32 %v5352, %v5362
    %v5365 = vadd.f32 %v5353, %v5363
    %5366 = vset.pattern.permute.xlu0 66
    %5367 = vperm.xlu0 %5366, %v2005
    %v5368 = vpop.permute.xlu0 %5367
    %5370 = vset.pattern.permute.xlu0 66
    %5371 = vperm.xlu0 %5370, %v2007
    %v5372 = vpop.permute.xlu0 %5371
    %v5374 = vmul.f32 %v5368, %v5076
    %v5375 = vmul.f32 %v5372, %v5080
    %v5376 = vadd.f32 %v5364, %v5374
    %v5377 = vadd.f32 %v5365, %v5375
    %5378 = vset.pattern.permute.xlu0 67
    %5379 = vperm.xlu0 %5378, %v2005
    %v5380 = vpop.permute.xlu0 %5379
    %5382 = vset.pattern.permute.xlu0 67
    %5383 = vperm.xlu0 %5382, %v2007
    %v5384 = vpop.permute.xlu0 %5383
    %v5386 = vmul.f32 %v5380, %v5078
    %v5387 = vmul.f32 %v5384, %v5082
    %v5388 = vadd.f32 %v5376, %v5386
    %v5389 = vadd.f32 %v5377, %v5387
    %5390 = vset.pattern.permute.xlu0 68
    %5391 = vperm.xlu0 %5390, %v2005
    %v5392 = vpop.permute.xlu0 %5391
    %5394 = vset.pattern.permute.xlu0 68
    %5395 = vperm.xlu0 %5394, %v2007
    %v5396 = vpop.permute.xlu0 %5395
    %v5398 = vmul.f32 %v5392, %v5119
    %v5399 = vmul.f32 %v5396, %v5123
    %v5400 = vadd.f32 %v5388, %v5398
    %v5401 = vadd.f32 %v5389, %v5399
    %5402 = vset.pattern.permute.xlu0 69
    %5403 = vperm.xlu0 %5402, %v2005
    %v5404 = vpop.permute.xlu0 %5403
    %5406 = vset.pattern.permute.xlu0 69
    %5407 = vperm.xlu0 %5406, %v2007
    %v5408 = vpop.permute.xlu0 %5407
    %v5410 = vmul.f32 %v5404, %v5121
    %v5411 = vmul.f32 %v5408, %v5125
    %v5412 = vadd.f32 %v5400, %v5410
    %v5413 = vadd.f32 %v5401, %v5411
    %5414 = vset.pattern.permute.xlu0 70
    %5415 = vperm.xlu0 %5414, %v2005
    %v5416 = vpop.permute.xlu0 %5415
    %5418 = vset.pattern.permute.xlu0 70
    %5419 = vperm.xlu0 %5418, %v2007
    %v5420 = vpop.permute.xlu0 %5419
    %v5422 = vmul.f32 %v5416, %v5162
    %v5423 = vmul.f32 %v5420, %v5166
    %v5424 = vadd.f32 %v5412, %v5422
    %v5425 = vadd.f32 %v5413, %v5423
    %5426 = vset.pattern.permute.xlu0 71
    %5427 = vperm.xlu0 %5426, %v2005
    %v5428 = vpop.permute.xlu0 %5427
    %5430 = vset.pattern.permute.xlu0 71
    %5431 = vperm.xlu0 %5430, %v2007
    %v5432 = vpop.permute.xlu0 %5431
    %v5434 = vmul.f32 %v5428, %v5164
    %v5435 = vmul.f32 %v5432, %v5168
    %v5436 = vadd.f32 %v5424, %v5434
    %v5437 = vadd.f32 %v5425, %v5435
    %5438 = vset.pattern.permute.xlu0 72
    %5439 = vperm.xlu0 %5438, %v2005
    %v5440 = vpop.permute.xlu0 %5439
    %5442 = vset.pattern.permute.xlu0 72
    %5443 = vperm.xlu0 %5442, %v2007
    %v5444 = vpop.permute.xlu0 %5443
    %v5446 = vmul.f32 %v5440, %v5205
    %v5447 = vmul.f32 %v5444, %v5209
    %v5448 = vadd.f32 %v5436, %v5446
    %v5449 = vadd.f32 %v5437, %v5447
    %5450 = vset.pattern.permute.xlu0 73
    %5451 = vperm.xlu0 %5450, %v2005
    %v5452 = vpop.permute.xlu0 %5451
    %5454 = vset.pattern.permute.xlu0 73
    %5455 = vperm.xlu0 %5454, %v2007
    %v5456 = vpop.permute.xlu0 %5455
    %v5458 = vmul.f32 %v5452, %v5207
    %v5459 = vmul.f32 %v5456, %v5211
    %v5460 = vadd.f32 %v5448, %v5458
    %v5461 = vadd.f32 %v5449, %v5459
    %5462 = vset.pattern.permute.xlu0 74
    %5463 = vperm.xlu0 %5462, %v2005
    %v5464 = vpop.permute.xlu0 %5463
    %5466 = vset.pattern.permute.xlu0 74
    %5467 = vperm.xlu0 %5466, %v2007
    %v5468 = vpop.permute.xlu0 %5467
    %v5470 = vmul.f32 %v5464, %v5248
    %v5471 = vmul.f32 %v5468, %v5252
    %v5472 = vadd.f32 %v5460, %v5470
    %v5473 = vadd.f32 %v5461, %v5471
    %5474 = vset.pattern.permute.xlu0 75
    %5475 = vperm.xlu0 %5474, %v2005
    %v5476 = vpop.permute.xlu0 %5475
    %5478 = vset.pattern.permute.xlu0 75
    %5479 = vperm.xlu0 %5478, %v2007
    %v5480 = vpop.permute.xlu0 %5479
    %v5482 = vmul.f32 %v5476, %v5250
    %v5483 = vmul.f32 %v5480, %v5254
    %v5484 = vadd.f32 %v5472, %v5482
    %v5485 = vadd.f32 %v5473, %v5483
    %5486 = vset.pattern.permute.xlu0 76
    %5487 = vperm.xlu0 %5486, %v2005
    %v5488 = vpop.permute.xlu0 %5487
    %5490 = vset.pattern.permute.xlu0 76
    %5491 = vperm.xlu0 %5490, %v2007
    %v5492 = vpop.permute.xlu0 %5491
    %v5494 = vmul.f32 %v5488, %v5291
    %v5495 = vmul.f32 %v5492, %v5295
    %v5496 = vadd.f32 %v5484, %v5494
    %v5497 = vadd.f32 %v5485, %v5495
    %5498 = vset.pattern.permute.xlu0 77
    %5499 = vperm.xlu0 %5498, %v2005
    %v5500 = vpop.permute.xlu0 %5499
    %5502 = vset.pattern.permute.xlu0 77
    %5503 = vperm.xlu0 %5502, %v2007
    %v5504 = vpop.permute.xlu0 %5503
    %v5506 = vmul.f32 %v5500, %v5293
    %v5507 = vmul.f32 %v5504, %v5297
    %v5508 = vadd.f32 %v5496, %v5506
    %v5509 = vadd.f32 %v5497, %v5507
    %5510 = vset.pattern.permute.xlu0 78
    %5511 = vperm.xlu0 %5510, %v2005
    %v5512 = vpop.permute.xlu0 %5511
    %5514 = vset.pattern.permute.xlu0 78
    %5515 = vperm.xlu0 %5514, %v2007
    %v5516 = vpop.permute.xlu0 %5515
    %v5518 = vmul.f32 %v5512, %v5334
    %v5519 = vmul.f32 %v5516, %v5338
    %v5520 = vadd.f32 %v5508, %v5518
    %v5521 = vadd.f32 %v5509, %v5519
    %5522 = vset.pattern.permute.xlu0 79
    %5523 = vperm.xlu0 %5522, %v2005
    %v5524 = vpop.permute.xlu0 %5523
    %5526 = vset.pattern.permute.xlu0 79
    %5527 = vperm.xlu0 %5526, %v2007
    %v5528 = vpop.permute.xlu0 %5527
    %v5530 = vmul.f32 %v5524, %v5336
    %v5531 = vmul.f32 %v5528, %v5340
    %v5532 = vadd.f32 %v5520, %v5530
    %v5533 = vadd.f32 %v5521, %v5531
    %s5534 = sshll.u32 %s2061, 4
    %5535 = dma.done %s207, %s5534
    %v5536 = vld [vmem:[%s206] sm:$0xff]
    %v5537 = vld [vmem:[%s206 + $0x8] sm:$0xff]
    %v5538 = vld [vmem:[%s206 + $0x10] sm:$0xff]
    %v5539 = vld [vmem:[%s206 + $0x18] sm:$0xff]
    %v5540 = vld [vmem:[%s206 + $0x20] sm:$0xff]
    %v5541 = vld [vmem:[%s206 + $0x28] sm:$0xff]
    %v5542 = vld [vmem:[%s206 + $0x30] sm:$0xff]
    %v5543 = vld [vmem:[%s206 + $0x38] sm:$0xff]
    %v5544 = vld [vmem:[%s206 + $0x40] sm:$0xff]
    %v5545 = vld [vmem:[%s206 + $0x48] sm:$0xff]
    %v5546 = vld [vmem:[%s206 + $0x50] sm:$0xff]
    %v5547 = vld [vmem:[%s206 + $0x58] sm:$0xff]
    %v5548 = vld [vmem:[%s206 + $0x60] sm:$0xff]
    %v5549 = vld [vmem:[%s206 + $0x68] sm:$0xff]
    %v5550 = vld [vmem:[%s206 + $0x70] sm:$0xff]
    %v5551 = vld [vmem:[%s206 + $0x78] sm:$0xff]
    %v5552 = vld [vmem:[%s206 + $0x80] sm:$0xff]
    %v5553 = vld [vmem:[%s206 + $0x88] sm:$0xff]
    %v5554 = vld [vmem:[%s206 + $0x90] sm:$0xff]
    %v5555 = vld [vmem:[%s206 + $0x98] sm:$0xff]
    %v5556 = vld [vmem:[%s206 + $0xa0] sm:$0xff]
    %v5557 = vld [vmem:[%s206 + $0xa8] sm:$0xff]
    %v5558 = vld [vmem:[%s206 + $0xb0] sm:$0xff]
    %v5559 = vld [vmem:[%s206 + $0xb8] sm:$0xff]
    %v5560 = vld [vmem:[%s206 + $0xc0] sm:$0xff]
    %v5561 = vld [vmem:[%s206 + $0xc8] sm:$0xff]
    %v5562 = vld [vmem:[%s206 + $0xd0] sm:$0xff]
    %v5563 = vld [vmem:[%s206 + $0xd8] sm:$0xff]
    %v5564 = vld [vmem:[%s206 + $0xe0] sm:$0xff]
    %v5565 = vld [vmem:[%s206 + $0xe8] sm:$0xff]
    %v5566 = vld [vmem:[%s206 + $0xf0] sm:$0xff]
    %v5567 = vld [vmem:[%s206 + $0xf8] sm:$0xff]
    %v5568 = vld [vmem:[%s206 + $0x100] sm:$0xff]
    %v5569 = vld [vmem:[%s206 + $0x108] sm:$0xff]
    %v5570 = vld [vmem:[%s206 + $0x110] sm:$0xff]
    %v5571 = vld [vmem:[%s206 + $0x118] sm:$0xff]
    %v5572 = vld [vmem:[%s206 + $0x120] sm:$0xff]
    %v5573 = vld [vmem:[%s206 + $0x128] sm:$0xff]
    %v5574 = vld [vmem:[%s206 + $0x130] sm:$0xff]
    %v5575 = vld [vmem:[%s206 + $0x138] sm:$0xff]
    %v5576 = vld [vmem:[%s206 + $0x140] sm:$0xff]
    %v5577 = vld [vmem:[%s206 + $0x148] sm:$0xff]
    %v5578 = vld [vmem:[%s206 + $0x150] sm:$0xff]
    %v5579 = vld [vmem:[%s206 + $0x158] sm:$0xff]
    %v5580 = vld [vmem:[%s206 + $0x160] sm:$0xff]
    %v5581 = vld [vmem:[%s206 + $0x168] sm:$0xff]
    %v5582 = vld [vmem:[%s206 + $0x170] sm:$0xff]
    %v5583 = vld [vmem:[%s206 + $0x178] sm:$0xff]
    %v5584 = vld [vmem:[%s206 + $0x180] sm:$0xff]
    %v5585 = vld [vmem:[%s206 + $0x188] sm:$0xff]
    %v5586 = vld [vmem:[%s206 + $0x190] sm:$0xff]
    %v5587 = vld [vmem:[%s206 + $0x198] sm:$0xff]
    %v5588 = vld [vmem:[%s206 + $0x1a0] sm:$0xff]
    %v5589 = vld [vmem:[%s206 + $0x1a8] sm:$0xff]
    %v5590 = vld [vmem:[%s206 + $0x1b0] sm:$0xff]
    %v5591 = vld [vmem:[%s206 + $0x1b8] sm:$0xff]
    %v5592 = vld [vmem:[%s206 + $0x1c0] sm:$0xff]
    %v5593 = vld [vmem:[%s206 + $0x1c8] sm:$0xff]
    %v5594 = vld [vmem:[%s206 + $0x1d0] sm:$0xff]
    %v5595 = vld [vmem:[%s206 + $0x1d8] sm:$0xff]
    %v5596 = vld [vmem:[%s206 + $0x1e0] sm:$0xff]
    %v5597 = vld [vmem:[%s206 + $0x1e8] sm:$0xff]
    %v5598 = vld [vmem:[%s206 + $0x1f0] sm:$0xff]
    %v5599 = vld [vmem:[%s206 + $0x1f8] sm:$0xff]
    %v5600 = vld [vmem:[%s206 + $0x200] sm:$0xff]
    %v5601 = vld [vmem:[%s206 + $0x208] sm:$0xff]
    %v5602 = vld [vmem:[%s206 + $0x210] sm:$0xff]
    %v5603 = vld [vmem:[%s206 + $0x218] sm:$0xff]
    %v5604 = vld [vmem:[%s206 + $0x220] sm:$0xff]
    %v5605 = vld [vmem:[%s206 + $0x228] sm:$0xff]
    %v5606 = vld [vmem:[%s206 + $0x230] sm:$0xff]
    %v5607 = vld [vmem:[%s206 + $0x238] sm:$0xff]
    %v5608 = vld [vmem:[%s206 + $0x240] sm:$0xff]
    %v5609 = vld [vmem:[%s206 + $0x248] sm:$0xff]
    %v5610 = vld [vmem:[%s206 + $0x250] sm:$0xff]
    %v5611 = vld [vmem:[%s206 + $0x258] sm:$0xff]
    %v5612 = vld [vmem:[%s206 + $0x260] sm:$0xff]
    %v5613 = vld [vmem:[%s206 + $0x268] sm:$0xff]
    %v5614 = vld [vmem:[%s206 + $0x270] sm:$0xff]
    %v5615 = vld [vmem:[%s206 + $0x278] sm:$0xff]
    %v5616 = vld [vmem:[%s206 + $0x280] sm:$0xff]
    %v5617 = vld [vmem:[%s206 + $0x288] sm:$0xff]
    %v5618 = vld [vmem:[%s206 + $0x290] sm:$0xff]
    %v5619 = vld [vmem:[%s206 + $0x298] sm:$0xff]
    %v5620 = vld [vmem:[%s206 + $0x2a0] sm:$0xff]
    %v5621 = vld [vmem:[%s206 + $0x2a8] sm:$0xff]
    %v5622 = vld [vmem:[%s206 + $0x2b0] sm:$0xff]
    %v5623 = vld [vmem:[%s206 + $0x2b8] sm:$0xff]
    %v5624 = vld [vmem:[%s206 + $0x2c0] sm:$0xff]
    %v5625 = vld [vmem:[%s206 + $0x2c8] sm:$0xff]
    %v5626 = vld [vmem:[%s206 + $0x2d0] sm:$0xff]
    %v5627 = vld [vmem:[%s206 + $0x2d8] sm:$0xff]
    %v5628 = vld [vmem:[%s206 + $0x2e0] sm:$0xff]
    %v5629 = vld [vmem:[%s206 + $0x2e8] sm:$0xff]
    %v5630 = vld [vmem:[%s206 + $0x2f0] sm:$0xff]
    %v5631 = vld [vmem:[%s206 + $0x2f8] sm:$0xff]
    %v5632 = vld [vmem:[%s206 + $0x300] sm:$0xff]
    %v5633 = vld [vmem:[%s206 + $0x308] sm:$0xff]
    %v5634 = vld [vmem:[%s206 + $0x310] sm:$0xff]
    %v5635 = vld [vmem:[%s206 + $0x318] sm:$0xff]
    %v5636 = vld [vmem:[%s206 + $0x320] sm:$0xff]
    %v5637 = vld [vmem:[%s206 + $0x328] sm:$0xff]
    %v5638 = vld [vmem:[%s206 + $0x330] sm:$0xff]
    %v5639 = vld [vmem:[%s206 + $0x338] sm:$0xff]
    %v5640 = vld [vmem:[%s206 + $0x340] sm:$0xff]
    %v5641 = vld [vmem:[%s206 + $0x348] sm:$0xff]
    %v5642 = vld [vmem:[%s206 + $0x350] sm:$0xff]
    %v5643 = vld [vmem:[%s206 + $0x358] sm:$0xff]
    %v5644 = vld [vmem:[%s206 + $0x360] sm:$0xff]
    %v5645 = vld [vmem:[%s206 + $0x368] sm:$0xff]
    %v5646 = vld [vmem:[%s206 + $0x370] sm:$0xff]
    %v5647 = vld [vmem:[%s206 + $0x378] sm:$0xff]
    %v5648 = vld [vmem:[%s206 + $0x380] sm:$0xff]
    %v5649 = vld [vmem:[%s206 + $0x388] sm:$0xff]
    %v5650 = vld [vmem:[%s206 + $0x390] sm:$0xff]
    %v5651 = vld [vmem:[%s206 + $0x398] sm:$0xff]
    %v5652 = vld [vmem:[%s206 + $0x3a0] sm:$0xff]
    %v5653 = vld [vmem:[%s206 + $0x3a8] sm:$0xff]
    %v5654 = vld [vmem:[%s206 + $0x3b0] sm:$0xff]
    %v5655 = vld [vmem:[%s206 + $0x3b8] sm:$0xff]
    %v5656 = vld [vmem:[%s206 + $0x3c0] sm:$0xff]
    %v5657 = vld [vmem:[%s206 + $0x3c8] sm:$0xff]
    %v5658 = vld [vmem:[%s206 + $0x3d0] sm:$0xff]
    %v5659 = vld [vmem:[%s206 + $0x3d8] sm:$0xff]
    %v5660 = vld [vmem:[%s206 + $0x3e0] sm:$0xff]
    %v5661 = vld [vmem:[%s206 + $0x3e8] sm:$0xff]
    %v5662 = vld [vmem:[%s206 + $0x3f0] sm:$0xff]
    %v5663 = vld [vmem:[%s206 + $0x3f8] sm:$0xff]
    %5664 = vmatprep.subr.bf16.mxu0 %v5537
    %5665 = vmatpush1.bf16.msra.mxu0 %v5536
    %5666 = vmatprep.subr.bf16.mxu0 %v5553
    %5667 = vmatpush1.bf16.msra.mxu0 %v5552
    %5668 = vmatprep.subr.bf16.mxu0 %v5569
    %5669 = vmatpush1.bf16.msra.mxu0 %v5568
    %5670 = vmatprep.subr.bf16.mxu0 %v5585
    %5671 = vmatpush1.bf16.msra.mxu0 %v5584
    %5672 = vmatprep.subr.bf16.mxu0 %v5601
    %5673 = vmatpush1.bf16.msra.mxu0 %v5600
    %5674 = vmatprep.subr.bf16.mxu0 %v5617
    %5675 = vmatpush1.bf16.msra.mxu0 %v5616
    %5676 = vmatprep.subr.bf16.mxu0 %v5633
    %5677 = vmatpush1.bf16.msra.mxu0 %v5632
    %5678 = vmatprep.subr.bf16.mxu0 %v5649
    %5679 = vmatpush1.bf16.msra.mxu0 %v5648
    %5680 = vmatprep.subr.bf16.mxu0 0
    %5681 = vmatpush1.bf16.msra.mxu0 0
    %5682 = vmatprep.subr.bf16.mxu0 0
    %5683 = vmatpush1.bf16.msra.mxu0 0
    %5684 = vmatprep.subr.bf16.mxu0 0
    %5685 = vmatpush1.bf16.msra.mxu0 0
    %5686 = vmatprep.subr.bf16.mxu0 0
    %5687 = vmatpush1.bf16.msra.mxu0 0
    %5688 = vmatprep.subr.bf16.mxu0 0
    %5689 = vmatpush1.bf16.msra.mxu0 0
    %5690 = vmatprep.subr.bf16.mxu0 0
    %5691 = vmatpush1.bf16.msra.mxu0 0
    %5692 = vmatprep.subr.bf16.mxu0 0
    %5693 = vmatpush1.bf16.msra.mxu0 0
    %5694 = vmatprep.subr.bf16.mxu0 0
    %5695 = vmatpush1.bf16.msra.mxu0 0
    %5696 = vmatprep.mubr.bf16.mxu0 0
    %5697 = vmatmul.mubr.bf16.gmra.mrb[0].mxu0 %v2022
    %v5698 = vpop.f32.mrb[0].mxu0
    %v5699 = vadd.f32 0.0, %v5698
    %v5700 = vpop.f32.mrb[0].mxu0
    %v5701 = vadd.f32 0.0, %v5700
    %v5702 = vpop.f32.mrb[0].mxu0
    %v5703 = vadd.f32 0.0, %v5702
    %v5704 = vpop.f32.mrb[0].mxu0
    %v5705 = vadd.f32 0.0, %v5704
    %5706 = vdwg.mxu0
    %5707 = vmatprep.subr.bf16.mxu0 %v5539
    %5708 = vmatpush1.bf16.msra.mxu0 %v5538
    %5709 = vmatprep.subr.bf16.mxu0 %v5555
    %5710 = vmatpush1.bf16.msra.mxu0 %v5554
    %5711 = vmatprep.subr.bf16.mxu0 %v5571
    %5712 = vmatpush1.bf16.msra.mxu0 %v5570
    %5713 = vmatprep.subr.bf16.mxu0 %v5587
    %5714 = vmatpush1.bf16.msra.mxu0 %v5586
    %5715 = vmatprep.subr.bf16.mxu0 %v5603
    %5716 = vmatpush1.bf16.msra.mxu0 %v5602
    %5717 = vmatprep.subr.bf16.mxu0 %v5619
    %5718 = vmatpush1.bf16.msra.mxu0 %v5618
    %5719 = vmatprep.subr.bf16.mxu0 %v5635
    %5720 = vmatpush1.bf16.msra.mxu0 %v5634
    %5721 = vmatprep.subr.bf16.mxu0 %v5651
    %5722 = vmatpush1.bf16.msra.mxu0 %v5650
    %5723 = vmatprep.subr.bf16.mxu0 0
    %5724 = vmatpush1.bf16.msra.mxu0 0
    %5725 = vmatprep.subr.bf16.mxu0 0
    %5726 = vmatpush1.bf16.msra.mxu0 0
    %5727 = vmatprep.subr.bf16.mxu0 0
    %5728 = vmatpush1.bf16.msra.mxu0 0
    %5729 = vmatprep.subr.bf16.mxu0 0
    %5730 = vmatpush1.bf16.msra.mxu0 0
    %5731 = vmatprep.subr.bf16.mxu0 0
    %5732 = vmatpush1.bf16.msra.mxu0 0
    %5733 = vmatprep.subr.bf16.mxu0 0
    %5734 = vmatpush1.bf16.msra.mxu0 0
    %5735 = vmatprep.subr.bf16.mxu0 0
    %5736 = vmatpush1.bf16.msra.mxu0 0
    %5737 = vmatprep.subr.bf16.mxu0 0
    %5738 = vmatpush1.bf16.msra.mxu0 0
    %5739 = vmatprep.mubr.bf16.mxu0 0
    %5740 = vmatmul.mubr.bf16.gmra.mrb[0].mxu0 %v2022
    %v5741 = vpop.f32.mrb[0].mxu0
    %v5742 = vadd.f32 0.0, %v5741
    %v5743 = vpop.f32.mrb[0].mxu0
    %v5744 = vadd.f32 0.0, %v5743
    %v5745 = vpop.f32.mrb[0].mxu0
    %v5746 = vadd.f32 0.0, %v5745
    %v5747 = vpop.f32.mrb[0].mxu0
    %v5748 = vadd.f32 0.0, %v5747
    %5749 = vdwg.mxu0
    %5750 = vmatprep.subr.bf16.mxu0 %v5541
    %5751 = vmatpush1.bf16.msra.mxu0 %v5540
    %5752 = vmatprep.subr.bf16.mxu0 %v5557
    %5753 = vmatpush1.bf16.msra.mxu0 %v5556
    %5754 = vmatprep.subr.bf16.mxu0 %v5573
    %5755 = vmatpush1.bf16.msra.mxu0 %v5572
    %5756 = vmatprep.subr.bf16.mxu0 %v5589
    %5757 = vmatpush1.bf16.msra.mxu0 %v5588
    %5758 = vmatprep.subr.bf16.mxu0 %v5605
    %5759 = vmatpush1.bf16.msra.mxu0 %v5604
    %5760 = vmatprep.subr.bf16.mxu0 %v5621
    %5761 = vmatpush1.bf16.msra.mxu0 %v5620
    %5762 = vmatprep.subr.bf16.mxu0 %v5637
    %5763 = vmatpush1.bf16.msra.mxu0 %v5636
    %5764 = vmatprep.subr.bf16.mxu0 %v5653
    %5765 = vmatpush1.bf16.msra.mxu0 %v5652
    %5766 = vmatprep.subr.bf16.mxu0 0
    %5767 = vmatpush1.bf16.msra.mxu0 0
    %5768 = vmatprep.subr.bf16.mxu0 0
    %5769 = vmatpush1.bf16.msra.mxu0 0
    %5770 = vmatprep.subr.bf16.mxu0 0
    %5771 = vmatpush1.bf16.msra.mxu0 0
    %5772 = vmatprep.subr.bf16.mxu0 0
    %5773 = vmatpush1.bf16.msra.mxu0 0
    %5774 = vmatprep.subr.bf16.mxu0 0
    %5775 = vmatpush1.bf16.msra.mxu0 0
    %5776 = vmatprep.subr.bf16.mxu0 0
    %5777 = vmatpush1.bf16.msra.mxu0 0
    %5778 = vmatprep.subr.bf16.mxu0 0
    %5779 = vmatpush1.bf16.msra.mxu0 0
    %5780 = vmatprep.subr.bf16.mxu0 0
    %5781 = vmatpush1.bf16.msra.mxu0 0
    %5782 = vmatprep.mubr.bf16.mxu0 0
    %5783 = vmatmul.mubr.bf16.gmra.mrb[0].mxu0 %v2022
    %v5784 = vpop.f32.mrb[0].mxu0
    %v5785 = vadd.f32 0.0, %v5784
    %v5786 = vpop.f32.mrb[0].mxu0
    %v5787 = vadd.f32 0.0, %v5786
    %v5788 = vpop.f32.mrb[0].mxu0
    %v5789 = vadd.f32 0.0, %v5788
    %v5790 = vpop.f32.mrb[0].mxu0
    %v5791 = vadd.f32 0.0, %v5790
    %5792 = vdwg.mxu0
    %5793 = vmatprep.subr.bf16.mxu0 %v5543
    %5794 = vmatpush1.bf16.msra.mxu0 %v5542
    %5795 = vmatprep.subr.bf16.mxu0 %v5559
    %5796 = vmatpush1.bf16.msra.mxu0 %v5558
    %5797 = vmatprep.subr.bf16.mxu0 %v5575
    %5798 = vmatpush1.bf16.msra.mxu0 %v5574
    %5799 = vmatprep.subr.bf16.mxu0 %v5591
    %5800 = vmatpush1.bf16.msra.mxu0 %v5590
    %5801 = vmatprep.subr.bf16.mxu0 %v5607
    %5802 = vmatpush1.bf16.msra.mxu0 %v5606
    %5803 = vmatprep.subr.bf16.mxu0 %v5623
    %5804 = vmatpush1.bf16.msra.mxu0 %v5622
    %5805 = vmatprep.subr.bf16.mxu0 %v5639
    %5806 = vmatpush1.bf16.msra.mxu0 %v5638
    %5807 = vmatprep.subr.bf16.mxu0 %v5655
    %5808 = vmatpush1.bf16.msra.mxu0 %v5654
    %5809 = vmatprep.subr.bf16.mxu0 0
    %5810 = vmatpush1.bf16.msra.mxu0 0
    %5811 = vmatprep.subr.bf16.mxu0 0
    %5812 = vmatpush1.bf16.msra.mxu0 0
    %5813 = vmatprep.subr.bf16.mxu0 0
    %5814 = vmatpush1.bf16.msra.mxu0 0
    %5815 = vmatprep.subr.bf16.mxu0 0
    %5816 = vmatpush1.bf16.msra.mxu0 0
    %5817 = vmatprep.subr.bf16.mxu0 0
    %5818 = vmatpush1.bf16.msra.mxu0 0
    %5819 = vmatprep.subr.bf16.mxu0 0
    %5820 = vmatpush1.bf16.msra.mxu0 0
    %5821 = vmatprep.subr.bf16.mxu0 0
    %5822 = vmatpush1.bf16.msra.mxu0 0
    %5823 = vmatprep.subr.bf16.mxu0 0
    %5824 = vmatpush1.bf16.msra.mxu0 0
    %5825 = vmatprep.mubr.bf16.mxu0 0
    %5826 = vmatmul.mubr.bf16.gmra.mrb[0].mxu0 %v2022
    %v5827 = vpop.f32.mrb[0].mxu0
    %v5828 = vadd.f32 0.0, %v5827
    %v5829 = vpop.f32.mrb[0].mxu0
    %v5830 = vadd.f32 0.0, %v5829
    %v5831 = vpop.f32.mrb[0].mxu0
    %v5832 = vadd.f32 0.0, %v5831
    %v5833 = vpop.f32.mrb[0].mxu0
    %v5834 = vadd.f32 0.0, %v5833
    %5835 = vdwg.mxu0
    %5836 = vmatprep.subr.bf16.mxu0 %v5545
    %5837 = vmatpush1.bf16.msra.mxu0 %v5544
    %5838 = vmatprep.subr.bf16.mxu0 %v5561
    %5839 = vmatpush1.bf16.msra.mxu0 %v5560
    %5840 = vmatprep.subr.bf16.mxu0 %v5577
    %5841 = vmatpush1.bf16.msra.mxu0 %v5576
    %5842 = vmatprep.subr.bf16.mxu0 %v5593
    %5843 = vmatpush1.bf16.msra.mxu0 %v5592
    %5844 = vmatprep.subr.bf16.mxu0 %v5609
    %5845 = vmatpush1.bf16.msra.mxu0 %v5608
    %5846 = vmatprep.subr.bf16.mxu0 %v5625
    %5847 = vmatpush1.bf16.msra.mxu0 %v5624
    %5848 = vmatprep.subr.bf16.mxu0 %v5641
    %5849 = vmatpush1.bf16.msra.mxu0 %v5640
    %5850 = vmatprep.subr.bf16.mxu0 %v5657
    %5851 = vmatpush1.bf16.msra.mxu0 %v5656
    %5852 = vmatprep.subr.bf16.mxu0 0
    %5853 = vmatpush1.bf16.msra.mxu0 0
    %5854 = vmatprep.subr.bf16.mxu0 0
    %5855 = vmatpush1.bf16.msra.mxu0 0
    %5856 = vmatprep.subr.bf16.mxu0 0
    %5857 = vmatpush1.bf16.msra.mxu0 0
    %5858 = vmatprep.subr.bf16.mxu0 0
    %5859 = vmatpush1.bf16.msra.mxu0 0
    %5860 = vmatprep.subr.bf16.mxu0 0
    %5861 = vmatpush1.bf16.msra.mxu0 0
    %5862 = vmatprep.subr.bf16.mxu0 0
    %5863 = vmatpush1.bf16.msra.mxu0 0
    %5864 = vmatprep.subr.bf16.mxu0 0
    %5865 = vmatpush1.bf16.msra.mxu0 0
    %5866 = vmatprep.subr.bf16.mxu0 0
    %5867 = vmatpush1.bf16.msra.mxu0 0
    %5868 = vmatprep.mubr.bf16.mxu0 0
    %5869 = vmatmul.mubr.bf16.gmra.mrb[0].mxu0 %v2022
    %v5870 = vpop.f32.mrb[0].mxu0
    %v5871 = vadd.f32 0.0, %v5870
    %v5872 = vpop.f32.mrb[0].mxu0
    %v5873 = vadd.f32 0.0, %v5872
    %v5874 = vpop.f32.mrb[0].mxu0
    %v5875 = vadd.f32 0.0, %v5874
    %v5876 = vpop.f32.mrb[0].mxu0
    %v5877 = vadd.f32 0.0, %v5876
    %5878 = vdwg.mxu0
    %5879 = vmatprep.subr.bf16.mxu0 %v5547
    %5880 = vmatpush1.bf16.msra.mxu0 %v5546
    %5881 = vmatprep.subr.bf16.mxu0 %v5563
    %5882 = vmatpush1.bf16.msra.mxu0 %v5562
    %5883 = vmatprep.subr.bf16.mxu0 %v5579
    %5884 = vmatpush1.bf16.msra.mxu0 %v5578
    %5885 = vmatprep.subr.bf16.mxu0 %v5595
    %5886 = vmatpush1.bf16.msra.mxu0 %v5594
    %5887 = vmatprep.subr.bf16.mxu0 %v5611
    %5888 = vmatpush1.bf16.msra.mxu0 %v5610
    %5889 = vmatprep.subr.bf16.mxu0 %v5627
    %5890 = vmatpush1.bf16.msra.mxu0 %v5626
    %5891 = vmatprep.subr.bf16.mxu0 %v5643
    %5892 = vmatpush1.bf16.msra.mxu0 %v5642
    %5893 = vmatprep.subr.bf16.mxu0 %v5659
    %5894 = vmatpush1.bf16.msra.mxu0 %v5658
    %5895 = vmatprep.subr.bf16.mxu0 0
    %5896 = vmatpush1.bf16.msra.mxu0 0
    %5897 = vmatprep.subr.bf16.mxu0 0
    %5898 = vmatpush1.bf16.msra.mxu0 0
    %5899 = vmatprep.subr.bf16.mxu0 0
    %5900 = vmatpush1.bf16.msra.mxu0 0
    %5901 = vmatprep.subr.bf16.mxu0 0
    %5902 = vmatpush1.bf16.msra.mxu0 0
    %5903 = vmatprep.subr.bf16.mxu0 0
    %5904 = vmatpush1.bf16.msra.mxu0 0
    %5905 = vmatprep.subr.bf16.mxu0 0
    %5906 = vmatpush1.bf16.msra.mxu0 0
    %5907 = vmatprep.subr.bf16.mxu0 0
    %5908 = vmatpush1.bf16.msra.mxu0 0
    %5909 = vmatprep.subr.bf16.mxu0 0
    %5910 = vmatpush1.bf16.msra.mxu0 0
    %5911 = vmatprep.mubr.bf16.mxu0 0
    %5912 = vmatmul.mubr.bf16.gmra.mrb[0].mxu0 %v2022
    %v5913 = vpop.f32.mrb[0].mxu0
    %v5914 = vadd.f32 0.0, %v5913
    %v5915 = vpop.f32.mrb[0].mxu0
    %v5916 = vadd.f32 0.0, %v5915
    %v5917 = vpop.f32.mrb[0].mxu0
    %v5918 = vadd.f32 0.0, %v5917
    %v5919 = vpop.f32.mrb[0].mxu0
    %v5920 = vadd.f32 0.0, %v5919
    %5921 = vdwg.mxu0
    %5922 = vmatprep.subr.bf16.mxu0 %v5549
    %5923 = vmatpush1.bf16.msra.mxu0 %v5548
    %5924 = vmatprep.subr.bf16.mxu0 %v5565
    %5925 = vmatpush1.bf16.msra.mxu0 %v5564
    %5926 = vmatprep.subr.bf16.mxu0 %v5581
    %5927 = vmatpush1.bf16.msra.mxu0 %v5580
    %5928 = vmatprep.subr.bf16.mxu0 %v5597
    %5929 = vmatpush1.bf16.msra.mxu0 %v5596
    %5930 = vmatprep.subr.bf16.mxu0 %v5613
    %5931 = vmatpush1.bf16.msra.mxu0 %v5612
    %5932 = vmatprep.subr.bf16.mxu0 %v5629
    %5933 = vmatpush1.bf16.msra.mxu0 %v5628
    %5934 = vmatprep.subr.bf16.mxu0 %v5645
    %5935 = vmatpush1.bf16.msra.mxu0 %v5644
    %5936 = vmatprep.subr.bf16.mxu0 %v5661
    %5937 = vmatpush1.bf16.msra.mxu0 %v5660
    %5938 = vmatprep.subr.bf16.mxu0 0
    %5939 = vmatpush1.bf16.msra.mxu0 0
    %5940 = vmatprep.subr.bf16.mxu0 0
    %5941 = vmatpush1.bf16.msra.mxu0 0
    %5942 = vmatprep.subr.bf16.mxu0 0
    %5943 = vmatpush1.bf16.msra.mxu0 0
    %5944 = vmatprep.subr.bf16.mxu0 0
    %5945 = vmatpush1.bf16.msra.mxu0 0
    %5946 = vmatprep.subr.bf16.mxu0 0
    %5947 = vmatpush1.bf16.msra.mxu0 0
    %5948 = vmatprep.subr.bf16.mxu0 0
    %5949 = vmatpush1.bf16.msra.mxu0 0
    %5950 = vmatprep.subr.bf16.mxu0 0
    %5951 = vmatpush1.bf16.msra.mxu0 0
    %5952 = vmatprep.subr.bf16.mxu0 0
    %5953 = vmatpush1.bf16.msra.mxu0 0
    %5954 = vmatprep.mubr.bf16.mxu0 0
    %5955 = vmatmul.mubr.bf16.gmra.mrb[0].mxu0 %v2022
    %v5956 = vpop.f32.mrb[0].mxu0
    %v5957 = vadd.f32 0.0, %v5956
    %v5958 = vpop.f32.mrb[0].mxu0
    %v5959 = vadd.f32 0.0, %v5958
    %v5960 = vpop.f32.mrb[0].mxu0
    %v5961 = vadd.f32 0.0, %v5960
    %v5962 = vpop.f32.mrb[0].mxu0
    %v5963 = vadd.f32 0.0, %v5962
    %5964 = vdwg.mxu0
    %5965 = vmatprep.subr.bf16.mxu0 %v5551
    %5966 = vmatpush1.bf16.msra.mxu0 %v5550
    %5967 = vmatprep.subr.bf16.mxu0 %v5567
    %5968 = vmatpush1.bf16.msra.mxu0 %v5566
    %5969 = vmatprep.subr.bf16.mxu0 %v5583
    %5970 = vmatpush1.bf16.msra.mxu0 %v5582
    %5971 = vmatprep.subr.bf16.mxu0 %v5599
    %5972 = vmatpush1.bf16.msra.mxu0 %v5598
    %5973 = vmatprep.subr.bf16.mxu0 %v5615
    %5974 = vmatpush1.bf16.msra.mxu0 %v5614
    %5975 = vmatprep.subr.bf16.mxu0 %v5631
    %5976 = vmatpush1.bf16.msra.mxu0 %v5630
    %5977 = vmatprep.subr.bf16.mxu0 %v5647
    %5978 = vmatpush1.bf16.msra.mxu0 %v5646
    %5979 = vmatprep.subr.bf16.mxu0 %v5663
    %5980 = vmatpush1.bf16.msra.mxu0 %v5662
    %5981 = vmatprep.subr.bf16.mxu0 0
    %5982 = vmatpush1.bf16.msra.mxu0 0
    %5983 = vmatprep.subr.bf16.mxu0 0
    %5984 = vmatpush1.bf16.msra.mxu0 0
    %5985 = vmatprep.subr.bf16.mxu0 0
    %5986 = vmatpush1.bf16.msra.mxu0 0
    %5987 = vmatprep.subr.bf16.mxu0 0
    %5988 = vmatpush1.bf16.msra.mxu0 0
    %5989 = vmatprep.subr.bf16.mxu0 0
    %5990 = vmatpush1.bf16.msra.mxu0 0
    %5991 = vmatprep.subr.bf16.mxu0 0
    %5992 = vmatpush1.bf16.msra.mxu0 0
    %5993 = vmatprep.subr.bf16.mxu0 0
    %5994 = vmatpush1.bf16.msra.mxu0 0
    %5995 = vmatprep.subr.bf16.mxu0 0
    %5996 = vmatpush1.bf16.msra.mxu0 0
    %5997 = vmatprep.mubr.bf16.mxu0 0
    %5998 = vmatmul.mubr.bf16.gmra.mrb[0].mxu0 %v2022
    %v5999 = vpop.f32.mrb[0].mxu0
    %v6000 = vadd.f32 0.0, %v5999
    %v6001 = vpop.f32.mrb[0].mxu0
    %v6002 = vadd.f32 0.0, %v6001
    %v6003 = vpop.f32.mrb[0].mxu0
    %v6004 = vadd.f32 0.0, %v6003
    %v6005 = vpop.f32.mrb[0].mxu0
    %v6006 = vadd.f32 0.0, %v6005
    %6007 = vdwg.mxu0
    %6008 = vset.pattern.permute.xlu0 80
    %6009 = vperm.xlu0 %6008, %v2005
    %v6010 = vpop.permute.xlu0 %6009
    %6012 = vset.pattern.permute.xlu0 80
    %6013 = vperm.xlu0 %6012, %v2007
    %v6014 = vpop.permute.xlu0 %6013
    %v6016 = vmul.f32 %v6010, %v5699
    %v6017 = vmul.f32 %v6014, %v5703
    %v6018 = vadd.f32 %v5532, %v6016
    %v6019 = vadd.f32 %v5533, %v6017
    %6020 = vset.pattern.permute.xlu0 81
    %6021 = vperm.xlu0 %6020, %v2005
    %v6022 = vpop.permute.xlu0 %6021
    %6024 = vset.pattern.permute.xlu0 81
    %6025 = vperm.xlu0 %6024, %v2007
    %v6026 = vpop.permute.xlu0 %6025
    %v6028 = vmul.f32 %v6022, %v5701
    %v6029 = vmul.f32 %v6026, %v5705
    %v6030 = vadd.f32 %v6018, %v6028
    %v6031 = vadd.f32 %v6019, %v6029
    %6032 = vset.pattern.permute.xlu0 82
    %6033 = vperm.xlu0 %6032, %v2005
    %v6034 = vpop.permute.xlu0 %6033
    %6036 = vset.pattern.permute.xlu0 82
    %6037 = vperm.xlu0 %6036, %v2007
    %v6038 = vpop.permute.xlu0 %6037
    %v6040 = vmul.f32 %v6034, %v5742
    %v6041 = vmul.f32 %v6038, %v5746
    %v6042 = vadd.f32 %v6030, %v6040
    %v6043 = vadd.f32 %v6031, %v6041
    %6044 = vset.pattern.permute.xlu0 83
    %6045 = vperm.xlu0 %6044, %v2005
    %v6046 = vpop.permute.xlu0 %6045
    %6048 = vset.pattern.permute.xlu0 83
    %6049 = vperm.xlu0 %6048, %v2007
    %v6050 = vpop.permute.xlu0 %6049
    %v6052 = vmul.f32 %v6046, %v5744
    %v6053 = vmul.f32 %v6050, %v5748
    %v6054 = vadd.f32 %v6042, %v6052
    %v6055 = vadd.f32 %v6043, %v6053
    %6056 = vset.pattern.permute.xlu0 84
    %6057 = vperm.xlu0 %6056, %v2005
    %v6058 = vpop.permute.xlu0 %6057
    %6060 = vset.pattern.permute.xlu0 84
    %6061 = vperm.xlu0 %6060, %v2007
    %v6062 = vpop.permute.xlu0 %6061
    %v6064 = vmul.f32 %v6058, %v5785
    %v6065 = vmul.f32 %v6062, %v5789
    %v6066 = vadd.f32 %v6054, %v6064
    %v6067 = vadd.f32 %v6055, %v6065
    %6068 = vset.pattern.permute.xlu0 85
    %6069 = vperm.xlu0 %6068, %v2005
    %v6070 = vpop.permute.xlu0 %6069
    %6072 = vset.pattern.permute.xlu0 85
    %6073 = vperm.xlu0 %6072, %v2007
    %v6074 = vpop.permute.xlu0 %6073
    %v6076 = vmul.f32 %v6070, %v5787
    %v6077 = vmul.f32 %v6074, %v5791
    %v6078 = vadd.f32 %v6066, %v6076
    %v6079 = vadd.f32 %v6067, %v6077
    %6080 = vset.pattern.permute.xlu0 86
    %6081 = vperm.xlu0 %6080, %v2005
    %v6082 = vpop.permute.xlu0 %6081
    %6084 = vset.pattern.permute.xlu0 86
    %6085 = vperm.xlu0 %6084, %v2007
    %v6086 = vpop.permute.xlu0 %6085
    %v6088 = vmul.f32 %v6082, %v5828
    %v6089 = vmul.f32 %v6086, %v5832
    %v6090 = vadd.f32 %v6078, %v6088
    %v6091 = vadd.f32 %v6079, %v6089
    %6092 = vset.pattern.permute.xlu0 87
    %6093 = vperm.xlu0 %6092, %v2005
    %v6094 = vpop.permute.xlu0 %6093
    %6096 = vset.pattern.permute.xlu0 87
    %6097 = vperm.xlu0 %6096, %v2007
    %v6098 = vpop.permute.xlu0 %6097
    %v6100 = vmul.f32 %v6094, %v5830
    %v6101 = vmul.f32 %v6098, %v5834
    %v6102 = vadd.f32 %v6090, %v6100
    %v6103 = vadd.f32 %v6091, %v6101
    %6104 = vset.pattern.permute.xlu0 88
    %6105 = vperm.xlu0 %6104, %v2005
    %v6106 = vpop.permute.xlu0 %6105
    %6108 = vset.pattern.permute.xlu0 88
    %6109 = vperm.xlu0 %6108, %v2007
    %v6110 = vpop.permute.xlu0 %6109
    %v6112 = vmul.f32 %v6106, %v5871
    %v6113 = vmul.f32 %v6110, %v5875
    %v6114 = vadd.f32 %v6102, %v6112
    %v6115 = vadd.f32 %v6103, %v6113
    %6116 = vset.pattern.permute.xlu0 89
    %6117 = vperm.xlu0 %6116, %v2005
    %v6118 = vpop.permute.xlu0 %6117
    %6120 = vset.pattern.permute.xlu0 89
    %6121 = vperm.xlu0 %6120, %v2007
    %v6122 = vpop.permute.xlu0 %6121
    %v6124 = vmul.f32 %v6118, %v5873
    %v6125 = vmul.f32 %v6122, %v5877
    %v6126 = vadd.f32 %v6114, %v6124
    %v6127 = vadd.f32 %v6115, %v6125
    %6128 = vset.pattern.permute.xlu0 90
    %6129 = vperm.xlu0 %6128, %v2005
    %v6130 = vpop.permute.xlu0 %6129
    %6132 = vset.pattern.permute.xlu0 90
    %6133 = vperm.xlu0 %6132, %v2007
    %v6134 = vpop.permute.xlu0 %6133
    %v6136 = vmul.f32 %v6130, %v5914
    %v6137 = vmul.f32 %v6134, %v5918
    %v6138 = vadd.f32 %v6126, %v6136
    %v6139 = vadd.f32 %v6127, %v6137
    %6140 = vset.pattern.permute.xlu0 91
    %6141 = vperm.xlu0 %6140, %v2005
    %v6142 = vpop.permute.xlu0 %6141
    %6144 = vset.pattern.permute.xlu0 91
    %6145 = vperm.xlu0 %6144, %v2007
    %v6146 = vpop.permute.xlu0 %6145
    %v6148 = vmul.f32 %v6142, %v5916
    %v6149 = vmul.f32 %v6146, %v5920
    %v6150 = vadd.f32 %v6138, %v6148
    %v6151 = vadd.f32 %v6139, %v6149
    %6152 = vset.pattern.permute.xlu0 92
    %6153 = vperm.xlu0 %6152, %v2005
    %v6154 = vpop.permute.xlu0 %6153
    %6156 = vset.pattern.permute.xlu0 92
    %6157 = vperm.xlu0 %6156, %v2007
    %v6158 = vpop.permute.xlu0 %6157
    %v6160 = vmul.f32 %v6154, %v5957
    %v6161 = vmul.f32 %v6158, %v5961
    %v6162 = vadd.f32 %v6150, %v6160
    %v6163 = vadd.f32 %v6151, %v6161
    %6164 = vset.pattern.permute.xlu0 93
    %6165 = vperm.xlu0 %6164, %v2005
    %v6166 = vpop.permute.xlu0 %6165
    %6168 = vset.pattern.permute.xlu0 93
    %6169 = vperm.xlu0 %6168, %v2007
    %v6170 = vpop.permute.xlu0 %6169
    %v6172 = vmul.f32 %v6166, %v5959
    %v6173 = vmul.f32 %v6170, %v5963
    %v6174 = vadd.f32 %v6162, %v6172
    %v6175 = vadd.f32 %v6163, %v6173
    %6176 = vset.pattern.permute.xlu0 94
    %6177 = vperm.xlu0 %6176, %v2005
    %v6178 = vpop.permute.xlu0 %6177
    %6180 = vset.pattern.permute.xlu0 94
    %6181 = vperm.xlu0 %6180, %v2007
    %v6182 = vpop.permute.xlu0 %6181
    %v6184 = vmul.f32 %v6178, %v6000
    %v6185 = vmul.f32 %v6182, %v6004
    %v6186 = vadd.f32 %v6174, %v6184
    %v6187 = vadd.f32 %v6175, %v6185
    %6188 = vset.pattern.permute.xlu0 95
    %6189 = vperm.xlu0 %6188, %v2005
    %v6190 = vpop.permute.xlu0 %6189
    %6192 = vset.pattern.permute.xlu0 95
    %6193 = vperm.xlu0 %6192, %v2007
    %v6194 = vpop.permute.xlu0 %6193
    %v6196 = vmul.f32 %v6190, %v6002
    %v6197 = vmul.f32 %v6194, %v6006
    %v6198 = vadd.f32 %v6186, %v6196
    %v6199 = vadd.f32 %v6187, %v6197
    %s6200 = sshll.u32 %s2061, 4
    %6201 = dma.done %s244, %s6200
    %v6202 = vld [vmem:[%s243] sm:$0xff]
    %v6203 = vld [vmem:[%s243 + $0x8] sm:$0xff]
    %v6204 = vld [vmem:[%s243 + $0x10] sm:$0xff]
    %v6205 = vld [vmem:[%s243 + $0x18] sm:$0xff]
    %v6206 = vld [vmem:[%s243 + $0x20] sm:$0xff]
    %v6207 = vld [vmem:[%s243 + $0x28] sm:$0xff]
    %v6208 = vld [vmem:[%s243 + $0x30] sm:$0xff]
    %v6209 = vld [vmem:[%s243 + $0x38] sm:$0xff]
    %v6210 = vld [vmem:[%s243 + $0x40] sm:$0xff]
    %v6211 = vld [vmem:[%s243 + $0x48] sm:$0xff]
    %v6212 = vld [vmem:[%s243 + $0x50] sm:$0xff]
    %v6213 = vld [vmem:[%s243 + $0x58] sm:$0xff]
    %v6214 = vld [vmem:[%s243 + $0x60] sm:$0xff]
    %v6215 = vld [vmem:[%s243 + $0x68] sm:$0xff]
    %v6216 = vld [vmem:[%s243 + $0x70] sm:$0xff]
    %v6217 = vld [vmem:[%s243 + $0x78] sm:$0xff]
    %v6218 = vld [vmem:[%s243 + $0x80] sm:$0xff]
    %v6219 = vld [vmem:[%s243 + $0x88] sm:$0xff]
    %v6220 = vld [vmem:[%s243 + $0x90] sm:$0xff]
    %v6221 = vld [vmem:[%s243 + $0x98] sm:$0xff]
    %v6222 = vld [vmem:[%s243 + $0xa0] sm:$0xff]
    %v6223 = vld [vmem:[%s243 + $0xa8] sm:$0xff]
    %v6224 = vld [vmem:[%s243 + $0xb0] sm:$0xff]
    %v6225 = vld [vmem:[%s243 + $0xb8] sm:$0xff]
    %v6226 = vld [vmem:[%s243 + $0xc0] sm:$0xff]
    %v6227 = vld [vmem:[%s243 + $0xc8] sm:$0xff]
    %v6228 = vld [vmem:[%s243 + $0xd0] sm:$0xff]
    %v6229 = vld [vmem:[%s243 + $0xd8] sm:$0xff]
    %v6230 = vld [vmem:[%s243 + $0xe0] sm:$0xff]
    %v6231 = vld [vmem:[%s243 + $0xe8] sm:$0xff]
    %v6232 = vld [vmem:[%s243 + $0xf0] sm:$0xff]
    %v6233 = vld [vmem:[%s243 + $0xf8] sm:$0xff]
    %v6234 = vld [vmem:[%s243 + $0x100] sm:$0xff]
    %v6235 = vld [vmem:[%s243 + $0x108] sm:$0xff]
    %v6236 = vld [vmem:[%s243 + $0x110] sm:$0xff]
    %v6237 = vld [vmem:[%s243 + $0x118] sm:$0xff]
    %v6238 = vld [vmem:[%s243 + $0x120] sm:$0xff]
    %v6239 = vld [vmem:[%s243 + $0x128] sm:$0xff]
    %v6240 = vld [vmem:[%s243 + $0x130] sm:$0xff]
    %v6241 = vld [vmem:[%s243 + $0x138] sm:$0xff]
    %v6242 = vld [vmem:[%s243 + $0x140] sm:$0xff]
    %v6243 = vld [vmem:[%s243 + $0x148] sm:$0xff]
    %v6244 = vld [vmem:[%s243 + $0x150] sm:$0xff]
    %v6245 = vld [vmem:[%s243 + $0x158] sm:$0xff]
    %v6246 = vld [vmem:[%s243 + $0x160] sm:$0xff]
    %v6247 = vld [vmem:[%s243 + $0x168] sm:$0xff]
    %v6248 = vld [vmem:[%s243 + $0x170] sm:$0xff]
    %v6249 = vld [vmem:[%s243 + $0x178] sm:$0xff]
    %v6250 = vld [vmem:[%s243 + $0x180] sm:$0xff]
    %v6251 = vld [vmem:[%s243 + $0x188] sm:$0xff]
    %v6252 = vld [vmem:[%s243 + $0x190] sm:$0xff]
    %v6253 = vld [vmem:[%s243 + $0x198] sm:$0xff]
    %v6254 = vld [vmem:[%s243 + $0x1a0] sm:$0xff]
    %v6255 = vld [vmem:[%s243 + $0x1a8] sm:$0xff]
    %v6256 = vld [vmem:[%s243 + $0x1b0] sm:$0xff]
    %v6257 = vld [vmem:[%s243 + $0x1b8] sm:$0xff]
    %v6258 = vld [vmem:[%s243 + $0x1c0] sm:$0xff]
    %v6259 = vld [vmem:[%s243 + $0x1c8] sm:$0xff]
    %v6260 = vld [vmem:[%s243 + $0x1d0] sm:$0xff]
    %v6261 = vld [vmem:[%s243 + $0x1d8] sm:$0xff]
    %v6262 = vld [vmem:[%s243 + $0x1e0] sm:$0xff]
    %v6263 = vld [vmem:[%s243 + $0x1e8] sm:$0xff]
    %v6264 = vld [vmem:[%s243 + $0x1f0] sm:$0xff]
    %v6265 = vld [vmem:[%s243 + $0x1f8] sm:$0xff]
    %v6266 = vld [vmem:[%s243 + $0x200] sm:$0xff]
    %v6267 = vld [vmem:[%s243 + $0x208] sm:$0xff]
    %v6268 = vld [vmem:[%s243 + $0x210] sm:$0xff]
    %v6269 = vld [vmem:[%s243 + $0x218] sm:$0xff]
    %v6270 = vld [vmem:[%s243 + $0x220] sm:$0xff]
    %v6271 = vld [vmem:[%s243 + $0x228] sm:$0xff]
    %v6272 = vld [vmem:[%s243 + $0x230] sm:$0xff]
    %v6273 = vld [vmem:[%s243 + $0x238] sm:$0xff]
    %v6274 = vld [vmem:[%s243 + $0x240] sm:$0xff]
    %v6275 = vld [vmem:[%s243 + $0x248] sm:$0xff]
    %v6276 = vld [vmem:[%s243 + $0x250] sm:$0xff]
    %v6277 = vld [vmem:[%s243 + $0x258] sm:$0xff]
    %v6278 = vld [vmem:[%s243 + $0x260] sm:$0xff]
    %v6279 = vld [vmem:[%s243 + $0x268] sm:$0xff]
    %v6280 = vld [vmem:[%s243 + $0x270] sm:$0xff]
    %v6281 = vld [vmem:[%s243 + $0x278] sm:$0xff]
    %v6282 = vld [vmem:[%s243 + $0x280] sm:$0xff]
    %v6283 = vld [vmem:[%s243 + $0x288] sm:$0xff]
    %v6284 = vld [vmem:[%s243 + $0x290] sm:$0xff]
    %v6285 = vld [vmem:[%s243 + $0x298] sm:$0xff]
    %v6286 = vld [vmem:[%s243 + $0x2a0] sm:$0xff]
    %v6287 = vld [vmem:[%s243 + $0x2a8] sm:$0xff]
    %v6288 = vld [vmem:[%s243 + $0x2b0] sm:$0xff]
    %v6289 = vld [vmem:[%s243 + $0x2b8] sm:$0xff]
    %v6290 = vld [vmem:[%s243 + $0x2c0] sm:$0xff]
    %v6291 = vld [vmem:[%s243 + $0x2c8] sm:$0xff]
    %v6292 = vld [vmem:[%s243 + $0x2d0] sm:$0xff]
    %v6293 = vld [vmem:[%s243 + $0x2d8] sm:$0xff]
    %v6294 = vld [vmem:[%s243 + $0x2e0] sm:$0xff]
    %v6295 = vld [vmem:[%s243 + $0x2e8] sm:$0xff]
    %v6296 = vld [vmem:[%s243 + $0x2f0] sm:$0xff]
    %v6297 = vld [vmem:[%s243 + $0x2f8] sm:$0xff]
    %v6298 = vld [vmem:[%s243 + $0x300] sm:$0xff]
    %v6299 = vld [vmem:[%s243 + $0x308] sm:$0xff]
    %v6300 = vld [vmem:[%s243 + $0x310] sm:$0xff]
    %v6301 = vld [vmem:[%s243 + $0x318] sm:$0xff]
    %v6302 = vld [vmem:[%s243 + $0x320] sm:$0xff]
    %v6303 = vld [vmem:[%s243 + $0x328] sm:$0xff]
    %v6304 = vld [vmem:[%s243 + $0x330] sm:$0xff]
    %v6305 = vld [vmem:[%s243 + $0x338] sm:$0xff]
    %v6306 = vld [vmem:[%s243 + $0x340] sm:$0xff]
    %v6307 = vld [vmem:[%s243 + $0x348] sm:$0xff]
    %v6308 = vld [vmem:[%s243 + $0x350] sm:$0xff]
    %v6309 = vld [vmem:[%s243 + $0x358] sm:$0xff]
    %v6310 = vld [vmem:[%s243 + $0x360] sm:$0xff]
    %v6311 = vld [vmem:[%s243 + $0x368] sm:$0xff]
    %v6312 = vld [vmem:[%s243 + $0x370] sm:$0xff]
    %v6313 = vld [vmem:[%s243 + $0x378] sm:$0xff]
    %v6314 = vld [vmem:[%s243 + $0x380] sm:$0xff]
    %v6315 = vld [vmem:[%s243 + $0x388] sm:$0xff]
    %v6316 = vld [vmem:[%s243 + $0x390] sm:$0xff]
    %v6317 = vld [vmem:[%s243 + $0x398] sm:$0xff]
    %v6318 = vld [vmem:[%s243 + $0x3a0] sm:$0xff]
    %v6319 = vld [vmem:[%s243 + $0x3a8] sm:$0xff]
    %v6320 = vld [vmem:[%s243 + $0x3b0] sm:$0xff]
    %v6321 = vld [vmem:[%s243 + $0x3b8] sm:$0xff]
    %v6322 = vld [vmem:[%s243 + $0x3c0] sm:$0xff]
    %v6323 = vld [vmem:[%s243 + $0x3c8] sm:$0xff]
    %v6324 = vld [vmem:[%s243 + $0x3d0] sm:$0xff]
    %v6325 = vld [vmem:[%s243 + $0x3d8] sm:$0xff]
    %v6326 = vld [vmem:[%s243 + $0x3e0] sm:$0xff]
    %v6327 = vld [vmem:[%s243 + $0x3e8] sm:$0xff]
    %v6328 = vld [vmem:[%s243 + $0x3f0] sm:$0xff]
    %v6329 = vld [vmem:[%s243 + $0x3f8] sm:$0xff]
    %6330 = vmatprep.subr.bf16.mxu0 %v6203
    %6331 = vmatpush1.bf16.msra.mxu0 %v6202
    %6332 = vmatprep.subr.bf16.mxu0 %v6219
    %6333 = vmatpush1.bf16.msra.mxu0 %v6218
    %6334 = vmatprep.subr.bf16.mxu0 %v6235
    %6335 = vmatpush1.bf16.msra.mxu0 %v6234
    %6336 = vmatprep.subr.bf16.mxu0 %v6251
    %6337 = vmatpush1.bf16.msra.mxu0 %v6250
    %6338 = vmatprep.subr.bf16.mxu0 %v6267
    %6339 = vmatpush1.bf16.msra.mxu0 %v6266
    %6340 = vmatprep.subr.bf16.mxu0 %v6283
    %6341 = vmatpush1.bf16.msra.mxu0 %v6282
    %6342 = vmatprep.subr.bf16.mxu0 %v6299
    %6343 = vmatpush1.bf16.msra.mxu0 %v6298
    %6344 = vmatprep.subr.bf16.mxu0 %v6315
    %6345 = vmatpush1.bf16.msra.mxu0 %v6314
    %6346 = vmatprep.subr.bf16.mxu0 0
    %6347 = vmatpush1.bf16.msra.mxu0 0
    %6348 = vmatprep.subr.bf16.mxu0 0
    %6349 = vmatpush1.bf16.msra.mxu0 0
    %6350 = vmatprep.subr.bf16.mxu0 0
    %6351 = vmatpush1.bf16.msra.mxu0 0
    %6352 = vmatprep.subr.bf16.mxu0 0
    %6353 = vmatpush1.bf16.msra.mxu0 0
    %6354 = vmatprep.subr.bf16.mxu0 0
    %6355 = vmatpush1.bf16.msra.mxu0 0
    %6356 = vmatprep.subr.bf16.mxu0 0
    %6357 = vmatpush1.bf16.msra.mxu0 0
    %6358 = vmatprep.subr.bf16.mxu0 0
    %6359 = vmatpush1.bf16.msra.mxu0 0
    %6360 = vmatprep.subr.bf16.mxu0 0
    %6361 = vmatpush1.bf16.msra.mxu0 0
    %6362 = vmatprep.mubr.bf16.mxu0 0
    %6363 = vmatmul.mubr.bf16.gmra.mrb[0].mxu0 %v2022
    %v6364 = vpop.f32.mrb[0].mxu0
    %v6365 = vadd.f32 0.0, %v6364
    %v6366 = vpop.f32.mrb[0].mxu0
    %v6367 = vadd.f32 0.0, %v6366
    %v6368 = vpop.f32.mrb[0].mxu0
    %v6369 = vadd.f32 0.0, %v6368
    %v6370 = vpop.f32.mrb[0].mxu0
    %v6371 = vadd.f32 0.0, %v6370
    %6372 = vdwg.mxu0
    %6373 = vmatprep.subr.bf16.mxu0 %v6205
    %6374 = vmatpush1.bf16.msra.mxu0 %v6204
    %6375 = vmatprep.subr.bf16.mxu0 %v6221
    %6376 = vmatpush1.bf16.msra.mxu0 %v6220
    %6377 = vmatprep.subr.bf16.mxu0 %v6237
    %6378 = vmatpush1.bf16.msra.mxu0 %v6236
    %6379 = vmatprep.subr.bf16.mxu0 %v6253
    %6380 = vmatpush1.bf16.msra.mxu0 %v6252
    %6381 = vmatprep.subr.bf16.mxu0 %v6269
    %6382 = vmatpush1.bf16.msra.mxu0 %v6268
    %6383 = vmatprep.subr.bf16.mxu0 %v6285
    %6384 = vmatpush1.bf16.msra.mxu0 %v6284
    %6385 = vmatprep.subr.bf16.mxu0 %v6301
    %6386 = vmatpush1.bf16.msra.mxu0 %v6300
    %6387 = vmatprep.subr.bf16.mxu0 %v6317
    %6388 = vmatpush1.bf16.msra.mxu0 %v6316
    %6389 = vmatprep.subr.bf16.mxu0 0
    %6390 = vmatpush1.bf16.msra.mxu0 0
    %6391 = vmatprep.subr.bf16.mxu0 0
    %6392 = vmatpush1.bf16.msra.mxu0 0
    %6393 = vmatprep.subr.bf16.mxu0 0
    %6394 = vmatpush1.bf16.msra.mxu0 0
    %6395 = vmatprep.subr.bf16.mxu0 0
    %6396 = vmatpush1.bf16.msra.mxu0 0
    %6397 = vmatprep.subr.bf16.mxu0 0
    %6398 = vmatpush1.bf16.msra.mxu0 0
    %6399 = vmatprep.subr.bf16.mxu0 0
    %6400 = vmatpush1.bf16.msra.mxu0 0
    %6401 = vmatprep.subr.bf16.mxu0 0
    %6402 = vmatpush1.bf16.msra.mxu0 0
    %6403 = vmatprep.subr.bf16.mxu0 0
    %6404 = vmatpush1.bf16.msra.mxu0 0
    %6405 = vmatprep.mubr.bf16.mxu0 0
    %6406 = vmatmul.mubr.bf16.gmra.mrb[0].mxu0 %v2022
    %v6407 = vpop.f32.mrb[0].mxu0
    %v6408 = vadd.f32 0.0, %v6407
    %v6409 = vpop.f32.mrb[0].mxu0
    %v6410 = vadd.f32 0.0, %v6409
    %v6411 = vpop.f32.mrb[0].mxu0
    %v6412 = vadd.f32 0.0, %v6411
    %v6413 = vpop.f32.mrb[0].mxu0
    %v6414 = vadd.f32 0.0, %v6413
    %6415 = vdwg.mxu0
    %6416 = vmatprep.subr.bf16.mxu0 %v6207
    %6417 = vmatpush1.bf16.msra.mxu0 %v6206
    %6418 = vmatprep.subr.bf16.mxu0 %v6223
    %6419 = vmatpush1.bf16.msra.mxu0 %v6222
    %6420 = vmatprep.subr.bf16.mxu0 %v6239
    %6421 = vmatpush1.bf16.msra.mxu0 %v6238
    %6422 = vmatprep.subr.bf16.mxu0 %v6255
    %6423 = vmatpush1.bf16.msra.mxu0 %v6254
    %6424 = vmatprep.subr.bf16.mxu0 %v6271
    %6425 = vmatpush1.bf16.msra.mxu0 %v6270
    %6426 = vmatprep.subr.bf16.mxu0 %v6287
    %6427 = vmatpush1.bf16.msra.mxu0 %v6286
    %6428 = vmatprep.subr.bf16.mxu0 %v6303
    %6429 = vmatpush1.bf16.msra.mxu0 %v6302
    %6430 = vmatprep.subr.bf16.mxu0 %v6319
    %6431 = vmatpush1.bf16.msra.mxu0 %v6318
    %6432 = vmatprep.subr.bf16.mxu0 0
    %6433 = vmatpush1.bf16.msra.mxu0 0
    %6434 = vmatprep.subr.bf16.mxu0 0
    %6435 = vmatpush1.bf16.msra.mxu0 0
    %6436 = vmatprep.subr.bf16.mxu0 0
    %6437 = vmatpush1.bf16.msra.mxu0 0
    %6438 = vmatprep.subr.bf16.mxu0 0
    %6439 = vmatpush1.bf16.msra.mxu0 0
    %6440 = vmatprep.subr.bf16.mxu0 0
    %6441 = vmatpush1.bf16.msra.mxu0 0
    %6442 = vmatprep.subr.bf16.mxu0 0
    %6443 = vmatpush1.bf16.msra.mxu0 0
    %6444 = vmatprep.subr.bf16.mxu0 0
    %6445 = vmatpush1.bf16.msra.mxu0 0
    %6446 = vmatprep.subr.bf16.mxu0 0
    %6447 = vmatpush1.bf16.msra.mxu0 0
    %6448 = vmatprep.mubr.bf16.mxu0 0
    %6449 = vmatmul.mubr.bf16.gmra.mrb[0].mxu0 %v2022
    %v6450 = vpop.f32.mrb[0].mxu0
    %v6451 = vadd.f32 0.0, %v6450
    %v6452 = vpop.f32.mrb[0].mxu0
    %v6453 = vadd.f32 0.0, %v6452
    %v6454 = vpop.f32.mrb[0].mxu0
    %v6455 = vadd.f32 0.0, %v6454
    %v6456 = vpop.f32.mrb[0].mxu0
    %v6457 = vadd.f32 0.0, %v6456
    %6458 = vdwg.mxu0
    %6459 = vmatprep.subr.bf16.mxu0 %v6209
    %6460 = vmatpush1.bf16.msra.mxu0 %v6208
    %6461 = vmatprep.subr.bf16.mxu0 %v6225
    %6462 = vmatpush1.bf16.msra.mxu0 %v6224
    %6463 = vmatprep.subr.bf16.mxu0 %v6241
    %6464 = vmatpush1.bf16.msra.mxu0 %v6240
    %6465 = vmatprep.subr.bf16.mxu0 %v6257
    %6466 = vmatpush1.bf16.msra.mxu0 %v6256
    %6467 = vmatprep.subr.bf16.mxu0 %v6273
    %6468 = vmatpush1.bf16.msra.mxu0 %v6272
    %6469 = vmatprep.subr.bf16.mxu0 %v6289
    %6470 = vmatpush1.bf16.msra.mxu0 %v6288
    %6471 = vmatprep.subr.bf16.mxu0 %v6305
    %6472 = vmatpush1.bf16.msra.mxu0 %v6304
    %6473 = vmatprep.subr.bf16.mxu0 %v6321
    %6474 = vmatpush1.bf16.msra.mxu0 %v6320
    %6475 = vmatprep.subr.bf16.mxu0 0
    %6476 = vmatpush1.bf16.msra.mxu0 0
    %6477 = vmatprep.subr.bf16.mxu0 0
    %6478 = vmatpush1.bf16.msra.mxu0 0
    %6479 = vmatprep.subr.bf16.mxu0 0
    %6480 = vmatpush1.bf16.msra.mxu0 0
    %6481 = vmatprep.subr.bf16.mxu0 0
    %6482 = vmatpush1.bf16.msra.mxu0 0
    %6483 = vmatprep.subr.bf16.mxu0 0
    %6484 = vmatpush1.bf16.msra.mxu0 0
    %6485 = vmatprep.subr.bf16.mxu0 0
    %6486 = vmatpush1.bf16.msra.mxu0 0
    %6487 = vmatprep.subr.bf16.mxu0 0
    %6488 = vmatpush1.bf16.msra.mxu0 0
    %6489 = vmatprep.subr.bf16.mxu0 0
    %6490 = vmatpush1.bf16.msra.mxu0 0
    %6491 = vmatprep.mubr.bf16.mxu0 0
    %6492 = vmatmul.mubr.bf16.gmra.mrb[0].mxu0 %v2022
    %v6493 = vpop.f32.mrb[0].mxu0
    %v6494 = vadd.f32 0.0, %v6493
    %v6495 = vpop.f32.mrb[0].mxu0
    %v6496 = vadd.f32 0.0, %v6495
    %v6497 = vpop.f32.mrb[0].mxu0
    %v6498 = vadd.f32 0.0, %v6497
    %v6499 = vpop.f32.mrb[0].mxu0
    %v6500 = vadd.f32 0.0, %v6499
    %6501 = vdwg.mxu0
    %6502 = vmatprep.subr.bf16.mxu0 %v6211
    %6503 = vmatpush1.bf16.msra.mxu0 %v6210
    %6504 = vmatprep.subr.bf16.mxu0 %v6227
    %6505 = vmatpush1.bf16.msra.mxu0 %v6226
    %6506 = vmatprep.subr.bf16.mxu0 %v6243
    %6507 = vmatpush1.bf16.msra.mxu0 %v6242
    %6508 = vmatprep.subr.bf16.mxu0 %v6259
    %6509 = vmatpush1.bf16.msra.mxu0 %v6258
    %6510 = vmatprep.subr.bf16.mxu0 %v6275
    %6511 = vmatpush1.bf16.msra.mxu0 %v6274
    %6512 = vmatprep.subr.bf16.mxu0 %v6291
    %6513 = vmatpush1.bf16.msra.mxu0 %v6290
    %6514 = vmatprep.subr.bf16.mxu0 %v6307
    %6515 = vmatpush1.bf16.msra.mxu0 %v6306
    %6516 = vmatprep.subr.bf16.mxu0 %v6323
    %6517 = vmatpush1.bf16.msra.mxu0 %v6322
    %6518 = vmatprep.subr.bf16.mxu0 0
    %6519 = vmatpush1.bf16.msra.mxu0 0
    %6520 = vmatprep.subr.bf16.mxu0 0
    %6521 = vmatpush1.bf16.msra.mxu0 0
    %6522 = vmatprep.subr.bf16.mxu0 0
    %6523 = vmatpush1.bf16.msra.mxu0 0
    %6524 = vmatprep.subr.bf16.mxu0 0
    %6525 = vmatpush1.bf16.msra.mxu0 0
    %6526 = vmatprep.subr.bf16.mxu0 0
    %6527 = vmatpush1.bf16.msra.mxu0 0
    %6528 = vmatprep.subr.bf16.mxu0 0
    %6529 = vmatpush1.bf16.msra.mxu0 0
    %6530 = vmatprep.subr.bf16.mxu0 0
    %6531 = vmatpush1.bf16.msra.mxu0 0
    %6532 = vmatprep.subr.bf16.mxu0 0
    %6533 = vmatpush1.bf16.msra.mxu0 0
    %6534 = vmatprep.mubr.bf16.mxu0 0
    %6535 = vmatmul.mubr.bf16.gmra.mrb[0].mxu0 %v2022
    %v6536 = vpop.f32.mrb[0].mxu0
    %v6537 = vadd.f32 0.0, %v6536
    %v6538 = vpop.f32.mrb[0].mxu0
    %v6539 = vadd.f32 0.0, %v6538
    %v6540 = vpop.f32.mrb[0].mxu0
    %v6541 = vadd.f32 0.0, %v6540
    %v6542 = vpop.f32.mrb[0].mxu0
    %v6543 = vadd.f32 0.0, %v6542
    %6544 = vdwg.mxu0
    %6545 = vmatprep.subr.bf16.mxu0 %v6213
    %6546 = vmatpush1.bf16.msra.mxu0 %v6212
    %6547 = vmatprep.subr.bf16.mxu0 %v6229
    %6548 = vmatpush1.bf16.msra.mxu0 %v6228
    %6549 = vmatprep.subr.bf16.mxu0 %v6245
    %6550 = vmatpush1.bf16.msra.mxu0 %v6244
    %6551 = vmatprep.subr.bf16.mxu0 %v6261
    %6552 = vmatpush1.bf16.msra.mxu0 %v6260
    %6553 = vmatprep.subr.bf16.mxu0 %v6277
    %6554 = vmatpush1.bf16.msra.mxu0 %v6276
    %6555 = vmatprep.subr.bf16.mxu0 %v6293
    %6556 = vmatpush1.bf16.msra.mxu0 %v6292
    %6557 = vmatprep.subr.bf16.mxu0 %v6309
    %6558 = vmatpush1.bf16.msra.mxu0 %v6308
    %6559 = vmatprep.subr.bf16.mxu0 %v6325
    %6560 = vmatpush1.bf16.msra.mxu0 %v6324
    %6561 = vmatprep.subr.bf16.mxu0 0
    %6562 = vmatpush1.bf16.msra.mxu0 0
    %6563 = vmatprep.subr.bf16.mxu0 0
    %6564 = vmatpush1.bf16.msra.mxu0 0
    %6565 = vmatprep.subr.bf16.mxu0 0
    %6566 = vmatpush1.bf16.msra.mxu0 0
    %6567 = vmatprep.subr.bf16.mxu0 0
    %6568 = vmatpush1.bf16.msra.mxu0 0
    %6569 = vmatprep.subr.bf16.mxu0 0
    %6570 = vmatpush1.bf16.msra.mxu0 0
    %6571 = vmatprep.subr.bf16.mxu0 0
    %6572 = vmatpush1.bf16.msra.mxu0 0
    %6573 = vmatprep.subr.bf16.mxu0 0
    %6574 = vmatpush1.bf16.msra.mxu0 0
    %6575 = vmatprep.subr.bf16.mxu0 0
    %6576 = vmatpush1.bf16.msra.mxu0 0
    %6577 = vmatprep.mubr.bf16.mxu0 0
    %6578 = vmatmul.mubr.bf16.gmra.mrb[0].mxu0 %v2022
    %v6579 = vpop.f32.mrb[0].mxu0
    %v6580 = vadd.f32 0.0, %v6579
    %v6581 = vpop.f32.mrb[0].mxu0
    %v6582 = vadd.f32 0.0, %v6581
    %v6583 = vpop.f32.mrb[0].mxu0
    %v6584 = vadd.f32 0.0, %v6583
    %v6585 = vpop.f32.mrb[0].mxu0
    %v6586 = vadd.f32 0.0, %v6585
    %6587 = vdwg.mxu0
    %6588 = vmatprep.subr.bf16.mxu0 %v6215
    %6589 = vmatpush1.bf16.msra.mxu0 %v6214
    %6590 = vmatprep.subr.bf16.mxu0 %v6231
    %6591 = vmatpush1.bf16.msra.mxu0 %v6230
    %6592 = vmatprep.subr.bf16.mxu0 %v6247
    %6593 = vmatpush1.bf16.msra.mxu0 %v6246
    %6594 = vmatprep.subr.bf16.mxu0 %v6263
    %6595 = vmatpush1.bf16.msra.mxu0 %v6262
    %6596 = vmatprep.subr.bf16.mxu0 %v6279
    %6597 = vmatpush1.bf16.msra.mxu0 %v6278
    %6598 = vmatprep.subr.bf16.mxu0 %v6295
    %6599 = vmatpush1.bf16.msra.mxu0 %v6294
    %6600 = vmatprep.subr.bf16.mxu0 %v6311
    %6601 = vmatpush1.bf16.msra.mxu0 %v6310
    %6602 = vmatprep.subr.bf16.mxu0 %v6327
    %6603 = vmatpush1.bf16.msra.mxu0 %v6326
    %6604 = vmatprep.subr.bf16.mxu0 0
    %6605 = vmatpush1.bf16.msra.mxu0 0
    %6606 = vmatprep.subr.bf16.mxu0 0
    %6607 = vmatpush1.bf16.msra.mxu0 0
    %6608 = vmatprep.subr.bf16.mxu0 0
    %6609 = vmatpush1.bf16.msra.mxu0 0
    %6610 = vmatprep.subr.bf16.mxu0 0
    %6611 = vmatpush1.bf16.msra.mxu0 0
    %6612 = vmatprep.subr.bf16.mxu0 0
    %6613 = vmatpush1.bf16.msra.mxu0 0
    %6614 = vmatprep.subr.bf16.mxu0 0
    %6615 = vmatpush1.bf16.msra.mxu0 0
    %6616 = vmatprep.subr.bf16.mxu0 0
    %6617 = vmatpush1.bf16.msra.mxu0 0
    %6618 = vmatprep.subr.bf16.mxu0 0
    %6619 = vmatpush1.bf16.msra.mxu0 0
    %6620 = vmatprep.mubr.bf16.mxu0 0
    %6621 = vmatmul.mubr.bf16.gmra.mrb[0].mxu0 %v2022
    %v6622 = vpop.f32.mrb[0].mxu0
    %v6623 = vadd.f32 0.0, %v6622
    %v6624 = vpop.f32.mrb[0].mxu0
    %v6625 = vadd.f32 0.0, %v6624
    %v6626 = vpop.f32.mrb[0].mxu0
    %v6627 = vadd.f32 0.0, %v6626
    %v6628 = vpop.f32.mrb[0].mxu0
    %v6629 = vadd.f32 0.0, %v6628
    %6630 = vdwg.mxu0
    %6631 = vmatprep.subr.bf16.mxu0 %v6217
    %6632 = vmatpush1.bf16.msra.mxu0 %v6216
    %6633 = vmatprep.subr.bf16.mxu0 %v6233
    %6634 = vmatpush1.bf16.msra.mxu0 %v6232
    %6635 = vmatprep.subr.bf16.mxu0 %v6249
    %6636 = vmatpush1.bf16.msra.mxu0 %v6248
    %6637 = vmatprep.subr.bf16.mxu0 %v6265
    %6638 = vmatpush1.bf16.msra.mxu0 %v6264
    %6639 = vmatprep.subr.bf16.mxu0 %v6281
    %6640 = vmatpush1.bf16.msra.mxu0 %v6280
    %6641 = vmatprep.subr.bf16.mxu0 %v6297
    %6642 = vmatpush1.bf16.msra.mxu0 %v6296
    %6643 = vmatprep.subr.bf16.mxu0 %v6313
    %6644 = vmatpush1.bf16.msra.mxu0 %v6312
    %6645 = vmatprep.subr.bf16.mxu0 %v6329
    %6646 = vmatpush1.bf16.msra.mxu0 %v6328
    %6647 = vmatprep.subr.bf16.mxu0 0
    %6648 = vmatpush1.bf16.msra.mxu0 0
    %6649 = vmatprep.subr.bf16.mxu0 0
    %6650 = vmatpush1.bf16.msra.mxu0 0
    %6651 = vmatprep.subr.bf16.mxu0 0
    %6652 = vmatpush1.bf16.msra.mxu0 0
    %6653 = vmatprep.subr.bf16.mxu0 0
    %6654 = vmatpush1.bf16.msra.mxu0 0
    %6655 = vmatprep.subr.bf16.mxu0 0
    %6656 = vmatpush1.bf16.msra.mxu0 0
    %6657 = vmatprep.subr.bf16.mxu0 0
    %6658 = vmatpush1.bf16.msra.mxu0 0
    %6659 = vmatprep.subr.bf16.mxu0 0
    %6660 = vmatpush1.bf16.msra.mxu0 0
    %6661 = vmatprep.subr.bf16.mxu0 0
    %6662 = vmatpush1.bf16.msra.mxu0 0
    %6663 = vmatprep.mubr.bf16.mxu0 0
    %6664 = vmatmul.mubr.bf16.gmra.mrb[0].mxu0 %v2022
    %v6665 = vpop.f32.mrb[0].mxu0
    %v6666 = vadd.f32 0.0, %v6665
    %v6667 = vpop.f32.mrb[0].mxu0
    %v6668 = vadd.f32 0.0, %v6667
    %v6669 = vpop.f32.mrb[0].mxu0
    %v6670 = vadd.f32 0.0, %v6669
    %v6671 = vpop.f32.mrb[0].mxu0
    %v6672 = vadd.f32 0.0, %v6671
    %6673 = vdwg.mxu0
    %6674 = vset.pattern.permute.xlu0 96
    %6675 = vperm.xlu0 %6674, %v2005
    %v6676 = vpop.permute.xlu0 %6675
    %6678 = vset.pattern.permute.xlu0 96
    %6679 = vperm.xlu0 %6678, %v2007
    %v6680 = vpop.permute.xlu0 %6679
    %v6682 = vmul.f32 %v6676, %v6365
    %v6683 = vmul.f32 %v6680, %v6369
    %v6684 = vadd.f32 %v6198, %v6682
    %v6685 = vadd.f32 %v6199, %v6683
    %6686 = vset.pattern.permute.xlu0 97
    %6687 = vperm.xlu0 %6686, %v2005
    %v6688 = vpop.permute.xlu0 %6687
    %6690 = vset.pattern.permute.xlu0 97
    %6691 = vperm.xlu0 %6690, %v2007
    %v6692 = vpop.permute.xlu0 %6691
    %v6694 = vmul.f32 %v6688, %v6367
    %v6695 = vmul.f32 %v6692, %v6371
    %v6696 = vadd.f32 %v6684, %v6694
    %v6697 = vadd.f32 %v6685, %v6695
    %6698 = vset.pattern.permute.xlu0 98
    %6699 = vperm.xlu0 %6698, %v2005
    %v6700 = vpop.permute.xlu0 %6699
    %6702 = vset.pattern.permute.xlu0 98
    %6703 = vperm.xlu0 %6702, %v2007
    %v6704 = vpop.permute.xlu0 %6703
    %v6706 = vmul.f32 %v6700, %v6408
    %v6707 = vmul.f32 %v6704, %v6412
    %v6708 = vadd.f32 %v6696, %v6706
    %v6709 = vadd.f32 %v6697, %v6707
    %6710 = vset.pattern.permute.xlu0 99
    %6711 = vperm.xlu0 %6710, %v2005
    %v6712 = vpop.permute.xlu0 %6711
    %6714 = vset.pattern.permute.xlu0 99
    %6715 = vperm.xlu0 %6714, %v2007
    %v6716 = vpop.permute.xlu0 %6715
    %v6718 = vmul.f32 %v6712, %v6410
    %v6719 = vmul.f32 %v6716, %v6414
    %v6720 = vadd.f32 %v6708, %v6718
    %v6721 = vadd.f32 %v6709, %v6719
    %6722 = vset.pattern.permute.xlu0 100
    %6723 = vperm.xlu0 %6722, %v2005
    %v6724 = vpop.permute.xlu0 %6723
    %6726 = vset.pattern.permute.xlu0 100
    %6727 = vperm.xlu0 %6726, %v2007
    %v6728 = vpop.permute.xlu0 %6727
    %v6730 = vmul.f32 %v6724, %v6451
    %v6731 = vmul.f32 %v6728, %v6455
    %v6732 = vadd.f32 %v6720, %v6730
    %v6733 = vadd.f32 %v6721, %v6731
    %6734 = vset.pattern.permute.xlu0 101
    %6735 = vperm.xlu0 %6734, %v2005
    %v6736 = vpop.permute.xlu0 %6735
    %6738 = vset.pattern.permute.xlu0 101
    %6739 = vperm.xlu0 %6738, %v2007
    %v6740 = vpop.permute.xlu0 %6739
    %v6742 = vmul.f32 %v6736, %v6453
    %v6743 = vmul.f32 %v6740, %v6457
    %v6744 = vadd.f32 %v6732, %v6742
    %v6745 = vadd.f32 %v6733, %v6743
    %6746 = vset.pattern.permute.xlu0 102
    %6747 = vperm.xlu0 %6746, %v2005
    %v6748 = vpop.permute.xlu0 %6747
    %6750 = vset.pattern.permute.xlu0 102
    %6751 = vperm.xlu0 %6750, %v2007
    %v6752 = vpop.permute.xlu0 %6751
    %v6754 = vmul.f32 %v6748, %v6494
    %v6755 = vmul.f32 %v6752, %v6498
    %v6756 = vadd.f32 %v6744, %v6754
    %v6757 = vadd.f32 %v6745, %v6755
    %6758 = vset.pattern.permute.xlu0 103
    %6759 = vperm.xlu0 %6758, %v2005
    %v6760 = vpop.permute.xlu0 %6759
    %6762 = vset.pattern.permute.xlu0 103
    %6763 = vperm.xlu0 %6762, %v2007
    %v6764 = vpop.permute.xlu0 %6763
    %v6766 = vmul.f32 %v6760, %v6496
    %v6767 = vmul.f32 %v6764, %v6500
    %v6768 = vadd.f32 %v6756, %v6766
    %v6769 = vadd.f32 %v6757, %v6767
    %6770 = vset.pattern.permute.xlu0 104
    %6771 = vperm.xlu0 %6770, %v2005
    %v6772 = vpop.permute.xlu0 %6771
    %6774 = vset.pattern.permute.xlu0 104
    %6775 = vperm.xlu0 %6774, %v2007
    %v6776 = vpop.permute.xlu0 %6775
    %v6778 = vmul.f32 %v6772, %v6537
    %v6779 = vmul.f32 %v6776, %v6541
    %v6780 = vadd.f32 %v6768, %v6778
    %v6781 = vadd.f32 %v6769, %v6779
    %6782 = vset.pattern.permute.xlu0 105
    %6783 = vperm.xlu0 %6782, %v2005
    %v6784 = vpop.permute.xlu0 %6783
    %6786 = vset.pattern.permute.xlu0 105
    %6787 = vperm.xlu0 %6786, %v2007
    %v6788 = vpop.permute.xlu0 %6787
    %v6790 = vmul.f32 %v6784, %v6539
    %v6791 = vmul.f32 %v6788, %v6543
    %v6792 = vadd.f32 %v6780, %v6790
    %v6793 = vadd.f32 %v6781, %v6791
    %6794 = vset.pattern.permute.xlu0 106
    %6795 = vperm.xlu0 %6794, %v2005
    %v6796 = vpop.permute.xlu0 %6795
    %6798 = vset.pattern.permute.xlu0 106
    %6799 = vperm.xlu0 %6798, %v2007
    %v6800 = vpop.permute.xlu0 %6799
    %v6802 = vmul.f32 %v6796, %v6580
    %v6803 = vmul.f32 %v6800, %v6584
    %v6804 = vadd.f32 %v6792, %v6802
    %v6805 = vadd.f32 %v6793, %v6803
    %6806 = vset.pattern.permute.xlu0 107
    %6807 = vperm.xlu0 %6806, %v2005
    %v6808 = vpop.permute.xlu0 %6807
    %6810 = vset.pattern.permute.xlu0 107
    %6811 = vperm.xlu0 %6810, %v2007
    %v6812 = vpop.permute.xlu0 %6811
    %v6814 = vmul.f32 %v6808, %v6582
    %v6815 = vmul.f32 %v6812, %v6586
    %v6816 = vadd.f32 %v6804, %v6814
    %v6817 = vadd.f32 %v6805, %v6815
    %6818 = vset.pattern.permute.xlu0 108
    %6819 = vperm.xlu0 %6818, %v2005
    %v6820 = vpop.permute.xlu0 %6819
    %6822 = vset.pattern.permute.xlu0 108
    %6823 = vperm.xlu0 %6822, %v2007
    %v6824 = vpop.permute.xlu0 %6823
    %v6826 = vmul.f32 %v6820, %v6623
    %v6827 = vmul.f32 %v6824, %v6627
    %v6828 = vadd.f32 %v6816, %v6826
    %v6829 = vadd.f32 %v6817, %v6827
    %6830 = vset.pattern.permute.xlu0 109
    %6831 = vperm.xlu0 %6830, %v2005
    %v6832 = vpop.permute.xlu0 %6831
    %6834 = vset.pattern.permute.xlu0 109
    %6835 = vperm.xlu0 %6834, %v2007
    %v6836 = vpop.permute.xlu0 %6835
    %v6838 = vmul.f32 %v6832, %v6625
    %v6839 = vmul.f32 %v6836, %v6629
    %v6840 = vadd.f32 %v6828, %v6838
    %v6841 = vadd.f32 %v6829, %v6839
    %6842 = vset.pattern.permute.xlu0 110
    %6843 = vperm.xlu0 %6842, %v2005
    %v6844 = vpop.permute.xlu0 %6843
    %6846 = vset.pattern.permute.xlu0 110
    %6847 = vperm.xlu0 %6846, %v2007
    %v6848 = vpop.permute.xlu0 %6847
    %v6850 = vmul.f32 %v6844, %v6666
    %v6851 = vmul.f32 %v6848, %v6670
    %v6852 = vadd.f32 %v6840, %v6850
    %v6853 = vadd.f32 %v6841, %v6851
    %6854 = vset.pattern.permute.xlu0 111
    %6855 = vperm.xlu0 %6854, %v2005
    %v6856 = vpop.permute.xlu0 %6855
    %6858 = vset.pattern.permute.xlu0 111
    %6859 = vperm.xlu0 %6858, %v2007
    %v6860 = vpop.permute.xlu0 %6859
    %v6862 = vmul.f32 %v6856, %v6668
    %v6863 = vmul.f32 %v6860, %v6672
    %v6864 = vadd.f32 %v6852, %v6862
    %v6865 = vadd.f32 %v6853, %v6863
    %s6866 = sshll.u32 %s2061, 4
    %6867 = dma.done %s2025, %s6866
    %v6868 = vld [vmem:[%s2024] sm:$0xff]
    %v6869 = vld [vmem:[%s2024 + $0x8] sm:$0xff]
    %v6870 = vld [vmem:[%s2024 + $0x10] sm:$0xff]
    %v6871 = vld [vmem:[%s2024 + $0x18] sm:$0xff]
    %v6872 = vld [vmem:[%s2024 + $0x20] sm:$0xff]
    %v6873 = vld [vmem:[%s2024 + $0x28] sm:$0xff]
    %v6874 = vld [vmem:[%s2024 + $0x30] sm:$0xff]
    %v6875 = vld [vmem:[%s2024 + $0x38] sm:$0xff]
    %v6876 = vld [vmem:[%s2024 + $0x40] sm:$0xff]
    %v6877 = vld [vmem:[%s2024 + $0x48] sm:$0xff]
    %v6878 = vld [vmem:[%s2024 + $0x50] sm:$0xff]
    %v6879 = vld [vmem:[%s2024 + $0x58] sm:$0xff]
    %v6880 = vld [vmem:[%s2024 + $0x60] sm:$0xff]
    %v6881 = vld [vmem:[%s2024 + $0x68] sm:$0xff]
    %v6882 = vld [vmem:[%s2024 + $0x70] sm:$0xff]
    %v6883 = vld [vmem:[%s2024 + $0x78] sm:$0xff]
    %v6884 = vld [vmem:[%s2024 + $0x80] sm:$0xff]
    %v6885 = vld [vmem:[%s2024 + $0x88] sm:$0xff]
    %v6886 = vld [vmem:[%s2024 + $0x90] sm:$0xff]
    %v6887 = vld [vmem:[%s2024 + $0x98] sm:$0xff]
    %v6888 = vld [vmem:[%s2024 + $0xa0] sm:$0xff]
    %v6889 = vld [vmem:[%s2024 + $0xa8] sm:$0xff]
    %v6890 = vld [vmem:[%s2024 + $0xb0] sm:$0xff]
    %v6891 = vld [vmem:[%s2024 + $0xb8] sm:$0xff]
    %v6892 = vld [vmem:[%s2024 + $0xc0] sm:$0xff]
    %v6893 = vld [vmem:[%s2024 + $0xc8] sm:$0xff]
    %v6894 = vld [vmem:[%s2024 + $0xd0] sm:$0xff]
    %v6895 = vld [vmem:[%s2024 + $0xd8] sm:$0xff]
    %v6896 = vld [vmem:[%s2024 + $0xe0] sm:$0xff]
    %v6897 = vld [vmem:[%s2024 + $0xe8] sm:$0xff]
    %v6898 = vld [vmem:[%s2024 + $0xf0] sm:$0xff]
    %v6899 = vld [vmem:[%s2024 + $0xf8] sm:$0xff]
    %v6900 = vld [vmem:[%s2024 + $0x100] sm:$0xff]
    %v6901 = vld [vmem:[%s2024 + $0x108] sm:$0xff]
    %v6902 = vld [vmem:[%s2024 + $0x110] sm:$0xff]
    %v6903 = vld [vmem:[%s2024 + $0x118] sm:$0xff]
    %v6904 = vld [vmem:[%s2024 + $0x120] sm:$0xff]
    %v6905 = vld [vmem:[%s2024 + $0x128] sm:$0xff]
    %v6906 = vld [vmem:[%s2024 + $0x130] sm:$0xff]
    %v6907 = vld [vmem:[%s2024 + $0x138] sm:$0xff]
    %v6908 = vld [vmem:[%s2024 + $0x140] sm:$0xff]
    %v6909 = vld [vmem:[%s2024 + $0x148] sm:$0xff]
    %v6910 = vld [vmem:[%s2024 + $0x150] sm:$0xff]
    %v6911 = vld [vmem:[%s2024 + $0x158] sm:$0xff]
    %v6912 = vld [vmem:[%s2024 + $0x160] sm:$0xff]
    %v6913 = vld [vmem:[%s2024 + $0x168] sm:$0xff]
    %v6914 = vld [vmem:[%s2024 + $0x170] sm:$0xff]
    %v6915 = vld [vmem:[%s2024 + $0x178] sm:$0xff]
    %v6916 = vld [vmem:[%s2024 + $0x180] sm:$0xff]
    %v6917 = vld [vmem:[%s2024 + $0x188] sm:$0xff]
    %v6918 = vld [vmem:[%s2024 + $0x190] sm:$0xff]
    %v6919 = vld [vmem:[%s2024 + $0x198] sm:$0xff]
    %v6920 = vld [vmem:[%s2024 + $0x1a0] sm:$0xff]
    %v6921 = vld [vmem:[%s2024 + $0x1a8] sm:$0xff]
    %v6922 = vld [vmem:[%s2024 + $0x1b0] sm:$0xff]
    %v6923 = vld [vmem:[%s2024 + $0x1b8] sm:$0xff]
    %v6924 = vld [vmem:[%s2024 + $0x1c0] sm:$0xff]
    %v6925 = vld [vmem:[%s2024 + $0x1c8] sm:$0xff]
    %v6926 = vld [vmem:[%s2024 + $0x1d0] sm:$0xff]
    %v6927 = vld [vmem:[%s2024 + $0x1d8] sm:$0xff]
    %v6928 = vld [vmem:[%s2024 + $0x1e0] sm:$0xff]
    %v6929 = vld [vmem:[%s2024 + $0x1e8] sm:$0xff]
    %v6930 = vld [vmem:[%s2024 + $0x1f0] sm:$0xff]
    %v6931 = vld [vmem:[%s2024 + $0x1f8] sm:$0xff]
    %v6932 = vld [vmem:[%s2024 + $0x200] sm:$0xff]
    %v6933 = vld [vmem:[%s2024 + $0x208] sm:$0xff]
    %v6934 = vld [vmem:[%s2024 + $0x210] sm:$0xff]
    %v6935 = vld [vmem:[%s2024 + $0x218] sm:$0xff]
    %v6936 = vld [vmem:[%s2024 + $0x220] sm:$0xff]
    %v6937 = vld [vmem:[%s2024 + $0x228] sm:$0xff]
    %v6938 = vld [vmem:[%s2024 + $0x230] sm:$0xff]
    %v6939 = vld [vmem:[%s2024 + $0x238] sm:$0xff]
    %v6940 = vld [vmem:[%s2024 + $0x240] sm:$0xff]
    %v6941 = vld [vmem:[%s2024 + $0x248] sm:$0xff]
    %v6942 = vld [vmem:[%s2024 + $0x250] sm:$0xff]
    %v6943 = vld [vmem:[%s2024 + $0x258] sm:$0xff]
    %v6944 = vld [vmem:[%s2024 + $0x260] sm:$0xff]
    %v6945 = vld [vmem:[%s2024 + $0x268] sm:$0xff]
    %v6946 = vld [vmem:[%s2024 + $0x270] sm:$0xff]
    %v6947 = vld [vmem:[%s2024 + $0x278] sm:$0xff]
    %v6948 = vld [vmem:[%s2024 + $0x280] sm:$0xff]
    %v6949 = vld [vmem:[%s2024 + $0x288] sm:$0xff]
    %v6950 = vld [vmem:[%s2024 + $0x290] sm:$0xff]
    %v6951 = vld [vmem:[%s2024 + $0x298] sm:$0xff]
    %v6952 = vld [vmem:[%s2024 + $0x2a0] sm:$0xff]
    %v6953 = vld [vmem:[%s2024 + $0x2a8] sm:$0xff]
    %v6954 = vld [vmem:[%s2024 + $0x2b0] sm:$0xff]
    %v6955 = vld [vmem:[%s2024 + $0x2b8] sm:$0xff]
    %v6956 = vld [vmem:[%s2024 + $0x2c0] sm:$0xff]
    %v6957 = vld [vmem:[%s2024 + $0x2c8] sm:$0xff]
    %v6958 = vld [vmem:[%s2024 + $0x2d0] sm:$0xff]
    %v6959 = vld [vmem:[%s2024 + $0x2d8] sm:$0xff]
    %v6960 = vld [vmem:[%s2024 + $0x2e0] sm:$0xff]
    %v6961 = vld [vmem:[%s2024 + $0x2e8] sm:$0xff]
    %v6962 = vld [vmem:[%s2024 + $0x2f0] sm:$0xff]
    %v6963 = vld [vmem:[%s2024 + $0x2f8] sm:$0xff]
    %v6964 = vld [vmem:[%s2024 + $0x300] sm:$0xff]
    %v6965 = vld [vmem:[%s2024 + $0x308] sm:$0xff]
    %v6966 = vld [vmem:[%s2024 + $0x310] sm:$0xff]
    %v6967 = vld [vmem:[%s2024 + $0x318] sm:$0xff]
    %v6968 = vld [vmem:[%s2024 + $0x320] sm:$0xff]
    %v6969 = vld [vmem:[%s2024 + $0x328] sm:$0xff]
    %v6970 = vld [vmem:[%s2024 + $0x330] sm:$0xff]
    %v6971 = vld [vmem:[%s2024 + $0x338] sm:$0xff]
    %v6972 = vld [vmem:[%s2024 + $0x340] sm:$0xff]
    %v6973 = vld [vmem:[%s2024 + $0x348] sm:$0xff]
    %v6974 = vld [vmem:[%s2024 + $0x350] sm:$0xff]
    %v6975 = vld [vmem:[%s2024 + $0x358] sm:$0xff]
    %v6976 = vld [vmem:[%s2024 + $0x360] sm:$0xff]
    %v6977 = vld [vmem:[%s2024 + $0x368] sm:$0xff]
    %v6978 = vld [vmem:[%s2024 + $0x370] sm:$0xff]
    %v6979 = vld [vmem:[%s2024 + $0x378] sm:$0xff]
    %v6980 = vld [vmem:[%s2024 + $0x380] sm:$0xff]
    %v6981 = vld [vmem:[%s2024 + $0x388] sm:$0xff]
    %v6982 = vld [vmem:[%s2024 + $0x390] sm:$0xff]
    %v6983 = vld [vmem:[%s2024 + $0x398] sm:$0xff]
    %v6984 = vld [vmem:[%s2024 + $0x3a0] sm:$0xff]
    %v6985 = vld [vmem:[%s2024 + $0x3a8] sm:$0xff]
    %v6986 = vld [vmem:[%s2024 + $0x3b0] sm:$0xff]
    %v6987 = vld [vmem:[%s2024 + $0x3b8] sm:$0xff]
    %v6988 = vld [vmem:[%s2024 + $0x3c0] sm:$0xff]
    %v6989 = vld [vmem:[%s2024 + $0x3c8] sm:$0xff]
    %v6990 = vld [vmem:[%s2024 + $0x3d0] sm:$0xff]
    %v6991 = vld [vmem:[%s2024 + $0x3d8] sm:$0xff]
    %v6992 = vld [vmem:[%s2024 + $0x3e0] sm:$0xff]
    %v6993 = vld [vmem:[%s2024 + $0x3e8] sm:$0xff]
    %v6994 = vld [vmem:[%s2024 + $0x3f0] sm:$0xff]
    %v6995 = vld [vmem:[%s2024 + $0x3f8] sm:$0xff]
    %6996 = vmatprep.subr.bf16.mxu0 %v6869
    %6997 = vmatpush1.bf16.msra.mxu0 %v6868
    %6998 = vmatprep.subr.bf16.mxu0 %v6885
    %6999 = vmatpush1.bf16.msra.mxu0 %v6884
    %7000 = vmatprep.subr.bf16.mxu0 %v6901
    %7001 = vmatpush1.bf16.msra.mxu0 %v6900
    %7002 = vmatprep.subr.bf16.mxu0 %v6917
    %7003 = vmatpush1.bf16.msra.mxu0 %v6916
    %7004 = vmatprep.subr.bf16.mxu0 %v6933
    %7005 = vmatpush1.bf16.msra.mxu0 %v6932
    %7006 = vmatprep.subr.bf16.mxu0 %v6949
    %7007 = vmatpush1.bf16.msra.mxu0 %v6948
    %7008 = vmatprep.subr.bf16.mxu0 %v6965
    %7009 = vmatpush1.bf16.msra.mxu0 %v6964
    %7010 = vmatprep.subr.bf16.mxu0 %v6981
    %7011 = vmatpush1.bf16.msra.mxu0 %v6980
    %7012 = vmatprep.subr.bf16.mxu0 0
    %7013 = vmatpush1.bf16.msra.mxu0 0
    %7014 = vmatprep.subr.bf16.mxu0 0
    %7015 = vmatpush1.bf16.msra.mxu0 0
    %7016 = vmatprep.subr.bf16.mxu0 0
    %7017 = vmatpush1.bf16.msra.mxu0 0
    %7018 = vmatprep.subr.bf16.mxu0 0
    %7019 = vmatpush1.bf16.msra.mxu0 0
    %7020 = vmatprep.subr.bf16.mxu0 0
    %7021 = vmatpush1.bf16.msra.mxu0 0
    %7022 = vmatprep.subr.bf16.mxu0 0
    %7023 = vmatpush1.bf16.msra.mxu0 0
    %7024 = vmatprep.subr.bf16.mxu0 0
    %7025 = vmatpush1.bf16.msra.mxu0 0
    %7026 = vmatprep.subr.bf16.mxu0 0
    %7027 = vmatpush1.bf16.msra.mxu0 0
    %7028 = vmatprep.mubr.bf16.mxu0 0
    %7029 = vmatmul.mubr.bf16.gmra.mrb[0].mxu0 %v2022
    %v7030 = vpop.f32.mrb[0].mxu0
    %v7031 = vadd.f32 0.0, %v7030
    %v7032 = vpop.f32.mrb[0].mxu0
    %v7033 = vadd.f32 0.0, %v7032
    %v7034 = vpop.f32.mrb[0].mxu0
    %v7035 = vadd.f32 0.0, %v7034
    %v7036 = vpop.f32.mrb[0].mxu0
    %v7037 = vadd.f32 0.0, %v7036
    %7038 = vdwg.mxu0
    %7039 = vmatprep.subr.bf16.mxu0 %v6871
    %7040 = vmatpush1.bf16.msra.mxu0 %v6870
    %7041 = vmatprep.subr.bf16.mxu0 %v6887
    %7042 = vmatpush1.bf16.msra.mxu0 %v6886
    %7043 = vmatprep.subr.bf16.mxu0 %v6903
    %7044 = vmatpush1.bf16.msra.mxu0 %v6902
    %7045 = vmatprep.subr.bf16.mxu0 %v6919
    %7046 = vmatpush1.bf16.msra.mxu0 %v6918
    %7047 = vmatprep.subr.bf16.mxu0 %v6935
    %7048 = vmatpush1.bf16.msra.mxu0 %v6934
    %7049 = vmatprep.subr.bf16.mxu0 %v6951
    %7050 = vmatpush1.bf16.msra.mxu0 %v6950
    %7051 = vmatprep.subr.bf16.mxu0 %v6967
    %7052 = vmatpush1.bf16.msra.mxu0 %v6966
    %7053 = vmatprep.subr.bf16.mxu0 %v6983
    %7054 = vmatpush1.bf16.msra.mxu0 %v6982
    %7055 = vmatprep.subr.bf16.mxu0 0
    %7056 = vmatpush1.bf16.msra.mxu0 0
    %7057 = vmatprep.subr.bf16.mxu0 0
    %7058 = vmatpush1.bf16.msra.mxu0 0
    %7059 = vmatprep.subr.bf16.mxu0 0
    %7060 = vmatpush1.bf16.msra.mxu0 0
    %7061 = vmatprep.subr.bf16.mxu0 0
    %7062 = vmatpush1.bf16.msra.mxu0 0
    %7063 = vmatprep.subr.bf16.mxu0 0
    %7064 = vmatpush1.bf16.msra.mxu0 0
    %7065 = vmatprep.subr.bf16.mxu0 0
    %7066 = vmatpush1.bf16.msra.mxu0 0
    %7067 = vmatprep.subr.bf16.mxu0 0
    %7068 = vmatpush1.bf16.msra.mxu0 0
    %7069 = vmatprep.subr.bf16.mxu0 0
    %7070 = vmatpush1.bf16.msra.mxu0 0
    %7071 = vmatprep.mubr.bf16.mxu0 0
    %7072 = vmatmul.mubr.bf16.gmra.mrb[0].mxu0 %v2022
    %v7073 = vpop.f32.mrb[0].mxu0
    %v7074 = vadd.f32 0.0, %v7073
    %v7075 = vpop.f32.mrb[0].mxu0
    %v7076 = vadd.f32 0.0, %v7075
    %v7077 = vpop.f32.mrb[0].mxu0
    %v7078 = vadd.f32 0.0, %v7077
    %v7079 = vpop.f32.mrb[0].mxu0
    %v7080 = vadd.f32 0.0, %v7079
    %7081 = vdwg.mxu0
    %7082 = vmatprep.subr.bf16.mxu0 %v6873
    %7083 = vmatpush1.bf16.msra.mxu0 %v6872
    %7084 = vmatprep.subr.bf16.mxu0 %v6889
    %7085 = vmatpush1.bf16.msra.mxu0 %v6888
    %7086 = vmatprep.subr.bf16.mxu0 %v6905
    %7087 = vmatpush1.bf16.msra.mxu0 %v6904
    %7088 = vmatprep.subr.bf16.mxu0 %v6921
    %7089 = vmatpush1.bf16.msra.mxu0 %v6920
    %7090 = vmatprep.subr.bf16.mxu0 %v6937
    %7091 = vmatpush1.bf16.msra.mxu0 %v6936
    %7092 = vmatprep.subr.bf16.mxu0 %v6953
    %7093 = vmatpush1.bf16.msra.mxu0 %v6952
    %7094 = vmatprep.subr.bf16.mxu0 %v6969
    %7095 = vmatpush1.bf16.msra.mxu0 %v6968
    %7096 = vmatprep.subr.bf16.mxu0 %v6985
    %7097 = vmatpush1.bf16.msra.mxu0 %v6984
    %7098 = vmatprep.subr.bf16.mxu0 0
    %7099 = vmatpush1.bf16.msra.mxu0 0
    %7100 = vmatprep.subr.bf16.mxu0 0
    %7101 = vmatpush1.bf16.msra.mxu0 0
    %7102 = vmatprep.subr.bf16.mxu0 0
    %7103 = vmatpush1.bf16.msra.mxu0 0
    %7104 = vmatprep.subr.bf16.mxu0 0
    %7105 = vmatpush1.bf16.msra.mxu0 0
    %7106 = vmatprep.subr.bf16.mxu0 0
    %7107 = vmatpush1.bf16.msra.mxu0 0
    %7108 = vmatprep.subr.bf16.mxu0 0
    %7109 = vmatpush1.bf16.msra.mxu0 0
    %7110 = vmatprep.subr.bf16.mxu0 0
    %7111 = vmatpush1.bf16.msra.mxu0 0
    %7112 = vmatprep.subr.bf16.mxu0 0
    %7113 = vmatpush1.bf16.msra.mxu0 0
    %7114 = vmatprep.mubr.bf16.mxu0 0
    %7115 = vmatmul.mubr.bf16.gmra.mrb[0].mxu0 %v2022
    %v7116 = vpop.f32.mrb[0].mxu0
    %v7117 = vadd.f32 0.0, %v7116
    %v7118 = vpop.f32.mrb[0].mxu0
    %v7119 = vadd.f32 0.0, %v7118
    %v7120 = vpop.f32.mrb[0].mxu0
    %v7121 = vadd.f32 0.0, %v7120
    %v7122 = vpop.f32.mrb[0].mxu0
    %v7123 = vadd.f32 0.0, %v7122
    %7124 = vdwg.mxu0
    %7125 = vmatprep.subr.bf16.mxu0 %v6875
    %7126 = vmatpush1.bf16.msra.mxu0 %v6874
    %7127 = vmatprep.subr.bf16.mxu0 %v6891
    %7128 = vmatpush1.bf16.msra.mxu0 %v6890
    %7129 = vmatprep.subr.bf16.mxu0 %v6907
    %7130 = vmatpush1.bf16.msra.mxu0 %v6906
    %7131 = vmatprep.subr.bf16.mxu0 %v6923
    %7132 = vmatpush1.bf16.msra.mxu0 %v6922
    %7133 = vmatprep.subr.bf16.mxu0 %v6939
    %7134 = vmatpush1.bf16.msra.mxu0 %v6938
    %7135 = vmatprep.subr.bf16.mxu0 %v6955
    %7136 = vmatpush1.bf16.msra.mxu0 %v6954
    %7137 = vmatprep.subr.bf16.mxu0 %v6971
    %7138 = vmatpush1.bf16.msra.mxu0 %v6970
    %7139 = vmatprep.subr.bf16.mxu0 %v6987
    %7140 = vmatpush1.bf16.msra.mxu0 %v6986
    %7141 = vmatprep.subr.bf16.mxu0 0
    %7142 = vmatpush1.bf16.msra.mxu0 0
    %7143 = vmatprep.subr.bf16.mxu0 0
    %7144 = vmatpush1.bf16.msra.mxu0 0
    %7145 = vmatprep.subr.bf16.mxu0 0
    %7146 = vmatpush1.bf16.msra.mxu0 0
    %7147 = vmatprep.subr.bf16.mxu0 0
    %7148 = vmatpush1.bf16.msra.mxu0 0
    %7149 = vmatprep.subr.bf16.mxu0 0
    %7150 = vmatpush1.bf16.msra.mxu0 0
    %7151 = vmatprep.subr.bf16.mxu0 0
    %7152 = vmatpush1.bf16.msra.mxu0 0
    %7153 = vmatprep.subr.bf16.mxu0 0
    %7154 = vmatpush1.bf16.msra.mxu0 0
    %7155 = vmatprep.subr.bf16.mxu0 0
    %7156 = vmatpush1.bf16.msra.mxu0 0
    %7157 = vmatprep.mubr.bf16.mxu0 0
    %7158 = vmatmul.mubr.bf16.gmra.mrb[0].mxu0 %v2022
    %v7159 = vpop.f32.mrb[0].mxu0
    %v7160 = vadd.f32 0.0, %v7159
    %v7161 = vpop.f32.mrb[0].mxu0
    %v7162 = vadd.f32 0.0, %v7161
    %v7163 = vpop.f32.mrb[0].mxu0
    %v7164 = vadd.f32 0.0, %v7163
    %v7165 = vpop.f32.mrb[0].mxu0
    %v7166 = vadd.f32 0.0, %v7165
    %7167 = vdwg.mxu0
    %7168 = vmatprep.subr.bf16.mxu0 %v6877
    %7169 = vmatpush1.bf16.msra.mxu0 %v6876
    %7170 = vmatprep.subr.bf16.mxu0 %v6893
    %7171 = vmatpush1.bf16.msra.mxu0 %v6892
    %7172 = vmatprep.subr.bf16.mxu0 %v6909
    %7173 = vmatpush1.bf16.msra.mxu0 %v6908
    %7174 = vmatprep.subr.bf16.mxu0 %v6925
    %7175 = vmatpush1.bf16.msra.mxu0 %v6924
    %7176 = vmatprep.subr.bf16.mxu0 %v6941
    %7177 = vmatpush1.bf16.msra.mxu0 %v6940
    %7178 = vmatprep.subr.bf16.mxu0 %v6957
    %7179 = vmatpush1.bf16.msra.mxu0 %v6956
    %7180 = vmatprep.subr.bf16.mxu0 %v6973
    %7181 = vmatpush1.bf16.msra.mxu0 %v6972
    %7182 = vmatprep.subr.bf16.mxu0 %v6989
    %7183 = vmatpush1.bf16.msra.mxu0 %v6988
    %7184 = vmatprep.subr.bf16.mxu0 0
    %7185 = vmatpush1.bf16.msra.mxu0 0
    %7186 = vmatprep.subr.bf16.mxu0 0
    %7187 = vmatpush1.bf16.msra.mxu0 0
    %7188 = vmatprep.subr.bf16.mxu0 0
    %7189 = vmatpush1.bf16.msra.mxu0 0
    %7190 = vmatprep.subr.bf16.mxu0 0
    %7191 = vmatpush1.bf16.msra.mxu0 0
    %7192 = vmatprep.subr.bf16.mxu0 0
    %7193 = vmatpush1.bf16.msra.mxu0 0
    %7194 = vmatprep.subr.bf16.mxu0 0
    %7195 = vmatpush1.bf16.msra.mxu0 0
    %7196 = vmatprep.subr.bf16.mxu0 0
    %7197 = vmatpush1.bf16.msra.mxu0 0
    %7198 = vmatprep.subr.bf16.mxu0 0
    %7199 = vmatpush1.bf16.msra.mxu0 0
    %7200 = vmatprep.mubr.bf16.mxu0 0
    %7201 = vmatmul.mubr.bf16.gmra.mrb[0].mxu0 %v2022
    %v7202 = vpop.f32.mrb[0].mxu0
    %v7203 = vadd.f32 0.0, %v7202
    %v7204 = vpop.f32.mrb[0].mxu0
    %v7205 = vadd.f32 0.0, %v7204
    %v7206 = vpop.f32.mrb[0].mxu0
    %v7207 = vadd.f32 0.0, %v7206
    %v7208 = vpop.f32.mrb[0].mxu0
    %v7209 = vadd.f32 0.0, %v7208
    %7210 = vdwg.mxu0
    %7211 = vmatprep.subr.bf16.mxu0 %v6879
    %7212 = vmatpush1.bf16.msra.mxu0 %v6878
    %7213 = vmatprep.subr.bf16.mxu0 %v6895
    %7214 = vmatpush1.bf16.msra.mxu0 %v6894
    %7215 = vmatprep.subr.bf16.mxu0 %v6911
    %7216 = vmatpush1.bf16.msra.mxu0 %v6910
    %7217 = vmatprep.subr.bf16.mxu0 %v6927
    %7218 = vmatpush1.bf16.msra.mxu0 %v6926
    %7219 = vmatprep.subr.bf16.mxu0 %v6943
    %7220 = vmatpush1.bf16.msra.mxu0 %v6942
    %7221 = vmatprep.subr.bf16.mxu0 %v6959
    %7222 = vmatpush1.bf16.msra.mxu0 %v6958
    %7223 = vmatprep.subr.bf16.mxu0 %v6975
    %7224 = vmatpush1.bf16.msra.mxu0 %v6974
    %7225 = vmatprep.subr.bf16.mxu0 %v6991
    %7226 = vmatpush1.bf16.msra.mxu0 %v6990
    %7227 = vmatprep.subr.bf16.mxu0 0
    %7228 = vmatpush1.bf16.msra.mxu0 0
    %7229 = vmatprep.subr.bf16.mxu0 0
    %7230 = vmatpush1.bf16.msra.mxu0 0
    %7231 = vmatprep.subr.bf16.mxu0 0
    %7232 = vmatpush1.bf16.msra.mxu0 0
    %7233 = vmatprep.subr.bf16.mxu0 0
    %7234 = vmatpush1.bf16.msra.mxu0 0
    %7235 = vmatprep.subr.bf16.mxu0 0
    %7236 = vmatpush1.bf16.msra.mxu0 0
    %7237 = vmatprep.subr.bf16.mxu0 0
    %7238 = vmatpush1.bf16.msra.mxu0 0
    %7239 = vmatprep.subr.bf16.mxu0 0
    %7240 = vmatpush1.bf16.msra.mxu0 0
    %7241 = vmatprep.subr.bf16.mxu0 0
    %7242 = vmatpush1.bf16.msra.mxu0 0
    %7243 = vmatprep.mubr.bf16.mxu0 0
    %7244 = vmatmul.mubr.bf16.gmra.mrb[0].mxu0 %v2022
    %v7245 = vpop.f32.mrb[0].mxu0
    %v7246 = vadd.f32 0.0, %v7245
    %v7247 = vpop.f32.mrb[0].mxu0
    %v7248 = vadd.f32 0.0, %v7247
    %v7249 = vpop.f32.mrb[0].mxu0
    %v7250 = vadd.f32 0.0, %v7249
    %v7251 = vpop.f32.mrb[0].mxu0
    %v7252 = vadd.f32 0.0, %v7251
    %7253 = vdwg.mxu0
    %7254 = vmatprep.subr.bf16.mxu0 %v6881
    %7255 = vmatpush1.bf16.msra.mxu0 %v6880
    %7256 = vmatprep.subr.bf16.mxu0 %v6897
    %7257 = vmatpush1.bf16.msra.mxu0 %v6896
    %7258 = vmatprep.subr.bf16.mxu0 %v6913
    %7259 = vmatpush1.bf16.msra.mxu0 %v6912
    %7260 = vmatprep.subr.bf16.mxu0 %v6929
    %7261 = vmatpush1.bf16.msra.mxu0 %v6928
    %7262 = vmatprep.subr.bf16.mxu0 %v6945
    %7263 = vmatpush1.bf16.msra.mxu0 %v6944
    %7264 = vmatprep.subr.bf16.mxu0 %v6961
    %7265 = vmatpush1.bf16.msra.mxu0 %v6960
    %7266 = vmatprep.subr.bf16.mxu0 %v6977
    %7267 = vmatpush1.bf16.msra.mxu0 %v6976
    %7268 = vmatprep.subr.bf16.mxu0 %v6993
    %7269 = vmatpush1.bf16.msra.mxu0 %v6992
    %7270 = vmatprep.subr.bf16.mxu0 0
    %7271 = vmatpush1.bf16.msra.mxu0 0
    %7272 = vmatprep.subr.bf16.mxu0 0
    %7273 = vmatpush1.bf16.msra.mxu0 0
    %7274 = vmatprep.subr.bf16.mxu0 0
    %7275 = vmatpush1.bf16.msra.mxu0 0
    %7276 = vmatprep.subr.bf16.mxu0 0
    %7277 = vmatpush1.bf16.msra.mxu0 0
    %7278 = vmatprep.subr.bf16.mxu0 0
    %7279 = vmatpush1.bf16.msra.mxu0 0
    %7280 = vmatprep.subr.bf16.mxu0 0
    %7281 = vmatpush1.bf16.msra.mxu0 0
    %7282 = vmatprep.subr.bf16.mxu0 0
    %7283 = vmatpush1.bf16.msra.mxu0 0
    %7284 = vmatprep.subr.bf16.mxu0 0
    %7285 = vmatpush1.bf16.msra.mxu0 0
    %7286 = vmatprep.mubr.bf16.mxu0 0
    %7287 = vmatmul.mubr.bf16.gmra.mrb[0].mxu0 %v2022
    %v7288 = vpop.f32.mrb[0].mxu0
    %v7289 = vadd.f32 0.0, %v7288
    %v7290 = vpop.f32.mrb[0].mxu0
    %v7291 = vadd.f32 0.0, %v7290
    %v7292 = vpop.f32.mrb[0].mxu0
    %v7293 = vadd.f32 0.0, %v7292
    %v7294 = vpop.f32.mrb[0].mxu0
    %v7295 = vadd.f32 0.0, %v7294
    %7296 = vdwg.mxu0
    %7297 = vmatprep.subr.bf16.mxu0 %v6883
    %7298 = vmatpush1.bf16.msra.mxu0 %v6882
    %7299 = vmatprep.subr.bf16.mxu0 %v6899
    %7300 = vmatpush1.bf16.msra.mxu0 %v6898
    %7301 = vmatprep.subr.bf16.mxu0 %v6915
    %7302 = vmatpush1.bf16.msra.mxu0 %v6914
    %7303 = vmatprep.subr.bf16.mxu0 %v6931
    %7304 = vmatpush1.bf16.msra.mxu0 %v6930
    %7305 = vmatprep.subr.bf16.mxu0 %v6947
    %7306 = vmatpush1.bf16.msra.mxu0 %v6946
    %7307 = vmatprep.subr.bf16.mxu0 %v6963
    %7308 = vmatpush1.bf16.msra.mxu0 %v6962
    %7309 = vmatprep.subr.bf16.mxu0 %v6979
    %7310 = vmatpush1.bf16.msra.mxu0 %v6978
    %7311 = vmatprep.subr.bf16.mxu0 %v6995
    %7312 = vmatpush1.bf16.msra.mxu0 %v6994
    %7313 = vmatprep.subr.bf16.mxu0 0
    %7314 = vmatpush1.bf16.msra.mxu0 0
    %7315 = vmatprep.subr.bf16.mxu0 0
    %7316 = vmatpush1.bf16.msra.mxu0 0
    %7317 = vmatprep.subr.bf16.mxu0 0
    %7318 = vmatpush1.bf16.msra.mxu0 0
    %7319 = vmatprep.subr.bf16.mxu0 0
    %7320 = vmatpush1.bf16.msra.mxu0 0
    %7321 = vmatprep.subr.bf16.mxu0 0
    %7322 = vmatpush1.bf16.msra.mxu0 0
    %7323 = vmatprep.subr.bf16.mxu0 0
    %7324 = vmatpush1.bf16.msra.mxu0 0
    %7325 = vmatprep.subr.bf16.mxu0 0
    %7326 = vmatpush1.bf16.msra.mxu0 0
    %7327 = vmatprep.subr.bf16.mxu0 0
    %7328 = vmatpush1.bf16.msra.mxu0 0
    %7329 = vmatprep.mubr.bf16.mxu0 0
    %7330 = vmatmul.mubr.bf16.gmra.mrb[0].mxu0 %v2022
    %v7331 = vpop.f32.mrb[0].mxu0
    %v7332 = vadd.f32 0.0, %v7331
    %v7333 = vpop.f32.mrb[0].mxu0
    %v7334 = vadd.f32 0.0, %v7333
    %v7335 = vpop.f32.mrb[0].mxu0
    %v7336 = vadd.f32 0.0, %v7335
    %v7337 = vpop.f32.mrb[0].mxu0
    %v7338 = vadd.f32 0.0, %v7337
    %7339 = vdwg.mxu0
    %7340 = vset.pattern.permute.xlu0 112
    %7341 = vperm.xlu0 %7340, %v2005
    %v7342 = vpop.permute.xlu0 %7341
    %7344 = vset.pattern.permute.xlu0 112
    %7345 = vperm.xlu0 %7344, %v2007
    %v7346 = vpop.permute.xlu0 %7345
    %v7348 = vmul.f32 %v7342, %v7031
    %v7349 = vmul.f32 %v7346, %v7035
    %v7350 = vadd.f32 %v6864, %v7348
    %v7351 = vadd.f32 %v6865, %v7349
    %7352 = vset.pattern.permute.xlu0 113
    %7353 = vperm.xlu0 %7352, %v2005
    %v7354 = vpop.permute.xlu0 %7353
    %7356 = vset.pattern.permute.xlu0 113
    %7357 = vperm.xlu0 %7356, %v2007
    %v7358 = vpop.permute.xlu0 %7357
    %v7360 = vmul.f32 %v7354, %v7033
    %v7361 = vmul.f32 %v7358, %v7037
    %v7362 = vadd.f32 %v7350, %v7360
    %v7363 = vadd.f32 %v7351, %v7361
    %7364 = vset.pattern.permute.xlu0 114
    %7365 = vperm.xlu0 %7364, %v2005
    %v7366 = vpop.permute.xlu0 %7365
    %7368 = vset.pattern.permute.xlu0 114
    %7369 = vperm.xlu0 %7368, %v2007
    %v7370 = vpop.permute.xlu0 %7369
    %v7372 = vmul.f32 %v7366, %v7074
    %v7373 = vmul.f32 %v7370, %v7078
    %v7374 = vadd.f32 %v7362, %v7372
    %v7375 = vadd.f32 %v7363, %v7373
    %7376 = vset.pattern.permute.xlu0 115
    %7377 = vperm.xlu0 %7376, %v2005
    %v7378 = vpop.permute.xlu0 %7377
    %7380 = vset.pattern.permute.xlu0 115
    %7381 = vperm.xlu0 %7380, %v2007
    %v7382 = vpop.permute.xlu0 %7381
    %v7384 = vmul.f32 %v7378, %v7076
    %v7385 = vmul.f32 %v7382, %v7080
    %v7386 = vadd.f32 %v7374, %v7384
    %v7387 = vadd.f32 %v7375, %v7385
    %7388 = vset.pattern.permute.xlu0 116
    %7389 = vperm.xlu0 %7388, %v2005
    %v7390 = vpop.permute.xlu0 %7389
    %7392 = vset.pattern.permute.xlu0 116
    %7393 = vperm.xlu0 %7392, %v2007
    %v7394 = vpop.permute.xlu0 %7393
    %v7396 = vmul.f32 %v7390, %v7117
    %v7397 = vmul.f32 %v7394, %v7121
    %v7398 = vadd.f32 %v7386, %v7396
    %v7399 = vadd.f32 %v7387, %v7397
    %7400 = vset.pattern.permute.xlu0 117
    %7401 = vperm.xlu0 %7400, %v2005
    %v7402 = vpop.permute.xlu0 %7401
    %7404 = vset.pattern.permute.xlu0 117
    %7405 = vperm.xlu0 %7404, %v2007
    %v7406 = vpop.permute.xlu0 %7405
    %v7408 = vmul.f32 %v7402, %v7119
    %v7409 = vmul.f32 %v7406, %v7123
    %v7410 = vadd.f32 %v7398, %v7408
    %v7411 = vadd.f32 %v7399, %v7409
    %7412 = vset.pattern.permute.xlu0 118
    %7413 = vperm.xlu0 %7412, %v2005
    %v7414 = vpop.permute.xlu0 %7413
    %7416 = vset.pattern.permute.xlu0 118
    %7417 = vperm.xlu0 %7416, %v2007
    %v7418 = vpop.permute.xlu0 %7417
    %v7420 = vmul.f32 %v7414, %v7160
    %v7421 = vmul.f32 %v7418, %v7164
    %v7422 = vadd.f32 %v7410, %v7420
    %v7423 = vadd.f32 %v7411, %v7421
    %7424 = vset.pattern.permute.xlu0 119
    %7425 = vperm.xlu0 %7424, %v2005
    %v7426 = vpop.permute.xlu0 %7425
    %7428 = vset.pattern.permute.xlu0 119
    %7429 = vperm.xlu0 %7428, %v2007
    %v7430 = vpop.permute.xlu0 %7429
    %v7432 = vmul.f32 %v7426, %v7162
    %v7433 = vmul.f32 %v7430, %v7166
    %v7434 = vadd.f32 %v7422, %v7432
    %v7435 = vadd.f32 %v7423, %v7433
    %7436 = vset.pattern.permute.xlu0 120
    %7437 = vperm.xlu0 %7436, %v2005
    %v7438 = vpop.permute.xlu0 %7437
    %7440 = vset.pattern.permute.xlu0 120
    %7441 = vperm.xlu0 %7440, %v2007
    %v7442 = vpop.permute.xlu0 %7441
    %v7444 = vmul.f32 %v7438, %v7203
    %v7445 = vmul.f32 %v7442, %v7207
    %v7446 = vadd.f32 %v7434, %v7444
    %v7447 = vadd.f32 %v7435, %v7445
    %7448 = vset.pattern.permute.xlu0 121
    %7449 = vperm.xlu0 %7448, %v2005
    %v7450 = vpop.permute.xlu0 %7449
    %7452 = vset.pattern.permute.xlu0 121
    %7453 = vperm.xlu0 %7452, %v2007
    %v7454 = vpop.permute.xlu0 %7453
    %v7456 = vmul.f32 %v7450, %v7205
    %v7457 = vmul.f32 %v7454, %v7209
    %v7458 = vadd.f32 %v7446, %v7456
    %v7459 = vadd.f32 %v7447, %v7457
    %7460 = vset.pattern.permute.xlu0 122
    %7461 = vperm.xlu0 %7460, %v2005
    %v7462 = vpop.permute.xlu0 %7461
    %7464 = vset.pattern.permute.xlu0 122
    %7465 = vperm.xlu0 %7464, %v2007
    %v7466 = vpop.permute.xlu0 %7465
    %v7468 = vmul.f32 %v7462, %v7246
    %v7469 = vmul.f32 %v7466, %v7250
    %v7470 = vadd.f32 %v7458, %v7468
    %v7471 = vadd.f32 %v7459, %v7469
    %7472 = vset.pattern.permute.xlu0 123
    %7473 = vperm.xlu0 %7472, %v2005
    %v7474 = vpop.permute.xlu0 %7473
    %7476 = vset.pattern.permute.xlu0 123
    %7477 = vperm.xlu0 %7476, %v2007
    %v7478 = vpop.permute.xlu0 %7477
    %v7480 = vmul.f32 %v7474, %v7248
    %v7481 = vmul.f32 %v7478, %v7252
    %v7482 = vadd.f32 %v7470, %v7480
    %v7483 = vadd.f32 %v7471, %v7481
    %7484 = vset.pattern.permute.xlu0 124
    %7485 = vperm.xlu0 %7484, %v2005
    %v7486 = vpop.permute.xlu0 %7485
    %7488 = vset.pattern.permute.xlu0 124
    %7489 = vperm.xlu0 %7488, %v2007
    %v7490 = vpop.permute.xlu0 %7489
    %v7492 = vmul.f32 %v7486, %v7289
    %v7493 = vmul.f32 %v7490, %v7293
    %v7494 = vadd.f32 %v7482, %v7492
    %v7495 = vadd.f32 %v7483, %v7493
    %7496 = vset.pattern.permute.xlu0 125
    %7497 = vperm.xlu0 %7496, %v2005
    %v7498 = vpop.permute.xlu0 %7497
    %7500 = vset.pattern.permute.xlu0 125
    %7501 = vperm.xlu0 %7500, %v2007
    %v7502 = vpop.permute.xlu0 %7501
    %v7504 = vmul.f32 %v7498, %v7291
    %v7505 = vmul.f32 %v7502, %v7295
    %v7506 = vadd.f32 %v7494, %v7504
    %v7507 = vadd.f32 %v7495, %v7505
    %7508 = vset.pattern.permute.xlu0 126
    %7509 = vperm.xlu0 %7508, %v2005
    %v7510 = vpop.permute.xlu0 %7509
    %7512 = vset.pattern.permute.xlu0 126
    %7513 = vperm.xlu0 %7512, %v2007
    %v7514 = vpop.permute.xlu0 %7513
    %v7516 = vmul.f32 %v7510, %v7332
    %v7517 = vmul.f32 %v7514, %v7336
    %v7518 = vadd.f32 %v7506, %v7516
    %v7519 = vadd.f32 %v7507, %v7517
    %7520 = vset.pattern.permute.xlu0 127
    %7521 = vperm.xlu0 %7520, %v2005
    %v7522 = vpop.permute.xlu0 %7521
    %7524 = vset.pattern.permute.xlu0 127
    %7525 = vperm.xlu0 %7524, %v2007
    %v7526 = vpop.permute.xlu0 %7525
    %v7528 = vmul.f32 %v7522, %v7334
    %v7529 = vmul.f32 %v7526, %v7338
    %v7530 = vadd.f32 %v7518, %v7528
    %v7531 = vadd.f32 %v7519, %v7529
    %v7532 = vxor.u32 %v7530, 2147483648
    %v7533 = vxor.u32 %v7531, 2147483648
    %v7534 = vmul.f32 %v7532, 1.442695
    %v7535 = vpow.pop %v7534
    %v7536 = vmul.f32 %v7533, 1.442695
    %v7537 = vpow.pop %v7536
    %v7538 = vadd.f32 %v7535, 1.0
    %v7539 = vadd.f32 %v7537, 1.0
    %v7540 = vrcp.pop %v7538
    %v7541 = vmul.f32 1.0, %v7540
    %v7542 = vrcp.pop %v7539
    %v7543 = vmul.f32 1.0, %v7542
    %s7544 = sld [smem:[#allocation4]]
    %v7545 = vstv %s7544
    %v7546 = vmul.f32 %v7545, %v7541
    %v7547 = vmul.f32 %v7545, %v7543
    %v7548 = vmul.f32 %v7546, %v279
    %v7549 = vmul.f32 %v7547, %v280
    %v7550 = vsub.f32 1.0, %v7541
    %v7551 = vsub.f32 1.0, %v7543
    %v7552 = vmul.f32 %v7550, %v281
    %v7553 = vmul.f32 %v7551, %v282
    %v7554 = vadd.f32 %v7548, %v7552
    %v7555 = vadd.f32 %v7549, %v7553
    %7556 = vst [vmem:[#allocation22] sm:$0xff] %v7554
    %7557 = vst [vmem:[#allocation22 + $0x8] sm:$0xff] %v7555
    // Predicated region
    $region86: #{tpu_custom_call.1} parent=1 // pred_check
      _
    $region87: #{tpu_custom_call.1} parent=1 // pred_check_branch
      %7559 = sbr.rel (0) target = $region89
    $region88: #{tpu_custom_call.1} parent=1 // pred_region
      %s7561 = ssub.s32 256, 256
      %7562 = vsyncadd [#allocation7], %s7561
      %s7563 = sshll.u32 [#allocation22], 4
      %s7564 = int_to_ptr.vmem [resolvable:$true] %s7563
      %7569 = dma.vmem_to_hbm [thread:$0]  %s7564, 256, %s12, [#allocation7], 128, 128, 8
    $region89: #{tpu_custom_call.1} parent=1 // pred_fallthru
      _
    // Predicated region
    $region90: #{tpu_custom_call.1} parent=1 // pred_check
      _
    $region91: #{tpu_custom_call.1} parent=1 // pred_check_branch
      %7571 = sbr.rel (0) target = $region93
    $region92: #{tpu_custom_call.1} parent=1 // pred_region
      %7572 = dma.done [#allocation7], 256
    $region93: #{tpu_custom_call.1} parent=1 // pred_fallthru
      _
    %7573 = vsyncpa [#allocation6], 1
    %7574 = vsyncpa [#allocation9], 1
    %7575 = vsyncpa [#allocation12], 1
    %7576 = vsyncpa [#allocation15], 1
    %7577 = vsyncpa [#allocation18], 1
    %7578 = vsyncpa [#allocation21], 1
    %7579 = vsyncpa [#allocation7], 1
  %7580 = vsyncmov [#allocation3]
  %s7581 = vpop.sfrf %7580
  %p7582 = scmp.eq.s32.totalorder %s7581, 0
  %p7583 = pneg %p7582
  %7585 = shalt.err (%p7583)
  %s7586 = scalar_lea.sflag [#allocation3], 1
  %7587 = vsyncmov %s7586
  %s7588 = vpop.sfrf %7587
  %p7589 = scmp.eq.s32.totalorder %s7588, 0
  %p7590 = pneg %p7589
  %7592 = shalt.err (%p7590)
  %s7593 = scalar_lea.sflag [#allocation3], 2
  %7594 = vsyncmov %s7593
  %s7595 = vpop.sfrf %7594
  %p7596 = scmp.eq.s32.totalorder %s7595, 0
  %p7597 = pneg %p7596
  %7599 = shalt.err (%p7597)
  %s7600 = scalar_lea.sflag [#allocation3], 3
  %7601 = vsyncmov %s7600
  %s7602 = vpop.sfrf %7601
  %p7603 = scmp.eq.s32.totalorder %s7602, 0
  %p7604 = pneg %p7603
  %7606 = shalt.err (%p7604)

</llo_original>
